<compile_context>
chip_gen: v5e
topology: v5e:2x2
jax: 0.10.0
libtpu: 0.0.40
codegen_flags: <defaults>
</compile_context>

<pallas_src>
import math

import numpy as np
import jax
import jax.numpy as jnp
from jax.experimental import pallas as pl
from jax.experimental.pallas import tpu as pltpu

_INV_SQRT2 = 1.0 / math.sqrt(2.0)


# ----------------------------- in-kernel helpers -----------------------------

def _erf(x):
    """erf via Abramowitz & Stegun 7.1.26 (max abs err ~1.5e-7, fine for f32)."""
    a1, a2, a3, a4, a5 = 0.254829592, -0.284496736, 1.421413741, -1.453152027, 1.061405429
    p = 0.3275911
    sgn = jnp.where(x < 0.0, -1.0, 1.0)
    ax = jnp.abs(x)
    t = 1.0 / (1.0 + p * ax)
    poly = ((((a5 * t + a4) * t + a3) * t + a2) * t + a1) * t
    return sgn * (1.0 - poly * jnp.exp(-ax * ax))


# --------------------------------- kernel ------------------------------------

def make_ensemble_kernel(n_layers):
    """Fused per-net forward. One grid step == one net of the ensemble.

    Ref order: x, expand(B*T,B), reduce(B,B*T),
               (Wt, b) for each of the n_layers layers,
               uniforms for each of the n_layers-1 stochastic layers,
               out(1, B, 1).
    """
    n_stoch = n_layers - 1

    def kernel(*refs):
        x_ref, e_ref, r_ref = refs[0], refs[1], refs[2]
        wb_refs = refs[3:3 + 2 * n_layers]
        u_refs = refs[3 + 2 * n_layers:3 + 2 * n_layers + n_stoch]
        out_ref = refs[3 + 2 * n_layers + n_stoch]

        x = x_ref[...]                       # (B, D0)
        expand = e_ref[...]                  # (B*T, B)  0/1 row-replication matrix
        reduce_avg = r_ref[...]              # (B, B*T)  (1/T) segment-mean matrix

        # ---- input layer: erf((x W0^T + b0) / (sqrt(2) * ||x||_row)) ----
        w0t = wb_refs[0][0]                  # (D0, H1)
        b0 = wb_refs[1][0]                   # (1, H1)
        lin0 = jnp.dot(x, w0t, preferred_element_type=jnp.float32) + b0
        inv_norm = jax.lax.rsqrt(jnp.sum(x * x, axis=1, keepdims=True))  # 1/||x||
        h = _erf(lin0 * (inv_norm * _INV_SQRT2))                         # (B, H1)

        # ---- stochastic (hidden/output) layers: MC over T ±1 samples ----
        for li in range(1, n_layers):
            wt = wb_refs[2 * li][0]          # (Din, Dout)
            bias = wb_refs[2 * li + 1][0]    # (1, Dout)
            u = u_refs[li - 1][0]            # (B*T, Din) uniforms in [0, 1)
            din = h.shape[1]

            proba = 0.5 + 0.5 * h            # (B, Din), P(s = +1)
            # replicate each batch row T times: (B*T, B) @ (B, Din)
            proba_bt = jnp.dot(expand, proba, preferred_element_type=jnp.float32)
            s = jnp.where(u < proba_bt, 1.0, -1.0)                       # ±1 samples
            lin = jnp.dot(s, wt, preferred_element_type=jnp.float32) + bias
            e = _erf(lin * (1.0 / math.sqrt(2.0 * din)))                 # (B*T, Dout)
            # mean over the T samples of each batch row: (B, B*T) @ (B*T, Dout)
            h = jnp.dot(reduce_avg, e, preferred_element_type=jnp.float32)

        out_ref[0] = h                       # (B, 1)

    return kernel


# --------------------------------- wrappers ----------------------------------

def _make_expand_reduce(batch, sample_size):
    """Host-side 0/1 replication (B*T, B) and (1/T) segment-mean (B, B*T) mats."""
    rows = np.arange(batch * sample_size)[:, None] // sample_size      # (B*T, 1)
    cols = np.arange(batch)[None, :]                                   # (1, B)
    expand = (rows == cols).astype(np.float32)                         # (B*T, B)
    reduce_avg = expand.T / float(sample_size)                         # (B, B*T)
    return jnp.asarray(expand), jnp.asarray(reduce_avg)


def pbgnet_ensemble_forward(x, wts, bs, uniforms, sample_size):
    """Single fused pallas_call over the whole ensemble.

    wts[l]      : (n_nets, Din_l, Dout_l)  pre-transposed stacked weights
    bs[l]       : (n_nets, 1, Dout_l)      stacked biases
    uniforms[k] : (n_nets, B*T, Din)       uniforms for stochastic layer k
    """
    n_nets = wts[0].shape[0]
    n_layers = len(wts)
    batch = x.shape[0]

    expand, reduce_avg = _make_expand_reduce(batch, sample_size)

    in_specs = [
        pl.BlockSpec(x.shape, lambda i: (0, 0)),
        pl.BlockSpec(expand.shape, lambda i: (0, 0)),
        pl.BlockSpec(reduce_avg.shape, lambda i: (0, 0)),
    ]
    args = [x, expand, reduce_avg]
    for wt, b in zip(wts, bs):
        in_specs.append(pl.BlockSpec((1,) + wt.shape[1:], lambda i: (i, 0, 0)))
        in_specs.append(pl.BlockSpec((1,) + b.shape[1:], lambda i: (i, 0, 0)))
        args.extend([wt, b])
    for u in uniforms:
        in_specs.append(pl.BlockSpec((1,) + u.shape[1:], lambda i: (i, 0, 0)))
        args.append(u)

    # Only pass TPU compiler params when actually lowering to TPU (the CPU
    # interpret path has no use for them).
    compiler_params = None
    if jax.default_backend() == "tpu":
        compiler_params = pltpu.CompilerParams(dimension_semantics=("parallel",))

    net_outs = pl.pallas_call(
        make_ensemble_kernel(n_layers),
        out_shape=jax.ShapeDtypeStruct((n_nets, batch, 1), jnp.float32),
        grid=(n_nets,),
        in_specs=in_specs,
        out_specs=pl.BlockSpec((1, batch, 1), lambda i: (i, 0, 0)),
        compiler_params=compiler_params,
    )(*args)

    retval = jnp.sign(jnp.sum(net_outs, axis=0))        # (B, 1) majority vote
    outputs = [net_outs[i] for i in range(n_nets)]      # per-net (B, 1) outputs
    return retval, outputs


# ------------------------------ model (glue) ----------------------------------

def init_pbgnet_params(key, input_size, hidden_layers):
    """Mirrors PBGNet.init_weights: xavier_normal weights, zero bias."""
    dims = [input_size] + list(hidden_layers) + [1]
    params = []
    for din, dout in zip(dims[:-1], dims[1:]):
        key, k = jax.random.split(key)
        std = math.sqrt(2.0 / (din + dout))              # xavier_normal, gain=1
        w = std * jax.random.normal(k, (dout, din), jnp.float32)
        b = jnp.zeros((dout,), jnp.float32)
        params.append((w, b))
    return params


def stack_ensemble_params(nets_params):
    """Hoisted once: stack per-layer (W.T, b[None, :]) across the ensemble."""
    n_layers = len(nets_params[0])
    wts, bs = [], []
    for li in range(n_layers):
        wts.append(jnp.stack([p[li][0].T for p in nets_params]))           # (N, Din, Dout)
        bs.append(jnp.stack([p[li][1].reshape(1, -1) for p in nets_params]))  # (N, 1, Dout)
    return wts, bs


def draw_uniforms(key, n_nets, batch, sample_size, stoch_in_dims):
    """Independent uniforms per (net, stochastic layer); replaces torch.bernoulli."""
    uniforms = []
    for din in stoch_in_dims:
        key, k = jax.random.split(key)
        uniforms.append(
            jax.random.uniform(k, (n_nets, batch * sample_size, din), jnp.float32))
    return uniforms


def update_disagreement(outputs):
    """Python-side bookkeeping mirroring PBGNet_Ensemble.update_disagreement."""
    outs = [np.asarray(o) for o in outputs]
    n = len(outs)
    cur = []
    for i in range(n):
        for j in range(i + 1, n):
            cur.append(int(np.sum(np.sign(outs[j]) != np.sign(outs[i]))))
    return cur, outs[0].shape[0]


# ----------------------------------- main --------------------------------------

if __name__ == "__main__":
    key = jax.random.PRNGKey(0)

    batch = 8
    input_size = 16
    hidden_layers = [32, 32]
    sample_size = 64
    n_nets = 3

    key, kx = jax.random.split(key)
    x = jax.random.normal(kx, (batch, input_size), jnp.float32)
    # TODO(synk): zero input rows would give Inf/NaN (divide by ||x||), same as
    # the PyTorch original; inputs here are random normal so never zero.

    nets_params = []
    for _ in range(n_nets):
        key, kn = jax.random.split(key)
        nets_params.append(init_pbgnet_params(kn, input_size, hidden_layers))

    wts, bs = stack_ensemble_params(nets_params)

    key, ku = jax.random.split(key)
    uniforms = draw_uniforms(ku, n_nets, batch, sample_size,
                             stoch_in_dims=hidden_layers)

    retval, outputs = pbgnet_ensemble_forward(x, wts, bs, uniforms, sample_size)
    retval = jax.block_until_ready(retval)

    disagreements, sample_count = update_disagreement(outputs)

    assert retval.shape == (batch, 1)
    assert retval.dtype == jnp.float32
    assert bool(jnp.all(jnp.abs(retval) <= 1.0))
    assert len(outputs) == n_nets and outputs[0].shape == (batch, 1)
    assert sample_count == batch and len(disagreements) == n_nets * (n_nets - 1) // 2
    print("KERNEL_OK")
</pallas_src>

<mosaic_0001>
module attributes {stable_mosaic.version = 11 : i64} {
  func.func @kernel(%arg0: i32, %arg1: memref<8x16xf32, #tpu.memory_space<vmem>>, %arg2: memref<512x8xf32, #tpu.memory_space<vmem>>, %arg3: memref<8x512xf32, #tpu.memory_space<vmem>>, %arg4: memref<1x16x32xf32, #tpu.memory_space<vmem>>, %arg5: memref<1x1x32xf32, #tpu.memory_space<vmem>>, %arg6: memref<1x32x32xf32, #tpu.memory_space<vmem>>, %arg7: memref<1x1x32xf32, #tpu.memory_space<vmem>>, %arg8: memref<1x32x1xf32, #tpu.memory_space<vmem>>, %arg9: memref<1x1x1xf32, #tpu.memory_space<vmem>>, %arg10: memref<1x512x32xf32, #tpu.memory_space<vmem>>, %arg11: memref<1x512x32xf32, #tpu.memory_space<vmem>>, %arg12: memref<1x8x1xf32, #tpu.memory_space<vmem>>) attributes {dimension_semantics = [#tpu.dimension_semantics<arbitrary>], iteration_bounds = array<i64: 3>, scalar_prefetch = 0 : i64, scratch_operands = 0 : i64, tpu.core_type = #tpu.core_type<tc>, window_params = [{pipeline_mode = #tpu.pipeline_mode<synchronous>, transform_indices = @transform_0, window_bounds = array<i64: 8, 16>}, {pipeline_mode = #tpu.pipeline_mode<synchronous>, transform_indices = @transform_1, window_bounds = array<i64: 512, 8>}, {pipeline_mode = #tpu.pipeline_mode<synchronous>, transform_indices = @transform_2, window_bounds = array<i64: 8, 512>}, {transform_indices = @transform_3, window_bounds = array<i64: 1, 16, 32>}, {transform_indices = @transform_4, window_bounds = array<i64: 1, 1, 32>}, {transform_indices = @transform_5, window_bounds = array<i64: 1, 32, 32>}, {transform_indices = @transform_6, window_bounds = array<i64: 1, 1, 32>}, {transform_indices = @transform_7, window_bounds = array<i64: 1, 32, 1>}, {transform_indices = @transform_8, window_bounds = array<i64: 1, 1, 1>}, {transform_indices = @transform_9, window_bounds = array<i64: 1, 512, 32>}, {transform_indices = @transform_10, window_bounds = array<i64: 1, 512, 32>}, {transform_indices = @transform_11, window_bounds = array<i64: 1, 8, 1>}]} {
    %c0 = arith.constant 0 : index
    %c0_0 = arith.constant 0 : index
    %0 = vector.load %arg1[%c0, %c0_0] : memref<8x16xf32, #tpu.memory_space<vmem>>, vector<8x16xf32>
    %c0_1 = arith.constant 0 : index
    %c0_2 = arith.constant 0 : index
    %1 = vector.load %arg2[%c0_1, %c0_2] : memref<512x8xf32, #tpu.memory_space<vmem>>, vector<512x8xf32>
    %c0_3 = arith.constant 0 : index
    %c0_4 = arith.constant 0 : index
    %2 = vector.load %arg3[%c0_3, %c0_4] : memref<8x512xf32, #tpu.memory_space<vmem>>, vector<8x512xf32>
    %c0_5 = arith.constant 0 : index
    %c0_6 = arith.constant 0 : index
    %c0_7 = arith.constant 0 : index
    %3 = vector.load %arg4[%c0_5, %c0_6, %c0_7] : memref<1x16x32xf32, #tpu.memory_space<vmem>>, vector<1x16x32xf32>
    %4 = vector.shape_cast %3 : vector<1x16x32xf32> to vector<16x32xf32>
    %c0_8 = arith.constant 0 : index
    %c0_9 = arith.constant 0 : index
    %c0_10 = arith.constant 0 : index
    %5 = vector.load %arg5[%c0_8, %c0_9, %c0_10] : memref<1x1x32xf32, #tpu.memory_space<vmem>>, vector<1x1x32xf32>
    %6 = vector.shape_cast %5 : vector<1x1x32xf32> to vector<1x32xf32>
    %cst = arith.constant dense<0.000000e+00> : vector<8x32xf32>
    %7 = tpu.matmul %0, %4, %cst {dimension_numbers = #tpu.dot_dimension_numbers<[1], [0], [0], [1], [0, 0, 1, 1], [], []>} : vector<8x16xf32>, vector<16x32xf32>, vector<8x32xf32> -> vector<8x32xf32>
    %8 = vector.broadcast %6 : vector<1x32xf32> to vector<8x32xf32>
    %9 = arith.addf %7, %8 : vector<8x32xf32>
    %10 = arith.mulf %0, %0 : vector<8x16xf32>
    %cst_11 = arith.constant dense<0.000000e+00> : vector<8xf32>
    %11 = vector.multi_reduction <add>, %10, %cst_11 [1] : vector<8x16xf32> to vector<8xf32>
    %12 = vector.shape_cast %11 : vector<8xf32> to vector<8x1xf32>
    %13 = math.rsqrt %12 : vector<8x1xf32>
    %cst_12 = arith.constant 0.707106769 : f32
    %14 = vector.broadcast %cst_12 : f32 to vector<8x1xf32>
    %15 = arith.mulf %13, %14 : vector<8x1xf32>
    %16 = vector.broadcast %15 : vector<8x1xf32> to vector<8x32xf32>
    %17 = arith.mulf %9, %16 : vector<8x32xf32>
    %cst_13 = arith.constant 0.000000e+00 : f32
    %18 = vector.broadcast %cst_13 : f32 to vector<8x32xf32>
    %19 = arith.cmpf olt, %17, %18 : vector<8x32xf32>
    %cst_14 = arith.constant -1.000000e+00 : f32
    %cst_15 = arith.constant 1.000000e+00 : f32
    %20 = vector.broadcast %cst_14 : f32 to vector<8x32xf32>
    %21 = vector.broadcast %cst_15 : f32 to vector<8x32xf32>
    %22 = arith.select %19, %20, %21 : vector<8x32xi1>, vector<8x32xf32>
    %23 = math.absf %17 : vector<8x32xf32>
    %cst_16 = arith.constant 0.327591091 : f32
    %24 = vector.broadcast %cst_16 : f32 to vector<8x32xf32>
    %25 = arith.mulf %24, %23 : vector<8x32xf32>
    %cst_17 = arith.constant 1.000000e+00 : f32
    %26 = vector.broadcast %cst_17 : f32 to vector<8x32xf32>
    %27 = arith.addf %26, %25 : vector<8x32xf32>
    %cst_18 = arith.constant 1.000000e+00 : f32
    %28 = vector.broadcast %cst_18 : f32 to vector<8x32xf32>
    %29 = arith.divf %28, %27 : vector<8x32xf32>
    %cst_19 = arith.constant 1.06140542 : f32
    %30 = vector.broadcast %cst_19 : f32 to vector<8x32xf32>
    %31 = arith.mulf %30, %29 : vector<8x32xf32>
    %cst_20 = arith.constant -1.45315206 : f32
    %32 = vector.broadcast %cst_20 : f32 to vector<8x32xf32>
    %33 = arith.addf %31, %32 : vector<8x32xf32>
    %34 = arith.mulf %33, %29 : vector<8x32xf32>
    %cst_21 = arith.constant 1.42141378 : f32
    %35 = vector.broadcast %cst_21 : f32 to vector<8x32xf32>
    %36 = arith.addf %34, %35 : vector<8x32xf32>
    %37 = arith.mulf %36, %29 : vector<8x32xf32>
    %cst_22 = arith.constant -0.284496725 : f32
    %38 = vector.broadcast %cst_22 : f32 to vector<8x32xf32>
    %39 = arith.addf %37, %38 : vector<8x32xf32>
    %40 = arith.mulf %39, %29 : vector<8x32xf32>
    %cst_23 = arith.constant 0.254829586 : f32
    %41 = vector.broadcast %cst_23 : f32 to vector<8x32xf32>
    %42 = arith.addf %40, %41 : vector<8x32xf32>
    %43 = arith.mulf %42, %29 : vector<8x32xf32>
    %cst_24 = arith.constant 0.000000e+00 : f32
    %44 = vector.broadcast %cst_24 : f32 to vector<8x32xf32>
    %45 = arith.subf %44, %23 : vector<8x32xf32>
    %46 = arith.mulf %45, %23 : vector<8x32xf32>
    %47 = math.exp %46 : vector<8x32xf32>
    %48 = arith.mulf %43, %47 : vector<8x32xf32>
    %cst_25 = arith.constant 1.000000e+00 : f32
    %49 = vector.broadcast %cst_25 : f32 to vector<8x32xf32>
    %50 = arith.subf %49, %48 : vector<8x32xf32>
    %51 = arith.mulf %22, %50 : vector<8x32xf32>
    %c0_26 = arith.constant 0 : index
    %c0_27 = arith.constant 0 : index
    %c0_28 = arith.constant 0 : index
    %52 = vector.load %arg6[%c0_26, %c0_27, %c0_28] : memref<1x32x32xf32, #tpu.memory_space<vmem>>, vector<1x32x32xf32>
    %53 = vector.shape_cast %52 : vector<1x32x32xf32> to vector<32x32xf32>
    %c0_29 = arith.constant 0 : index
    %c0_30 = arith.constant 0 : index
    %c0_31 = arith.constant 0 : index
    %54 = vector.load %arg7[%c0_29, %c0_30, %c0_31] : memref<1x1x32xf32, #tpu.memory_space<vmem>>, vector<1x1x32xf32>
    %55 = vector.shape_cast %54 : vector<1x1x32xf32> to vector<1x32xf32>
    %c0_32 = arith.constant 0 : index
    %c0_33 = arith.constant 0 : index
    %c0_34 = arith.constant 0 : index
    %56 = vector.load %arg10[%c0_32, %c0_33, %c0_34] : memref<1x512x32xf32, #tpu.memory_space<vmem>>, vector<1x512x32xf32>
    %57 = vector.shape_cast %56 : vector<1x512x32xf32> to vector<512x32xf32>
    %cst_35 = arith.constant 5.000000e-01 : f32
    %58 = vector.broadcast %cst_35 : f32 to vector<8x32xf32>
    %59 = arith.mulf %58, %51 : vector<8x32xf32>
    %cst_36 = arith.constant 5.000000e-01 : f32
    %60 = vector.broadcast %cst_36 : f32 to vector<8x32xf32>
    %61 = arith.addf %60, %59 : vector<8x32xf32>
    %cst_37 = arith.constant dense<0.000000e+00> : vector<512x32xf32>
    %62 = tpu.matmul %1, %61, %cst_37 {dimension_numbers = #tpu.dot_dimension_numbers<[1], [0], [0], [1], [0, 0, 1, 1], [], []>} : vector<512x8xf32>, vector<8x32xf32>, vector<512x32xf32> -> vector<512x32xf32>
    %63 = arith.cmpf olt, %57, %62 : vector<512x32xf32>
    %cst_38 = arith.constant 1.000000e+00 : f32
    %cst_39 = arith.constant -1.000000e+00 : f32
    %64 = vector.broadcast %cst_38 : f32 to vector<512x32xf32>
    %65 = vector.broadcast %cst_39 : f32 to vector<512x32xf32>
    %66 = arith.select %63, %64, %65 : vector<512x32xi1>, vector<512x32xf32>
    %cst_40 = arith.constant dense<0.000000e+00> : vector<512x32xf32>
    %67 = tpu.matmul %66, %53, %cst_40 {dimension_numbers = #tpu.dot_dimension_numbers<[1], [0], [0], [1], [0, 0, 1, 1], [], []>} : vector<512x32xf32>, vector<32x32xf32>, vector<512x32xf32> -> vector<512x32xf32>
    %68 = vector.broadcast %55 : vector<1x32xf32> to vector<512x32xf32>
    %69 = arith.addf %67, %68 : vector<512x32xf32>
    %cst_41 = arith.constant 1.250000e-01 : f32
    %70 = vector.broadcast %cst_41 : f32 to vector<512x32xf32>
    %71 = arith.mulf %69, %70 : vector<512x32xf32>
    %cst_42 = arith.constant 0.000000e+00 : f32
    %72 = vector.broadcast %cst_42 : f32 to vector<512x32xf32>
    %73 = arith.cmpf olt, %71, %72 : vector<512x32xf32>
    %cst_43 = arith.constant -1.000000e+00 : f32
    %cst_44 = arith.constant 1.000000e+00 : f32
    %74 = vector.broadcast %cst_43 : f32 to vector<512x32xf32>
    %75 = vector.broadcast %cst_44 : f32 to vector<512x32xf32>
    %76 = arith.select %73, %74, %75 : vector<512x32xi1>, vector<512x32xf32>
    %77 = math.absf %71 : vector<512x32xf32>
    %cst_45 = arith.constant 0.327591091 : f32
    %78 = vector.broadcast %cst_45 : f32 to vector<512x32xf32>
    %79 = arith.mulf %78, %77 : vector<512x32xf32>
    %cst_46 = arith.constant 1.000000e+00 : f32
    %80 = vector.broadcast %cst_46 : f32 to vector<512x32xf32>
    %81 = arith.addf %80, %79 : vector<512x32xf32>
    %cst_47 = arith.constant 1.000000e+00 : f32
    %82 = vector.broadcast %cst_47 : f32 to vector<512x32xf32>
    %83 = arith.divf %82, %81 : vector<512x32xf32>
    %cst_48 = arith.constant 1.06140542 : f32
    %84 = vector.broadcast %cst_48 : f32 to vector<512x32xf32>
    %85 = arith.mulf %84, %83 : vector<512x32xf32>
    %cst_49 = arith.constant -1.45315206 : f32
    %86 = vector.broadcast %cst_49 : f32 to vector<512x32xf32>
    %87 = arith.addf %85, %86 : vector<512x32xf32>
    %88 = arith.mulf %87, %83 : vector<512x32xf32>
    %cst_50 = arith.constant 1.42141378 : f32
    %89 = vector.broadcast %cst_50 : f32 to vector<512x32xf32>
    %90 = arith.addf %88, %89 : vector<512x32xf32>
    %91 = arith.mulf %90, %83 : vector<512x32xf32>
    %cst_51 = arith.constant -0.284496725 : f32
    %92 = vector.broadcast %cst_51 : f32 to vector<512x32xf32>
    %93 = arith.addf %91, %92 : vector<512x32xf32>
    %94 = arith.mulf %93, %83 : vector<512x32xf32>
    %cst_52 = arith.constant 0.254829586 : f32
    %95 = vector.broadcast %cst_52 : f32 to vector<512x32xf32>
    %96 = arith.addf %94, %95 : vector<512x32xf32>
    %97 = arith.mulf %96, %83 : vector<512x32xf32>
    %cst_53 = arith.constant 0.000000e+00 : f32
    %98 = vector.broadcast %cst_53 : f32 to vector<512x32xf32>
    %99 = arith.subf %98, %77 : vector<512x32xf32>
    %100 = arith.mulf %99, %77 : vector<512x32xf32>
    %101 = math.exp %100 : vector<512x32xf32>
    %102 = arith.mulf %97, %101 : vector<512x32xf32>
    %cst_54 = arith.constant 1.000000e+00 : f32
    %103 = vector.broadcast %cst_54 : f32 to vector<512x32xf32>
    %104 = arith.subf %103, %102 : vector<512x32xf32>
    %105 = arith.mulf %76, %104 : vector<512x32xf32>
    %cst_55 = arith.constant dense<0.000000e+00> : vector<8x32xf32>
    %106 = tpu.matmul %2, %105, %cst_55 {dimension_numbers = #tpu.dot_dimension_numbers<[1], [0], [0], [1], [0, 0, 1, 1], [], []>} : vector<8x512xf32>, vector<512x32xf32>, vector<8x32xf32> -> vector<8x32xf32>
    %c0_56 = arith.constant 0 : index
    %c0_57 = arith.constant 0 : index
    %c0_58 = arith.constant 0 : index
    %107 = vector.load %arg8[%c0_56, %c0_57, %c0_58] : memref<1x32x1xf32, #tpu.memory_space<vmem>>, vector<1x32x1xf32>
    %108 = vector.shape_cast %107 : vector<1x32x1xf32> to vector<32x1xf32>
    %c0_59 = arith.constant 0 : index
    %c0_60 = arith.constant 0 : index
    %c0_61 = arith.constant 0 : index
    %109 = vector.load %arg9[%c0_59, %c0_60, %c0_61] : memref<1x1x1xf32, #tpu.memory_space<vmem>>, vector<1x1x1xf32>
    %110 = vector.shape_cast %109 : vector<1x1x1xf32> to vector<1x1xf32>
    %c0_62 = arith.constant 0 : index
    %c0_63 = arith.constant 0 : index
    %c0_64 = arith.constant 0 : index
    %111 = vector.load %arg11[%c0_62, %c0_63, %c0_64] : memref<1x512x32xf32, #tpu.memory_space<vmem>>, vector<1x512x32xf32>
    %112 = vector.shape_cast %111 : vector<1x512x32xf32> to vector<512x32xf32>
    %cst_65 = arith.constant 5.000000e-01 : f32
    %113 = vector.broadcast %cst_65 : f32 to vector<8x32xf32>
    %114 = arith.mulf %113, %106 : vector<8x32xf32>
    %cst_66 = arith.constant 5.000000e-01 : f32
    %115 = vector.broadcast %cst_66 : f32 to vector<8x32xf32>
    %116 = arith.addf %115, %114 : vector<8x32xf32>
    %cst_67 = arith.constant dense<0.000000e+00> : vector<512x32xf32>
    %117 = tpu.matmul %1, %116, %cst_67 {dimension_numbers = #tpu.dot_dimension_numbers<[1], [0], [0], [1], [0, 0, 1, 1], [], []>} : vector<512x8xf32>, vector<8x32xf32>, vector<512x32xf32> -> vector<512x32xf32>
    %118 = arith.cmpf olt, %112, %117 : vector<512x32xf32>
    %cst_68 = arith.constant 1.000000e+00 : f32
    %cst_69 = arith.constant -1.000000e+00 : f32
    %119 = vector.broadcast %cst_68 : f32 to vector<512x32xf32>
    %120 = vector.broadcast %cst_69 : f32 to vector<512x32xf32>
    %121 = arith.select %118, %119, %120 : vector<512x32xi1>, vector<512x32xf32>
    %cst_70 = arith.constant dense<0.000000e+00> : vector<512x1xf32>
    %122 = tpu.matmul %121, %108, %cst_70 {dimension_numbers = #tpu.dot_dimension_numbers<[1], [0], [0], [1], [0, 0, 1, 1], [], []>} : vector<512x32xf32>, vector<32x1xf32>, vector<512x1xf32> -> vector<512x1xf32>
    %123 = vector.broadcast %110 : vector<1x1xf32> to vector<512x1xf32>
    %124 = arith.addf %122, %123 : vector<512x1xf32>
    %cst_71 = arith.constant 1.250000e-01 : f32
    %125 = vector.broadcast %cst_71 : f32 to vector<512x1xf32>
    %126 = arith.mulf %124, %125 : vector<512x1xf32>
    %cst_72 = arith.constant 0.000000e+00 : f32
    %127 = vector.broadcast %cst_72 : f32 to vector<512x1xf32>
    %128 = arith.cmpf olt, %126, %127 : vector<512x1xf32>
    %cst_73 = arith.constant -1.000000e+00 : f32
    %cst_74 = arith.constant 1.000000e+00 : f32
    %129 = vector.broadcast %cst_73 : f32 to vector<512x1xf32>
    %130 = vector.broadcast %cst_74 : f32 to vector<512x1xf32>
    %131 = arith.select %128, %129, %130 : vector<512x1xi1>, vector<512x1xf32>
    %132 = math.absf %126 : vector<512x1xf32>
    %cst_75 = arith.constant 0.327591091 : f32
    %133 = vector.broadcast %cst_75 : f32 to vector<512x1xf32>
    %134 = arith.mulf %133, %132 : vector<512x1xf32>
    %cst_76 = arith.constant 1.000000e+00 : f32
    %135 = vector.broadcast %cst_76 : f32 to vector<512x1xf32>
    %136 = arith.addf %135, %134 : vector<512x1xf32>
    %cst_77 = arith.constant 1.000000e+00 : f32
    %137 = vector.broadcast %cst_77 : f32 to vector<512x1xf32>
    %138 = arith.divf %137, %136 : vector<512x1xf32>
    %cst_78 = arith.constant 1.06140542 : f32
    %139 = vector.broadcast %cst_78 : f32 to vector<512x1xf32>
    %140 = arith.mulf %139, %138 : vector<512x1xf32>
    %cst_79 = arith.constant -1.45315206 : f32
    %141 = vector.broadcast %cst_79 : f32 to vector<512x1xf32>
    %142 = arith.addf %140, %141 : vector<512x1xf32>
    %143 = arith.mulf %142, %138 : vector<512x1xf32>
    %cst_80 = arith.constant 1.42141378 : f32
    %144 = vector.broadcast %cst_80 : f32 to vector<512x1xf32>
    %145 = arith.addf %143, %144 : vector<512x1xf32>
    %146 = arith.mulf %145, %138 : vector<512x1xf32>
    %cst_81 = arith.constant -0.284496725 : f32
    %147 = vector.broadcast %cst_81 : f32 to vector<512x1xf32>
    %148 = arith.addf %146, %147 : vector<512x1xf32>
    %149 = arith.mulf %148, %138 : vector<512x1xf32>
    %cst_82 = arith.constant 0.254829586 : f32
    %150 = vector.broadcast %cst_82 : f32 to vector<512x1xf32>
    %151 = arith.addf %149, %150 : vector<512x1xf32>
    %152 = arith.mulf %151, %138 : vector<512x1xf32>
    %cst_83 = arith.constant 0.000000e+00 : f32
    %153 = vector.broadcast %cst_83 : f32 to vector<512x1xf32>
    %154 = arith.subf %153, %132 : vector<512x1xf32>
    %155 = arith.mulf %154, %132 : vector<512x1xf32>
    %156 = math.exp %155 : vector<512x1xf32>
    %157 = arith.mulf %152, %156 : vector<512x1xf32>
    %cst_84 = arith.constant 1.000000e+00 : f32
    %158 = vector.broadcast %cst_84 : f32 to vector<512x1xf32>
    %159 = arith.subf %158, %157 : vector<512x1xf32>
    %160 = arith.mulf %131, %159 : vector<512x1xf32>
    %cst_85 = arith.constant dense<0.000000e+00> : vector<8x1xf32>
    %161 = tpu.matmul %2, %160, %cst_85 {dimension_numbers = #tpu.dot_dimension_numbers<[1], [0], [0], [1], [0, 0, 1, 1], [], []>} : vector<8x512xf32>, vector<512x1xf32>, vector<8x1xf32> -> vector<8x1xf32>
    %c0_86 = arith.constant 0 : index
    %c0_87 = arith.constant 0 : index
    %c0_88 = arith.constant 0 : index
    %162 = vector.load %arg12[%c0_86, %c0_87, %c0_88] : memref<1x8x1xf32, #tpu.memory_space<vmem>>, vector<1x8x1xf32>
    %163 = vector.shape_cast %162 : vector<1x8x1xf32> to vector<8x1xf32>
    %164 = vector.shape_cast %161 : vector<8x1xf32> to vector<1x8x1xf32>
    tpu.vector_store %arg12[%c0_86, %c0_87, %c0_88], %164 {strides = array<i32>} : memref<1x8x1xf32, #tpu.memory_space<vmem>>, vector<1x8x1xf32>,
    return
  }
  func.func @transform_0(%arg0: i32) -> (i32, i32) {
    %c0_i32 = arith.constant 0 : i32
    %c0_i32_0 = arith.constant 0 : i32
    %c0_i32_1 = arith.constant 0 : i32
    return %c0_i32, %c0_i32_0 : i32, i32
  }
  func.func @transform_1(%arg0: i32) -> (i32, i32) {
    %c0_i32 = arith.constant 0 : i32
    %c0_i32_0 = arith.constant 0 : i32
    %c0_i32_1 = arith.constant 0 : i32
    return %c0_i32, %c0_i32_0 : i32, i32
  }
  func.func @transform_2(%arg0: i32) -> (i32, i32) {
    %c0_i32 = arith.constant 0 : i32
    %c0_i32_0 = arith.constant 0 : i32
    %c0_i32_1 = arith.constant 0 : i32
    return %c0_i32, %c0_i32_0 : i32, i32
  }
  func.func @transform_3(%arg0: i32) -> (i32, i32, i32) {
    %c0_i32 = arith.constant 0 : i32
    %c0_i32_0 = arith.constant 0 : i32
    %c0_i32_1 = arith.constant 0 : i32
    return %arg0, %c0_i32, %c0_i32_0 : i32, i32, i32
  }
  func.func @transform_4(%arg0: i32) -> (i32, i32, i32) {
    %c0_i32 = arith.constant 0 : i32
    %c0_i32_0 = arith.constant 0 : i32
    %c0_i32_1 = arith.constant 0 : i32
    return %arg0, %c0_i32, %c0_i32_0 : i32, i32, i32
  }
  func.func @transform_5(%arg0: i32) -> (i32, i32, i32) {
    %c0_i32 = arith.constant 0 : i32
    %c0_i32_0 = arith.constant 0 : i32
    %c0_i32_1 = arith.constant 0 : i32
    return %arg0, %c0_i32, %c0_i32_0 : i32, i32, i32
  }
  func.func @transform_6(%arg0: i32) -> (i32, i32, i32) {
    %c0_i32 = arith.constant 0 : i32
    %c0_i32_0 = arith.constant 0 : i32
    %c0_i32_1 = arith.constant 0 : i32
    return %arg0, %c0_i32, %c0_i32_0 : i32, i32, i32
  }
  func.func @transform_7(%arg0: i32) -> (i32, i32, i32) {
    %c0_i32 = arith.constant 0 : i32
    %c0_i32_0 = arith.constant 0 : i32
    %c0_i32_1 = arith.constant 0 : i32
    return %arg0, %c0_i32, %c0_i32_0 : i32, i32, i32
  }
  func.func @transform_8(%arg0: i32) -> (i32, i32, i32) {
    %c0_i32 = arith.constant 0 : i32
    %c0_i32_0 = arith.constant 0 : i32
    %c0_i32_1 = arith.constant 0 : i32
    return %arg0, %c0_i32, %c0_i32_0 : i32, i32, i32
  }
  func.func @transform_9(%arg0: i32) -> (i32, i32, i32) {
    %c0_i32 = arith.constant 0 : i32
    %c0_i32_0 = arith.constant 0 : i32
    %c0_i32_1 = arith.constant 0 : i32
    return %arg0, %c0_i32, %c0_i32_0 : i32, i32, i32
  }
  func.func @transform_10(%arg0: i32) -> (i32, i32, i32) {
    %c0_i32 = arith.constant 0 : i32
    %c0_i32_0 = arith.constant 0 : i32
    %c0_i32_1 = arith.constant 0 : i32
    return %arg0, %c0_i32, %c0_i32_0 : i32, i32, i32
  }
  func.func @transform_11(%arg0: i32) -> (i32, i32, i32) {
    %c0_i32 = arith.constant 0 : i32
    %c0_i32_0 = arith.constant 0 : i32
    %c0_i32_1 = arith.constant 0 : i32
    return %arg0, %c0_i32, %c0_i32_0 : i32, i32, i32
  }
}

</mosaic_0001>

<llo_original>
// kernel: tpu_custom_call.1
$region0: #{tpu_custom_call.1}
  #allocation0 [shape = 'u32[]', space=smem, size = 0x4, offset = 0x4, fixed_abs, tag = 'smem constant byte address 0x4 - core index']
  #allocation1 [shape = 'u32[72,128]{1,0:T(1,128)}', space=vmem, size = 0x9000, scoped, tag = 'internal scratch']
  %s0 = inlined_call_operand.vmem [shape: f32[8,16], index: 0, kind: input, shape index: {}]
  %s1 = inlined_call_operand.vmem [shape: f32[512,8], index: 1, kind: input, shape index: {}]
  %s2 = inlined_call_operand.vmem [shape: f32[8,512], index: 2, kind: input, shape index: {}]
  %s3 = inlined_call_operand.vmem [shape: f32[3,16,32], index: 3, kind: input, shape index: {}]
  %s4 = inlined_call_operand.vmem [shape: f32[3,1,32], index: 4, kind: input, shape index: {}]
  %s5 = inlined_call_operand.vmem [shape: f32[3,32,32], index: 5, kind: input, shape index: {}]
  %s6 = inlined_call_operand.vmem [shape: f32[3,1,32], index: 6, kind: input, shape index: {}]
  %s7 = inlined_call_operand.vmem [shape: f32[3,32,1], index: 7, kind: input, shape index: {}]
  %s8 = inlined_call_operand.vmem [shape: f32[3,1,1], index: 8, kind: input, shape index: {}]
  %s9 = inlined_call_operand.vmem [shape: f32[3,512,32], index: 9, kind: input, shape index: {}]
  %s10 = inlined_call_operand.vmem [shape: f32[3,512,32], index: 10, kind: input, shape index: {}]
  %s11 = inlined_call_operand.vmem [shape: f32[3,8,1], index: 11, kind: output, shape index: {}]
  %s12 = sld [smem:[#allocation0]]
  $region77: #{tpu_custom_call.1} parent=0
    _
  %s14 = ssub.s32 1, %s12
  %s15 = scalar_select 0, %s14, %s12
  loop: start=0, step=1, limit=5
  $region2: #{tpu_custom_call.1} parent=0 // loop_pre_header
    _
  $region3: #{tpu_custom_call.1} parent=0 // loop_header
    %s17 = sphi 0, %s21
    %p18 = scmp.ge.s32.totalorder %s17, 5
    %s25 = sphi 0, %s25
    %s27 = sphi 0, %s25
    %s28 = sphi 0, %s27
    %s42 = sphi 0, %s28
    %s46 = sphi 0, %s46
    %s48 = sphi 0, %s46
    %s49 = sphi 0, %s48
    %s63 = sphi 0, %s49
    %s67 = sphi 0, %s67
    %s69 = sphi 0, %s67
    %s70 = sphi 0, %s69
    %s84 = sphi 0, %s70
    %s90 = sphi 0, %s92
    %s93 = sphi 0, %s90
    %s94 = sphi 0, %s93
    %s110 = sphi 0, %s94
    %s116 = sphi 0, %s118
    %s119 = sphi 0, %s116
    %s120 = sphi 0, %s119
    %s136 = sphi 0, %s120
    %s142 = sphi 0, %s144
    %s145 = sphi 0, %s142
    %s146 = sphi 0, %s145
    %s162 = sphi 0, %s146
    %s168 = sphi 0, %s170
    %s171 = sphi 0, %s168
    %s172 = sphi 0, %s171
    %s188 = sphi 0, %s172
    %s194 = sphi 0, %s196
    %s197 = sphi 0, %s194
    %s198 = sphi 0, %s197
    %s214 = sphi 0, %s198
    %s220 = sphi 0, %s222
    %s223 = sphi 0, %s220
    %s224 = sphi 0, %s223
    %s240 = sphi 0, %s224
    %s246 = sphi 0, %s248
    %s249 = sphi 0, %s246
    %s250 = sphi 0, %s249
    %s266 = sphi 0, %s250
    %s272 = sphi 0, %s274
    %s275 = sphi 0, %s272
    %s276 = sphi 0, %s275
    %s292 = sphi 0, %s276
    %s298 = sphi 0, %s300
    %s301 = sphi 0, %s298
    %s302 = sphi 0, %s301
    %s318 = sphi 0, %s302
  $region4: #{tpu_custom_call.1} parent=0 // loop_header_branch
    %20 = sbr.rel (%p18) target = $region8
  $region5: #{tpu_custom_call.1} parent=0 // loop_body
    %s22 = ssub.s32 %s17, 1
    %s23 = ssub.s32 %s17, 2
    %s24 = sadd.s32 %s17, 1
    %s26 = sadd.s32 %s25, 1
    %p29 = scmp.eq.s32.totalorder %s17, 2
    %p30 = scmp.ne.s32.totalorder %s25, %s27
    %p31 = scmp.eq.s32.totalorder %s17, 0
    %p32 = por %p30, %p31
    %p33 = scmp.ne.s32.totalorder %s25, %s27
    %p34 = scmp.eq.s32.totalorder %s22, 2
    %p35 = por %p33, %p34
    %p36 = scmp.ne.s32.totalorder %s27, %s28
    %p37 = scmp.eq.s32.totalorder %s22, 0
    %p38 = por %p36, %p37
    %p39 = scmp.ne.s32.totalorder %s27, %s28
    %p40 = scmp.eq.s32.totalorder %s23, 2
    %p41 = por %p39, %p40
    %p43 = scmp.ne.s32.totalorder %s28, %s42
    %p44 = scmp.eq.s32.totalorder %s23, 0
    %p45 = por %p43, %p44
    %s47 = sadd.s32 %s46, 1
    %p50 = scmp.eq.s32.totalorder %s17, 2
    %p51 = scmp.ne.s32.totalorder %s46, %s48
    %p52 = scmp.eq.s32.totalorder %s17, 0
    %p53 = por %p51, %p52
    %p54 = scmp.ne.s32.totalorder %s46, %s48
    %p55 = scmp.eq.s32.totalorder %s22, 2
    %p56 = por %p54, %p55
    %p57 = scmp.ne.s32.totalorder %s48, %s49
    %p58 = scmp.eq.s32.totalorder %s22, 0
    %p59 = por %p57, %p58
    %p60 = scmp.ne.s32.totalorder %s48, %s49
    %p61 = scmp.eq.s32.totalorder %s23, 2
    %p62 = por %p60, %p61
    %p64 = scmp.ne.s32.totalorder %s49, %s63
    %p65 = scmp.eq.s32.totalorder %s23, 0
    %p66 = por %p64, %p65
    %s68 = sadd.s32 %s67, 1
    %p71 = scmp.eq.s32.totalorder %s17, 2
    %p72 = scmp.ne.s32.totalorder %s67, %s69
    %p73 = scmp.eq.s32.totalorder %s17, 0
    %p74 = por %p72, %p73
    %p75 = scmp.ne.s32.totalorder %s67, %s69
    %p76 = scmp.eq.s32.totalorder %s22, 2
    %p77 = por %p75, %p76
    %p78 = scmp.ne.s32.totalorder %s69, %s70
    %p79 = scmp.eq.s32.totalorder %s22, 0
    %p80 = por %p78, %p79
    %p81 = scmp.ne.s32.totalorder %s69, %s70
    %p82 = scmp.eq.s32.totalorder %s23, 2
    %p83 = por %p81, %p82
    %p85 = scmp.ne.s32.totalorder %s70, %s84
    %p86 = scmp.eq.s32.totalorder %s23, 0
    %p87 = por %p85, %p86
    %s88 = ssub.s32 %s17, %s24
    %p89 = scmp.eq.s32.totalorder %s88, 0
    %s91 = sadd.s32 %s90, 1
    %s92 = scalar_select %p89, %s90, %s91
    %p95 = pneg %p89
    %p96 = scmp.eq.s32.totalorder %s17, 2
    %p97 = por %p95, %p96
    %p98 = scmp.ne.s32.totalorder %s90, %s93
    %p99 = scmp.eq.s32.totalorder %s17, 0
    %p100 = por %p98, %p99
    %p101 = scmp.ne.s32.totalorder %s90, %s93
    %p102 = scmp.eq.s32.totalorder %s22, 2
    %p103 = por %p101, %p102
    %p104 = scmp.ne.s32.totalorder %s93, %s94
    %p105 = scmp.eq.s32.totalorder %s22, 0
    %p106 = por %p104, %p105
    %p107 = scmp.ne.s32.totalorder %s93, %s94
    %p108 = scmp.eq.s32.totalorder %s23, 2
    %p109 = por %p107, %p108
    %p111 = scmp.ne.s32.totalorder %s94, %s110
    %p112 = scmp.eq.s32.totalorder %s23, 0
    %p113 = por %p111, %p112
    %s114 = ssub.s32 %s17, %s24
    %p115 = scmp.eq.s32.totalorder %s114, 0
    %s117 = sadd.s32 %s116, 1
    %s118 = scalar_select %p115, %s116, %s117
    %p121 = pneg %p115
    %p122 = scmp.eq.s32.totalorder %s17, 2
    %p123 = por %p121, %p122
    %p124 = scmp.ne.s32.totalorder %s116, %s119
    %p125 = scmp.eq.s32.totalorder %s17, 0
    %p126 = por %p124, %p125
    %p127 = scmp.ne.s32.totalorder %s116, %s119
    %p128 = scmp.eq.s32.totalorder %s22, 2
    %p129 = por %p127, %p128
    %p130 = scmp.ne.s32.totalorder %s119, %s120
    %p131 = scmp.eq.s32.totalorder %s22, 0
    %p132 = por %p130, %p131
    %p133 = scmp.ne.s32.totalorder %s119, %s120
    %p134 = scmp.eq.s32.totalorder %s23, 2
    %p135 = por %p133, %p134
    %p137 = scmp.ne.s32.totalorder %s120, %s136
    %p138 = scmp.eq.s32.totalorder %s23, 0
    %p139 = por %p137, %p138
    %s140 = ssub.s32 %s17, %s24
    %p141 = scmp.eq.s32.totalorder %s140, 0
    %s143 = sadd.s32 %s142, 1
    %s144 = scalar_select %p141, %s142, %s143
    %p147 = pneg %p141
    %p148 = scmp.eq.s32.totalorder %s17, 2
    %p149 = por %p147, %p148
    %p150 = scmp.ne.s32.totalorder %s142, %s145
    %p151 = scmp.eq.s32.totalorder %s17, 0
    %p152 = por %p150, %p151
    %p153 = scmp.ne.s32.totalorder %s142, %s145
    %p154 = scmp.eq.s32.totalorder %s22, 2
    %p155 = por %p153, %p154
    %p156 = scmp.ne.s32.totalorder %s145, %s146
    %p157 = scmp.eq.s32.totalorder %s22, 0
    %p158 = por %p156, %p157
    %p159 = scmp.ne.s32.totalorder %s145, %s146
    %p160 = scmp.eq.s32.totalorder %s23, 2
    %p161 = por %p159, %p160
    %p163 = scmp.ne.s32.totalorder %s146, %s162
    %p164 = scmp.eq.s32.totalorder %s23, 0
    %p165 = por %p163, %p164
    %s166 = ssub.s32 %s17, %s24
    %p167 = scmp.eq.s32.totalorder %s166, 0
    %s169 = sadd.s32 %s168, 1
    %s170 = scalar_select %p167, %s168, %s169
    %p173 = pneg %p167
    %p174 = scmp.eq.s32.totalorder %s17, 2
    %p175 = por %p173, %p174
    %p176 = scmp.ne.s32.totalorder %s168, %s171
    %p177 = scmp.eq.s32.totalorder %s17, 0
    %p178 = por %p176, %p177
    %p179 = scmp.ne.s32.totalorder %s168, %s171
    %p180 = scmp.eq.s32.totalorder %s22, 2
    %p181 = por %p179, %p180
    %p182 = scmp.ne.s32.totalorder %s171, %s172
    %p183 = scmp.eq.s32.totalorder %s22, 0
    %p184 = por %p182, %p183
    %p185 = scmp.ne.s32.totalorder %s171, %s172
    %p186 = scmp.eq.s32.totalorder %s23, 2
    %p187 = por %p185, %p186
    %p189 = scmp.ne.s32.totalorder %s172, %s188
    %p190 = scmp.eq.s32.totalorder %s23, 0
    %p191 = por %p189, %p190
    %s192 = ssub.s32 %s17, %s24
    %p193 = scmp.eq.s32.totalorder %s192, 0
    %s195 = sadd.s32 %s194, 1
    %s196 = scalar_select %p193, %s194, %s195
    %p199 = pneg %p193
    %p200 = scmp.eq.s32.totalorder %s17, 2
    %p201 = por %p199, %p200
    %p202 = scmp.ne.s32.totalorder %s194, %s197
    %p203 = scmp.eq.s32.totalorder %s17, 0
    %p204 = por %p202, %p203
    %p205 = scmp.ne.s32.totalorder %s194, %s197
    %p206 = scmp.eq.s32.totalorder %s22, 2
    %p207 = por %p205, %p206
    %p208 = scmp.ne.s32.totalorder %s197, %s198
    %p209 = scmp.eq.s32.totalorder %s22, 0
    %p210 = por %p208, %p209
    %p211 = scmp.ne.s32.totalorder %s197, %s198
    %p212 = scmp.eq.s32.totalorder %s23, 2
    %p213 = por %p211, %p212
    %p215 = scmp.ne.s32.totalorder %s198, %s214
    %p216 = scmp.eq.s32.totalorder %s23, 0
    %p217 = por %p215, %p216
    %s218 = ssub.s32 %s17, %s24
    %p219 = scmp.eq.s32.totalorder %s218, 0
    %s221 = sadd.s32 %s220, 1
    %s222 = scalar_select %p219, %s220, %s221
    %p225 = pneg %p219
    %p226 = scmp.eq.s32.totalorder %s17, 2
    %p227 = por %p225, %p226
    %p228 = scmp.ne.s32.totalorder %s220, %s223
    %p229 = scmp.eq.s32.totalorder %s17, 0
    %p230 = por %p228, %p229
    %p231 = scmp.ne.s32.totalorder %s220, %s223
    %p232 = scmp.eq.s32.totalorder %s22, 2
    %p233 = por %p231, %p232
    %p234 = scmp.ne.s32.totalorder %s223, %s224
    %p235 = scmp.eq.s32.totalorder %s22, 0
    %p236 = por %p234, %p235
    %p237 = scmp.ne.s32.totalorder %s223, %s224
    %p238 = scmp.eq.s32.totalorder %s23, 2
    %p239 = por %p237, %p238
    %p241 = scmp.ne.s32.totalorder %s224, %s240
    %p242 = scmp.eq.s32.totalorder %s23, 0
    %p243 = por %p241, %p242
    %s244 = ssub.s32 %s17, %s24
    %p245 = scmp.eq.s32.totalorder %s244, 0
    %s247 = sadd.s32 %s246, 1
    %s248 = scalar_select %p245, %s246, %s247
    %p251 = pneg %p245
    %p252 = scmp.eq.s32.totalorder %s17, 2
    %p253 = por %p251, %p252
    %p254 = scmp.ne.s32.totalorder %s246, %s249
    %p255 = scmp.eq.s32.totalorder %s17, 0
    %p256 = por %p254, %p255
    %p257 = scmp.ne.s32.totalorder %s246, %s249
    %p258 = scmp.eq.s32.totalorder %s22, 2
    %p259 = por %p257, %p258
    %p260 = scmp.ne.s32.totalorder %s249, %s250
    %p261 = scmp.eq.s32.totalorder %s22, 0
    %p262 = por %p260, %p261
    %p263 = scmp.ne.s32.totalorder %s249, %s250
    %p264 = scmp.eq.s32.totalorder %s23, 2
    %p265 = por %p263, %p264
    %p267 = scmp.ne.s32.totalorder %s250, %s266
    %p268 = scmp.eq.s32.totalorder %s23, 0
    %p269 = por %p267, %p268
    %s270 = ssub.s32 %s17, %s24
    %p271 = scmp.eq.s32.totalorder %s270, 0
    %s273 = sadd.s32 %s272, 1
    %s274 = scalar_select %p271, %s272, %s273
    %p277 = pneg %p271
    %p278 = scmp.eq.s32.totalorder %s17, 2
    %p279 = por %p277, %p278
    %p280 = scmp.ne.s32.totalorder %s272, %s275
    %p281 = scmp.eq.s32.totalorder %s17, 0
    %p282 = por %p280, %p281
    %p283 = scmp.ne.s32.totalorder %s272, %s275
    %p284 = scmp.eq.s32.totalorder %s22, 2
    %p285 = por %p283, %p284
    %p286 = scmp.ne.s32.totalorder %s275, %s276
    %p287 = scmp.eq.s32.totalorder %s22, 0
    %p288 = por %p286, %p287
    %p289 = scmp.ne.s32.totalorder %s275, %s276
    %p290 = scmp.eq.s32.totalorder %s23, 2
    %p291 = por %p289, %p290
    %p293 = scmp.ne.s32.totalorder %s276, %s292
    %p294 = scmp.eq.s32.totalorder %s23, 0
    %p295 = por %p293, %p294
    %s296 = ssub.s32 %s17, %s24
    %p297 = scmp.eq.s32.totalorder %s296, 0
    %s299 = sadd.s32 %s298, 1
    %s300 = scalar_select %p297, %s298, %s299
    %p303 = pneg %p297
    %p304 = scmp.eq.s32.totalorder %s17, 2
    %p305 = por %p303, %p304
    %p306 = scmp.ne.s32.totalorder %s298, %s301
    %p307 = scmp.eq.s32.totalorder %s17, 0
    %p308 = por %p306, %p307
    %p309 = scmp.ne.s32.totalorder %s298, %s301
    %p310 = scmp.eq.s32.totalorder %s22, 2
    %p311 = por %p309, %p310
    %p312 = scmp.ne.s32.totalorder %s301, %s302
    %p313 = scmp.eq.s32.totalorder %s22, 0
    %p314 = por %p312, %p313
    %p315 = scmp.ne.s32.totalorder %s301, %s302
    %p316 = scmp.eq.s32.totalorder %s23, 2
    %p317 = por %p315, %p316
    %p319 = scmp.ne.s32.totalorder %s302, %s318
    %p320 = scmp.eq.s32.totalorder %s23, 0
    %p321 = por %p319, %p320
    %p322 = scmp.le.s32.totalorder 1, %s17
    %p323 = scmp.lt.s32.totalorder %s17, 4
    %p324 = pnand %p322, %p323
    %p325 = pneg %p324
    // Predicated region
    $region9: #{tpu_custom_call.1} parent=5 // pred_check
      _
    $region10: #{tpu_custom_call.1} parent=5 // pred_check_branch
      %327 = sbr.rel (%p324) target = $region12
    $region11: #{tpu_custom_call.1} parent=5 // pred_region
      %s328 = ssub.s32 %s17, 1
      // Predicated region
      $region13: #{tpu_custom_call.1} parent=11 // pred_check
        %p329 = pneg %p38
      $region14: #{tpu_custom_call.1} parent=11 // pred_check_branch
        %331 = sbr.rel (%p329) target = $region16
      $region15: #{tpu_custom_call.1} parent=11 // pred_region
        _
      $region16: #{tpu_custom_call.1} parent=11 // pred_fallthru
        _
      // Predicated region
      $region17: #{tpu_custom_call.1} parent=11 // pred_check
        %p332 = pneg %p59
      $region18: #{tpu_custom_call.1} parent=11 // pred_check_branch
        %334 = sbr.rel (%p332) target = $region20
      $region19: #{tpu_custom_call.1} parent=11 // pred_region
        _
      $region20: #{tpu_custom_call.1} parent=11 // pred_fallthru
        _
      // Predicated region
      $region21: #{tpu_custom_call.1} parent=11 // pred_check
        %p335 = pneg %p80
      $region22: #{tpu_custom_call.1} parent=11 // pred_check_branch
        %337 = sbr.rel (%p335) target = $region24
      $region23: #{tpu_custom_call.1} parent=11 // pred_region
        _
      $region24: #{tpu_custom_call.1} parent=11 // pred_fallthru
        _
    $region12: #{tpu_custom_call.1} parent=5 // pred_fallthru
      _
    %p338 = scmp.lt.s32.totalorder %s17, 3
    // Predicated region
    $region25: #{tpu_custom_call.1} parent=5 // pred_check
      %p339 = pneg %p338
    $region26: #{tpu_custom_call.1} parent=5 // pred_check_branch
      %341 = sbr.rel (%p339) target = $region28
    $region27: #{tpu_custom_call.1} parent=5 // pred_region
      // Predicated region
      $region29: #{tpu_custom_call.1} parent=27 // pred_check
        %p342 = pneg %p100
      $region30: #{tpu_custom_call.1} parent=27 // pred_check_branch
        %344 = sbr.rel (%p342) target = $region32
      $region31: #{tpu_custom_call.1} parent=27 // pred_region
        %p345 = scmp.lt.s32.totalorder %s17, 2
        %s346 = scalar_select %p345, %s17, 2
        %s347 = smul.addr %s346, 2
        %s348 = smul.addr %s347, 8
        %s349 = scalar_lea.vmem %s3, %s348
      $region32: #{tpu_custom_call.1} parent=27 // pred_fallthru
        _
      // Predicated region
      $region33: #{tpu_custom_call.1} parent=27 // pred_check
        %p350 = pneg %p126
      $region34: #{tpu_custom_call.1} parent=27 // pred_check_branch
        %352 = sbr.rel (%p350) target = $region36
      $region35: #{tpu_custom_call.1} parent=27 // pred_region
        %p353 = scmp.lt.s32.totalorder %s17, 2
        %s354 = scalar_select %p353, %s17, 2
        %s355 = scalar_lea.vmem %s4, %s354
      $region36: #{tpu_custom_call.1} parent=27 // pred_fallthru
        _
      // Predicated region
      $region37: #{tpu_custom_call.1} parent=27 // pred_check
        %p356 = pneg %p152
      $region38: #{tpu_custom_call.1} parent=27 // pred_check_branch
        %358 = sbr.rel (%p356) target = $region40
      $region39: #{tpu_custom_call.1} parent=27 // pred_region
        %p359 = scmp.lt.s32.totalorder %s17, 2
        %s360 = scalar_select %p359, %s17, 2
        %s361 = smul.addr %s360, 4
        %s362 = smul.addr %s361, 8
        %s363 = scalar_lea.vmem %s5, %s362
      $region40: #{tpu_custom_call.1} parent=27 // pred_fallthru
        _
      // Predicated region
      $region41: #{tpu_custom_call.1} parent=27 // pred_check
        %p364 = pneg %p178
      $region42: #{tpu_custom_call.1} parent=27 // pred_check_branch
        %366 = sbr.rel (%p364) target = $region44
      $region43: #{tpu_custom_call.1} parent=27 // pred_region
        %p367 = scmp.lt.s32.totalorder %s17, 2
        %s368 = scalar_select %p367, %s17, 2
        %s369 = scalar_lea.vmem %s6, %s368
      $region44: #{tpu_custom_call.1} parent=27 // pred_fallthru
        _
      // Predicated region
      $region45: #{tpu_custom_call.1} parent=27 // pred_check
        %p370 = pneg %p204
      $region46: #{tpu_custom_call.1} parent=27 // pred_check_branch
        %372 = sbr.rel (%p370) target = $region48
      $region47: #{tpu_custom_call.1} parent=27 // pred_region
        %p373 = scmp.lt.s32.totalorder %s17, 2
        %s374 = scalar_select %p373, %s17, 2
        %s375 = smul.addr %s374, 4
        %s376 = smul.addr %s375, 8
        %s377 = scalar_lea.vmem %s7, %s376
      $region48: #{tpu_custom_call.1} parent=27 // pred_fallthru
        _
      // Predicated region
      $region49: #{tpu_custom_call.1} parent=27 // pred_check
        %p378 = pneg %p230
      $region50: #{tpu_custom_call.1} parent=27 // pred_check_branch
        %380 = sbr.rel (%p378) target = $region52
      $region51: #{tpu_custom_call.1} parent=27 // pred_region
        %p381 = scmp.lt.s32.totalorder %s17, 2
        %s382 = scalar_select %p381, %s17, 2
        %s383 = scalar_lea.vmem %s8, %s382
      $region52: #{tpu_custom_call.1} parent=27 // pred_fallthru
        _
      // Predicated region
      $region53: #{tpu_custom_call.1} parent=27 // pred_check
        %p384 = pneg %p256
      $region54: #{tpu_custom_call.1} parent=27 // pred_check_branch
        %386 = sbr.rel (%p384) target = $region56
      $region55: #{tpu_custom_call.1} parent=27 // pred_region
        %p387 = scmp.lt.s32.totalorder %s17, 2
        %s388 = scalar_select %p387, %s17, 2
        %s389 = smul.addr %s388, 64
        %s390 = smul.addr %s389, 8
        %s391 = scalar_lea.vmem %s9, %s390
      $region56: #{tpu_custom_call.1} parent=27 // pred_fallthru
        _
      // Predicated region
      $region57: #{tpu_custom_call.1} parent=27 // pred_check
        %p392 = pneg %p282
      $region58: #{tpu_custom_call.1} parent=27 // pred_check_branch
        %394 = sbr.rel (%p392) target = $region60
      $region59: #{tpu_custom_call.1} parent=27 // pred_region
        %p395 = scmp.lt.s32.totalorder %s17, 2
        %s396 = scalar_select %p395, %s17, 2
        %s397 = smul.addr %s396, 64
        %s398 = smul.addr %s397, 8
        %s399 = scalar_lea.vmem %s10, %s398
      $region60: #{tpu_custom_call.1} parent=27 // pred_fallthru
        _
    $region28: #{tpu_custom_call.1} parent=5 // pred_fallthru
      _
    %p400 = scmp.le.s32.totalorder 1, %s17
    %p401 = scmp.lt.s32.totalorder %s17, 4
    %p402 = pnand %p400, %p401
    %p403 = pneg %p402
    // Predicated region
    $region61: #{tpu_custom_call.1} parent=5 // pred_check
      _
    $region62: #{tpu_custom_call.1} parent=5 // pred_check_branch
      %405 = sbr.rel (%p402) target = $region64
    $region63: #{tpu_custom_call.1} parent=5 // pred_region
      %s406 = ssub.s32 %s17, 1
      %p407 = pneg %p38
      %p408 = pneg %p35
      %p409 = pneg %p59
      %p410 = pneg %p56
      %p411 = pneg %p80
      %p412 = pneg %p77
      %p413 = scmp.lt.s32.totalorder %s22, 2
      %s414 = scalar_select %p413, %s22, 2
      %s415 = smul.addr %s414, 2
      %s416 = smul.addr %s415, 8
      %s417 = scalar_lea.vmem %s3, %s416
      %p418 = pneg %p106
      %p419 = pneg %p103
      %p420 = scmp.lt.s32.totalorder %s22, 2
      %s421 = scalar_select %p420, %s22, 2
      %s422 = scalar_lea.vmem %s4, %s421
      %p423 = pneg %p132
      %p424 = pneg %p129
      %p425 = scmp.lt.s32.totalorder %s22, 2
      %s426 = scalar_select %p425, %s22, 2
      %s427 = smul.addr %s426, 4
      %s428 = smul.addr %s427, 8
      %s429 = scalar_lea.vmem %s5, %s428
      %p430 = pneg %p158
      %p431 = pneg %p155
      %p432 = scmp.lt.s32.totalorder %s22, 2
      %s433 = scalar_select %p432, %s22, 2
      %s434 = scalar_lea.vmem %s6, %s433
      %p435 = pneg %p184
      %p436 = pneg %p181
      %p437 = scmp.lt.s32.totalorder %s22, 2
      %s438 = scalar_select %p437, %s22, 2
      %s439 = smul.addr %s438, 4
      %s440 = smul.addr %s439, 8
      %s441 = scalar_lea.vmem %s7, %s440
      %p442 = pneg %p210
      %p443 = pneg %p207
      %p444 = scmp.lt.s32.totalorder %s22, 2
      %s445 = scalar_select %p444, %s22, 2
      %s446 = scalar_lea.vmem %s8, %s445
      %p447 = pneg %p236
      %p448 = pneg %p233
      %p449 = scmp.lt.s32.totalorder %s22, 2
      %s450 = scalar_select %p449, %s22, 2
      %s451 = smul.addr %s450, 64
      %s452 = smul.addr %s451, 8
      %s453 = scalar_lea.vmem %s9, %s452
      %p454 = pneg %p262
      %p455 = pneg %p259
      %p456 = scmp.lt.s32.totalorder %s22, 2
      %s457 = scalar_select %p456, %s22, 2
      %s458 = smul.addr %s457, 64
      %s459 = smul.addr %s458, 8
      %s460 = scalar_lea.vmem %s10, %s459
      %p461 = pneg %p288
      %p462 = pneg %p285
      %p463 = pneg %p314
      %p464 = pneg %p311
      %p465 = scmp.lt.s32.totalorder %s22, 2
      %s466 = scalar_select %p465, %s22, 2
      %s467 = smul.addr %s466, 8
      %s468 = scalar_lea.vmem %s11, %s467
      %p469 = scmp.lt.s32.totalorder %s22, 2
      %s470 = scalar_select %p469, %s22, 2
      %s471 = smul.addr %s470, 2
      %s472 = smul.addr %s471, 8
      %s473 = scalar_lea.vmem %s3, %s472
      %p474 = scmp.lt.s32.totalorder %s22, 2
      %s475 = scalar_select %p474, %s22, 2
      %s476 = scalar_lea.vmem %s4, %s475
      %p477 = scmp.lt.s32.totalorder %s22, 2
      %s478 = scalar_select %p477, %s22, 2
      %s479 = smul.addr %s478, 4
      %s480 = smul.addr %s479, 8
      %s481 = scalar_lea.vmem %s5, %s480
      %p482 = scmp.lt.s32.totalorder %s22, 2
      %s483 = scalar_select %p482, %s22, 2
      %s484 = scalar_lea.vmem %s6, %s483
      %p485 = scmp.lt.s32.totalorder %s22, 2
      %s486 = scalar_select %p485, %s22, 2
      %s487 = smul.addr %s486, 4
      %s488 = smul.addr %s487, 8
      %s489 = scalar_lea.vmem %s7, %s488
      %p490 = scmp.lt.s32.totalorder %s22, 2
      %s491 = scalar_select %p490, %s22, 2
      %s492 = scalar_lea.vmem %s8, %s491
      %p493 = scmp.lt.s32.totalorder %s22, 2
      %s494 = scalar_select %p493, %s22, 2
      %s495 = smul.addr %s494, 64
      %s496 = smul.addr %s495, 8
      %s497 = scalar_lea.vmem %s9, %s496
      %p498 = scmp.lt.s32.totalorder %s22, 2
      %s499 = scalar_select %p498, %s22, 2
      %s500 = smul.addr %s499, 64
      %s501 = smul.addr %s500, 8
      %s502 = scalar_lea.vmem %s10, %s501
      %p503 = scmp.lt.s32.totalorder %s22, 2
      %s504 = scalar_select %p503, %s22, 2
      %s505 = smul.addr %s504, 8
      %s506 = scalar_lea.vmem %s11, %s505
      %v507 = vld [vmem:[%s0] sm:$0xff]
      %v508 = vld [vmem:[%s1] sm:$0xff]
      %v509 = vld [vmem:[%s1 + $0x8] sm:$0xff]
      %v510 = vld [vmem:[%s1 + $0x10] sm:$0xff]
      %v511 = vld [vmem:[%s1 + $0x18] sm:$0xff]
      %v512 = vld [vmem:[%s1 + $0x20] sm:$0xff]
      %v513 = vld [vmem:[%s1 + $0x28] sm:$0xff]
      %v514 = vld [vmem:[%s1 + $0x30] sm:$0xff]
      %v515 = vld [vmem:[%s1 + $0x38] sm:$0xff]
      %v516 = vld [vmem:[%s1 + $0x40] sm:$0xff]
      %v517 = vld [vmem:[%s1 + $0x48] sm:$0xff]
      %v518 = vld [vmem:[%s1 + $0x50] sm:$0xff]
      %v519 = vld [vmem:[%s1 + $0x58] sm:$0xff]
      %v520 = vld [vmem:[%s1 + $0x60] sm:$0xff]
      %v521 = vld [vmem:[%s1 + $0x68] sm:$0xff]
      %v522 = vld [vmem:[%s1 + $0x70] sm:$0xff]
      %v523 = vld [vmem:[%s1 + $0x78] sm:$0xff]
      %v524 = vld [vmem:[%s1 + $0x80] sm:$0xff]
      %v525 = vld [vmem:[%s1 + $0x88] sm:$0xff]
      %v526 = vld [vmem:[%s1 + $0x90] sm:$0xff]
      %v527 = vld [vmem:[%s1 + $0x98] sm:$0xff]
      %v528 = vld [vmem:[%s1 + $0xa0] sm:$0xff]
      %v529 = vld [vmem:[%s1 + $0xa8] sm:$0xff]
      %v530 = vld [vmem:[%s1 + $0xb0] sm:$0xff]
      %v531 = vld [vmem:[%s1 + $0xb8] sm:$0xff]
      %v532 = vld [vmem:[%s1 + $0xc0] sm:$0xff]
      %v533 = vld [vmem:[%s1 + $0xc8] sm:$0xff]
      %v534 = vld [vmem:[%s1 + $0xd0] sm:$0xff]
      %v535 = vld [vmem:[%s1 + $0xd8] sm:$0xff]
      %v536 = vld [vmem:[%s1 + $0xe0] sm:$0xff]
      %v537 = vld [vmem:[%s1 + $0xe8] sm:$0xff]
      %v538 = vld [vmem:[%s1 + $0xf0] sm:$0xff]
      %v539 = vld [vmem:[%s1 + $0xf8] sm:$0xff]
      %v540 = vld [vmem:[%s1 + $0x100] sm:$0xff]
      %v541 = vld [vmem:[%s1 + $0x108] sm:$0xff]
      %v542 = vld [vmem:[%s1 + $0x110] sm:$0xff]
      %v543 = vld [vmem:[%s1 + $0x118] sm:$0xff]
      %v544 = vld [vmem:[%s1 + $0x120] sm:$0xff]
      %v545 = vld [vmem:[%s1 + $0x128] sm:$0xff]
      %v546 = vld [vmem:[%s1 + $0x130] sm:$0xff]
      %v547 = vld [vmem:[%s1 + $0x138] sm:$0xff]
      %v548 = vld [vmem:[%s1 + $0x140] sm:$0xff]
      %v549 = vld [vmem:[%s1 + $0x148] sm:$0xff]
      %v550 = vld [vmem:[%s1 + $0x150] sm:$0xff]
      %v551 = vld [vmem:[%s1 + $0x158] sm:$0xff]
      %v552 = vld [vmem:[%s1 + $0x160] sm:$0xff]
      %v553 = vld [vmem:[%s1 + $0x168] sm:$0xff]
      %v554 = vld [vmem:[%s1 + $0x170] sm:$0xff]
      %v555 = vld [vmem:[%s1 + $0x178] sm:$0xff]
      %v556 = vld [vmem:[%s1 + $0x180] sm:$0xff]
      %v557 = vld [vmem:[%s1 + $0x188] sm:$0xff]
      %v558 = vld [vmem:[%s1 + $0x190] sm:$0xff]
      %v559 = vld [vmem:[%s1 + $0x198] sm:$0xff]
      %v560 = vld [vmem:[%s1 + $0x1a0] sm:$0xff]
      %v561 = vld [vmem:[%s1 + $0x1a8] sm:$0xff]
      %v562 = vld [vmem:[%s1 + $0x1b0] sm:$0xff]
      %v563 = vld [vmem:[%s1 + $0x1b8] sm:$0xff]
      %v564 = vld [vmem:[%s1 + $0x1c0] sm:$0xff]
      %v565 = vld [vmem:[%s1 + $0x1c8] sm:$0xff]
      %v566 = vld [vmem:[%s1 + $0x1d0] sm:$0xff]
      %v567 = vld [vmem:[%s1 + $0x1d8] sm:$0xff]
      %v568 = vld [vmem:[%s1 + $0x1e0] sm:$0xff]
      %v569 = vld [vmem:[%s1 + $0x1e8] sm:$0xff]
      %v570 = vld [vmem:[%s1 + $0x1f0] sm:$0xff]
      %v571 = vld [vmem:[%s1 + $0x1f8] sm:$0xff]
      %v572 = vld [vmem:[%s2] sm:$0xff]
      %v573 = vld [vmem:[%s2 + $0x8] sm:$0xff]
      %v574 = vld [vmem:[%s2 + $0x10] sm:$0xff]
      %v575 = vld [vmem:[%s2 + $0x18] sm:$0xff]
      %v576 = vld [vmem:[%s473] sm:$0xff]
      %v577 = vld [vmem:[%s473 + $0x8] sm:$0xff]
      %v578 = vld [vmem:[%s476] sm:$0x1]
      %v580 = vperm.slane %v578, 0
      %vm582 = vcmask 130048
      %v584 = vsel %vm582, %v507, 0
      %586 = vmatpush.msra.mxu0 0.0
      %587 = vmatpush.msra.mxu0 0.0
      %588 = vmatpush.msra.mxu0 0.0
      %589 = vmatpush.msra.mxu0 0.0
      %590 = vmatpush.msra.mxu0 0.0
      %591 = vmatpush.msra.mxu0 0.0
      %592 = vmatpush.msra.mxu0 0.0
      %593 = vmatpush.msra.mxu0 0.0
      %594 = vmatpush.msra.mxu0 0.0
      %595 = vmatpush.msra.mxu0 0.0
      %596 = vmatpush.msra.mxu0 0.0
      %597 = vmatpush.msra.mxu0 0.0
      %598 = vmatpush.msra.mxu0 0.0
      %599 = vmatpush.msra.mxu0 0.0
      %600 = vmatpush.msra.mxu0 %v577
      %601 = vmatpush.msra.mxu0 %v576
      %602 = vmatmul.f32.gmra.mxu0 %v584
      %v603 = vpop.f32.mrf.mxu0
      %v604 = vadd.f32 %v580, %v603
      %605 = vdwg.mxu0
      %v606 = vmul.f32 %v507, %v507
      %v607 = vsel %vm582, %v606, 0.0
      %608 = vadd.xlane.f32.xlu0 %v607
      %v609 = vpop.xlane.xlu0 %608
      %v610 = vrsqrt.pop %v609
      %v611 = vmul.f32 %v610, %v609
      %v612 = vmul.f32 %v611, %v610
      %v613 = vmul.f32 0.5, %v612
      %v614 = vsub.f32 1.5, %v613
      %v615 = vmul.f32 %v610, %v614
      %vm616 = vweird.f32 %v609
      %vm617 = vweird.f32 %v610
      %vm618 = vmor %vm616, %vm617
      %v619 = vsel %vm618, %v610, %v615
      %v620 = vmul.f32 %v619, 0.70710677
      %v621 = vmul.f32 %v604, %v620
      %vm622 = vcmp.lt.f32.partialorder %v621, 0.0
      %v623 = vsel %vm622, -1.0, 1.0
      %v624 = vand.u32 2147483647, %v621
      %v625 = vmul.f32 %v624, 0.3275911
      %v626 = vadd.f32 %v625, 1.0
      %v627 = vrcp.pop %v626
      %v628 = vmul.f32 %v626, %v627
      %v629 = vsub.f32 1.0, %v628
      %v630 = vmul.f32 %v627, %v629
      %v631 = vadd.f32 %v627, %v630
      %vm632 = vweird.f32 %v626
      %vm633 = vweird.f32 %v627
      %vm634 = vmor %vm632, %vm633
      %v635 = vsel %vm634, %v627, %v631
      %v636 = vand.u32 2147483647, %v626
      %vm637 = vcmp.eq.f32.partialorder %v636, 8.507059e+37
      %v638 = vand.u32 %v626, 2147483648
      %v639 = vor.u32 1.1754944e-38, %v638
      %v640 = vsel %vm637, %v639, %v635
      %v641 = vmul.f32 1.0, %v640
      %v642 = vmul.f32 %v641, 1.0614054
      %v643 = vadd.f32 %v642, -1.4531521
      %v644 = vmul.f32 %v643, %v641
      %v645 = vadd.f32 %v644, 1.4214138
      %v646 = vmul.f32 %v645, %v641
      %v647 = vadd.f32 %v646, -0.28449672
      %v648 = vmul.f32 %v647, %v641
      %v649 = vadd.f32 %v648, 0.2548296
      %v650 = vmul.f32 %v649, %v641
      %v651 = vsub.f32 0.0, %v624
      %v652 = vmul.f32 %v651, %v624
      %v653 = vmul.f32 %v652, 1.442695
      %v654 = vpow.pop %v653
      %v655 = vmul.f32 %v650, %v654
      %v656 = vsub.f32 1.0, %v655
      %v657 = vmul.f32 %v623, %v656
      %v658 = vld [vmem:[%s481] sm:$0xff]
      %v659 = vld [vmem:[%s481 + $0x8] sm:$0xff]
      %v660 = vld [vmem:[%s481 + $0x10] sm:$0xff]
      %v661 = vld [vmem:[%s481 + $0x18] sm:$0xff]
      %v662 = vld [vmem:[%s484] sm:$0x1]
      %v663 = vld [vmem:[%s497] sm:$0xff]
      %v664 = vld [vmem:[%s497 + $0x8] sm:$0xff]
      %v665 = vld [vmem:[%s497 + $0x10] sm:$0xff]
      %v666 = vld [vmem:[%s497 + $0x18] sm:$0xff]
      %v667 = vld [vmem:[%s497 + $0x20] sm:$0xff]
      %v668 = vld [vmem:[%s497 + $0x28] sm:$0xff]
      %v669 = vld [vmem:[%s497 + $0x30] sm:$0xff]
      %v670 = vld [vmem:[%s497 + $0x38] sm:$0xff]
      %v671 = vld [vmem:[%s497 + $0x40] sm:$0xff]
      %v672 = vld [vmem:[%s497 + $0x48] sm:$0xff]
      %v673 = vld [vmem:[%s497 + $0x50] sm:$0xff]
      %v674 = vld [vmem:[%s497 + $0x58] sm:$0xff]
      %v675 = vld [vmem:[%s497 + $0x60] sm:$0xff]
      %v676 = vld [vmem:[%s497 + $0x68] sm:$0xff]
      %v677 = vld [vmem:[%s497 + $0x70] sm:$0xff]
      %v678 = vld [vmem:[%s497 + $0x78] sm:$0xff]
      %v679 = vld [vmem:[%s497 + $0x80] sm:$0xff]
      %v680 = vld [vmem:[%s497 + $0x88] sm:$0xff]
      %v681 = vld [vmem:[%s497 + $0x90] sm:$0xff]
      %v682 = vld [vmem:[%s497 + $0x98] sm:$0xff]
      %v683 = vld [vmem:[%s497 + $0xa0] sm:$0xff]
      %v684 = vld [vmem:[%s497 + $0xa8] sm:$0xff]
      %v685 = vld [vmem:[%s497 + $0xb0] sm:$0xff]
      %v686 = vld [vmem:[%s497 + $0xb8] sm:$0xff]
      %v687 = vld [vmem:[%s497 + $0xc0] sm:$0xff]
      %v688 = vld [vmem:[%s497 + $0xc8] sm:$0xff]
      %v689 = vld [vmem:[%s497 + $0xd0] sm:$0xff]
      %v690 = vld [vmem:[%s497 + $0xd8] sm:$0xff]
      %v691 = vld [vmem:[%s497 + $0xe0] sm:$0xff]
      %v692 = vld [vmem:[%s497 + $0xe8] sm:$0xff]
      %v693 = vld [vmem:[%s497 + $0xf0] sm:$0xff]
      %v694 = vld [vmem:[%s497 + $0xf8] sm:$0xff]
      %v695 = vld [vmem:[%s497 + $0x100] sm:$0xff]
      %v696 = vld [vmem:[%s497 + $0x108] sm:$0xff]
      %v697 = vld [vmem:[%s497 + $0x110] sm:$0xff]
      %v698 = vld [vmem:[%s497 + $0x118] sm:$0xff]
      %v699 = vld [vmem:[%s497 + $0x120] sm:$0xff]
      %v700 = vld [vmem:[%s497 + $0x128] sm:$0xff]
      %v701 = vld [vmem:[%s497 + $0x130] sm:$0xff]
      %v702 = vld [vmem:[%s497 + $0x138] sm:$0xff]
      %v703 = vld [vmem:[%s497 + $0x140] sm:$0xff]
      %v704 = vld [vmem:[%s497 + $0x148] sm:$0xff]
      %v705 = vld [vmem:[%s497 + $0x150] sm:$0xff]
      %v706 = vld [vmem:[%s497 + $0x158] sm:$0xff]
      %v707 = vld [vmem:[%s497 + $0x160] sm:$0xff]
      %v708 = vld [vmem:[%s497 + $0x168] sm:$0xff]
      %v709 = vld [vmem:[%s497 + $0x170] sm:$0xff]
      %v710 = vld [vmem:[%s497 + $0x178] sm:$0xff]
      %v711 = vld [vmem:[%s497 + $0x180] sm:$0xff]
      %v712 = vld [vmem:[%s497 + $0x188] sm:$0xff]
      %v713 = vld [vmem:[%s497 + $0x190] sm:$0xff]
      %v714 = vld [vmem:[%s497 + $0x198] sm:$0xff]
      %v715 = vld [vmem:[%s497 + $0x1a0] sm:$0xff]
      %v716 = vld [vmem:[%s497 + $0x1a8] sm:$0xff]
      %v717 = vld [vmem:[%s497 + $0x1b0] sm:$0xff]
      %v718 = vld [vmem:[%s497 + $0x1b8] sm:$0xff]
      %v719 = vld [vmem:[%s497 + $0x1c0] sm:$0xff]
      %v720 = vld [vmem:[%s497 + $0x1c8] sm:$0xff]
      %v721 = vld [vmem:[%s497 + $0x1d0] sm:$0xff]
      %v722 = vld [vmem:[%s497 + $0x1d8] sm:$0xff]
      %v723 = vld [vmem:[%s497 + $0x1e0] sm:$0xff]
      %v724 = vld [vmem:[%s497 + $0x1e8] sm:$0xff]
      %v725 = vld [vmem:[%s497 + $0x1f0] sm:$0xff]
      %v726 = vld [vmem:[%s497 + $0x1f8] sm:$0xff]
      %v727 = vmul.f32 %v657, 0.5
      %v728 = vadd.f32 %v727, 0.5
      %vm729 = vcmask 64512
      %v731 = vsel %vm729, %v508, 0
      %v734 = vsel %vm729, %v509, 0
      %v737 = vsel %vm729, %v510, 0
      %v740 = vsel %vm729, %v511, 0
      %v743 = vsel %vm729, %v512, 0
      %v746 = vsel %vm729, %v513, 0
      %v749 = vsel %vm729, %v514, 0
      %v752 = vsel %vm729, %v515, 0
      %v755 = vsel %vm729, %v516, 0
      %v758 = vsel %vm729, %v517, 0
      %v761 = vsel %vm729, %v518, 0
      %v764 = vsel %vm729, %v519, 0
      %v767 = vsel %vm729, %v520, 0
      %v770 = vsel %vm729, %v521, 0
      %v773 = vsel %vm729, %v522, 0
      %v776 = vsel %vm729, %v523, 0
      %v779 = vsel %vm729, %v524, 0
      %v782 = vsel %vm729, %v525, 0
      %v785 = vsel %vm729, %v526, 0
      %v788 = vsel %vm729, %v527, 0
      %v791 = vsel %vm729, %v528, 0
      %v794 = vsel %vm729, %v529, 0
      %v797 = vsel %vm729, %v530, 0
      %v800 = vsel %vm729, %v531, 0
      %v803 = vsel %vm729, %v532, 0
      %v806 = vsel %vm729, %v533, 0
      %v809 = vsel %vm729, %v534, 0
      %v812 = vsel %vm729, %v535, 0
      %v815 = vsel %vm729, %v536, 0
      %v818 = vsel %vm729, %v537, 0
      %v821 = vsel %vm729, %v538, 0
      %v824 = vsel %vm729, %v539, 0
      %v827 = vsel %vm729, %v540, 0
      %v830 = vsel %vm729, %v541, 0
      %v833 = vsel %vm729, %v542, 0
      %v836 = vsel %vm729, %v543, 0
      %v839 = vsel %vm729, %v544, 0
      %v842 = vsel %vm729, %v545, 0
      %v845 = vsel %vm729, %v546, 0
      %v848 = vsel %vm729, %v547, 0
      %v851 = vsel %vm729, %v548, 0
      %v854 = vsel %vm729, %v549, 0
      %v857 = vsel %vm729, %v550, 0
      %v860 = vsel %vm729, %v551, 0
      %v863 = vsel %vm729, %v552, 0
      %v866 = vsel %vm729, %v553, 0
      %v869 = vsel %vm729, %v554, 0
      %v872 = vsel %vm729, %v555, 0
      %v875 = vsel %vm729, %v556, 0
      %v878 = vsel %vm729, %v557, 0
      %v881 = vsel %vm729, %v558, 0
      %v884 = vsel %vm729, %v559, 0
      %v887 = vsel %vm729, %v560, 0
      %v890 = vsel %vm729, %v561, 0
      %v893 = vsel %vm729, %v562, 0
      %v896 = vsel %vm729, %v563, 0
      %v899 = vsel %vm729, %v564, 0
      %v902 = vsel %vm729, %v565, 0
      %v905 = vsel %vm729, %v566, 0
      %v908 = vsel %vm729, %v567, 0
      %v911 = vsel %vm729, %v568, 0
      %v914 = vsel %vm729, %v569, 0
      %v917 = vsel %vm729, %v570, 0
      %v920 = vsel %vm729, %v571, 0
      %922 = vmatpush.msra.mxu0 0.0
      %923 = vmatpush.msra.mxu0 0.0
      %924 = vmatpush.msra.mxu0 0.0
      %925 = vmatpush.msra.mxu0 0.0
      %926 = vmatpush.msra.mxu0 0.0
      %927 = vmatpush.msra.mxu0 0.0
      %928 = vmatpush.msra.mxu0 0.0
      %929 = vmatpush.msra.mxu0 0.0
      %930 = vmatpush.msra.mxu0 0.0
      %931 = vmatpush.msra.mxu0 0.0
      %932 = vmatpush.msra.mxu0 0.0
      %933 = vmatpush.msra.mxu0 0.0
      %934 = vmatpush.msra.mxu0 0.0
      %935 = vmatpush.msra.mxu0 0.0
      %936 = vmatpush.msra.mxu0 0.0
      %937 = vmatpush.msra.mxu0 %v728
      %938 = vmatmul.f32.gmra.mxu0 %v731
      %v939 = vpop.f32.mrf.mxu0
      %v940 = vadd.f32 0.0, %v939
      %941 = vmatmul.f32.gmra.mxu0 %v734
      %v942 = vpop.f32.mrf.mxu0
      %v943 = vadd.f32 0.0, %v942
      %944 = vmatmul.f32.gmra.mxu0 %v737
      %v945 = vpop.f32.mrf.mxu0
      %v946 = vadd.f32 0.0, %v945
      %947 = vmatmul.f32.gmra.mxu0 %v740
      %v948 = vpop.f32.mrf.mxu0
      %v949 = vadd.f32 0.0, %v948
      %950 = vmatmul.f32.gmra.mxu0 %v743
      %v951 = vpop.f32.mrf.mxu0
      %v952 = vadd.f32 0.0, %v951
      %953 = vmatmul.f32.gmra.mxu0 %v746
      %v954 = vpop.f32.mrf.mxu0
      %v955 = vadd.f32 0.0, %v954
      %956 = vmatmul.f32.gmra.mxu0 %v749
      %v957 = vpop.f32.mrf.mxu0
      %v958 = vadd.f32 0.0, %v957
      %959 = vmatmul.f32.gmra.mxu0 %v752
      %v960 = vpop.f32.mrf.mxu0
      %v961 = vadd.f32 0.0, %v960
      %962 = vmatmul.f32.gmra.mxu0 %v755
      %v963 = vpop.f32.mrf.mxu0
      %v964 = vadd.f32 0.0, %v963
      %965 = vmatmul.f32.gmra.mxu0 %v758
      %v966 = vpop.f32.mrf.mxu0
      %v967 = vadd.f32 0.0, %v966
      %968 = vmatmul.f32.gmra.mxu0 %v761
      %v969 = vpop.f32.mrf.mxu0
      %v970 = vadd.f32 0.0, %v969
      %971 = vmatmul.f32.gmra.mxu0 %v764
      %v972 = vpop.f32.mrf.mxu0
      %v973 = vadd.f32 0.0, %v972
      %974 = vmatmul.f32.gmra.mxu0 %v767
      %v975 = vpop.f32.mrf.mxu0
      %v976 = vadd.f32 0.0, %v975
      %977 = vmatmul.f32.gmra.mxu0 %v770
      %v978 = vpop.f32.mrf.mxu0
      %v979 = vadd.f32 0.0, %v978
      %980 = vmatmul.f32.gmra.mxu0 %v773
      %v981 = vpop.f32.mrf.mxu0
      %v982 = vadd.f32 0.0, %v981
      %983 = vmatmul.f32.gmra.mxu0 %v776
      %v984 = vpop.f32.mrf.mxu0
      %v985 = vadd.f32 0.0, %v984
      %986 = vmatmul.f32.gmra.mxu0 %v779
      %v987 = vpop.f32.mrf.mxu0
      %v988 = vadd.f32 0.0, %v987
      %989 = vmatmul.f32.gmra.mxu0 %v782
      %v990 = vpop.f32.mrf.mxu0
      %v991 = vadd.f32 0.0, %v990
      %992 = vmatmul.f32.gmra.mxu0 %v785
      %v993 = vpop.f32.mrf.mxu0
      %v994 = vadd.f32 0.0, %v993
      %995 = vmatmul.f32.gmra.mxu0 %v788
      %v996 = vpop.f32.mrf.mxu0
      %v997 = vadd.f32 0.0, %v996
      %998 = vmatmul.f32.gmra.mxu0 %v791
      %v999 = vpop.f32.mrf.mxu0
      %v1000 = vadd.f32 0.0, %v999
      %1001 = vmatmul.f32.gmra.mxu0 %v794
      %v1002 = vpop.f32.mrf.mxu0
      %v1003 = vadd.f32 0.0, %v1002
      %1004 = vmatmul.f32.gmra.mxu0 %v797
      %v1005 = vpop.f32.mrf.mxu0
      %v1006 = vadd.f32 0.0, %v1005
      %1007 = vmatmul.f32.gmra.mxu0 %v800
      %v1008 = vpop.f32.mrf.mxu0
      %v1009 = vadd.f32 0.0, %v1008
      %1010 = vmatmul.f32.gmra.mxu0 %v803
      %v1011 = vpop.f32.mrf.mxu0
      %v1012 = vadd.f32 0.0, %v1011
      %1013 = vmatmul.f32.gmra.mxu0 %v806
      %v1014 = vpop.f32.mrf.mxu0
      %v1015 = vadd.f32 0.0, %v1014
      %1016 = vmatmul.f32.gmra.mxu0 %v809
      %v1017 = vpop.f32.mrf.mxu0
      %v1018 = vadd.f32 0.0, %v1017
      %1019 = vmatmul.f32.gmra.mxu0 %v812
      %v1020 = vpop.f32.mrf.mxu0
      %v1021 = vadd.f32 0.0, %v1020
      %1022 = vmatmul.f32.gmra.mxu0 %v815
      %v1023 = vpop.f32.mrf.mxu0
      %v1024 = vadd.f32 0.0, %v1023
      %1025 = vmatmul.f32.gmra.mxu0 %v818
      %v1026 = vpop.f32.mrf.mxu0
      %v1027 = vadd.f32 0.0, %v1026
      %1028 = vmatmul.f32.gmra.mxu0 %v821
      %v1029 = vpop.f32.mrf.mxu0
      %v1030 = vadd.f32 0.0, %v1029
      %1031 = vmatmul.f32.gmra.mxu0 %v824
      %v1032 = vpop.f32.mrf.mxu0
      %v1033 = vadd.f32 0.0, %v1032
      %1034 = vmatmul.f32.gmra.mxu0 %v827
      %v1035 = vpop.f32.mrf.mxu0
      %v1036 = vadd.f32 0.0, %v1035
      %1037 = vmatmul.f32.gmra.mxu0 %v830
      %v1038 = vpop.f32.mrf.mxu0
      %v1039 = vadd.f32 0.0, %v1038
      %1040 = vmatmul.f32.gmra.mxu0 %v833
      %v1041 = vpop.f32.mrf.mxu0
      %v1042 = vadd.f32 0.0, %v1041
      %1043 = vmatmul.f32.gmra.mxu0 %v836
      %v1044 = vpop.f32.mrf.mxu0
      %v1045 = vadd.f32 0.0, %v1044
      %1046 = vmatmul.f32.gmra.mxu0 %v839
      %v1047 = vpop.f32.mrf.mxu0
      %v1048 = vadd.f32 0.0, %v1047
      %1049 = vmatmul.f32.gmra.mxu0 %v842
      %v1050 = vpop.f32.mrf.mxu0
      %v1051 = vadd.f32 0.0, %v1050
      %1052 = vmatmul.f32.gmra.mxu0 %v845
      %v1053 = vpop.f32.mrf.mxu0
      %v1054 = vadd.f32 0.0, %v1053
      %1055 = vmatmul.f32.gmra.mxu0 %v848
      %v1056 = vpop.f32.mrf.mxu0
      %v1057 = vadd.f32 0.0, %v1056
      %1058 = vmatmul.f32.gmra.mxu0 %v851
      %v1059 = vpop.f32.mrf.mxu0
      %v1060 = vadd.f32 0.0, %v1059
      %1061 = vmatmul.f32.gmra.mxu0 %v854
      %v1062 = vpop.f32.mrf.mxu0
      %v1063 = vadd.f32 0.0, %v1062
      %1064 = vmatmul.f32.gmra.mxu0 %v857
      %v1065 = vpop.f32.mrf.mxu0
      %v1066 = vadd.f32 0.0, %v1065
      %1067 = vmatmul.f32.gmra.mxu0 %v860
      %v1068 = vpop.f32.mrf.mxu0
      %v1069 = vadd.f32 0.0, %v1068
      %1070 = vmatmul.f32.gmra.mxu0 %v863
      %v1071 = vpop.f32.mrf.mxu0
      %v1072 = vadd.f32 0.0, %v1071
      %1073 = vmatmul.f32.gmra.mxu0 %v866
      %v1074 = vpop.f32.mrf.mxu0
      %v1075 = vadd.f32 0.0, %v1074
      %1076 = vmatmul.f32.gmra.mxu0 %v869
      %v1077 = vpop.f32.mrf.mxu0
      %v1078 = vadd.f32 0.0, %v1077
      %1079 = vmatmul.f32.gmra.mxu0 %v872
      %v1080 = vpop.f32.mrf.mxu0
      %v1081 = vadd.f32 0.0, %v1080
      %1082 = vmatmul.f32.gmra.mxu0 %v875
      %v1083 = vpop.f32.mrf.mxu0
      %v1084 = vadd.f32 0.0, %v1083
      %1085 = vmatmul.f32.gmra.mxu0 %v878
      %v1086 = vpop.f32.mrf.mxu0
      %v1087 = vadd.f32 0.0, %v1086
      %1088 = vmatmul.f32.gmra.mxu0 %v881
      %v1089 = vpop.f32.mrf.mxu0
      %v1090 = vadd.f32 0.0, %v1089
      %1091 = vmatmul.f32.gmra.mxu0 %v884
      %v1092 = vpop.f32.mrf.mxu0
      %v1093 = vadd.f32 0.0, %v1092
      %1094 = vmatmul.f32.gmra.mxu0 %v887
      %v1095 = vpop.f32.mrf.mxu0
      %v1096 = vadd.f32 0.0, %v1095
      %1097 = vmatmul.f32.gmra.mxu0 %v890
      %v1098 = vpop.f32.mrf.mxu0
      %v1099 = vadd.f32 0.0, %v1098
      %1100 = vmatmul.f32.gmra.mxu0 %v893
      %v1101 = vpop.f32.mrf.mxu0
      %v1102 = vadd.f32 0.0, %v1101
      %1103 = vmatmul.f32.gmra.mxu0 %v896
      %v1104 = vpop.f32.mrf.mxu0
      %v1105 = vadd.f32 0.0, %v1104
      %1106 = vmatmul.f32.gmra.mxu0 %v899
      %v1107 = vpop.f32.mrf.mxu0
      %v1108 = vadd.f32 0.0, %v1107
      %1109 = vmatmul.f32.gmra.mxu0 %v902
      %v1110 = vpop.f32.mrf.mxu0
      %v1111 = vadd.f32 0.0, %v1110
      %1112 = vmatmul.f32.gmra.mxu0 %v905
      %v1113 = vpop.f32.mrf.mxu0
      %v1114 = vadd.f32 0.0, %v1113
      %1115 = vmatmul.f32.gmra.mxu0 %v908
      %v1116 = vpop.f32.mrf.mxu0
      %v1117 = vadd.f32 0.0, %v1116
      %1118 = vmatmul.f32.gmra.mxu0 %v911
      %v1119 = vpop.f32.mrf.mxu0
      %v1120 = vadd.f32 0.0, %v1119
      %1121 = vmatmul.f32.gmra.mxu0 %v914
      %v1122 = vpop.f32.mrf.mxu0
      %v1123 = vadd.f32 0.0, %v1122
      %1124 = vmatmul.f32.gmra.mxu0 %v917
      %v1125 = vpop.f32.mrf.mxu0
      %v1126 = vadd.f32 0.0, %v1125
      %1127 = vmatmul.f32.gmra.mxu0 %v920
      %v1128 = vpop.f32.mrf.mxu0
      %v1129 = vadd.f32 0.0, %v1128
      %1130 = vdwg.mxu0
      %vm1131 = vcmp.lt.f32.partialorder %v663, %v940
      %vm1132 = vcmp.lt.f32.partialorder %v664, %v943
      %vm1133 = vcmp.lt.f32.partialorder %v665, %v946
      %vm1134 = vcmp.lt.f32.partialorder %v666, %v949
      %vm1135 = vcmp.lt.f32.partialorder %v667, %v952
      %vm1136 = vcmp.lt.f32.partialorder %v668, %v955
      %vm1137 = vcmp.lt.f32.partialorder %v669, %v958
      %vm1138 = vcmp.lt.f32.partialorder %v670, %v961
      %vm1139 = vcmp.lt.f32.partialorder %v671, %v964
      %vm1140 = vcmp.lt.f32.partialorder %v672, %v967
      %vm1141 = vcmp.lt.f32.partialorder %v673, %v970
      %vm1142 = vcmp.lt.f32.partialorder %v674, %v973
      %vm1143 = vcmp.lt.f32.partialorder %v675, %v976
      %vm1144 = vcmp.lt.f32.partialorder %v676, %v979
      %vm1145 = vcmp.lt.f32.partialorder %v677, %v982
      %vm1146 = vcmp.lt.f32.partialorder %v678, %v985
      %vm1147 = vcmp.lt.f32.partialorder %v679, %v988
      %vm1148 = vcmp.lt.f32.partialorder %v680, %v991
      %vm1149 = vcmp.lt.f32.partialorder %v681, %v994
      %vm1150 = vcmp.lt.f32.partialorder %v682, %v997
      %vm1151 = vcmp.lt.f32.partialorder %v683, %v1000
      %vm1152 = vcmp.lt.f32.partialorder %v684, %v1003
      %vm1153 = vcmp.lt.f32.partialorder %v685, %v1006
      %vm1154 = vcmp.lt.f32.partialorder %v686, %v1009
      %vm1155 = vcmp.lt.f32.partialorder %v687, %v1012
      %vm1156 = vcmp.lt.f32.partialorder %v688, %v1015
      %vm1157 = vcmp.lt.f32.partialorder %v689, %v1018
      %vm1158 = vcmp.lt.f32.partialorder %v690, %v1021
      %vm1159 = vcmp.lt.f32.partialorder %v691, %v1024
      %vm1160 = vcmp.lt.f32.partialorder %v692, %v1027
      %vm1161 = vcmp.lt.f32.partialorder %v693, %v1030
      %vm1162 = vcmp.lt.f32.partialorder %v694, %v1033
      %vm1163 = vcmp.lt.f32.partialorder %v695, %v1036
      %vm1164 = vcmp.lt.f32.partialorder %v696, %v1039
      %vm1165 = vcmp.lt.f32.partialorder %v697, %v1042
      %vm1166 = vcmp.lt.f32.partialorder %v698, %v1045
      %vm1167 = vcmp.lt.f32.partialorder %v699, %v1048
      %vm1168 = vcmp.lt.f32.partialorder %v700, %v1051
      %vm1169 = vcmp.lt.f32.partialorder %v701, %v1054
      %vm1170 = vcmp.lt.f32.partialorder %v702, %v1057
      %vm1171 = vcmp.lt.f32.partialorder %v703, %v1060
      %vm1172 = vcmp.lt.f32.partialorder %v704, %v1063
      %vm1173 = vcmp.lt.f32.partialorder %v705, %v1066
      %vm1174 = vcmp.lt.f32.partialorder %v706, %v1069
      %vm1175 = vcmp.lt.f32.partialorder %v707, %v1072
      %vm1176 = vcmp.lt.f32.partialorder %v708, %v1075
      %vm1177 = vcmp.lt.f32.partialorder %v709, %v1078
      %vm1178 = vcmp.lt.f32.partialorder %v710, %v1081
      %vm1179 = vcmp.lt.f32.partialorder %v711, %v1084
      %vm1180 = vcmp.lt.f32.partialorder %v712, %v1087
      %vm1181 = vcmp.lt.f32.partialorder %v713, %v1090
      %vm1182 = vcmp.lt.f32.partialorder %v714, %v1093
      %vm1183 = vcmp.lt.f32.partialorder %v715, %v1096
      %vm1184 = vcmp.lt.f32.partialorder %v716, %v1099
      %vm1185 = vcmp.lt.f32.partialorder %v717, %v1102
      %vm1186 = vcmp.lt.f32.partialorder %v718, %v1105
      %vm1187 = vcmp.lt.f32.partialorder %v719, %v1108
      %vm1188 = vcmp.lt.f32.partialorder %v720, %v1111
      %vm1189 = vcmp.lt.f32.partialorder %v721, %v1114
      %vm1190 = vcmp.lt.f32.partialorder %v722, %v1117
      %vm1191 = vcmp.lt.f32.partialorder %v723, %v1120
      %vm1192 = vcmp.lt.f32.partialorder %v724, %v1123
      %vm1193 = vcmp.lt.f32.partialorder %v725, %v1126
      %vm1194 = vcmp.lt.f32.partialorder %v726, %v1129
      %v1195 = vsel %vm1131, 1.0, -1.0
      %v1196 = vsel %vm1132, 1.0, -1.0
      %v1197 = vsel %vm1133, 1.0, -1.0
      %v1198 = vsel %vm1134, 1.0, -1.0
      %v1199 = vsel %vm1135, 1.0, -1.0
      %v1200 = vsel %vm1136, 1.0, -1.0
      %v1201 = vsel %vm1137, 1.0, -1.0
      %v1202 = vsel %vm1138, 1.0, -1.0
      %v1203 = vsel %vm1139, 1.0, -1.0
      %v1204 = vsel %vm1140, 1.0, -1.0
      %v1205 = vsel %vm1141, 1.0, -1.0
      %v1206 = vsel %vm1142, 1.0, -1.0
      %v1207 = vsel %vm1143, 1.0, -1.0
      %v1208 = vsel %vm1144, 1.0, -1.0
      %v1209 = vsel %vm1145, 1.0, -1.0
      %v1210 = vsel %vm1146, 1.0, -1.0
      %v1211 = vsel %vm1147, 1.0, -1.0
      %v1212 = vsel %vm1148, 1.0, -1.0
      %v1213 = vsel %vm1149, 1.0, -1.0
      %v1214 = vsel %vm1150, 1.0, -1.0
      %v1215 = vsel %vm1151, 1.0, -1.0
      %v1216 = vsel %vm1152, 1.0, -1.0
      %v1217 = vsel %vm1153, 1.0, -1.0
      %v1218 = vsel %vm1154, 1.0, -1.0
      %v1219 = vsel %vm1155, 1.0, -1.0
      %v1220 = vsel %vm1156, 1.0, -1.0
      %v1221 = vsel %vm1157, 1.0, -1.0
      %v1222 = vsel %vm1158, 1.0, -1.0
      %v1223 = vsel %vm1159, 1.0, -1.0
      %v1224 = vsel %vm1160, 1.0, -1.0
      %v1225 = vsel %vm1161, 1.0, -1.0
      %v1226 = vsel %vm1162, 1.0, -1.0
      %v1227 = vsel %vm1163, 1.0, -1.0
      %v1228 = vsel %vm1164, 1.0, -1.0
      %v1229 = vsel %vm1165, 1.0, -1.0
      %v1230 = vsel %vm1166, 1.0, -1.0
      %v1231 = vsel %vm1167, 1.0, -1.0
      %v1232 = vsel %vm1168, 1.0, -1.0
      %v1233 = vsel %vm1169, 1.0, -1.0
      %v1234 = vsel %vm1170, 1.0, -1.0
      %v1235 = vsel %vm1171, 1.0, -1.0
      %v1236 = vsel %vm1172, 1.0, -1.0
      %v1237 = vsel %vm1173, 1.0, -1.0
      %v1238 = vsel %vm1174, 1.0, -1.0
      %v1239 = vsel %vm1175, 1.0, -1.0
      %v1240 = vsel %vm1176, 1.0, -1.0
      %v1241 = vsel %vm1177, 1.0, -1.0
      %v1242 = vsel %vm1178, 1.0, -1.0
      %v1243 = vsel %vm1179, 1.0, -1.0
      %v1244 = vsel %vm1180, 1.0, -1.0
      %v1245 = vsel %vm1181, 1.0, -1.0
      %v1246 = vsel %vm1182, 1.0, -1.0
      %v1247 = vsel %vm1183, 1.0, -1.0
      %v1248 = vsel %vm1184, 1.0, -1.0
      %v1249 = vsel %vm1185, 1.0, -1.0
      %v1250 = vsel %vm1186, 1.0, -1.0
      %v1251 = vsel %vm1187, 1.0, -1.0
      %v1252 = vsel %vm1188, 1.0, -1.0
      %v1253 = vsel %vm1189, 1.0, -1.0
      %v1254 = vsel %vm1190, 1.0, -1.0
      %v1255 = vsel %vm1191, 1.0, -1.0
      %v1256 = vsel %vm1192, 1.0, -1.0
      %v1257 = vsel %vm1193, 1.0, -1.0
      %v1258 = vsel %vm1194, 1.0, -1.0
      %v1260 = vperm.slane %v662, 0
      %vm1262 = vcmask 261120
      %v1264 = vsel %vm1262, %v1195, 0
      %v1267 = vsel %vm1262, %v1196, 0
      %v1270 = vsel %vm1262, %v1197, 0
      %v1273 = vsel %vm1262, %v1198, 0
      %v1276 = vsel %vm1262, %v1199, 0
      %v1279 = vsel %vm1262, %v1200, 0
      %v1282 = vsel %vm1262, %v1201, 0
      %v1285 = vsel %vm1262, %v1202, 0
      %v1288 = vsel %vm1262, %v1203, 0
      %v1291 = vsel %vm1262, %v1204, 0
      %v1294 = vsel %vm1262, %v1205, 0
      %v1297 = vsel %vm1262, %v1206, 0
      %v1300 = vsel %vm1262, %v1207, 0
      %v1303 = vsel %vm1262, %v1208, 0
      %v1306 = vsel %vm1262, %v1209, 0
      %v1309 = vsel %vm1262, %v1210, 0
      %v1312 = vsel %vm1262, %v1211, 0
      %v1315 = vsel %vm1262, %v1212, 0
      %v1318 = vsel %vm1262, %v1213, 0
      %v1321 = vsel %vm1262, %v1214, 0
      %v1324 = vsel %vm1262, %v1215, 0
      %v1327 = vsel %vm1262, %v1216, 0
      %v1330 = vsel %vm1262, %v1217, 0
      %v1333 = vsel %vm1262, %v1218, 0
      %v1336 = vsel %vm1262, %v1219, 0
      %v1339 = vsel %vm1262, %v1220, 0
      %v1342 = vsel %vm1262, %v1221, 0
      %v1345 = vsel %vm1262, %v1222, 0
      %v1348 = vsel %vm1262, %v1223, 0
      %v1351 = vsel %vm1262, %v1224, 0
      %v1354 = vsel %vm1262, %v1225, 0
      %v1357 = vsel %vm1262, %v1226, 0
      %v1360 = vsel %vm1262, %v1227, 0
      %v1363 = vsel %vm1262, %v1228, 0
      %v1366 = vsel %vm1262, %v1229, 0
      %v1369 = vsel %vm1262, %v1230, 0
      %v1372 = vsel %vm1262, %v1231, 0
      %v1375 = vsel %vm1262, %v1232, 0
      %v1378 = vsel %vm1262, %v1233, 0
      %v1381 = vsel %vm1262, %v1234, 0
      %v1384 = vsel %vm1262, %v1235, 0
      %v1387 = vsel %vm1262, %v1236, 0
      %v1390 = vsel %vm1262, %v1237, 0
      %v1393 = vsel %vm1262, %v1238, 0
      %v1396 = vsel %vm1262, %v1239, 0
      %v1399 = vsel %vm1262, %v1240, 0
      %v1402 = vsel %vm1262, %v1241, 0
      %v1405 = vsel %vm1262, %v1242, 0
      %v1408 = vsel %vm1262, %v1243, 0
      %v1411 = vsel %vm1262, %v1244, 0
      %v1414 = vsel %vm1262, %v1245, 0
      %v1417 = vsel %vm1262, %v1246, 0
      %v1420 = vsel %vm1262, %v1247, 0
      %v1423 = vsel %vm1262, %v1248, 0
      %v1426 = vsel %vm1262, %v1249, 0
      %v1429 = vsel %vm1262, %v1250, 0
      %v1432 = vsel %vm1262, %v1251, 0
      %v1435 = vsel %vm1262, %v1252, 0
      %v1438 = vsel %vm1262, %v1253, 0
      %v1441 = vsel %vm1262, %v1254, 0
      %v1444 = vsel %vm1262, %v1255, 0
      %v1447 = vsel %vm1262, %v1256, 0
      %v1450 = vsel %vm1262, %v1257, 0
      %v1453 = vsel %vm1262, %v1258, 0
      %1455 = vmatpush.msra.mxu0 0.0
      %1456 = vmatpush.msra.mxu0 0.0
      %1457 = vmatpush.msra.mxu0 0.0
      %1458 = vmatpush.msra.mxu0 0.0
      %1459 = vmatpush.msra.mxu0 0.0
      %1460 = vmatpush.msra.mxu0 0.0
      %1461 = vmatpush.msra.mxu0 0.0
      %1462 = vmatpush.msra.mxu0 0.0
      %1463 = vmatpush.msra.mxu0 0.0
      %1464 = vmatpush.msra.mxu0 0.0
      %1465 = vmatpush.msra.mxu0 0.0
      %1466 = vmatpush.msra.mxu0 0.0
      %1467 = vmatpush.msra.mxu0 %v661
      %1468 = vmatpush.msra.mxu0 %v660
      %1469 = vmatpush.msra.mxu0 %v659
      %1470 = vmatpush.msra.mxu0 %v658
      %1471 = vmatmul.f32.gmra.mxu0 %v1264
      %v1472 = vpop.f32.mrf.mxu0
      %v1473 = vadd.f32 %v1260, %v1472
      %1474 = vmatmul.f32.gmra.mxu0 %v1267
      %v1475 = vpop.f32.mrf.mxu0
      %v1476 = vadd.f32 %v1260, %v1475
      %1477 = vmatmul.f32.gmra.mxu0 %v1270
      %v1478 = vpop.f32.mrf.mxu0
      %v1479 = vadd.f32 %v1260, %v1478
      %1480 = vmatmul.f32.gmra.mxu0 %v1273
      %v1481 = vpop.f32.mrf.mxu0
      %v1482 = vadd.f32 %v1260, %v1481
      %1483 = vmatmul.f32.gmra.mxu0 %v1276
      %v1484 = vpop.f32.mrf.mxu0
      %v1485 = vadd.f32 %v1260, %v1484
      %1486 = vmatmul.f32.gmra.mxu0 %v1279
      %v1487 = vpop.f32.mrf.mxu0
      %v1488 = vadd.f32 %v1260, %v1487
      %1489 = vmatmul.f32.gmra.mxu0 %v1282
      %v1490 = vpop.f32.mrf.mxu0
      %v1491 = vadd.f32 %v1260, %v1490
      %1492 = vmatmul.f32.gmra.mxu0 %v1285
      %v1493 = vpop.f32.mrf.mxu0
      %v1494 = vadd.f32 %v1260, %v1493
      %1495 = vmatmul.f32.gmra.mxu0 %v1288
      %v1496 = vpop.f32.mrf.mxu0
      %v1497 = vadd.f32 %v1260, %v1496
      %1498 = vmatmul.f32.gmra.mxu0 %v1291
      %v1499 = vpop.f32.mrf.mxu0
      %v1500 = vadd.f32 %v1260, %v1499
      %1501 = vmatmul.f32.gmra.mxu0 %v1294
      %v1502 = vpop.f32.mrf.mxu0
      %v1503 = vadd.f32 %v1260, %v1502
      %1504 = vmatmul.f32.gmra.mxu0 %v1297
      %v1505 = vpop.f32.mrf.mxu0
      %v1506 = vadd.f32 %v1260, %v1505
      %1507 = vmatmul.f32.gmra.mxu0 %v1300
      %v1508 = vpop.f32.mrf.mxu0
      %v1509 = vadd.f32 %v1260, %v1508
      %1510 = vmatmul.f32.gmra.mxu0 %v1303
      %v1511 = vpop.f32.mrf.mxu0
      %v1512 = vadd.f32 %v1260, %v1511
      %1513 = vmatmul.f32.gmra.mxu0 %v1306
      %v1514 = vpop.f32.mrf.mxu0
      %v1515 = vadd.f32 %v1260, %v1514
      %1516 = vmatmul.f32.gmra.mxu0 %v1309
      %v1517 = vpop.f32.mrf.mxu0
      %v1518 = vadd.f32 %v1260, %v1517
      %1519 = vmatmul.f32.gmra.mxu0 %v1312
      %v1520 = vpop.f32.mrf.mxu0
      %v1521 = vadd.f32 %v1260, %v1520
      %1522 = vmatmul.f32.gmra.mxu0 %v1315
      %v1523 = vpop.f32.mrf.mxu0
      %v1524 = vadd.f32 %v1260, %v1523
      %1525 = vmatmul.f32.gmra.mxu0 %v1318
      %v1526 = vpop.f32.mrf.mxu0
      %v1527 = vadd.f32 %v1260, %v1526
      %1528 = vmatmul.f32.gmra.mxu0 %v1321
      %v1529 = vpop.f32.mrf.mxu0
      %v1530 = vadd.f32 %v1260, %v1529
      %1531 = vmatmul.f32.gmra.mxu0 %v1324
      %v1532 = vpop.f32.mrf.mxu0
      %v1533 = vadd.f32 %v1260, %v1532
      %1534 = vmatmul.f32.gmra.mxu0 %v1327
      %v1535 = vpop.f32.mrf.mxu0
      %v1536 = vadd.f32 %v1260, %v1535
      %1537 = vmatmul.f32.gmra.mxu0 %v1330
      %v1538 = vpop.f32.mrf.mxu0
      %v1539 = vadd.f32 %v1260, %v1538
      %1540 = vmatmul.f32.gmra.mxu0 %v1333
      %v1541 = vpop.f32.mrf.mxu0
      %v1542 = vadd.f32 %v1260, %v1541
      %1543 = vmatmul.f32.gmra.mxu0 %v1336
      %v1544 = vpop.f32.mrf.mxu0
      %v1545 = vadd.f32 %v1260, %v1544
      %1546 = vmatmul.f32.gmra.mxu0 %v1339
      %v1547 = vpop.f32.mrf.mxu0
      %v1548 = vadd.f32 %v1260, %v1547
      %1549 = vmatmul.f32.gmra.mxu0 %v1342
      %v1550 = vpop.f32.mrf.mxu0
      %v1551 = vadd.f32 %v1260, %v1550
      %1552 = vmatmul.f32.gmra.mxu0 %v1345
      %v1553 = vpop.f32.mrf.mxu0
      %v1554 = vadd.f32 %v1260, %v1553
      %1555 = vmatmul.f32.gmra.mxu0 %v1348
      %v1556 = vpop.f32.mrf.mxu0
      %v1557 = vadd.f32 %v1260, %v1556
      %1558 = vmatmul.f32.gmra.mxu0 %v1351
      %v1559 = vpop.f32.mrf.mxu0
      %v1560 = vadd.f32 %v1260, %v1559
      %1561 = vmatmul.f32.gmra.mxu0 %v1354
      %v1562 = vpop.f32.mrf.mxu0
      %v1563 = vadd.f32 %v1260, %v1562
      %1564 = vmatmul.f32.gmra.mxu0 %v1357
      %v1565 = vpop.f32.mrf.mxu0
      %v1566 = vadd.f32 %v1260, %v1565
      %1567 = vmatmul.f32.gmra.mxu0 %v1360
      %v1568 = vpop.f32.mrf.mxu0
      %v1569 = vadd.f32 %v1260, %v1568
      %1570 = vmatmul.f32.gmra.mxu0 %v1363
      %v1571 = vpop.f32.mrf.mxu0
      %v1572 = vadd.f32 %v1260, %v1571
      %1573 = vmatmul.f32.gmra.mxu0 %v1366
      %v1574 = vpop.f32.mrf.mxu0
      %v1575 = vadd.f32 %v1260, %v1574
      %1576 = vmatmul.f32.gmra.mxu0 %v1369
      %v1577 = vpop.f32.mrf.mxu0
      %v1578 = vadd.f32 %v1260, %v1577
      %1579 = vmatmul.f32.gmra.mxu0 %v1372
      %v1580 = vpop.f32.mrf.mxu0
      %v1581 = vadd.f32 %v1260, %v1580
      %1582 = vmatmul.f32.gmra.mxu0 %v1375
      %v1583 = vpop.f32.mrf.mxu0
      %v1584 = vadd.f32 %v1260, %v1583
      %1585 = vmatmul.f32.gmra.mxu0 %v1378
      %v1586 = vpop.f32.mrf.mxu0
      %v1587 = vadd.f32 %v1260, %v1586
      %1588 = vmatmul.f32.gmra.mxu0 %v1381
      %v1589 = vpop.f32.mrf.mxu0
      %v1590 = vadd.f32 %v1260, %v1589
      %1591 = vmatmul.f32.gmra.mxu0 %v1384
      %v1592 = vpop.f32.mrf.mxu0
      %v1593 = vadd.f32 %v1260, %v1592
      %1594 = vmatmul.f32.gmra.mxu0 %v1387
      %v1595 = vpop.f32.mrf.mxu0
      %v1596 = vadd.f32 %v1260, %v1595
      %1597 = vmatmul.f32.gmra.mxu0 %v1390
      %v1598 = vpop.f32.mrf.mxu0
      %v1599 = vadd.f32 %v1260, %v1598
      %1600 = vmatmul.f32.gmra.mxu0 %v1393
      %v1601 = vpop.f32.mrf.mxu0
      %v1602 = vadd.f32 %v1260, %v1601
      %1603 = vmatmul.f32.gmra.mxu0 %v1396
      %v1604 = vpop.f32.mrf.mxu0
      %v1605 = vadd.f32 %v1260, %v1604
      %1606 = vmatmul.f32.gmra.mxu0 %v1399
      %v1607 = vpop.f32.mrf.mxu0
      %v1608 = vadd.f32 %v1260, %v1607
      %1609 = vmatmul.f32.gmra.mxu0 %v1402
      %v1610 = vpop.f32.mrf.mxu0
      %v1611 = vadd.f32 %v1260, %v1610
      %1612 = vmatmul.f32.gmra.mxu0 %v1405
      %v1613 = vpop.f32.mrf.mxu0
      %v1614 = vadd.f32 %v1260, %v1613
      %1615 = vmatmul.f32.gmra.mxu0 %v1408
      %v1616 = vpop.f32.mrf.mxu0
      %v1617 = vadd.f32 %v1260, %v1616
      %1618 = vmatmul.f32.gmra.mxu0 %v1411
      %v1619 = vpop.f32.mrf.mxu0
      %v1620 = vadd.f32 %v1260, %v1619
      %1621 = vmatmul.f32.gmra.mxu0 %v1414
      %v1622 = vpop.f32.mrf.mxu0
      %v1623 = vadd.f32 %v1260, %v1622
      %1624 = vmatmul.f32.gmra.mxu0 %v1417
      %v1625 = vpop.f32.mrf.mxu0
      %v1626 = vadd.f32 %v1260, %v1625
      %1627 = vmatmul.f32.gmra.mxu0 %v1420
      %v1628 = vpop.f32.mrf.mxu0
      %v1629 = vadd.f32 %v1260, %v1628
      %1630 = vmatmul.f32.gmra.mxu0 %v1423
      %v1631 = vpop.f32.mrf.mxu0
      %v1632 = vadd.f32 %v1260, %v1631
      %1633 = vmatmul.f32.gmra.mxu0 %v1426
      %v1634 = vpop.f32.mrf.mxu0
      %v1635 = vadd.f32 %v1260, %v1634
      %1636 = vmatmul.f32.gmra.mxu0 %v1429
      %v1637 = vpop.f32.mrf.mxu0
      %v1638 = vadd.f32 %v1260, %v1637
      %1639 = vmatmul.f32.gmra.mxu0 %v1432
      %v1640 = vpop.f32.mrf.mxu0
      %v1641 = vadd.f32 %v1260, %v1640
      %1642 = vmatmul.f32.gmra.mxu0 %v1435
      %v1643 = vpop.f32.mrf.mxu0
      %v1644 = vadd.f32 %v1260, %v1643
      %1645 = vmatmul.f32.gmra.mxu0 %v1438
      %v1646 = vpop.f32.mrf.mxu0
      %v1647 = vadd.f32 %v1260, %v1646
      %1648 = vmatmul.f32.gmra.mxu0 %v1441
      %v1649 = vpop.f32.mrf.mxu0
      %v1650 = vadd.f32 %v1260, %v1649
      %1651 = vmatmul.f32.gmra.mxu0 %v1444
      %v1652 = vpop.f32.mrf.mxu0
      %v1653 = vadd.f32 %v1260, %v1652
      %1654 = vmatmul.f32.gmra.mxu0 %v1447
      %v1655 = vpop.f32.mrf.mxu0
      %v1656 = vadd.f32 %v1260, %v1655
      %1657 = vmatmul.f32.gmra.mxu0 %v1450
      %v1658 = vpop.f32.mrf.mxu0
      %v1659 = vadd.f32 %v1260, %v1658
      %1660 = vmatmul.f32.gmra.mxu0 %v1453
      %v1661 = vpop.f32.mrf.mxu0
      %v1662 = vadd.f32 %v1260, %v1661
      %1663 = vdwg.mxu0
      %v1664 = vmul.f32 %v1473, 0.125
      %v1665 = vmul.f32 %v1476, 0.125
      %v1666 = vmul.f32 %v1479, 0.125
      %v1667 = vmul.f32 %v1482, 0.125
      %v1668 = vmul.f32 %v1485, 0.125
      %v1669 = vmul.f32 %v1488, 0.125
      %v1670 = vmul.f32 %v1491, 0.125
      %v1671 = vmul.f32 %v1494, 0.125
      %v1672 = vmul.f32 %v1497, 0.125
      %v1673 = vmul.f32 %v1500, 0.125
      %v1674 = vmul.f32 %v1503, 0.125
      %v1675 = vmul.f32 %v1506, 0.125
      %v1676 = vmul.f32 %v1509, 0.125
      %v1677 = vmul.f32 %v1512, 0.125
      %v1678 = vmul.f32 %v1515, 0.125
      %v1679 = vmul.f32 %v1518, 0.125
      %v1680 = vmul.f32 %v1521, 0.125
      %v1681 = vmul.f32 %v1524, 0.125
      %v1682 = vmul.f32 %v1527, 0.125
      %v1683 = vmul.f32 %v1530, 0.125
      %v1684 = vmul.f32 %v1533, 0.125
      %v1685 = vmul.f32 %v1536, 0.125
      %v1686 = vmul.f32 %v1539, 0.125
      %v1687 = vmul.f32 %v1542, 0.125
      %v1688 = vmul.f32 %v1545, 0.125
      %v1689 = vmul.f32 %v1548, 0.125
      %v1690 = vmul.f32 %v1551, 0.125
      %v1691 = vmul.f32 %v1554, 0.125
      %v1692 = vmul.f32 %v1557, 0.125
      %v1693 = vmul.f32 %v1560, 0.125
      %v1694 = vmul.f32 %v1563, 0.125
      %v1695 = vmul.f32 %v1566, 0.125
      %v1696 = vmul.f32 %v1569, 0.125
      %v1697 = vmul.f32 %v1572, 0.125
      %v1698 = vmul.f32 %v1575, 0.125
      %v1699 = vmul.f32 %v1578, 0.125
      %v1700 = vmul.f32 %v1581, 0.125
      %v1701 = vmul.f32 %v1584, 0.125
      %v1702 = vmul.f32 %v1587, 0.125
      %v1703 = vmul.f32 %v1590, 0.125
      %v1704 = vmul.f32 %v1593, 0.125
      %v1705 = vmul.f32 %v1596, 0.125
      %v1706 = vmul.f32 %v1599, 0.125
      %v1707 = vmul.f32 %v1602, 0.125
      %v1708 = vmul.f32 %v1605, 0.125
      %v1709 = vmul.f32 %v1608, 0.125
      %v1710 = vmul.f32 %v1611, 0.125
      %v1711 = vmul.f32 %v1614, 0.125
      %v1712 = vmul.f32 %v1617, 0.125
      %v1713 = vmul.f32 %v1620, 0.125
      %v1714 = vmul.f32 %v1623, 0.125
      %v1715 = vmul.f32 %v1626, 0.125
      %v1716 = vmul.f32 %v1629, 0.125
      %v1717 = vmul.f32 %v1632, 0.125
      %v1718 = vmul.f32 %v1635, 0.125
      %v1719 = vmul.f32 %v1638, 0.125
      %v1720 = vmul.f32 %v1641, 0.125
      %v1721 = vmul.f32 %v1644, 0.125
      %v1722 = vmul.f32 %v1647, 0.125
      %v1723 = vmul.f32 %v1650, 0.125
      %v1724 = vmul.f32 %v1653, 0.125
      %v1725 = vmul.f32 %v1656, 0.125
      %v1726 = vmul.f32 %v1659, 0.125
      %v1727 = vmul.f32 %v1662, 0.125
      %vm1728 = vcmp.lt.f32.partialorder %v1664, 0.0
      %vm1729 = vcmp.lt.f32.partialorder %v1665, 0.0
      %vm1730 = vcmp.lt.f32.partialorder %v1666, 0.0
      %vm1731 = vcmp.lt.f32.partialorder %v1667, 0.0
      %vm1732 = vcmp.lt.f32.partialorder %v1668, 0.0
      %vm1733 = vcmp.lt.f32.partialorder %v1669, 0.0
      %vm1734 = vcmp.lt.f32.partialorder %v1670, 0.0
      %vm1735 = vcmp.lt.f32.partialorder %v1671, 0.0
      %vm1736 = vcmp.lt.f32.partialorder %v1672, 0.0
      %vm1737 = vcmp.lt.f32.partialorder %v1673, 0.0
      %vm1738 = vcmp.lt.f32.partialorder %v1674, 0.0
      %vm1739 = vcmp.lt.f32.partialorder %v1675, 0.0
      %vm1740 = vcmp.lt.f32.partialorder %v1676, 0.0
      %vm1741 = vcmp.lt.f32.partialorder %v1677, 0.0
      %vm1742 = vcmp.lt.f32.partialorder %v1678, 0.0
      %vm1743 = vcmp.lt.f32.partialorder %v1679, 0.0
      %vm1744 = vcmp.lt.f32.partialorder %v1680, 0.0
      %vm1745 = vcmp.lt.f32.partialorder %v1681, 0.0
      %vm1746 = vcmp.lt.f32.partialorder %v1682, 0.0
      %vm1747 = vcmp.lt.f32.partialorder %v1683, 0.0
      %vm1748 = vcmp.lt.f32.partialorder %v1684, 0.0
      %vm1749 = vcmp.lt.f32.partialorder %v1685, 0.0
      %vm1750 = vcmp.lt.f32.partialorder %v1686, 0.0
      %vm1751 = vcmp.lt.f32.partialorder %v1687, 0.0
      %vm1752 = vcmp.lt.f32.partialorder %v1688, 0.0
      %vm1753 = vcmp.lt.f32.partialorder %v1689, 0.0
      %vm1754 = vcmp.lt.f32.partialorder %v1690, 0.0
      %vm1755 = vcmp.lt.f32.partialorder %v1691, 0.0
      %vm1756 = vcmp.lt.f32.partialorder %v1692, 0.0
      %vm1757 = vcmp.lt.f32.partialorder %v1693, 0.0
      %vm1758 = vcmp.lt.f32.partialorder %v1694, 0.0
      %vm1759 = vcmp.lt.f32.partialorder %v1695, 0.0
      %vm1760 = vcmp.lt.f32.partialorder %v1696, 0.0
      %vm1761 = vcmp.lt.f32.partialorder %v1697, 0.0
      %vm1762 = vcmp.lt.f32.partialorder %v1698, 0.0
      %vm1763 = vcmp.lt.f32.partialorder %v1699, 0.0
      %vm1764 = vcmp.lt.f32.partialorder %v1700, 0.0
      %vm1765 = vcmp.lt.f32.partialorder %v1701, 0.0
      %vm1766 = vcmp.lt.f32.partialorder %v1702, 0.0
      %vm1767 = vcmp.lt.f32.partialorder %v1703, 0.0
      %vm1768 = vcmp.lt.f32.partialorder %v1704, 0.0
      %vm1769 = vcmp.lt.f32.partialorder %v1705, 0.0
      %vm1770 = vcmp.lt.f32.partialorder %v1706, 0.0
      %vm1771 = vcmp.lt.f32.partialorder %v1707, 0.0
      %vm1772 = vcmp.lt.f32.partialorder %v1708, 0.0
      %vm1773 = vcmp.lt.f32.partialorder %v1709, 0.0
      %vm1774 = vcmp.lt.f32.partialorder %v1710, 0.0
      %vm1775 = vcmp.lt.f32.partialorder %v1711, 0.0
      %vm1776 = vcmp.lt.f32.partialorder %v1712, 0.0
      %vm1777 = vcmp.lt.f32.partialorder %v1713, 0.0
      %vm1778 = vcmp.lt.f32.partialorder %v1714, 0.0
      %vm1779 = vcmp.lt.f32.partialorder %v1715, 0.0
      %vm1780 = vcmp.lt.f32.partialorder %v1716, 0.0
      %vm1781 = vcmp.lt.f32.partialorder %v1717, 0.0
      %vm1782 = vcmp.lt.f32.partialorder %v1718, 0.0
      %vm1783 = vcmp.lt.f32.partialorder %v1719, 0.0
      %vm1784 = vcmp.lt.f32.partialorder %v1720, 0.0
      %vm1785 = vcmp.lt.f32.partialorder %v1721, 0.0
      %vm1786 = vcmp.lt.f32.partialorder %v1722, 0.0
      %vm1787 = vcmp.lt.f32.partialorder %v1723, 0.0
      %vm1788 = vcmp.lt.f32.partialorder %v1724, 0.0
      %vm1789 = vcmp.lt.f32.partialorder %v1725, 0.0
      %vm1790 = vcmp.lt.f32.partialorder %v1726, 0.0
      %vm1791 = vcmp.lt.f32.partialorder %v1727, 0.0
      %v1792 = vsel %vm1728, -1.0, 1.0
      %v1793 = vsel %vm1729, -1.0, 1.0
      %v1794 = vsel %vm1730, -1.0, 1.0
      %v1795 = vsel %vm1731, -1.0, 1.0
      %v1796 = vsel %vm1732, -1.0, 1.0
      %v1797 = vsel %vm1733, -1.0, 1.0
      %v1798 = vsel %vm1734, -1.0, 1.0
      %v1799 = vsel %vm1735, -1.0, 1.0
      %v1800 = vsel %vm1736, -1.0, 1.0
      %v1801 = vsel %vm1737, -1.0, 1.0
      %v1802 = vsel %vm1738, -1.0, 1.0
      %v1803 = vsel %vm1739, -1.0, 1.0
      %v1804 = vsel %vm1740, -1.0, 1.0
      %v1805 = vsel %vm1741, -1.0, 1.0
      %v1806 = vsel %vm1742, -1.0, 1.0
      %v1807 = vsel %vm1743, -1.0, 1.0
      %v1808 = vsel %vm1744, -1.0, 1.0
      %v1809 = vsel %vm1745, -1.0, 1.0
      %v1810 = vsel %vm1746, -1.0, 1.0
      %v1811 = vsel %vm1747, -1.0, 1.0
      %v1812 = vsel %vm1748, -1.0, 1.0
      %v1813 = vsel %vm1749, -1.0, 1.0
      %v1814 = vsel %vm1750, -1.0, 1.0
      %v1815 = vsel %vm1751, -1.0, 1.0
      %v1816 = vsel %vm1752, -1.0, 1.0
      %v1817 = vsel %vm1753, -1.0, 1.0
      %v1818 = vsel %vm1754, -1.0, 1.0
      %v1819 = vsel %vm1755, -1.0, 1.0
      %v1820 = vsel %vm1756, -1.0, 1.0
      %v1821 = vsel %vm1757, -1.0, 1.0
      %v1822 = vsel %vm1758, -1.0, 1.0
      %v1823 = vsel %vm1759, -1.0, 1.0
      %v1824 = vsel %vm1760, -1.0, 1.0
      %v1825 = vsel %vm1761, -1.0, 1.0
      %v1826 = vsel %vm1762, -1.0, 1.0
      %v1827 = vsel %vm1763, -1.0, 1.0
      %v1828 = vsel %vm1764, -1.0, 1.0
      %v1829 = vsel %vm1765, -1.0, 1.0
      %v1830 = vsel %vm1766, -1.0, 1.0
      %v1831 = vsel %vm1767, -1.0, 1.0
      %v1832 = vsel %vm1768, -1.0, 1.0
      %v1833 = vsel %vm1769, -1.0, 1.0
      %v1834 = vsel %vm1770, -1.0, 1.0
      %v1835 = vsel %vm1771, -1.0, 1.0
      %v1836 = vsel %vm1772, -1.0, 1.0
      %v1837 = vsel %vm1773, -1.0, 1.0
      %v1838 = vsel %vm1774, -1.0, 1.0
      %v1839 = vsel %vm1775, -1.0, 1.0
      %v1840 = vsel %vm1776, -1.0, 1.0
      %v1841 = vsel %vm1777, -1.0, 1.0
      %v1842 = vsel %vm1778, -1.0, 1.0
      %v1843 = vsel %vm1779, -1.0, 1.0
      %v1844 = vsel %vm1780, -1.0, 1.0
      %v1845 = vsel %vm1781, -1.0, 1.0
      %v1846 = vsel %vm1782, -1.0, 1.0
      %v1847 = vsel %vm1783, -1.0, 1.0
      %v1848 = vsel %vm1784, -1.0, 1.0
      %v1849 = vsel %vm1785, -1.0, 1.0
      %v1850 = vsel %vm1786, -1.0, 1.0
      %v1851 = vsel %vm1787, -1.0, 1.0
      %v1852 = vsel %vm1788, -1.0, 1.0
      %v1853 = vsel %vm1789, -1.0, 1.0
      %v1854 = vsel %vm1790, -1.0, 1.0
      %v1855 = vsel %vm1791, -1.0, 1.0
      %v1856 = vand.u32 2147483647, %v1664
      %v1857 = vand.u32 2147483647, %v1665
      %v1858 = vand.u32 2147483647, %v1666
      %v1859 = vand.u32 2147483647, %v1667
      %v1860 = vand.u32 2147483647, %v1668
      %v1861 = vand.u32 2147483647, %v1669
      %v1862 = vand.u32 2147483647, %v1670
      %v1863 = vand.u32 2147483647, %v1671
      %v1864 = vand.u32 2147483647, %v1672
      %v1865 = vand.u32 2147483647, %v1673
      %v1866 = vand.u32 2147483647, %v1674
      %v1867 = vand.u32 2147483647, %v1675
      %v1868 = vand.u32 2147483647, %v1676
      %v1869 = vand.u32 2147483647, %v1677
      %v1870 = vand.u32 2147483647, %v1678
      %v1871 = vand.u32 2147483647, %v1679
      %v1872 = vand.u32 2147483647, %v1680
      %v1873 = vand.u32 2147483647, %v1681
      %v1874 = vand.u32 2147483647, %v1682
      %v1875 = vand.u32 2147483647, %v1683
      %v1876 = vand.u32 2147483647, %v1684
      %v1877 = vand.u32 2147483647, %v1685
      %v1878 = vand.u32 2147483647, %v1686
      %v1879 = vand.u32 2147483647, %v1687
      %v1880 = vand.u32 2147483647, %v1688
      %v1881 = vand.u32 2147483647, %v1689
      %v1882 = vand.u32 2147483647, %v1690
      %v1883 = vand.u32 2147483647, %v1691
      %v1884 = vand.u32 2147483647, %v1692
      %v1885 = vand.u32 2147483647, %v1693
      %v1886 = vand.u32 2147483647, %v1694
      %v1887 = vand.u32 2147483647, %v1695
      %v1888 = vand.u32 2147483647, %v1696
      %v1889 = vand.u32 2147483647, %v1697
      %v1890 = vand.u32 2147483647, %v1698
      %v1891 = vand.u32 2147483647, %v1699
      %v1892 = vand.u32 2147483647, %v1700
      %v1893 = vand.u32 2147483647, %v1701
      %v1894 = vand.u32 2147483647, %v1702
      %v1895 = vand.u32 2147483647, %v1703
      %v1896 = vand.u32 2147483647, %v1704
      %v1897 = vand.u32 2147483647, %v1705
      %v1898 = vand.u32 2147483647, %v1706
      %v1899 = vand.u32 2147483647, %v1707
      %v1900 = vand.u32 2147483647, %v1708
      %v1901 = vand.u32 2147483647, %v1709
      %v1902 = vand.u32 2147483647, %v1710
      %v1903 = vand.u32 2147483647, %v1711
      %v1904 = vand.u32 2147483647, %v1712
      %v1905 = vand.u32 2147483647, %v1713
      %v1906 = vand.u32 2147483647, %v1714
      %v1907 = vand.u32 2147483647, %v1715
      %v1908 = vand.u32 2147483647, %v1716
      %v1909 = vand.u32 2147483647, %v1717
      %v1910 = vand.u32 2147483647, %v1718
      %v1911 = vand.u32 2147483647, %v1719
      %v1912 = vand.u32 2147483647, %v1720
      %v1913 = vand.u32 2147483647, %v1721
      %v1914 = vand.u32 2147483647, %v1722
      %v1915 = vand.u32 2147483647, %v1723
      %v1916 = vand.u32 2147483647, %v1724
      %v1917 = vand.u32 2147483647, %v1725
      %v1918 = vand.u32 2147483647, %v1726
      %v1919 = vand.u32 2147483647, %v1727
      %v1920 = vmul.f32 %v1856, 0.3275911
      %v1921 = vmul.f32 %v1857, 0.3275911
      %v1922 = vmul.f32 %v1858, 0.3275911
      %v1923 = vmul.f32 %v1859, 0.3275911
      %v1924 = vmul.f32 %v1860, 0.3275911
      %v1925 = vmul.f32 %v1861, 0.3275911
      %v1926 = vmul.f32 %v1862, 0.3275911
      %v1927 = vmul.f32 %v1863, 0.3275911
      %v1928 = vmul.f32 %v1864, 0.3275911
      %v1929 = vmul.f32 %v1865, 0.3275911
      %v1930 = vmul.f32 %v1866, 0.3275911
      %v1931 = vmul.f32 %v1867, 0.3275911
      %v1932 = vmul.f32 %v1868, 0.3275911
      %v1933 = vmul.f32 %v1869, 0.3275911
      %v1934 = vmul.f32 %v1870, 0.3275911
      %v1935 = vmul.f32 %v1871, 0.3275911
      %v1936 = vmul.f32 %v1872, 0.3275911
      %v1937 = vmul.f32 %v1873, 0.3275911
      %v1938 = vmul.f32 %v1874, 0.3275911
      %v1939 = vmul.f32 %v1875, 0.3275911
      %v1940 = vmul.f32 %v1876, 0.3275911
      %v1941 = vmul.f32 %v1877, 0.3275911
      %v1942 = vmul.f32 %v1878, 0.3275911
      %v1943 = vmul.f32 %v1879, 0.3275911
      %v1944 = vmul.f32 %v1880, 0.3275911
      %v1945 = vmul.f32 %v1881, 0.3275911
      %v1946 = vmul.f32 %v1882, 0.3275911
      %v1947 = vmul.f32 %v1883, 0.3275911
      %v1948 = vmul.f32 %v1884, 0.3275911
      %v1949 = vmul.f32 %v1885, 0.3275911
      %v1950 = vmul.f32 %v1886, 0.3275911
      %v1951 = vmul.f32 %v1887, 0.3275911
      %v1952 = vmul.f32 %v1888, 0.3275911
      %v1953 = vmul.f32 %v1889, 0.3275911
      %v1954 = vmul.f32 %v1890, 0.3275911
      %v1955 = vmul.f32 %v1891, 0.3275911
      %v1956 = vmul.f32 %v1892, 0.3275911
      %v1957 = vmul.f32 %v1893, 0.3275911
      %v1958 = vmul.f32 %v1894, 0.3275911
      %v1959 = vmul.f32 %v1895, 0.3275911
      %v1960 = vmul.f32 %v1896, 0.3275911
      %v1961 = vmul.f32 %v1897, 0.3275911
      %v1962 = vmul.f32 %v1898, 0.3275911
      %v1963 = vmul.f32 %v1899, 0.3275911
      %v1964 = vmul.f32 %v1900, 0.3275911
      %v1965 = vmul.f32 %v1901, 0.3275911
      %v1966 = vmul.f32 %v1902, 0.3275911
      %v1967 = vmul.f32 %v1903, 0.3275911
      %v1968 = vmul.f32 %v1904, 0.3275911
      %v1969 = vmul.f32 %v1905, 0.3275911
      %v1970 = vmul.f32 %v1906, 0.3275911
      %v1971 = vmul.f32 %v1907, 0.3275911
      %v1972 = vmul.f32 %v1908, 0.3275911
      %v1973 = vmul.f32 %v1909, 0.3275911
      %v1974 = vmul.f32 %v1910, 0.3275911
      %v1975 = vmul.f32 %v1911, 0.3275911
      %v1976 = vmul.f32 %v1912, 0.3275911
      %v1977 = vmul.f32 %v1913, 0.3275911
      %v1978 = vmul.f32 %v1914, 0.3275911
      %v1979 = vmul.f32 %v1915, 0.3275911
      %v1980 = vmul.f32 %v1916, 0.3275911
      %v1981 = vmul.f32 %v1917, 0.3275911
      %v1982 = vmul.f32 %v1918, 0.3275911
      %v1983 = vmul.f32 %v1919, 0.3275911
      %v1984 = vadd.f32 %v1920, 1.0
      %v1985 = vadd.f32 %v1921, 1.0
      %v1986 = vadd.f32 %v1922, 1.0
      %v1987 = vadd.f32 %v1923, 1.0
      %v1988 = vadd.f32 %v1924, 1.0
      %v1989 = vadd.f32 %v1925, 1.0
      %v1990 = vadd.f32 %v1926, 1.0
      %v1991 = vadd.f32 %v1927, 1.0
      %v1992 = vadd.f32 %v1928, 1.0
      %v1993 = vadd.f32 %v1929, 1.0
      %v1994 = vadd.f32 %v1930, 1.0
      %v1995 = vadd.f32 %v1931, 1.0
      %v1996 = vadd.f32 %v1932, 1.0
      %v1997 = vadd.f32 %v1933, 1.0
      %v1998 = vadd.f32 %v1934, 1.0
      %v1999 = vadd.f32 %v1935, 1.0
      %v2000 = vadd.f32 %v1936, 1.0
      %v2001 = vadd.f32 %v1937, 1.0
      %v2002 = vadd.f32 %v1938, 1.0
      %v2003 = vadd.f32 %v1939, 1.0
      %v2004 = vadd.f32 %v1940, 1.0
      %v2005 = vadd.f32 %v1941, 1.0
      %v2006 = vadd.f32 %v1942, 1.0
      %v2007 = vadd.f32 %v1943, 1.0
      %v2008 = vadd.f32 %v1944, 1.0
      %v2009 = vadd.f32 %v1945, 1.0
      %v2010 = vadd.f32 %v1946, 1.0
      %v2011 = vadd.f32 %v1947, 1.0
      %v2012 = vadd.f32 %v1948, 1.0
      %v2013 = vadd.f32 %v1949, 1.0
      %v2014 = vadd.f32 %v1950, 1.0
      %v2015 = vadd.f32 %v1951, 1.0
      %v2016 = vadd.f32 %v1952, 1.0
      %v2017 = vadd.f32 %v1953, 1.0
      %v2018 = vadd.f32 %v1954, 1.0
      %v2019 = vadd.f32 %v1955, 1.0
      %v2020 = vadd.f32 %v1956, 1.0
      %v2021 = vadd.f32 %v1957, 1.0
      %v2022 = vadd.f32 %v1958, 1.0
      %v2023 = vadd.f32 %v1959, 1.0
      %v2024 = vadd.f32 %v1960, 1.0
      %v2025 = vadd.f32 %v1961, 1.0
      %v2026 = vadd.f32 %v1962, 1.0
      %v2027 = vadd.f32 %v1963, 1.0
      %v2028 = vadd.f32 %v1964, 1.0
      %v2029 = vadd.f32 %v1965, 1.0
      %v2030 = vadd.f32 %v1966, 1.0
      %v2031 = vadd.f32 %v1967, 1.0
      %v2032 = vadd.f32 %v1968, 1.0
      %v2033 = vadd.f32 %v1969, 1.0
      %v2034 = vadd.f32 %v1970, 1.0
      %v2035 = vadd.f32 %v1971, 1.0
      %v2036 = vadd.f32 %v1972, 1.0
      %v2037 = vadd.f32 %v1973, 1.0
      %v2038 = vadd.f32 %v1974, 1.0
      %v2039 = vadd.f32 %v1975, 1.0
      %v2040 = vadd.f32 %v1976, 1.0
      %v2041 = vadd.f32 %v1977, 1.0
      %v2042 = vadd.f32 %v1978, 1.0
      %v2043 = vadd.f32 %v1979, 1.0
      %v2044 = vadd.f32 %v1980, 1.0
      %v2045 = vadd.f32 %v1981, 1.0
      %v2046 = vadd.f32 %v1982, 1.0
      %v2047 = vadd.f32 %v1983, 1.0
      %v2048 = vrcp.pop %v1984
      %v2049 = vmul.f32 %v1984, %v2048
      %v2050 = vsub.f32 1.0, %v2049
      %v2051 = vmul.f32 %v2048, %v2050
      %v2052 = vadd.f32 %v2048, %v2051
      %vm2053 = vweird.f32 %v1984
      %vm2054 = vweird.f32 %v2048
      %vm2055 = vmor %vm2053, %vm2054
      %v2056 = vsel %vm2055, %v2048, %v2052
      %v2057 = vand.u32 2147483647, %v1984
      %vm2058 = vcmp.eq.f32.partialorder %v2057, 8.507059e+37
      %v2059 = vand.u32 %v1984, 2147483648
      %v2060 = vor.u32 1.1754944e-38, %v2059
      %v2061 = vsel %vm2058, %v2060, %v2056
      %v2062 = vmul.f32 1.0, %v2061
      %v2063 = vrcp.pop %v1985
      %v2064 = vmul.f32 %v1985, %v2063
      %v2065 = vsub.f32 1.0, %v2064
      %v2066 = vmul.f32 %v2063, %v2065
      %v2067 = vadd.f32 %v2063, %v2066
      %vm2068 = vweird.f32 %v1985
      %vm2069 = vweird.f32 %v2063
      %vm2070 = vmor %vm2068, %vm2069
      %v2071 = vsel %vm2070, %v2063, %v2067
      %v2072 = vand.u32 2147483647, %v1985
      %vm2073 = vcmp.eq.f32.partialorder %v2072, 8.507059e+37
      %v2074 = vand.u32 %v1985, 2147483648
      %v2075 = vor.u32 1.1754944e-38, %v2074
      %v2076 = vsel %vm2073, %v2075, %v2071
      %v2077 = vmul.f32 1.0, %v2076
      %v2078 = vrcp.pop %v1986
      %v2079 = vmul.f32 %v1986, %v2078
      %v2080 = vsub.f32 1.0, %v2079
      %v2081 = vmul.f32 %v2078, %v2080
      %v2082 = vadd.f32 %v2078, %v2081
      %vm2083 = vweird.f32 %v1986
      %vm2084 = vweird.f32 %v2078
      %vm2085 = vmor %vm2083, %vm2084
      %v2086 = vsel %vm2085, %v2078, %v2082
      %v2087 = vand.u32 2147483647, %v1986
      %vm2088 = vcmp.eq.f32.partialorder %v2087, 8.507059e+37
      %v2089 = vand.u32 %v1986, 2147483648
      %v2090 = vor.u32 1.1754944e-38, %v2089
      %v2091 = vsel %vm2088, %v2090, %v2086
      %v2092 = vmul.f32 1.0, %v2091
      %v2093 = vrcp.pop %v1987
      %v2094 = vmul.f32 %v1987, %v2093
      %v2095 = vsub.f32 1.0, %v2094
      %v2096 = vmul.f32 %v2093, %v2095
      %v2097 = vadd.f32 %v2093, %v2096
      %vm2098 = vweird.f32 %v1987
      %vm2099 = vweird.f32 %v2093
      %vm2100 = vmor %vm2098, %vm2099
      %v2101 = vsel %vm2100, %v2093, %v2097
      %v2102 = vand.u32 2147483647, %v1987
      %vm2103 = vcmp.eq.f32.partialorder %v2102, 8.507059e+37
      %v2104 = vand.u32 %v1987, 2147483648
      %v2105 = vor.u32 1.1754944e-38, %v2104
      %v2106 = vsel %vm2103, %v2105, %v2101
      %v2107 = vmul.f32 1.0, %v2106
      %v2108 = vrcp.pop %v1988
      %v2109 = vmul.f32 %v1988, %v2108
      %v2110 = vsub.f32 1.0, %v2109
      %v2111 = vmul.f32 %v2108, %v2110
      %v2112 = vadd.f32 %v2108, %v2111
      %vm2113 = vweird.f32 %v1988
      %vm2114 = vweird.f32 %v2108
      %vm2115 = vmor %vm2113, %vm2114
      %v2116 = vsel %vm2115, %v2108, %v2112
      %v2117 = vand.u32 2147483647, %v1988
      %vm2118 = vcmp.eq.f32.partialorder %v2117, 8.507059e+37
      %v2119 = vand.u32 %v1988, 2147483648
      %v2120 = vor.u32 1.1754944e-38, %v2119
      %v2121 = vsel %vm2118, %v2120, %v2116
      %v2122 = vmul.f32 1.0, %v2121
      %v2123 = vrcp.pop %v1989
      %v2124 = vmul.f32 %v1989, %v2123
      %v2125 = vsub.f32 1.0, %v2124
      %v2126 = vmul.f32 %v2123, %v2125
      %v2127 = vadd.f32 %v2123, %v2126
      %vm2128 = vweird.f32 %v1989
      %vm2129 = vweird.f32 %v2123
      %vm2130 = vmor %vm2128, %vm2129
      %v2131 = vsel %vm2130, %v2123, %v2127
      %v2132 = vand.u32 2147483647, %v1989
      %vm2133 = vcmp.eq.f32.partialorder %v2132, 8.507059e+37
      %v2134 = vand.u32 %v1989, 2147483648
      %v2135 = vor.u32 1.1754944e-38, %v2134
      %v2136 = vsel %vm2133, %v2135, %v2131
      %v2137 = vmul.f32 1.0, %v2136
      %v2138 = vrcp.pop %v1990
      %v2139 = vmul.f32 %v1990, %v2138
      %v2140 = vsub.f32 1.0, %v2139
      %v2141 = vmul.f32 %v2138, %v2140
      %v2142 = vadd.f32 %v2138, %v2141
      %vm2143 = vweird.f32 %v1990
      %vm2144 = vweird.f32 %v2138
      %vm2145 = vmor %vm2143, %vm2144
      %v2146 = vsel %vm2145, %v2138, %v2142
      %v2147 = vand.u32 2147483647, %v1990
      %vm2148 = vcmp.eq.f32.partialorder %v2147, 8.507059e+37
      %v2149 = vand.u32 %v1990, 2147483648
      %v2150 = vor.u32 1.1754944e-38, %v2149
      %v2151 = vsel %vm2148, %v2150, %v2146
      %v2152 = vmul.f32 1.0, %v2151
      %v2153 = vrcp.pop %v1991
      %v2154 = vmul.f32 %v1991, %v2153
      %v2155 = vsub.f32 1.0, %v2154
      %v2156 = vmul.f32 %v2153, %v2155
      %v2157 = vadd.f32 %v2153, %v2156
      %vm2158 = vweird.f32 %v1991
      %vm2159 = vweird.f32 %v2153
      %vm2160 = vmor %vm2158, %vm2159
      %v2161 = vsel %vm2160, %v2153, %v2157
      %v2162 = vand.u32 2147483647, %v1991
      %vm2163 = vcmp.eq.f32.partialorder %v2162, 8.507059e+37
      %v2164 = vand.u32 %v1991, 2147483648
      %v2165 = vor.u32 1.1754944e-38, %v2164
      %v2166 = vsel %vm2163, %v2165, %v2161
      %v2167 = vmul.f32 1.0, %v2166
      %v2168 = vrcp.pop %v1992
      %v2169 = vmul.f32 %v1992, %v2168
      %v2170 = vsub.f32 1.0, %v2169
      %v2171 = vmul.f32 %v2168, %v2170
      %v2172 = vadd.f32 %v2168, %v2171
      %vm2173 = vweird.f32 %v1992
      %vm2174 = vweird.f32 %v2168
      %vm2175 = vmor %vm2173, %vm2174
      %v2176 = vsel %vm2175, %v2168, %v2172
      %v2177 = vand.u32 2147483647, %v1992
      %vm2178 = vcmp.eq.f32.partialorder %v2177, 8.507059e+37
      %v2179 = vand.u32 %v1992, 2147483648
      %v2180 = vor.u32 1.1754944e-38, %v2179
      %v2181 = vsel %vm2178, %v2180, %v2176
      %v2182 = vmul.f32 1.0, %v2181
      %v2183 = vrcp.pop %v1993
      %v2184 = vmul.f32 %v1993, %v2183
      %v2185 = vsub.f32 1.0, %v2184
      %v2186 = vmul.f32 %v2183, %v2185
      %v2187 = vadd.f32 %v2183, %v2186
      %vm2188 = vweird.f32 %v1993
      %vm2189 = vweird.f32 %v2183
      %vm2190 = vmor %vm2188, %vm2189
      %v2191 = vsel %vm2190, %v2183, %v2187
      %v2192 = vand.u32 2147483647, %v1993
      %vm2193 = vcmp.eq.f32.partialorder %v2192, 8.507059e+37
      %v2194 = vand.u32 %v1993, 2147483648
      %v2195 = vor.u32 1.1754944e-38, %v2194
      %v2196 = vsel %vm2193, %v2195, %v2191
      %v2197 = vmul.f32 1.0, %v2196
      %v2198 = vrcp.pop %v1994
      %v2199 = vmul.f32 %v1994, %v2198
      %v2200 = vsub.f32 1.0, %v2199
      %v2201 = vmul.f32 %v2198, %v2200
      %v2202 = vadd.f32 %v2198, %v2201
      %vm2203 = vweird.f32 %v1994
      %vm2204 = vweird.f32 %v2198
      %vm2205 = vmor %vm2203, %vm2204
      %v2206 = vsel %vm2205, %v2198, %v2202
      %v2207 = vand.u32 2147483647, %v1994
      %vm2208 = vcmp.eq.f32.partialorder %v2207, 8.507059e+37
      %v2209 = vand.u32 %v1994, 2147483648
      %v2210 = vor.u32 1.1754944e-38, %v2209
      %v2211 = vsel %vm2208, %v2210, %v2206
      %v2212 = vmul.f32 1.0, %v2211
      %v2213 = vrcp.pop %v1995
      %v2214 = vmul.f32 %v1995, %v2213
      %v2215 = vsub.f32 1.0, %v2214
      %v2216 = vmul.f32 %v2213, %v2215
      %v2217 = vadd.f32 %v2213, %v2216
      %vm2218 = vweird.f32 %v1995
      %vm2219 = vweird.f32 %v2213
      %vm2220 = vmor %vm2218, %vm2219
      %v2221 = vsel %vm2220, %v2213, %v2217
      %v2222 = vand.u32 2147483647, %v1995
      %vm2223 = vcmp.eq.f32.partialorder %v2222, 8.507059e+37
      %v2224 = vand.u32 %v1995, 2147483648
      %v2225 = vor.u32 1.1754944e-38, %v2224
      %v2226 = vsel %vm2223, %v2225, %v2221
      %v2227 = vmul.f32 1.0, %v2226
      %v2228 = vrcp.pop %v1996
      %v2229 = vmul.f32 %v1996, %v2228
      %v2230 = vsub.f32 1.0, %v2229
      %v2231 = vmul.f32 %v2228, %v2230
      %v2232 = vadd.f32 %v2228, %v2231
      %vm2233 = vweird.f32 %v1996
      %vm2234 = vweird.f32 %v2228
      %vm2235 = vmor %vm2233, %vm2234
      %v2236 = vsel %vm2235, %v2228, %v2232
      %v2237 = vand.u32 2147483647, %v1996
      %vm2238 = vcmp.eq.f32.partialorder %v2237, 8.507059e+37
      %v2239 = vand.u32 %v1996, 2147483648
      %v2240 = vor.u32 1.1754944e-38, %v2239
      %v2241 = vsel %vm2238, %v2240, %v2236
      %v2242 = vmul.f32 1.0, %v2241
      %v2243 = vrcp.pop %v1997
      %v2244 = vmul.f32 %v1997, %v2243
      %v2245 = vsub.f32 1.0, %v2244
      %v2246 = vmul.f32 %v2243, %v2245
      %v2247 = vadd.f32 %v2243, %v2246
      %vm2248 = vweird.f32 %v1997
      %vm2249 = vweird.f32 %v2243
      %vm2250 = vmor %vm2248, %vm2249
      %v2251 = vsel %vm2250, %v2243, %v2247
      %v2252 = vand.u32 2147483647, %v1997
      %vm2253 = vcmp.eq.f32.partialorder %v2252, 8.507059e+37
      %v2254 = vand.u32 %v1997, 2147483648
      %v2255 = vor.u32 1.1754944e-38, %v2254
      %v2256 = vsel %vm2253, %v2255, %v2251
      %v2257 = vmul.f32 1.0, %v2256
      %v2258 = vrcp.pop %v1998
      %v2259 = vmul.f32 %v1998, %v2258
      %v2260 = vsub.f32 1.0, %v2259
      %v2261 = vmul.f32 %v2258, %v2260
      %v2262 = vadd.f32 %v2258, %v2261
      %vm2263 = vweird.f32 %v1998
      %vm2264 = vweird.f32 %v2258
      %vm2265 = vmor %vm2263, %vm2264
      %v2266 = vsel %vm2265, %v2258, %v2262
      %v2267 = vand.u32 2147483647, %v1998
      %vm2268 = vcmp.eq.f32.partialorder %v2267, 8.507059e+37
      %v2269 = vand.u32 %v1998, 2147483648
      %v2270 = vor.u32 1.1754944e-38, %v2269
      %v2271 = vsel %vm2268, %v2270, %v2266
      %v2272 = vmul.f32 1.0, %v2271
      %v2273 = vrcp.pop %v1999
      %v2274 = vmul.f32 %v1999, %v2273
      %v2275 = vsub.f32 1.0, %v2274
      %v2276 = vmul.f32 %v2273, %v2275
      %v2277 = vadd.f32 %v2273, %v2276
      %vm2278 = vweird.f32 %v1999
      %vm2279 = vweird.f32 %v2273
      %vm2280 = vmor %vm2278, %vm2279
      %v2281 = vsel %vm2280, %v2273, %v2277
      %v2282 = vand.u32 2147483647, %v1999
      %vm2283 = vcmp.eq.f32.partialorder %v2282, 8.507059e+37
      %v2284 = vand.u32 %v1999, 2147483648
      %v2285 = vor.u32 1.1754944e-38, %v2284
      %v2286 = vsel %vm2283, %v2285, %v2281
      %v2287 = vmul.f32 1.0, %v2286
      %v2288 = vrcp.pop %v2000
      %v2289 = vmul.f32 %v2000, %v2288
      %v2290 = vsub.f32 1.0, %v2289
      %v2291 = vmul.f32 %v2288, %v2290
      %v2292 = vadd.f32 %v2288, %v2291
      %vm2293 = vweird.f32 %v2000
      %vm2294 = vweird.f32 %v2288
      %vm2295 = vmor %vm2293, %vm2294
      %v2296 = vsel %vm2295, %v2288, %v2292
      %v2297 = vand.u32 2147483647, %v2000
      %vm2298 = vcmp.eq.f32.partialorder %v2297, 8.507059e+37
      %v2299 = vand.u32 %v2000, 2147483648
      %v2300 = vor.u32 1.1754944e-38, %v2299
      %v2301 = vsel %vm2298, %v2300, %v2296
      %v2302 = vmul.f32 1.0, %v2301
      %v2303 = vrcp.pop %v2001
      %v2304 = vmul.f32 %v2001, %v2303
      %v2305 = vsub.f32 1.0, %v2304
      %v2306 = vmul.f32 %v2303, %v2305
      %v2307 = vadd.f32 %v2303, %v2306
      %vm2308 = vweird.f32 %v2001
      %vm2309 = vweird.f32 %v2303
      %vm2310 = vmor %vm2308, %vm2309
      %v2311 = vsel %vm2310, %v2303, %v2307
      %v2312 = vand.u32 2147483647, %v2001
      %vm2313 = vcmp.eq.f32.partialorder %v2312, 8.507059e+37
      %v2314 = vand.u32 %v2001, 2147483648
      %v2315 = vor.u32 1.1754944e-38, %v2314
      %v2316 = vsel %vm2313, %v2315, %v2311
      %v2317 = vmul.f32 1.0, %v2316
      %v2318 = vrcp.pop %v2002
      %v2319 = vmul.f32 %v2002, %v2318
      %v2320 = vsub.f32 1.0, %v2319
      %v2321 = vmul.f32 %v2318, %v2320
      %v2322 = vadd.f32 %v2318, %v2321
      %vm2323 = vweird.f32 %v2002
      %vm2324 = vweird.f32 %v2318
      %vm2325 = vmor %vm2323, %vm2324
      %v2326 = vsel %vm2325, %v2318, %v2322
      %v2327 = vand.u32 2147483647, %v2002
      %vm2328 = vcmp.eq.f32.partialorder %v2327, 8.507059e+37
      %v2329 = vand.u32 %v2002, 2147483648
      %v2330 = vor.u32 1.1754944e-38, %v2329
      %v2331 = vsel %vm2328, %v2330, %v2326
      %v2332 = vmul.f32 1.0, %v2331
      %v2333 = vrcp.pop %v2003
      %v2334 = vmul.f32 %v2003, %v2333
      %v2335 = vsub.f32 1.0, %v2334
      %v2336 = vmul.f32 %v2333, %v2335
      %v2337 = vadd.f32 %v2333, %v2336
      %vm2338 = vweird.f32 %v2003
      %vm2339 = vweird.f32 %v2333
      %vm2340 = vmor %vm2338, %vm2339
      %v2341 = vsel %vm2340, %v2333, %v2337
      %v2342 = vand.u32 2147483647, %v2003
      %vm2343 = vcmp.eq.f32.partialorder %v2342, 8.507059e+37
      %v2344 = vand.u32 %v2003, 2147483648
      %v2345 = vor.u32 1.1754944e-38, %v2344
      %v2346 = vsel %vm2343, %v2345, %v2341
      %v2347 = vmul.f32 1.0, %v2346
      %v2348 = vrcp.pop %v2004
      %v2349 = vmul.f32 %v2004, %v2348
      %v2350 = vsub.f32 1.0, %v2349
      %v2351 = vmul.f32 %v2348, %v2350
      %v2352 = vadd.f32 %v2348, %v2351
      %vm2353 = vweird.f32 %v2004
      %vm2354 = vweird.f32 %v2348
      %vm2355 = vmor %vm2353, %vm2354
      %v2356 = vsel %vm2355, %v2348, %v2352
      %v2357 = vand.u32 2147483647, %v2004
      %vm2358 = vcmp.eq.f32.partialorder %v2357, 8.507059e+37
      %v2359 = vand.u32 %v2004, 2147483648
      %v2360 = vor.u32 1.1754944e-38, %v2359
      %v2361 = vsel %vm2358, %v2360, %v2356
      %v2362 = vmul.f32 1.0, %v2361
      %v2363 = vrcp.pop %v2005
      %v2364 = vmul.f32 %v2005, %v2363
      %v2365 = vsub.f32 1.0, %v2364
      %v2366 = vmul.f32 %v2363, %v2365
      %v2367 = vadd.f32 %v2363, %v2366
      %vm2368 = vweird.f32 %v2005
      %vm2369 = vweird.f32 %v2363
      %vm2370 = vmor %vm2368, %vm2369
      %v2371 = vsel %vm2370, %v2363, %v2367
      %v2372 = vand.u32 2147483647, %v2005
      %vm2373 = vcmp.eq.f32.partialorder %v2372, 8.507059e+37
      %v2374 = vand.u32 %v2005, 2147483648
      %v2375 = vor.u32 1.1754944e-38, %v2374
      %v2376 = vsel %vm2373, %v2375, %v2371
      %v2377 = vmul.f32 1.0, %v2376
      %v2378 = vrcp.pop %v2006
      %v2379 = vmul.f32 %v2006, %v2378
      %v2380 = vsub.f32 1.0, %v2379
      %v2381 = vmul.f32 %v2378, %v2380
      %v2382 = vadd.f32 %v2378, %v2381
      %vm2383 = vweird.f32 %v2006
      %vm2384 = vweird.f32 %v2378
      %vm2385 = vmor %vm2383, %vm2384
      %v2386 = vsel %vm2385, %v2378, %v2382
      %v2387 = vand.u32 2147483647, %v2006
      %vm2388 = vcmp.eq.f32.partialorder %v2387, 8.507059e+37
      %v2389 = vand.u32 %v2006, 2147483648
      %v2390 = vor.u32 1.1754944e-38, %v2389
      %v2391 = vsel %vm2388, %v2390, %v2386
      %v2392 = vmul.f32 1.0, %v2391
      %v2393 = vrcp.pop %v2007
      %v2394 = vmul.f32 %v2007, %v2393
      %v2395 = vsub.f32 1.0, %v2394
      %v2396 = vmul.f32 %v2393, %v2395
      %v2397 = vadd.f32 %v2393, %v2396
      %vm2398 = vweird.f32 %v2007
      %vm2399 = vweird.f32 %v2393
      %vm2400 = vmor %vm2398, %vm2399
      %v2401 = vsel %vm2400, %v2393, %v2397
      %v2402 = vand.u32 2147483647, %v2007
      %vm2403 = vcmp.eq.f32.partialorder %v2402, 8.507059e+37
      %v2404 = vand.u32 %v2007, 2147483648
      %v2405 = vor.u32 1.1754944e-38, %v2404
      %v2406 = vsel %vm2403, %v2405, %v2401
      %v2407 = vmul.f32 1.0, %v2406
      %v2408 = vrcp.pop %v2008
      %v2409 = vmul.f32 %v2008, %v2408
      %v2410 = vsub.f32 1.0, %v2409
      %v2411 = vmul.f32 %v2408, %v2410
      %v2412 = vadd.f32 %v2408, %v2411
      %vm2413 = vweird.f32 %v2008
      %vm2414 = vweird.f32 %v2408
      %vm2415 = vmor %vm2413, %vm2414
      %v2416 = vsel %vm2415, %v2408, %v2412
      %v2417 = vand.u32 2147483647, %v2008
      %vm2418 = vcmp.eq.f32.partialorder %v2417, 8.507059e+37
      %v2419 = vand.u32 %v2008, 2147483648
      %v2420 = vor.u32 1.1754944e-38, %v2419
      %v2421 = vsel %vm2418, %v2420, %v2416
      %v2422 = vmul.f32 1.0, %v2421
      %v2423 = vrcp.pop %v2009
      %v2424 = vmul.f32 %v2009, %v2423
      %v2425 = vsub.f32 1.0, %v2424
      %v2426 = vmul.f32 %v2423, %v2425
      %v2427 = vadd.f32 %v2423, %v2426
      %vm2428 = vweird.f32 %v2009
      %vm2429 = vweird.f32 %v2423
      %vm2430 = vmor %vm2428, %vm2429
      %v2431 = vsel %vm2430, %v2423, %v2427
      %v2432 = vand.u32 2147483647, %v2009
      %vm2433 = vcmp.eq.f32.partialorder %v2432, 8.507059e+37
      %v2434 = vand.u32 %v2009, 2147483648
      %v2435 = vor.u32 1.1754944e-38, %v2434
      %v2436 = vsel %vm2433, %v2435, %v2431
      %v2437 = vmul.f32 1.0, %v2436
      %v2438 = vrcp.pop %v2010
      %v2439 = vmul.f32 %v2010, %v2438
      %v2440 = vsub.f32 1.0, %v2439
      %v2441 = vmul.f32 %v2438, %v2440
      %v2442 = vadd.f32 %v2438, %v2441
      %vm2443 = vweird.f32 %v2010
      %vm2444 = vweird.f32 %v2438
      %vm2445 = vmor %vm2443, %vm2444
      %v2446 = vsel %vm2445, %v2438, %v2442
      %v2447 = vand.u32 2147483647, %v2010
      %vm2448 = vcmp.eq.f32.partialorder %v2447, 8.507059e+37
      %v2449 = vand.u32 %v2010, 2147483648
      %v2450 = vor.u32 1.1754944e-38, %v2449
      %v2451 = vsel %vm2448, %v2450, %v2446
      %v2452 = vmul.f32 1.0, %v2451
      %v2453 = vrcp.pop %v2011
      %v2454 = vmul.f32 %v2011, %v2453
      %v2455 = vsub.f32 1.0, %v2454
      %v2456 = vmul.f32 %v2453, %v2455
      %v2457 = vadd.f32 %v2453, %v2456
      %vm2458 = vweird.f32 %v2011
      %vm2459 = vweird.f32 %v2453
      %vm2460 = vmor %vm2458, %vm2459
      %v2461 = vsel %vm2460, %v2453, %v2457
      %v2462 = vand.u32 2147483647, %v2011
      %vm2463 = vcmp.eq.f32.partialorder %v2462, 8.507059e+37
      %v2464 = vand.u32 %v2011, 2147483648
      %v2465 = vor.u32 1.1754944e-38, %v2464
      %v2466 = vsel %vm2463, %v2465, %v2461
      %v2467 = vmul.f32 1.0, %v2466
      %v2468 = vrcp.pop %v2012
      %v2469 = vmul.f32 %v2012, %v2468
      %v2470 = vsub.f32 1.0, %v2469
      %v2471 = vmul.f32 %v2468, %v2470
      %v2472 = vadd.f32 %v2468, %v2471
      %vm2473 = vweird.f32 %v2012
      %vm2474 = vweird.f32 %v2468
      %vm2475 = vmor %vm2473, %vm2474
      %v2476 = vsel %vm2475, %v2468, %v2472
      %v2477 = vand.u32 2147483647, %v2012
      %vm2478 = vcmp.eq.f32.partialorder %v2477, 8.507059e+37
      %v2479 = vand.u32 %v2012, 2147483648
      %v2480 = vor.u32 1.1754944e-38, %v2479
      %v2481 = vsel %vm2478, %v2480, %v2476
      %v2482 = vmul.f32 1.0, %v2481
      %v2483 = vrcp.pop %v2013
      %v2484 = vmul.f32 %v2013, %v2483
      %v2485 = vsub.f32 1.0, %v2484
      %v2486 = vmul.f32 %v2483, %v2485
      %v2487 = vadd.f32 %v2483, %v2486
      %vm2488 = vweird.f32 %v2013
      %vm2489 = vweird.f32 %v2483
      %vm2490 = vmor %vm2488, %vm2489
      %v2491 = vsel %vm2490, %v2483, %v2487
      %v2492 = vand.u32 2147483647, %v2013
      %vm2493 = vcmp.eq.f32.partialorder %v2492, 8.507059e+37
      %v2494 = vand.u32 %v2013, 2147483648
      %v2495 = vor.u32 1.1754944e-38, %v2494
      %v2496 = vsel %vm2493, %v2495, %v2491
      %v2497 = vmul.f32 1.0, %v2496
      %v2498 = vrcp.pop %v2014
      %v2499 = vmul.f32 %v2014, %v2498
      %v2500 = vsub.f32 1.0, %v2499
      %v2501 = vmul.f32 %v2498, %v2500
      %v2502 = vadd.f32 %v2498, %v2501
      %vm2503 = vweird.f32 %v2014
      %vm2504 = vweird.f32 %v2498
      %vm2505 = vmor %vm2503, %vm2504
      %v2506 = vsel %vm2505, %v2498, %v2502
      %v2507 = vand.u32 2147483647, %v2014
      %vm2508 = vcmp.eq.f32.partialorder %v2507, 8.507059e+37
      %v2509 = vand.u32 %v2014, 2147483648
      %v2510 = vor.u32 1.1754944e-38, %v2509
      %v2511 = vsel %vm2508, %v2510, %v2506
      %v2512 = vmul.f32 1.0, %v2511
      %v2513 = vrcp.pop %v2015
      %v2514 = vmul.f32 %v2015, %v2513
      %v2515 = vsub.f32 1.0, %v2514
      %v2516 = vmul.f32 %v2513, %v2515
      %v2517 = vadd.f32 %v2513, %v2516
      %vm2518 = vweird.f32 %v2015
      %vm2519 = vweird.f32 %v2513
      %vm2520 = vmor %vm2518, %vm2519
      %v2521 = vsel %vm2520, %v2513, %v2517
      %v2522 = vand.u32 2147483647, %v2015
      %vm2523 = vcmp.eq.f32.partialorder %v2522, 8.507059e+37
      %v2524 = vand.u32 %v2015, 2147483648
      %v2525 = vor.u32 1.1754944e-38, %v2524
      %v2526 = vsel %vm2523, %v2525, %v2521
      %v2527 = vmul.f32 1.0, %v2526
      %v2528 = vrcp.pop %v2016
      %v2529 = vmul.f32 %v2016, %v2528
      %v2530 = vsub.f32 1.0, %v2529
      %v2531 = vmul.f32 %v2528, %v2530
      %v2532 = vadd.f32 %v2528, %v2531
      %vm2533 = vweird.f32 %v2016
      %vm2534 = vweird.f32 %v2528
      %vm2535 = vmor %vm2533, %vm2534
      %v2536 = vsel %vm2535, %v2528, %v2532
      %v2537 = vand.u32 2147483647, %v2016
      %vm2538 = vcmp.eq.f32.partialorder %v2537, 8.507059e+37
      %v2539 = vand.u32 %v2016, 2147483648
      %v2540 = vor.u32 1.1754944e-38, %v2539
      %v2541 = vsel %vm2538, %v2540, %v2536
      %v2542 = vmul.f32 1.0, %v2541
      %v2543 = vrcp.pop %v2017
      %v2544 = vmul.f32 %v2017, %v2543
      %v2545 = vsub.f32 1.0, %v2544
      %v2546 = vmul.f32 %v2543, %v2545
      %v2547 = vadd.f32 %v2543, %v2546
      %vm2548 = vweird.f32 %v2017
      %vm2549 = vweird.f32 %v2543
      %vm2550 = vmor %vm2548, %vm2549
      %v2551 = vsel %vm2550, %v2543, %v2547
      %v2552 = vand.u32 2147483647, %v2017
      %vm2553 = vcmp.eq.f32.partialorder %v2552, 8.507059e+37
      %v2554 = vand.u32 %v2017, 2147483648
      %v2555 = vor.u32 1.1754944e-38, %v2554
      %v2556 = vsel %vm2553, %v2555, %v2551
      %v2557 = vmul.f32 1.0, %v2556
      %v2558 = vrcp.pop %v2018
      %v2559 = vmul.f32 %v2018, %v2558
      %v2560 = vsub.f32 1.0, %v2559
      %v2561 = vmul.f32 %v2558, %v2560
      %v2562 = vadd.f32 %v2558, %v2561
      %vm2563 = vweird.f32 %v2018
      %vm2564 = vweird.f32 %v2558
      %vm2565 = vmor %vm2563, %vm2564
      %v2566 = vsel %vm2565, %v2558, %v2562
      %v2567 = vand.u32 2147483647, %v2018
      %vm2568 = vcmp.eq.f32.partialorder %v2567, 8.507059e+37
      %v2569 = vand.u32 %v2018, 2147483648
      %v2570 = vor.u32 1.1754944e-38, %v2569
      %v2571 = vsel %vm2568, %v2570, %v2566
      %v2572 = vmul.f32 1.0, %v2571
      %v2573 = vrcp.pop %v2019
      %v2574 = vmul.f32 %v2019, %v2573
      %v2575 = vsub.f32 1.0, %v2574
      %v2576 = vmul.f32 %v2573, %v2575
      %v2577 = vadd.f32 %v2573, %v2576
      %vm2578 = vweird.f32 %v2019
      %vm2579 = vweird.f32 %v2573
      %vm2580 = vmor %vm2578, %vm2579
      %v2581 = vsel %vm2580, %v2573, %v2577
      %v2582 = vand.u32 2147483647, %v2019
      %vm2583 = vcmp.eq.f32.partialorder %v2582, 8.507059e+37
      %v2584 = vand.u32 %v2019, 2147483648
      %v2585 = vor.u32 1.1754944e-38, %v2584
      %v2586 = vsel %vm2583, %v2585, %v2581
      %v2587 = vmul.f32 1.0, %v2586
      %v2588 = vrcp.pop %v2020
      %v2589 = vmul.f32 %v2020, %v2588
      %v2590 = vsub.f32 1.0, %v2589
      %v2591 = vmul.f32 %v2588, %v2590
      %v2592 = vadd.f32 %v2588, %v2591
      %vm2593 = vweird.f32 %v2020
      %vm2594 = vweird.f32 %v2588
      %vm2595 = vmor %vm2593, %vm2594
      %v2596 = vsel %vm2595, %v2588, %v2592
      %v2597 = vand.u32 2147483647, %v2020
      %vm2598 = vcmp.eq.f32.partialorder %v2597, 8.507059e+37
      %v2599 = vand.u32 %v2020, 2147483648
      %v2600 = vor.u32 1.1754944e-38, %v2599
      %v2601 = vsel %vm2598, %v2600, %v2596
      %v2602 = vmul.f32 1.0, %v2601
      %v2603 = vrcp.pop %v2021
      %v2604 = vmul.f32 %v2021, %v2603
      %v2605 = vsub.f32 1.0, %v2604
      %v2606 = vmul.f32 %v2603, %v2605
      %v2607 = vadd.f32 %v2603, %v2606
      %vm2608 = vweird.f32 %v2021
      %vm2609 = vweird.f32 %v2603
      %vm2610 = vmor %vm2608, %vm2609
      %v2611 = vsel %vm2610, %v2603, %v2607
      %v2612 = vand.u32 2147483647, %v2021
      %vm2613 = vcmp.eq.f32.partialorder %v2612, 8.507059e+37
      %v2614 = vand.u32 %v2021, 2147483648
      %v2615 = vor.u32 1.1754944e-38, %v2614
      %v2616 = vsel %vm2613, %v2615, %v2611
      %v2617 = vmul.f32 1.0, %v2616
      %v2618 = vrcp.pop %v2022
      %v2619 = vmul.f32 %v2022, %v2618
      %v2620 = vsub.f32 1.0, %v2619
      %v2621 = vmul.f32 %v2618, %v2620
      %v2622 = vadd.f32 %v2618, %v2621
      %vm2623 = vweird.f32 %v2022
      %vm2624 = vweird.f32 %v2618
      %vm2625 = vmor %vm2623, %vm2624
      %v2626 = vsel %vm2625, %v2618, %v2622
      %v2627 = vand.u32 2147483647, %v2022
      %vm2628 = vcmp.eq.f32.partialorder %v2627, 8.507059e+37
      %v2629 = vand.u32 %v2022, 2147483648
      %v2630 = vor.u32 1.1754944e-38, %v2629
      %v2631 = vsel %vm2628, %v2630, %v2626
      %v2632 = vmul.f32 1.0, %v2631
      %v2633 = vrcp.pop %v2023
      %v2634 = vmul.f32 %v2023, %v2633
      %v2635 = vsub.f32 1.0, %v2634
      %v2636 = vmul.f32 %v2633, %v2635
      %v2637 = vadd.f32 %v2633, %v2636
      %vm2638 = vweird.f32 %v2023
      %vm2639 = vweird.f32 %v2633
      %vm2640 = vmor %vm2638, %vm2639
      %v2641 = vsel %vm2640, %v2633, %v2637
      %v2642 = vand.u32 2147483647, %v2023
      %vm2643 = vcmp.eq.f32.partialorder %v2642, 8.507059e+37
      %v2644 = vand.u32 %v2023, 2147483648
      %v2645 = vor.u32 1.1754944e-38, %v2644
      %v2646 = vsel %vm2643, %v2645, %v2641
      %v2647 = vmul.f32 1.0, %v2646
      %v2648 = vrcp.pop %v2024
      %v2649 = vmul.f32 %v2024, %v2648
      %v2650 = vsub.f32 1.0, %v2649
      %v2651 = vmul.f32 %v2648, %v2650
      %v2652 = vadd.f32 %v2648, %v2651
      %vm2653 = vweird.f32 %v2024
      %vm2654 = vweird.f32 %v2648
      %vm2655 = vmor %vm2653, %vm2654
      %v2656 = vsel %vm2655, %v2648, %v2652
      %v2657 = vand.u32 2147483647, %v2024
      %vm2658 = vcmp.eq.f32.partialorder %v2657, 8.507059e+37
      %v2659 = vand.u32 %v2024, 2147483648
      %v2660 = vor.u32 1.1754944e-38, %v2659
      %v2661 = vsel %vm2658, %v2660, %v2656
      %v2662 = vmul.f32 1.0, %v2661
      %v2663 = vrcp.pop %v2025
      %v2664 = vmul.f32 %v2025, %v2663
      %v2665 = vsub.f32 1.0, %v2664
      %v2666 = vmul.f32 %v2663, %v2665
      %v2667 = vadd.f32 %v2663, %v2666
      %vm2668 = vweird.f32 %v2025
      %vm2669 = vweird.f32 %v2663
      %vm2670 = vmor %vm2668, %vm2669
      %v2671 = vsel %vm2670, %v2663, %v2667
      %v2672 = vand.u32 2147483647, %v2025
      %vm2673 = vcmp.eq.f32.partialorder %v2672, 8.507059e+37
      %v2674 = vand.u32 %v2025, 2147483648
      %v2675 = vor.u32 1.1754944e-38, %v2674
      %v2676 = vsel %vm2673, %v2675, %v2671
      %v2677 = vmul.f32 1.0, %v2676
      %v2678 = vrcp.pop %v2026
      %v2679 = vmul.f32 %v2026, %v2678
      %v2680 = vsub.f32 1.0, %v2679
      %v2681 = vmul.f32 %v2678, %v2680
      %v2682 = vadd.f32 %v2678, %v2681
      %vm2683 = vweird.f32 %v2026
      %vm2684 = vweird.f32 %v2678
      %vm2685 = vmor %vm2683, %vm2684
      %v2686 = vsel %vm2685, %v2678, %v2682
      %v2687 = vand.u32 2147483647, %v2026
      %vm2688 = vcmp.eq.f32.partialorder %v2687, 8.507059e+37
      %v2689 = vand.u32 %v2026, 2147483648
      %v2690 = vor.u32 1.1754944e-38, %v2689
      %v2691 = vsel %vm2688, %v2690, %v2686
      %v2692 = vmul.f32 1.0, %v2691
      %v2693 = vrcp.pop %v2027
      %v2694 = vmul.f32 %v2027, %v2693
      %v2695 = vsub.f32 1.0, %v2694
      %v2696 = vmul.f32 %v2693, %v2695
      %v2697 = vadd.f32 %v2693, %v2696
      %vm2698 = vweird.f32 %v2027
      %vm2699 = vweird.f32 %v2693
      %vm2700 = vmor %vm2698, %vm2699
      %v2701 = vsel %vm2700, %v2693, %v2697
      %v2702 = vand.u32 2147483647, %v2027
      %vm2703 = vcmp.eq.f32.partialorder %v2702, 8.507059e+37
      %v2704 = vand.u32 %v2027, 2147483648
      %v2705 = vor.u32 1.1754944e-38, %v2704
      %v2706 = vsel %vm2703, %v2705, %v2701
      %v2707 = vmul.f32 1.0, %v2706
      %v2708 = vrcp.pop %v2028
      %v2709 = vmul.f32 %v2028, %v2708
      %v2710 = vsub.f32 1.0, %v2709
      %v2711 = vmul.f32 %v2708, %v2710
      %v2712 = vadd.f32 %v2708, %v2711
      %vm2713 = vweird.f32 %v2028
      %vm2714 = vweird.f32 %v2708
      %vm2715 = vmor %vm2713, %vm2714
      %v2716 = vsel %vm2715, %v2708, %v2712
      %v2717 = vand.u32 2147483647, %v2028
      %vm2718 = vcmp.eq.f32.partialorder %v2717, 8.507059e+37
      %v2719 = vand.u32 %v2028, 2147483648
      %v2720 = vor.u32 1.1754944e-38, %v2719
      %v2721 = vsel %vm2718, %v2720, %v2716
      %v2722 = vmul.f32 1.0, %v2721
      %v2723 = vrcp.pop %v2029
      %v2724 = vmul.f32 %v2029, %v2723
      %v2725 = vsub.f32 1.0, %v2724
      %v2726 = vmul.f32 %v2723, %v2725
      %v2727 = vadd.f32 %v2723, %v2726
      %vm2728 = vweird.f32 %v2029
      %vm2729 = vweird.f32 %v2723
      %vm2730 = vmor %vm2728, %vm2729
      %v2731 = vsel %vm2730, %v2723, %v2727
      %v2732 = vand.u32 2147483647, %v2029
      %vm2733 = vcmp.eq.f32.partialorder %v2732, 8.507059e+37
      %v2734 = vand.u32 %v2029, 2147483648
      %v2735 = vor.u32 1.1754944e-38, %v2734
      %v2736 = vsel %vm2733, %v2735, %v2731
      %v2737 = vmul.f32 1.0, %v2736
      %v2738 = vrcp.pop %v2030
      %v2739 = vmul.f32 %v2030, %v2738
      %v2740 = vsub.f32 1.0, %v2739
      %v2741 = vmul.f32 %v2738, %v2740
      %v2742 = vadd.f32 %v2738, %v2741
      %vm2743 = vweird.f32 %v2030
      %vm2744 = vweird.f32 %v2738
      %vm2745 = vmor %vm2743, %vm2744
      %v2746 = vsel %vm2745, %v2738, %v2742
      %v2747 = vand.u32 2147483647, %v2030
      %vm2748 = vcmp.eq.f32.partialorder %v2747, 8.507059e+37
      %v2749 = vand.u32 %v2030, 2147483648
      %v2750 = vor.u32 1.1754944e-38, %v2749
      %v2751 = vsel %vm2748, %v2750, %v2746
      %v2752 = vmul.f32 1.0, %v2751
      %v2753 = vrcp.pop %v2031
      %v2754 = vmul.f32 %v2031, %v2753
      %v2755 = vsub.f32 1.0, %v2754
      %v2756 = vmul.f32 %v2753, %v2755
      %v2757 = vadd.f32 %v2753, %v2756
      %vm2758 = vweird.f32 %v2031
      %vm2759 = vweird.f32 %v2753
      %vm2760 = vmor %vm2758, %vm2759
      %v2761 = vsel %vm2760, %v2753, %v2757
      %v2762 = vand.u32 2147483647, %v2031
      %vm2763 = vcmp.eq.f32.partialorder %v2762, 8.507059e+37
      %v2764 = vand.u32 %v2031, 2147483648
      %v2765 = vor.u32 1.1754944e-38, %v2764
      %v2766 = vsel %vm2763, %v2765, %v2761
      %v2767 = vmul.f32 1.0, %v2766
      %v2768 = vrcp.pop %v2032
      %v2769 = vmul.f32 %v2032, %v2768
      %v2770 = vsub.f32 1.0, %v2769
      %v2771 = vmul.f32 %v2768, %v2770
      %v2772 = vadd.f32 %v2768, %v2771
      %vm2773 = vweird.f32 %v2032
      %vm2774 = vweird.f32 %v2768
      %vm2775 = vmor %vm2773, %vm2774
      %v2776 = vsel %vm2775, %v2768, %v2772
      %v2777 = vand.u32 2147483647, %v2032
      %vm2778 = vcmp.eq.f32.partialorder %v2777, 8.507059e+37
      %v2779 = vand.u32 %v2032, 2147483648
      %v2780 = vor.u32 1.1754944e-38, %v2779
      %v2781 = vsel %vm2778, %v2780, %v2776
      %v2782 = vmul.f32 1.0, %v2781
      %v2783 = vrcp.pop %v2033
      %v2784 = vmul.f32 %v2033, %v2783
      %v2785 = vsub.f32 1.0, %v2784
      %v2786 = vmul.f32 %v2783, %v2785
      %v2787 = vadd.f32 %v2783, %v2786
      %vm2788 = vweird.f32 %v2033
      %vm2789 = vweird.f32 %v2783
      %vm2790 = vmor %vm2788, %vm2789
      %v2791 = vsel %vm2790, %v2783, %v2787
      %v2792 = vand.u32 2147483647, %v2033
      %vm2793 = vcmp.eq.f32.partialorder %v2792, 8.507059e+37
      %v2794 = vand.u32 %v2033, 2147483648
      %v2795 = vor.u32 1.1754944e-38, %v2794
      %v2796 = vsel %vm2793, %v2795, %v2791
      %v2797 = vmul.f32 1.0, %v2796
      %v2798 = vrcp.pop %v2034
      %v2799 = vmul.f32 %v2034, %v2798
      %v2800 = vsub.f32 1.0, %v2799
      %v2801 = vmul.f32 %v2798, %v2800
      %v2802 = vadd.f32 %v2798, %v2801
      %vm2803 = vweird.f32 %v2034
      %vm2804 = vweird.f32 %v2798
      %vm2805 = vmor %vm2803, %vm2804
      %v2806 = vsel %vm2805, %v2798, %v2802
      %v2807 = vand.u32 2147483647, %v2034
      %vm2808 = vcmp.eq.f32.partialorder %v2807, 8.507059e+37
      %v2809 = vand.u32 %v2034, 2147483648
      %v2810 = vor.u32 1.1754944e-38, %v2809
      %v2811 = vsel %vm2808, %v2810, %v2806
      %v2812 = vmul.f32 1.0, %v2811
      %v2813 = vrcp.pop %v2035
      %v2814 = vmul.f32 %v2035, %v2813
      %v2815 = vsub.f32 1.0, %v2814
      %v2816 = vmul.f32 %v2813, %v2815
      %v2817 = vadd.f32 %v2813, %v2816
      %vm2818 = vweird.f32 %v2035
      %vm2819 = vweird.f32 %v2813
      %vm2820 = vmor %vm2818, %vm2819
      %v2821 = vsel %vm2820, %v2813, %v2817
      %v2822 = vand.u32 2147483647, %v2035
      %vm2823 = vcmp.eq.f32.partialorder %v2822, 8.507059e+37
      %v2824 = vand.u32 %v2035, 2147483648
      %v2825 = vor.u32 1.1754944e-38, %v2824
      %v2826 = vsel %vm2823, %v2825, %v2821
      %v2827 = vmul.f32 1.0, %v2826
      %v2828 = vrcp.pop %v2036
      %v2829 = vmul.f32 %v2036, %v2828
      %v2830 = vsub.f32 1.0, %v2829
      %v2831 = vmul.f32 %v2828, %v2830
      %v2832 = vadd.f32 %v2828, %v2831
      %vm2833 = vweird.f32 %v2036
      %vm2834 = vweird.f32 %v2828
      %vm2835 = vmor %vm2833, %vm2834
      %v2836 = vsel %vm2835, %v2828, %v2832
      %v2837 = vand.u32 2147483647, %v2036
      %vm2838 = vcmp.eq.f32.partialorder %v2837, 8.507059e+37
      %v2839 = vand.u32 %v2036, 2147483648
      %v2840 = vor.u32 1.1754944e-38, %v2839
      %v2841 = vsel %vm2838, %v2840, %v2836
      %v2842 = vmul.f32 1.0, %v2841
      %v2843 = vrcp.pop %v2037
      %v2844 = vmul.f32 %v2037, %v2843
      %v2845 = vsub.f32 1.0, %v2844
      %v2846 = vmul.f32 %v2843, %v2845
      %v2847 = vadd.f32 %v2843, %v2846
      %vm2848 = vweird.f32 %v2037
      %vm2849 = vweird.f32 %v2843
      %vm2850 = vmor %vm2848, %vm2849
      %v2851 = vsel %vm2850, %v2843, %v2847
      %v2852 = vand.u32 2147483647, %v2037
      %vm2853 = vcmp.eq.f32.partialorder %v2852, 8.507059e+37
      %v2854 = vand.u32 %v2037, 2147483648
      %v2855 = vor.u32 1.1754944e-38, %v2854
      %v2856 = vsel %vm2853, %v2855, %v2851
      %v2857 = vmul.f32 1.0, %v2856
      %v2858 = vrcp.pop %v2038
      %v2859 = vmul.f32 %v2038, %v2858
      %v2860 = vsub.f32 1.0, %v2859
      %v2861 = vmul.f32 %v2858, %v2860
      %v2862 = vadd.f32 %v2858, %v2861
      %vm2863 = vweird.f32 %v2038
      %vm2864 = vweird.f32 %v2858
      %vm2865 = vmor %vm2863, %vm2864
      %v2866 = vsel %vm2865, %v2858, %v2862
      %v2867 = vand.u32 2147483647, %v2038
      %vm2868 = vcmp.eq.f32.partialorder %v2867, 8.507059e+37
      %v2869 = vand.u32 %v2038, 2147483648
      %v2870 = vor.u32 1.1754944e-38, %v2869
      %v2871 = vsel %vm2868, %v2870, %v2866
      %v2872 = vmul.f32 1.0, %v2871
      %v2873 = vrcp.pop %v2039
      %v2874 = vmul.f32 %v2039, %v2873
      %v2875 = vsub.f32 1.0, %v2874
      %v2876 = vmul.f32 %v2873, %v2875
      %v2877 = vadd.f32 %v2873, %v2876
      %vm2878 = vweird.f32 %v2039
      %vm2879 = vweird.f32 %v2873
      %vm2880 = vmor %vm2878, %vm2879
      %v2881 = vsel %vm2880, %v2873, %v2877
      %v2882 = vand.u32 2147483647, %v2039
      %vm2883 = vcmp.eq.f32.partialorder %v2882, 8.507059e+37
      %v2884 = vand.u32 %v2039, 2147483648
      %v2885 = vor.u32 1.1754944e-38, %v2884
      %v2886 = vsel %vm2883, %v2885, %v2881
      %v2887 = vmul.f32 1.0, %v2886
      %v2888 = vrcp.pop %v2040
      %v2889 = vmul.f32 %v2040, %v2888
      %v2890 = vsub.f32 1.0, %v2889
      %v2891 = vmul.f32 %v2888, %v2890
      %v2892 = vadd.f32 %v2888, %v2891
      %vm2893 = vweird.f32 %v2040
      %vm2894 = vweird.f32 %v2888
      %vm2895 = vmor %vm2893, %vm2894
      %v2896 = vsel %vm2895, %v2888, %v2892
      %v2897 = vand.u32 2147483647, %v2040
      %vm2898 = vcmp.eq.f32.partialorder %v2897, 8.507059e+37
      %v2899 = vand.u32 %v2040, 2147483648
      %v2900 = vor.u32 1.1754944e-38, %v2899
      %v2901 = vsel %vm2898, %v2900, %v2896
      %v2902 = vmul.f32 1.0, %v2901
      %v2903 = vrcp.pop %v2041
      %v2904 = vmul.f32 %v2041, %v2903
      %v2905 = vsub.f32 1.0, %v2904
      %v2906 = vmul.f32 %v2903, %v2905
      %v2907 = vadd.f32 %v2903, %v2906
      %vm2908 = vweird.f32 %v2041
      %vm2909 = vweird.f32 %v2903
      %vm2910 = vmor %vm2908, %vm2909
      %v2911 = vsel %vm2910, %v2903, %v2907
      %v2912 = vand.u32 2147483647, %v2041
      %vm2913 = vcmp.eq.f32.partialorder %v2912, 8.507059e+37
      %v2914 = vand.u32 %v2041, 2147483648
      %v2915 = vor.u32 1.1754944e-38, %v2914
      %v2916 = vsel %vm2913, %v2915, %v2911
      %v2917 = vmul.f32 1.0, %v2916
      %v2918 = vrcp.pop %v2042
      %v2919 = vmul.f32 %v2042, %v2918
      %v2920 = vsub.f32 1.0, %v2919
      %v2921 = vmul.f32 %v2918, %v2920
      %v2922 = vadd.f32 %v2918, %v2921
      %vm2923 = vweird.f32 %v2042
      %vm2924 = vweird.f32 %v2918
      %vm2925 = vmor %vm2923, %vm2924
      %v2926 = vsel %vm2925, %v2918, %v2922
      %v2927 = vand.u32 2147483647, %v2042
      %vm2928 = vcmp.eq.f32.partialorder %v2927, 8.507059e+37
      %v2929 = vand.u32 %v2042, 2147483648
      %v2930 = vor.u32 1.1754944e-38, %v2929
      %v2931 = vsel %vm2928, %v2930, %v2926
      %v2932 = vmul.f32 1.0, %v2931
      %v2933 = vrcp.pop %v2043
      %v2934 = vmul.f32 %v2043, %v2933
      %v2935 = vsub.f32 1.0, %v2934
      %v2936 = vmul.f32 %v2933, %v2935
      %v2937 = vadd.f32 %v2933, %v2936
      %vm2938 = vweird.f32 %v2043
      %vm2939 = vweird.f32 %v2933
      %vm2940 = vmor %vm2938, %vm2939
      %v2941 = vsel %vm2940, %v2933, %v2937
      %v2942 = vand.u32 2147483647, %v2043
      %vm2943 = vcmp.eq.f32.partialorder %v2942, 8.507059e+37
      %v2944 = vand.u32 %v2043, 2147483648
      %v2945 = vor.u32 1.1754944e-38, %v2944
      %v2946 = vsel %vm2943, %v2945, %v2941
      %v2947 = vmul.f32 1.0, %v2946
      %v2948 = vrcp.pop %v2044
      %v2949 = vmul.f32 %v2044, %v2948
      %v2950 = vsub.f32 1.0, %v2949
      %v2951 = vmul.f32 %v2948, %v2950
      %v2952 = vadd.f32 %v2948, %v2951
      %vm2953 = vweird.f32 %v2044
      %vm2954 = vweird.f32 %v2948
      %vm2955 = vmor %vm2953, %vm2954
      %v2956 = vsel %vm2955, %v2948, %v2952
      %v2957 = vand.u32 2147483647, %v2044
      %vm2958 = vcmp.eq.f32.partialorder %v2957, 8.507059e+37
      %v2959 = vand.u32 %v2044, 2147483648
      %v2960 = vor.u32 1.1754944e-38, %v2959
      %v2961 = vsel %vm2958, %v2960, %v2956
      %v2962 = vmul.f32 1.0, %v2961
      %v2963 = vrcp.pop %v2045
      %v2964 = vmul.f32 %v2045, %v2963
      %v2965 = vsub.f32 1.0, %v2964
      %v2966 = vmul.f32 %v2963, %v2965
      %v2967 = vadd.f32 %v2963, %v2966
      %vm2968 = vweird.f32 %v2045
      %vm2969 = vweird.f32 %v2963
      %vm2970 = vmor %vm2968, %vm2969
      %v2971 = vsel %vm2970, %v2963, %v2967
      %v2972 = vand.u32 2147483647, %v2045
      %vm2973 = vcmp.eq.f32.partialorder %v2972, 8.507059e+37
      %v2974 = vand.u32 %v2045, 2147483648
      %v2975 = vor.u32 1.1754944e-38, %v2974
      %v2976 = vsel %vm2973, %v2975, %v2971
      %v2977 = vmul.f32 1.0, %v2976
      %v2978 = vrcp.pop %v2046
      %v2979 = vmul.f32 %v2046, %v2978
      %v2980 = vsub.f32 1.0, %v2979
      %v2981 = vmul.f32 %v2978, %v2980
      %v2982 = vadd.f32 %v2978, %v2981
      %vm2983 = vweird.f32 %v2046
      %vm2984 = vweird.f32 %v2978
      %vm2985 = vmor %vm2983, %vm2984
      %v2986 = vsel %vm2985, %v2978, %v2982
      %v2987 = vand.u32 2147483647, %v2046
      %vm2988 = vcmp.eq.f32.partialorder %v2987, 8.507059e+37
      %v2989 = vand.u32 %v2046, 2147483648
      %v2990 = vor.u32 1.1754944e-38, %v2989
      %v2991 = vsel %vm2988, %v2990, %v2986
      %v2992 = vmul.f32 1.0, %v2991
      %v2993 = vrcp.pop %v2047
      %v2994 = vmul.f32 %v2047, %v2993
      %v2995 = vsub.f32 1.0, %v2994
      %v2996 = vmul.f32 %v2993, %v2995
      %v2997 = vadd.f32 %v2993, %v2996
      %vm2998 = vweird.f32 %v2047
      %vm2999 = vweird.f32 %v2993
      %vm3000 = vmor %vm2998, %vm2999
      %v3001 = vsel %vm3000, %v2993, %v2997
      %v3002 = vand.u32 2147483647, %v2047
      %vm3003 = vcmp.eq.f32.partialorder %v3002, 8.507059e+37
      %v3004 = vand.u32 %v2047, 2147483648
      %v3005 = vor.u32 1.1754944e-38, %v3004
      %v3006 = vsel %vm3003, %v3005, %v3001
      %v3007 = vmul.f32 1.0, %v3006
      %v3008 = vmul.f32 %v2062, 1.0614054
      %v3009 = vmul.f32 %v2077, 1.0614054
      %v3010 = vmul.f32 %v2092, 1.0614054
      %v3011 = vmul.f32 %v2107, 1.0614054
      %v3012 = vmul.f32 %v2122, 1.0614054
      %v3013 = vmul.f32 %v2137, 1.0614054
      %v3014 = vmul.f32 %v2152, 1.0614054
      %v3015 = vmul.f32 %v2167, 1.0614054
      %v3016 = vmul.f32 %v2182, 1.0614054
      %v3017 = vmul.f32 %v2197, 1.0614054
      %v3018 = vmul.f32 %v2212, 1.0614054
      %v3019 = vmul.f32 %v2227, 1.0614054
      %v3020 = vmul.f32 %v2242, 1.0614054
      %v3021 = vmul.f32 %v2257, 1.0614054
      %v3022 = vmul.f32 %v2272, 1.0614054
      %v3023 = vmul.f32 %v2287, 1.0614054
      %v3024 = vmul.f32 %v2302, 1.0614054
      %v3025 = vmul.f32 %v2317, 1.0614054
      %v3026 = vmul.f32 %v2332, 1.0614054
      %v3027 = vmul.f32 %v2347, 1.0614054
      %v3028 = vmul.f32 %v2362, 1.0614054
      %v3029 = vmul.f32 %v2377, 1.0614054
      %v3030 = vmul.f32 %v2392, 1.0614054
      %v3031 = vmul.f32 %v2407, 1.0614054
      %v3032 = vmul.f32 %v2422, 1.0614054
      %v3033 = vmul.f32 %v2437, 1.0614054
      %v3034 = vmul.f32 %v2452, 1.0614054
      %v3035 = vmul.f32 %v2467, 1.0614054
      %v3036 = vmul.f32 %v2482, 1.0614054
      %v3037 = vmul.f32 %v2497, 1.0614054
      %v3038 = vmul.f32 %v2512, 1.0614054
      %v3039 = vmul.f32 %v2527, 1.0614054
      %v3040 = vmul.f32 %v2542, 1.0614054
      %v3041 = vmul.f32 %v2557, 1.0614054
      %v3042 = vmul.f32 %v2572, 1.0614054
      %v3043 = vmul.f32 %v2587, 1.0614054
      %v3044 = vmul.f32 %v2602, 1.0614054
      %v3045 = vmul.f32 %v2617, 1.0614054
      %v3046 = vmul.f32 %v2632, 1.0614054
      %v3047 = vmul.f32 %v2647, 1.0614054
      %v3048 = vmul.f32 %v2662, 1.0614054
      %v3049 = vmul.f32 %v2677, 1.0614054
      %v3050 = vmul.f32 %v2692, 1.0614054
      %v3051 = vmul.f32 %v2707, 1.0614054
      %v3052 = vmul.f32 %v2722, 1.0614054
      %v3053 = vmul.f32 %v2737, 1.0614054
      %v3054 = vmul.f32 %v2752, 1.0614054
      %v3055 = vmul.f32 %v2767, 1.0614054
      %v3056 = vmul.f32 %v2782, 1.0614054
      %v3057 = vmul.f32 %v2797, 1.0614054
      %v3058 = vmul.f32 %v2812, 1.0614054
      %v3059 = vmul.f32 %v2827, 1.0614054
      %v3060 = vmul.f32 %v2842, 1.0614054
      %v3061 = vmul.f32 %v2857, 1.0614054
      %v3062 = vmul.f32 %v2872, 1.0614054
      %v3063 = vmul.f32 %v2887, 1.0614054
      %v3064 = vmul.f32 %v2902, 1.0614054
      %v3065 = vmul.f32 %v2917, 1.0614054
      %v3066 = vmul.f32 %v2932, 1.0614054
      %v3067 = vmul.f32 %v2947, 1.0614054
      %v3068 = vmul.f32 %v2962, 1.0614054
      %v3069 = vmul.f32 %v2977, 1.0614054
      %v3070 = vmul.f32 %v2992, 1.0614054
      %v3071 = vmul.f32 %v3007, 1.0614054
      %v3072 = vadd.f32 %v3008, -1.4531521
      %v3073 = vadd.f32 %v3009, -1.4531521
      %v3074 = vadd.f32 %v3010, -1.4531521
      %v3075 = vadd.f32 %v3011, -1.4531521
      %v3076 = vadd.f32 %v3012, -1.4531521
      %v3077 = vadd.f32 %v3013, -1.4531521
      %v3078 = vadd.f32 %v3014, -1.4531521
      %v3079 = vadd.f32 %v3015, -1.4531521
      %v3080 = vadd.f32 %v3016, -1.4531521
      %v3081 = vadd.f32 %v3017, -1.4531521
      %v3082 = vadd.f32 %v3018, -1.4531521
      %v3083 = vadd.f32 %v3019, -1.4531521
      %v3084 = vadd.f32 %v3020, -1.4531521
      %v3085 = vadd.f32 %v3021, -1.4531521
      %v3086 = vadd.f32 %v3022, -1.4531521
      %v3087 = vadd.f32 %v3023, -1.4531521
      %v3088 = vadd.f32 %v3024, -1.4531521
      %v3089 = vadd.f32 %v3025, -1.4531521
      %v3090 = vadd.f32 %v3026, -1.4531521
      %v3091 = vadd.f32 %v3027, -1.4531521
      %v3092 = vadd.f32 %v3028, -1.4531521
      %v3093 = vadd.f32 %v3029, -1.4531521
      %v3094 = vadd.f32 %v3030, -1.4531521
      %v3095 = vadd.f32 %v3031, -1.4531521
      %v3096 = vadd.f32 %v3032, -1.4531521
      %v3097 = vadd.f32 %v3033, -1.4531521
      %v3098 = vadd.f32 %v3034, -1.4531521
      %v3099 = vadd.f32 %v3035, -1.4531521
      %v3100 = vadd.f32 %v3036, -1.4531521
      %v3101 = vadd.f32 %v3037, -1.4531521
      %v3102 = vadd.f32 %v3038, -1.4531521
      %v3103 = vadd.f32 %v3039, -1.4531521
      %v3104 = vadd.f32 %v3040, -1.4531521
      %v3105 = vadd.f32 %v3041, -1.4531521
      %v3106 = vadd.f32 %v3042, -1.4531521
      %v3107 = vadd.f32 %v3043, -1.4531521
      %v3108 = vadd.f32 %v3044, -1.4531521
      %v3109 = vadd.f32 %v3045, -1.4531521
      %v3110 = vadd.f32 %v3046, -1.4531521
      %v3111 = vadd.f32 %v3047, -1.4531521
      %v3112 = vadd.f32 %v3048, -1.4531521
      %v3113 = vadd.f32 %v3049, -1.4531521
      %v3114 = vadd.f32 %v3050, -1.4531521
      %v3115 = vadd.f32 %v3051, -1.4531521
      %v3116 = vadd.f32 %v3052, -1.4531521
      %v3117 = vadd.f32 %v3053, -1.4531521
      %v3118 = vadd.f32 %v3054, -1.4531521
      %v3119 = vadd.f32 %v3055, -1.4531521
      %v3120 = vadd.f32 %v3056, -1.4531521
      %v3121 = vadd.f32 %v3057, -1.4531521
      %v3122 = vadd.f32 %v3058, -1.4531521
      %v3123 = vadd.f32 %v3059, -1.4531521
      %v3124 = vadd.f32 %v3060, -1.4531521
      %v3125 = vadd.f32 %v3061, -1.4531521
      %v3126 = vadd.f32 %v3062, -1.4531521
      %v3127 = vadd.f32 %v3063, -1.4531521
      %v3128 = vadd.f32 %v3064, -1.4531521
      %v3129 = vadd.f32 %v3065, -1.4531521
      %v3130 = vadd.f32 %v3066, -1.4531521
      %v3131 = vadd.f32 %v3067, -1.4531521
      %v3132 = vadd.f32 %v3068, -1.4531521
      %v3133 = vadd.f32 %v3069, -1.4531521
      %v3134 = vadd.f32 %v3070, -1.4531521
      %v3135 = vadd.f32 %v3071, -1.4531521
      %v3136 = vmul.f32 %v3072, %v2062
      %v3137 = vmul.f32 %v3073, %v2077
      %v3138 = vmul.f32 %v3074, %v2092
      %v3139 = vmul.f32 %v3075, %v2107
      %v3140 = vmul.f32 %v3076, %v2122
      %v3141 = vmul.f32 %v3077, %v2137
      %v3142 = vmul.f32 %v3078, %v2152
      %v3143 = vmul.f32 %v3079, %v2167
      %v3144 = vmul.f32 %v3080, %v2182
      %v3145 = vmul.f32 %v3081, %v2197
      %v3146 = vmul.f32 %v3082, %v2212
      %v3147 = vmul.f32 %v3083, %v2227
      %v3148 = vmul.f32 %v3084, %v2242
      %v3149 = vmul.f32 %v3085, %v2257
      %v3150 = vmul.f32 %v3086, %v2272
      %v3151 = vmul.f32 %v3087, %v2287
      %v3152 = vmul.f32 %v3088, %v2302
      %v3153 = vmul.f32 %v3089, %v2317
      %v3154 = vmul.f32 %v3090, %v2332
      %v3155 = vmul.f32 %v3091, %v2347
      %v3156 = vmul.f32 %v3092, %v2362
      %v3157 = vmul.f32 %v3093, %v2377
      %v3158 = vmul.f32 %v3094, %v2392
      %v3159 = vmul.f32 %v3095, %v2407
      %v3160 = vmul.f32 %v3096, %v2422
      %v3161 = vmul.f32 %v3097, %v2437
      %v3162 = vmul.f32 %v3098, %v2452
      %v3163 = vmul.f32 %v3099, %v2467
      %v3164 = vmul.f32 %v3100, %v2482
      %v3165 = vmul.f32 %v3101, %v2497
      %v3166 = vmul.f32 %v3102, %v2512
      %v3167 = vmul.f32 %v3103, %v2527
      %v3168 = vmul.f32 %v3104, %v2542
      %v3169 = vmul.f32 %v3105, %v2557
      %v3170 = vmul.f32 %v3106, %v2572
      %v3171 = vmul.f32 %v3107, %v2587
      %v3172 = vmul.f32 %v3108, %v2602
      %v3173 = vmul.f32 %v3109, %v2617
      %v3174 = vmul.f32 %v3110, %v2632
      %v3175 = vmul.f32 %v3111, %v2647
      %v3176 = vmul.f32 %v3112, %v2662
      %v3177 = vmul.f32 %v3113, %v2677
      %v3178 = vmul.f32 %v3114, %v2692
      %v3179 = vmul.f32 %v3115, %v2707
      %v3180 = vmul.f32 %v3116, %v2722
      %v3181 = vmul.f32 %v3117, %v2737
      %v3182 = vmul.f32 %v3118, %v2752
      %v3183 = vmul.f32 %v3119, %v2767
      %v3184 = vmul.f32 %v3120, %v2782
      %v3185 = vmul.f32 %v3121, %v2797
      %v3186 = vmul.f32 %v3122, %v2812
      %v3187 = vmul.f32 %v3123, %v2827
      %v3188 = vmul.f32 %v3124, %v2842
      %v3189 = vmul.f32 %v3125, %v2857
      %v3190 = vmul.f32 %v3126, %v2872
      %v3191 = vmul.f32 %v3127, %v2887
      %v3192 = vmul.f32 %v3128, %v2902
      %v3193 = vmul.f32 %v3129, %v2917
      %v3194 = vmul.f32 %v3130, %v2932
      %v3195 = vmul.f32 %v3131, %v2947
      %v3196 = vmul.f32 %v3132, %v2962
      %v3197 = vmul.f32 %v3133, %v2977
      %v3198 = vmul.f32 %v3134, %v2992
      %v3199 = vmul.f32 %v3135, %v3007
      %v3200 = vadd.f32 %v3136, 1.4214138
      %v3201 = vadd.f32 %v3137, 1.4214138
      %v3202 = vadd.f32 %v3138, 1.4214138
      %v3203 = vadd.f32 %v3139, 1.4214138
      %v3204 = vadd.f32 %v3140, 1.4214138
      %v3205 = vadd.f32 %v3141, 1.4214138
      %v3206 = vadd.f32 %v3142, 1.4214138
      %v3207 = vadd.f32 %v3143, 1.4214138
      %v3208 = vadd.f32 %v3144, 1.4214138
      %v3209 = vadd.f32 %v3145, 1.4214138
      %v3210 = vadd.f32 %v3146, 1.4214138
      %v3211 = vadd.f32 %v3147, 1.4214138
      %v3212 = vadd.f32 %v3148, 1.4214138
      %v3213 = vadd.f32 %v3149, 1.4214138
      %v3214 = vadd.f32 %v3150, 1.4214138
      %v3215 = vadd.f32 %v3151, 1.4214138
      %v3216 = vadd.f32 %v3152, 1.4214138
      %v3217 = vadd.f32 %v3153, 1.4214138
      %v3218 = vadd.f32 %v3154, 1.4214138
      %v3219 = vadd.f32 %v3155, 1.4214138
      %v3220 = vadd.f32 %v3156, 1.4214138
      %v3221 = vadd.f32 %v3157, 1.4214138
      %v3222 = vadd.f32 %v3158, 1.4214138
      %v3223 = vadd.f32 %v3159, 1.4214138
      %v3224 = vadd.f32 %v3160, 1.4214138
      %v3225 = vadd.f32 %v3161, 1.4214138
      %v3226 = vadd.f32 %v3162, 1.4214138
      %v3227 = vadd.f32 %v3163, 1.4214138
      %v3228 = vadd.f32 %v3164, 1.4214138
      %v3229 = vadd.f32 %v3165, 1.4214138
      %v3230 = vadd.f32 %v3166, 1.4214138
      %v3231 = vadd.f32 %v3167, 1.4214138
      %v3232 = vadd.f32 %v3168, 1.4214138
      %v3233 = vadd.f32 %v3169, 1.4214138
      %v3234 = vadd.f32 %v3170, 1.4214138
      %v3235 = vadd.f32 %v3171, 1.4214138
      %v3236 = vadd.f32 %v3172, 1.4214138
      %v3237 = vadd.f32 %v3173, 1.4214138
      %v3238 = vadd.f32 %v3174, 1.4214138
      %v3239 = vadd.f32 %v3175, 1.4214138
      %v3240 = vadd.f32 %v3176, 1.4214138
      %v3241 = vadd.f32 %v3177, 1.4214138
      %v3242 = vadd.f32 %v3178, 1.4214138
      %v3243 = vadd.f32 %v3179, 1.4214138
      %v3244 = vadd.f32 %v3180, 1.4214138
      %v3245 = vadd.f32 %v3181, 1.4214138
      %v3246 = vadd.f32 %v3182, 1.4214138
      %v3247 = vadd.f32 %v3183, 1.4214138
      %v3248 = vadd.f32 %v3184, 1.4214138
      %v3249 = vadd.f32 %v3185, 1.4214138
      %v3250 = vadd.f32 %v3186, 1.4214138
      %v3251 = vadd.f32 %v3187, 1.4214138
      %v3252 = vadd.f32 %v3188, 1.4214138
      %v3253 = vadd.f32 %v3189, 1.4214138
      %v3254 = vadd.f32 %v3190, 1.4214138
      %v3255 = vadd.f32 %v3191, 1.4214138
      %v3256 = vadd.f32 %v3192, 1.4214138
      %v3257 = vadd.f32 %v3193, 1.4214138
      %v3258 = vadd.f32 %v3194, 1.4214138
      %v3259 = vadd.f32 %v3195, 1.4214138
      %v3260 = vadd.f32 %v3196, 1.4214138
      %v3261 = vadd.f32 %v3197, 1.4214138
      %v3262 = vadd.f32 %v3198, 1.4214138
      %v3263 = vadd.f32 %v3199, 1.4214138
      %v3264 = vmul.f32 %v3200, %v2062
      %v3265 = vmul.f32 %v3201, %v2077
      %v3266 = vmul.f32 %v3202, %v2092
      %v3267 = vmul.f32 %v3203, %v2107
      %v3268 = vmul.f32 %v3204, %v2122
      %v3269 = vmul.f32 %v3205, %v2137
      %v3270 = vmul.f32 %v3206, %v2152
      %v3271 = vmul.f32 %v3207, %v2167
      %v3272 = vmul.f32 %v3208, %v2182
      %v3273 = vmul.f32 %v3209, %v2197
      %v3274 = vmul.f32 %v3210, %v2212
      %v3275 = vmul.f32 %v3211, %v2227
      %v3276 = vmul.f32 %v3212, %v2242
      %v3277 = vmul.f32 %v3213, %v2257
      %v3278 = vmul.f32 %v3214, %v2272
      %v3279 = vmul.f32 %v3215, %v2287
      %v3280 = vmul.f32 %v3216, %v2302
      %v3281 = vmul.f32 %v3217, %v2317
      %v3282 = vmul.f32 %v3218, %v2332
      %v3283 = vmul.f32 %v3219, %v2347
      %v3284 = vmul.f32 %v3220, %v2362
      %v3285 = vmul.f32 %v3221, %v2377
      %v3286 = vmul.f32 %v3222, %v2392
      %v3287 = vmul.f32 %v3223, %v2407
      %v3288 = vmul.f32 %v3224, %v2422
      %v3289 = vmul.f32 %v3225, %v2437
      %v3290 = vmul.f32 %v3226, %v2452
      %v3291 = vmul.f32 %v3227, %v2467
      %v3292 = vmul.f32 %v3228, %v2482
      %v3293 = vmul.f32 %v3229, %v2497
      %v3294 = vmul.f32 %v3230, %v2512
      %v3295 = vmul.f32 %v3231, %v2527
      %v3296 = vmul.f32 %v3232, %v2542
      %v3297 = vmul.f32 %v3233, %v2557
      %v3298 = vmul.f32 %v3234, %v2572
      %v3299 = vmul.f32 %v3235, %v2587
      %v3300 = vmul.f32 %v3236, %v2602
      %v3301 = vmul.f32 %v3237, %v2617
      %v3302 = vmul.f32 %v3238, %v2632
      %v3303 = vmul.f32 %v3239, %v2647
      %v3304 = vmul.f32 %v3240, %v2662
      %v3305 = vmul.f32 %v3241, %v2677
      %v3306 = vmul.f32 %v3242, %v2692
      %v3307 = vmul.f32 %v3243, %v2707
      %v3308 = vmul.f32 %v3244, %v2722
      %v3309 = vmul.f32 %v3245, %v2737
      %v3310 = vmul.f32 %v3246, %v2752
      %v3311 = vmul.f32 %v3247, %v2767
      %v3312 = vmul.f32 %v3248, %v2782
      %v3313 = vmul.f32 %v3249, %v2797
      %v3314 = vmul.f32 %v3250, %v2812
      %v3315 = vmul.f32 %v3251, %v2827
      %v3316 = vmul.f32 %v3252, %v2842
      %v3317 = vmul.f32 %v3253, %v2857
      %v3318 = vmul.f32 %v3254, %v2872
      %v3319 = vmul.f32 %v3255, %v2887
      %v3320 = vmul.f32 %v3256, %v2902
      %v3321 = vmul.f32 %v3257, %v2917
      %v3322 = vmul.f32 %v3258, %v2932
      %v3323 = vmul.f32 %v3259, %v2947
      %v3324 = vmul.f32 %v3260, %v2962
      %v3325 = vmul.f32 %v3261, %v2977
      %v3326 = vmul.f32 %v3262, %v2992
      %v3327 = vmul.f32 %v3263, %v3007
      %v3328 = vadd.f32 %v3264, -0.28449672
      %v3329 = vadd.f32 %v3265, -0.28449672
      %v3330 = vadd.f32 %v3266, -0.28449672
      %v3331 = vadd.f32 %v3267, -0.28449672
      %v3332 = vadd.f32 %v3268, -0.28449672
      %v3333 = vadd.f32 %v3269, -0.28449672
      %v3334 = vadd.f32 %v3270, -0.28449672
      %v3335 = vadd.f32 %v3271, -0.28449672
      %v3336 = vadd.f32 %v3272, -0.28449672
      %v3337 = vadd.f32 %v3273, -0.28449672
      %v3338 = vadd.f32 %v3274, -0.28449672
      %v3339 = vadd.f32 %v3275, -0.28449672
      %v3340 = vadd.f32 %v3276, -0.28449672
      %v3341 = vadd.f32 %v3277, -0.28449672
      %v3342 = vadd.f32 %v3278, -0.28449672
      %v3343 = vadd.f32 %v3279, -0.28449672
      %v3344 = vadd.f32 %v3280, -0.28449672
      %v3345 = vadd.f32 %v3281, -0.28449672
      %v3346 = vadd.f32 %v3282, -0.28449672
      %v3347 = vadd.f32 %v3283, -0.28449672
      %v3348 = vadd.f32 %v3284, -0.28449672
      %v3349 = vadd.f32 %v3285, -0.28449672
      %v3350 = vadd.f32 %v3286, -0.28449672
      %v3351 = vadd.f32 %v3287, -0.28449672
      %v3352 = vadd.f32 %v3288, -0.28449672
      %v3353 = vadd.f32 %v3289, -0.28449672
      %v3354 = vadd.f32 %v3290, -0.28449672
      %v3355 = vadd.f32 %v3291, -0.28449672
      %v3356 = vadd.f32 %v3292, -0.28449672
      %v3357 = vadd.f32 %v3293, -0.28449672
      %v3358 = vadd.f32 %v3294, -0.28449672
      %v3359 = vadd.f32 %v3295, -0.28449672
      %v3360 = vadd.f32 %v3296, -0.28449672
      %v3361 = vadd.f32 %v3297, -0.28449672
      %v3362 = vadd.f32 %v3298, -0.28449672
      %v3363 = vadd.f32 %v3299, -0.28449672
      %v3364 = vadd.f32 %v3300, -0.28449672
      %v3365 = vadd.f32 %v3301, -0.28449672
      %v3366 = vadd.f32 %v3302, -0.28449672
      %v3367 = vadd.f32 %v3303, -0.28449672
      %v3368 = vadd.f32 %v3304, -0.28449672
      %v3369 = vadd.f32 %v3305, -0.28449672
      %v3370 = vadd.f32 %v3306, -0.28449672
      %v3371 = vadd.f32 %v3307, -0.28449672
      %v3372 = vadd.f32 %v3308, -0.28449672
      %v3373 = vadd.f32 %v3309, -0.28449672
      %v3374 = vadd.f32 %v3310, -0.28449672
      %v3375 = vadd.f32 %v3311, -0.28449672
      %v3376 = vadd.f32 %v3312, -0.28449672
      %v3377 = vadd.f32 %v3313, -0.28449672
      %v3378 = vadd.f32 %v3314, -0.28449672
      %v3379 = vadd.f32 %v3315, -0.28449672
      %v3380 = vadd.f32 %v3316, -0.28449672
      %v3381 = vadd.f32 %v3317, -0.28449672
      %v3382 = vadd.f32 %v3318, -0.28449672
      %v3383 = vadd.f32 %v3319, -0.28449672
      %v3384 = vadd.f32 %v3320, -0.28449672
      %v3385 = vadd.f32 %v3321, -0.28449672
      %v3386 = vadd.f32 %v3322, -0.28449672
      %v3387 = vadd.f32 %v3323, -0.28449672
      %v3388 = vadd.f32 %v3324, -0.28449672
      %v3389 = vadd.f32 %v3325, -0.28449672
      %v3390 = vadd.f32 %v3326, -0.28449672
      %v3391 = vadd.f32 %v3327, -0.28449672
      %v3392 = vmul.f32 %v3328, %v2062
      %v3393 = vmul.f32 %v3329, %v2077
      %v3394 = vmul.f32 %v3330, %v2092
      %v3395 = vmul.f32 %v3331, %v2107
      %v3396 = vmul.f32 %v3332, %v2122
      %v3397 = vmul.f32 %v3333, %v2137
      %v3398 = vmul.f32 %v3334, %v2152
      %v3399 = vmul.f32 %v3335, %v2167
      %v3400 = vmul.f32 %v3336, %v2182
      %v3401 = vmul.f32 %v3337, %v2197
      %v3402 = vmul.f32 %v3338, %v2212
      %v3403 = vmul.f32 %v3339, %v2227
      %v3404 = vmul.f32 %v3340, %v2242
      %v3405 = vmul.f32 %v3341, %v2257
      %v3406 = vmul.f32 %v3342, %v2272
      %v3407 = vmul.f32 %v3343, %v2287
      %v3408 = vmul.f32 %v3344, %v2302
      %v3409 = vmul.f32 %v3345, %v2317
      %v3410 = vmul.f32 %v3346, %v2332
      %v3411 = vmul.f32 %v3347, %v2347
      %v3412 = vmul.f32 %v3348, %v2362
      %v3413 = vmul.f32 %v3349, %v2377
      %v3414 = vmul.f32 %v3350, %v2392
      %v3415 = vmul.f32 %v3351, %v2407
      %v3416 = vmul.f32 %v3352, %v2422
      %v3417 = vmul.f32 %v3353, %v2437
      %v3418 = vmul.f32 %v3354, %v2452
      %v3419 = vmul.f32 %v3355, %v2467
      %v3420 = vmul.f32 %v3356, %v2482
      %v3421 = vmul.f32 %v3357, %v2497
      %v3422 = vmul.f32 %v3358, %v2512
      %v3423 = vmul.f32 %v3359, %v2527
      %v3424 = vmul.f32 %v3360, %v2542
      %v3425 = vmul.f32 %v3361, %v2557
      %v3426 = vmul.f32 %v3362, %v2572
      %v3427 = vmul.f32 %v3363, %v2587
      %v3428 = vmul.f32 %v3364, %v2602
      %v3429 = vmul.f32 %v3365, %v2617
      %v3430 = vmul.f32 %v3366, %v2632
      %v3431 = vmul.f32 %v3367, %v2647
      %v3432 = vmul.f32 %v3368, %v2662
      %v3433 = vmul.f32 %v3369, %v2677
      %v3434 = vmul.f32 %v3370, %v2692
      %v3435 = vmul.f32 %v3371, %v2707
      %v3436 = vmul.f32 %v3372, %v2722
      %v3437 = vmul.f32 %v3373, %v2737
      %v3438 = vmul.f32 %v3374, %v2752
      %v3439 = vmul.f32 %v3375, %v2767
      %v3440 = vmul.f32 %v3376, %v2782
      %v3441 = vmul.f32 %v3377, %v2797
      %v3442 = vmul.f32 %v3378, %v2812
      %v3443 = vmul.f32 %v3379, %v2827
      %v3444 = vmul.f32 %v3380, %v2842
      %v3445 = vmul.f32 %v3381, %v2857
      %v3446 = vmul.f32 %v3382, %v2872
      %v3447 = vmul.f32 %v3383, %v2887
      %v3448 = vmul.f32 %v3384, %v2902
      %v3449 = vmul.f32 %v3385, %v2917
      %v3450 = vmul.f32 %v3386, %v2932
      %v3451 = vmul.f32 %v3387, %v2947
      %v3452 = vmul.f32 %v3388, %v2962
      %v3453 = vmul.f32 %v3389, %v2977
      %v3454 = vmul.f32 %v3390, %v2992
      %v3455 = vmul.f32 %v3391, %v3007
      %v3456 = vadd.f32 %v3392, 0.2548296
      %v3457 = vadd.f32 %v3393, 0.2548296
      %v3458 = vadd.f32 %v3394, 0.2548296
      %v3459 = vadd.f32 %v3395, 0.2548296
      %v3460 = vadd.f32 %v3396, 0.2548296
      %v3461 = vadd.f32 %v3397, 0.2548296
      %v3462 = vadd.f32 %v3398, 0.2548296
      %v3463 = vadd.f32 %v3399, 0.2548296
      %v3464 = vadd.f32 %v3400, 0.2548296
      %v3465 = vadd.f32 %v3401, 0.2548296
      %v3466 = vadd.f32 %v3402, 0.2548296
      %v3467 = vadd.f32 %v3403, 0.2548296
      %v3468 = vadd.f32 %v3404, 0.2548296
      %v3469 = vadd.f32 %v3405, 0.2548296
      %v3470 = vadd.f32 %v3406, 0.2548296
      %v3471 = vadd.f32 %v3407, 0.2548296
      %v3472 = vadd.f32 %v3408, 0.2548296
      %v3473 = vadd.f32 %v3409, 0.2548296
      %v3474 = vadd.f32 %v3410, 0.2548296
      %v3475 = vadd.f32 %v3411, 0.2548296
      %v3476 = vadd.f32 %v3412, 0.2548296
      %v3477 = vadd.f32 %v3413, 0.2548296
      %v3478 = vadd.f32 %v3414, 0.2548296
      %v3479 = vadd.f32 %v3415, 0.2548296
      %v3480 = vadd.f32 %v3416, 0.2548296
      %v3481 = vadd.f32 %v3417, 0.2548296
      %v3482 = vadd.f32 %v3418, 0.2548296
      %v3483 = vadd.f32 %v3419, 0.2548296
      %v3484 = vadd.f32 %v3420, 0.2548296
      %v3485 = vadd.f32 %v3421, 0.2548296
      %v3486 = vadd.f32 %v3422, 0.2548296
      %v3487 = vadd.f32 %v3423, 0.2548296
      %v3488 = vadd.f32 %v3424, 0.2548296
      %v3489 = vadd.f32 %v3425, 0.2548296
      %v3490 = vadd.f32 %v3426, 0.2548296
      %v3491 = vadd.f32 %v3427, 0.2548296
      %v3492 = vadd.f32 %v3428, 0.2548296
      %v3493 = vadd.f32 %v3429, 0.2548296
      %v3494 = vadd.f32 %v3430, 0.2548296
      %v3495 = vadd.f32 %v3431, 0.2548296
      %v3496 = vadd.f32 %v3432, 0.2548296
      %v3497 = vadd.f32 %v3433, 0.2548296
      %v3498 = vadd.f32 %v3434, 0.2548296
      %v3499 = vadd.f32 %v3435, 0.2548296
      %v3500 = vadd.f32 %v3436, 0.2548296
      %v3501 = vadd.f32 %v3437, 0.2548296
      %v3502 = vadd.f32 %v3438, 0.2548296
      %v3503 = vadd.f32 %v3439, 0.2548296
      %v3504 = vadd.f32 %v3440, 0.2548296
      %v3505 = vadd.f32 %v3441, 0.2548296
      %v3506 = vadd.f32 %v3442, 0.2548296
      %v3507 = vadd.f32 %v3443, 0.2548296
      %v3508 = vadd.f32 %v3444, 0.2548296
      %v3509 = vadd.f32 %v3445, 0.2548296
      %v3510 = vadd.f32 %v3446, 0.2548296
      %v3511 = vadd.f32 %v3447, 0.2548296
      %v3512 = vadd.f32 %v3448, 0.2548296
      %v3513 = vadd.f32 %v3449, 0.2548296
      %v3514 = vadd.f32 %v3450, 0.2548296
      %v3515 = vadd.f32 %v3451, 0.2548296
      %v3516 = vadd.f32 %v3452, 0.2548296
      %v3517 = vadd.f32 %v3453, 0.2548296
      %v3518 = vadd.f32 %v3454, 0.2548296
      %v3519 = vadd.f32 %v3455, 0.2548296
      %v3520 = vmul.f32 %v3456, %v2062
      %v3521 = vmul.f32 %v3457, %v2077
      %v3522 = vmul.f32 %v3458, %v2092
      %v3523 = vmul.f32 %v3459, %v2107
      %v3524 = vmul.f32 %v3460, %v2122
      %v3525 = vmul.f32 %v3461, %v2137
      %v3526 = vmul.f32 %v3462, %v2152
      %v3527 = vmul.f32 %v3463, %v2167
      %v3528 = vmul.f32 %v3464, %v2182
      %v3529 = vmul.f32 %v3465, %v2197
      %v3530 = vmul.f32 %v3466, %v2212
      %v3531 = vmul.f32 %v3467, %v2227
      %v3532 = vmul.f32 %v3468, %v2242
      %v3533 = vmul.f32 %v3469, %v2257
      %v3534 = vmul.f32 %v3470, %v2272
      %v3535 = vmul.f32 %v3471, %v2287
      %v3536 = vmul.f32 %v3472, %v2302
      %v3537 = vmul.f32 %v3473, %v2317
      %v3538 = vmul.f32 %v3474, %v2332
      %v3539 = vmul.f32 %v3475, %v2347
      %v3540 = vmul.f32 %v3476, %v2362
      %v3541 = vmul.f32 %v3477, %v2377
      %v3542 = vmul.f32 %v3478, %v2392
      %v3543 = vmul.f32 %v3479, %v2407
      %v3544 = vmul.f32 %v3480, %v2422
      %v3545 = vmul.f32 %v3481, %v2437
      %v3546 = vmul.f32 %v3482, %v2452
      %v3547 = vmul.f32 %v3483, %v2467
      %v3548 = vmul.f32 %v3484, %v2482
      %v3549 = vmul.f32 %v3485, %v2497
      %v3550 = vmul.f32 %v3486, %v2512
      %v3551 = vmul.f32 %v3487, %v2527
      %v3552 = vmul.f32 %v3488, %v2542
      %v3553 = vmul.f32 %v3489, %v2557
      %v3554 = vmul.f32 %v3490, %v2572
      %v3555 = vmul.f32 %v3491, %v2587
      %v3556 = vmul.f32 %v3492, %v2602
      %v3557 = vmul.f32 %v3493, %v2617
      %v3558 = vmul.f32 %v3494, %v2632
      %v3559 = vmul.f32 %v3495, %v2647
      %v3560 = vmul.f32 %v3496, %v2662
      %v3561 = vmul.f32 %v3497, %v2677
      %v3562 = vmul.f32 %v3498, %v2692
      %v3563 = vmul.f32 %v3499, %v2707
      %v3564 = vmul.f32 %v3500, %v2722
      %v3565 = vmul.f32 %v3501, %v2737
      %v3566 = vmul.f32 %v3502, %v2752
      %v3567 = vmul.f32 %v3503, %v2767
      %v3568 = vmul.f32 %v3504, %v2782
      %v3569 = vmul.f32 %v3505, %v2797
      %v3570 = vmul.f32 %v3506, %v2812
      %v3571 = vmul.f32 %v3507, %v2827
      %v3572 = vmul.f32 %v3508, %v2842
      %v3573 = vmul.f32 %v3509, %v2857
      %v3574 = vmul.f32 %v3510, %v2872
      %v3575 = vmul.f32 %v3511, %v2887
      %v3576 = vmul.f32 %v3512, %v2902
      %v3577 = vmul.f32 %v3513, %v2917
      %v3578 = vmul.f32 %v3514, %v2932
      %v3579 = vmul.f32 %v3515, %v2947
      %v3580 = vmul.f32 %v3516, %v2962
      %v3581 = vmul.f32 %v3517, %v2977
      %v3582 = vmul.f32 %v3518, %v2992
      %v3583 = vmul.f32 %v3519, %v3007
      %v3584 = vsub.f32 0.0, %v1856
      %v3585 = vsub.f32 0.0, %v1857
      %v3586 = vsub.f32 0.0, %v1858
      %v3587 = vsub.f32 0.0, %v1859
      %v3588 = vsub.f32 0.0, %v1860
      %v3589 = vsub.f32 0.0, %v1861
      %v3590 = vsub.f32 0.0, %v1862
      %v3591 = vsub.f32 0.0, %v1863
      %v3592 = vsub.f32 0.0, %v1864
      %v3593 = vsub.f32 0.0, %v1865
      %v3594 = vsub.f32 0.0, %v1866
      %v3595 = vsub.f32 0.0, %v1867
      %v3596 = vsub.f32 0.0, %v1868
      %v3597 = vsub.f32 0.0, %v1869
      %v3598 = vsub.f32 0.0, %v1870
      %v3599 = vsub.f32 0.0, %v1871
      %v3600 = vsub.f32 0.0, %v1872
      %v3601 = vsub.f32 0.0, %v1873
      %v3602 = vsub.f32 0.0, %v1874
      %v3603 = vsub.f32 0.0, %v1875
      %v3604 = vsub.f32 0.0, %v1876
      %v3605 = vsub.f32 0.0, %v1877
      %v3606 = vsub.f32 0.0, %v1878
      %v3607 = vsub.f32 0.0, %v1879
      %v3608 = vsub.f32 0.0, %v1880
      %v3609 = vsub.f32 0.0, %v1881
      %v3610 = vsub.f32 0.0, %v1882
      %v3611 = vsub.f32 0.0, %v1883
      %v3612 = vsub.f32 0.0, %v1884
      %v3613 = vsub.f32 0.0, %v1885
      %v3614 = vsub.f32 0.0, %v1886
      %v3615 = vsub.f32 0.0, %v1887
      %v3616 = vsub.f32 0.0, %v1888
      %v3617 = vsub.f32 0.0, %v1889
      %v3618 = vsub.f32 0.0, %v1890
      %v3619 = vsub.f32 0.0, %v1891
      %v3620 = vsub.f32 0.0, %v1892
      %v3621 = vsub.f32 0.0, %v1893
      %v3622 = vsub.f32 0.0, %v1894
      %v3623 = vsub.f32 0.0, %v1895
      %v3624 = vsub.f32 0.0, %v1896
      %v3625 = vsub.f32 0.0, %v1897
      %v3626 = vsub.f32 0.0, %v1898
      %v3627 = vsub.f32 0.0, %v1899
      %v3628 = vsub.f32 0.0, %v1900
      %v3629 = vsub.f32 0.0, %v1901
      %v3630 = vsub.f32 0.0, %v1902
      %v3631 = vsub.f32 0.0, %v1903
      %v3632 = vsub.f32 0.0, %v1904
      %v3633 = vsub.f32 0.0, %v1905
      %v3634 = vsub.f32 0.0, %v1906
      %v3635 = vsub.f32 0.0, %v1907
      %v3636 = vsub.f32 0.0, %v1908
      %v3637 = vsub.f32 0.0, %v1909
      %v3638 = vsub.f32 0.0, %v1910
      %v3639 = vsub.f32 0.0, %v1911
      %v3640 = vsub.f32 0.0, %v1912
      %v3641 = vsub.f32 0.0, %v1913
      %v3642 = vsub.f32 0.0, %v1914
      %v3643 = vsub.f32 0.0, %v1915
      %v3644 = vsub.f32 0.0, %v1916
      %v3645 = vsub.f32 0.0, %v1917
      %v3646 = vsub.f32 0.0, %v1918
      %v3647 = vsub.f32 0.0, %v1919
      %v3648 = vmul.f32 %v3584, %v1856
      %v3649 = vmul.f32 %v3585, %v1857
      %v3650 = vmul.f32 %v3586, %v1858
      %v3651 = vmul.f32 %v3587, %v1859
      %v3652 = vmul.f32 %v3588, %v1860
      %v3653 = vmul.f32 %v3589, %v1861
      %v3654 = vmul.f32 %v3590, %v1862
      %v3655 = vmul.f32 %v3591, %v1863
      %v3656 = vmul.f32 %v3592, %v1864
      %v3657 = vmul.f32 %v3593, %v1865
      %v3658 = vmul.f32 %v3594, %v1866
      %v3659 = vmul.f32 %v3595, %v1867
      %v3660 = vmul.f32 %v3596, %v1868
      %v3661 = vmul.f32 %v3597, %v1869
      %v3662 = vmul.f32 %v3598, %v1870
      %v3663 = vmul.f32 %v3599, %v1871
      %v3664 = vmul.f32 %v3600, %v1872
      %v3665 = vmul.f32 %v3601, %v1873
      %v3666 = vmul.f32 %v3602, %v1874
      %v3667 = vmul.f32 %v3603, %v1875
      %v3668 = vmul.f32 %v3604, %v1876
      %v3669 = vmul.f32 %v3605, %v1877
      %v3670 = vmul.f32 %v3606, %v1878
      %v3671 = vmul.f32 %v3607, %v1879
      %v3672 = vmul.f32 %v3608, %v1880
      %v3673 = vmul.f32 %v3609, %v1881
      %v3674 = vmul.f32 %v3610, %v1882
      %v3675 = vmul.f32 %v3611, %v1883
      %v3676 = vmul.f32 %v3612, %v1884
      %v3677 = vmul.f32 %v3613, %v1885
      %v3678 = vmul.f32 %v3614, %v1886
      %v3679 = vmul.f32 %v3615, %v1887
      %v3680 = vmul.f32 %v3616, %v1888
      %v3681 = vmul.f32 %v3617, %v1889
      %v3682 = vmul.f32 %v3618, %v1890
      %v3683 = vmul.f32 %v3619, %v1891
      %v3684 = vmul.f32 %v3620, %v1892
      %v3685 = vmul.f32 %v3621, %v1893
      %v3686 = vmul.f32 %v3622, %v1894
      %v3687 = vmul.f32 %v3623, %v1895
      %v3688 = vmul.f32 %v3624, %v1896
      %v3689 = vmul.f32 %v3625, %v1897
      %v3690 = vmul.f32 %v3626, %v1898
      %v3691 = vmul.f32 %v3627, %v1899
      %v3692 = vmul.f32 %v3628, %v1900
      %v3693 = vmul.f32 %v3629, %v1901
      %v3694 = vmul.f32 %v3630, %v1902
      %v3695 = vmul.f32 %v3631, %v1903
      %v3696 = vmul.f32 %v3632, %v1904
      %v3697 = vmul.f32 %v3633, %v1905
      %v3698 = vmul.f32 %v3634, %v1906
      %v3699 = vmul.f32 %v3635, %v1907
      %v3700 = vmul.f32 %v3636, %v1908
      %v3701 = vmul.f32 %v3637, %v1909
      %v3702 = vmul.f32 %v3638, %v1910
      %v3703 = vmul.f32 %v3639, %v1911
      %v3704 = vmul.f32 %v3640, %v1912
      %v3705 = vmul.f32 %v3641, %v1913
      %v3706 = vmul.f32 %v3642, %v1914
      %v3707 = vmul.f32 %v3643, %v1915
      %v3708 = vmul.f32 %v3644, %v1916
      %v3709 = vmul.f32 %v3645, %v1917
      %v3710 = vmul.f32 %v3646, %v1918
      %v3711 = vmul.f32 %v3647, %v1919
      %v3712 = vmul.f32 %v3648, 1.442695
      %v3713 = vpow.pop %v3712
      %v3714 = vmul.f32 %v3649, 1.442695
      %v3715 = vpow.pop %v3714
      %v3716 = vmul.f32 %v3650, 1.442695
      %v3717 = vpow.pop %v3716
      %v3718 = vmul.f32 %v3651, 1.442695
      %v3719 = vpow.pop %v3718
      %v3720 = vmul.f32 %v3652, 1.442695
      %v3721 = vpow.pop %v3720
      %v3722 = vmul.f32 %v3653, 1.442695
      %v3723 = vpow.pop %v3722
      %v3724 = vmul.f32 %v3654, 1.442695
      %v3725 = vpow.pop %v3724
      %v3726 = vmul.f32 %v3655, 1.442695
      %v3727 = vpow.pop %v3726
      %v3728 = vmul.f32 %v3656, 1.442695
      %v3729 = vpow.pop %v3728
      %v3730 = vmul.f32 %v3657, 1.442695
      %v3731 = vpow.pop %v3730
      %v3732 = vmul.f32 %v3658, 1.442695
      %v3733 = vpow.pop %v3732
      %v3734 = vmul.f32 %v3659, 1.442695
      %v3735 = vpow.pop %v3734
      %v3736 = vmul.f32 %v3660, 1.442695
      %v3737 = vpow.pop %v3736
      %v3738 = vmul.f32 %v3661, 1.442695
      %v3739 = vpow.pop %v3738
      %v3740 = vmul.f32 %v3662, 1.442695
      %v3741 = vpow.pop %v3740
      %v3742 = vmul.f32 %v3663, 1.442695
      %v3743 = vpow.pop %v3742
      %v3744 = vmul.f32 %v3664, 1.442695
      %v3745 = vpow.pop %v3744
      %v3746 = vmul.f32 %v3665, 1.442695
      %v3747 = vpow.pop %v3746
      %v3748 = vmul.f32 %v3666, 1.442695
      %v3749 = vpow.pop %v3748
      %v3750 = vmul.f32 %v3667, 1.442695
      %v3751 = vpow.pop %v3750
      %v3752 = vmul.f32 %v3668, 1.442695
      %v3753 = vpow.pop %v3752
      %v3754 = vmul.f32 %v3669, 1.442695
      %v3755 = vpow.pop %v3754
      %v3756 = vmul.f32 %v3670, 1.442695
      %v3757 = vpow.pop %v3756
      %v3758 = vmul.f32 %v3671, 1.442695
      %v3759 = vpow.pop %v3758
      %v3760 = vmul.f32 %v3672, 1.442695
      %v3761 = vpow.pop %v3760
      %v3762 = vmul.f32 %v3673, 1.442695
      %v3763 = vpow.pop %v3762
      %v3764 = vmul.f32 %v3674, 1.442695
      %v3765 = vpow.pop %v3764
      %v3766 = vmul.f32 %v3675, 1.442695
      %v3767 = vpow.pop %v3766
      %v3768 = vmul.f32 %v3676, 1.442695
      %v3769 = vpow.pop %v3768
      %v3770 = vmul.f32 %v3677, 1.442695
      %v3771 = vpow.pop %v3770
      %v3772 = vmul.f32 %v3678, 1.442695
      %v3773 = vpow.pop %v3772
      %v3774 = vmul.f32 %v3679, 1.442695
      %v3775 = vpow.pop %v3774
      %v3776 = vmul.f32 %v3680, 1.442695
      %v3777 = vpow.pop %v3776
      %v3778 = vmul.f32 %v3681, 1.442695
      %v3779 = vpow.pop %v3778
      %v3780 = vmul.f32 %v3682, 1.442695
      %v3781 = vpow.pop %v3780
      %v3782 = vmul.f32 %v3683, 1.442695
      %v3783 = vpow.pop %v3782
      %v3784 = vmul.f32 %v3684, 1.442695
      %v3785 = vpow.pop %v3784
      %v3786 = vmul.f32 %v3685, 1.442695
      %v3787 = vpow.pop %v3786
      %v3788 = vmul.f32 %v3686, 1.442695
      %v3789 = vpow.pop %v3788
      %v3790 = vmul.f32 %v3687, 1.442695
      %v3791 = vpow.pop %v3790
      %v3792 = vmul.f32 %v3688, 1.442695
      %v3793 = vpow.pop %v3792
      %v3794 = vmul.f32 %v3689, 1.442695
      %v3795 = vpow.pop %v3794
      %v3796 = vmul.f32 %v3690, 1.442695
      %v3797 = vpow.pop %v3796
      %v3798 = vmul.f32 %v3691, 1.442695
      %v3799 = vpow.pop %v3798
      %v3800 = vmul.f32 %v3692, 1.442695
      %v3801 = vpow.pop %v3800
      %v3802 = vmul.f32 %v3693, 1.442695
      %v3803 = vpow.pop %v3802
      %v3804 = vmul.f32 %v3694, 1.442695
      %v3805 = vpow.pop %v3804
      %v3806 = vmul.f32 %v3695, 1.442695
      %v3807 = vpow.pop %v3806
      %v3808 = vmul.f32 %v3696, 1.442695
      %v3809 = vpow.pop %v3808
      %v3810 = vmul.f32 %v3697, 1.442695
      %v3811 = vpow.pop %v3810
      %v3812 = vmul.f32 %v3698, 1.442695
      %v3813 = vpow.pop %v3812
      %v3814 = vmul.f32 %v3699, 1.442695
      %v3815 = vpow.pop %v3814
      %v3816 = vmul.f32 %v3700, 1.442695
      %v3817 = vpow.pop %v3816
      %v3818 = vmul.f32 %v3701, 1.442695
      %v3819 = vpow.pop %v3818
      %v3820 = vmul.f32 %v3702, 1.442695
      %v3821 = vpow.pop %v3820
      %v3822 = vmul.f32 %v3703, 1.442695
      %v3823 = vpow.pop %v3822
      %v3824 = vmul.f32 %v3704, 1.442695
      %v3825 = vpow.pop %v3824
      %v3826 = vmul.f32 %v3705, 1.442695
      %v3827 = vpow.pop %v3826
      %v3828 = vmul.f32 %v3706, 1.442695
      %v3829 = vpow.pop %v3828
      %v3830 = vmul.f32 %v3707, 1.442695
      %v3831 = vpow.pop %v3830
      %v3832 = vmul.f32 %v3708, 1.442695
      %v3833 = vpow.pop %v3832
      %v3834 = vmul.f32 %v3709, 1.442695
      %v3835 = vpow.pop %v3834
      %v3836 = vmul.f32 %v3710, 1.442695
      %v3837 = vpow.pop %v3836
      %v3838 = vmul.f32 %v3711, 1.442695
      %v3839 = vpow.pop %v3838
      %v3840 = vmul.f32 %v3520, %v3713
      %v3841 = vmul.f32 %v3521, %v3715
      %v3842 = vmul.f32 %v3522, %v3717
      %v3843 = vmul.f32 %v3523, %v3719
      %v3844 = vmul.f32 %v3524, %v3721
      %v3845 = vmul.f32 %v3525, %v3723
      %v3846 = vmul.f32 %v3526, %v3725
      %v3847 = vmul.f32 %v3527, %v3727
      %v3848 = vmul.f32 %v3528, %v3729
      %v3849 = vmul.f32 %v3529, %v3731
      %v3850 = vmul.f32 %v3530, %v3733
      %v3851 = vmul.f32 %v3531, %v3735
      %v3852 = vmul.f32 %v3532, %v3737
      %v3853 = vmul.f32 %v3533, %v3739
      %v3854 = vmul.f32 %v3534, %v3741
      %v3855 = vmul.f32 %v3535, %v3743
      %v3856 = vmul.f32 %v3536, %v3745
      %v3857 = vmul.f32 %v3537, %v3747
      %v3858 = vmul.f32 %v3538, %v3749
      %v3859 = vmul.f32 %v3539, %v3751
      %v3860 = vmul.f32 %v3540, %v3753
      %v3861 = vmul.f32 %v3541, %v3755
      %v3862 = vmul.f32 %v3542, %v3757
      %v3863 = vmul.f32 %v3543, %v3759
      %v3864 = vmul.f32 %v3544, %v3761
      %v3865 = vmul.f32 %v3545, %v3763
      %v3866 = vmul.f32 %v3546, %v3765
      %v3867 = vmul.f32 %v3547, %v3767
      %v3868 = vmul.f32 %v3548, %v3769
      %v3869 = vmul.f32 %v3549, %v3771
      %v3870 = vmul.f32 %v3550, %v3773
      %v3871 = vmul.f32 %v3551, %v3775
      %v3872 = vmul.f32 %v3552, %v3777
      %v3873 = vmul.f32 %v3553, %v3779
      %v3874 = vmul.f32 %v3554, %v3781
      %v3875 = vmul.f32 %v3555, %v3783
      %v3876 = vmul.f32 %v3556, %v3785
      %v3877 = vmul.f32 %v3557, %v3787
      %v3878 = vmul.f32 %v3558, %v3789
      %v3879 = vmul.f32 %v3559, %v3791
      %v3880 = vmul.f32 %v3560, %v3793
      %v3881 = vmul.f32 %v3561, %v3795
      %v3882 = vmul.f32 %v3562, %v3797
      %v3883 = vmul.f32 %v3563, %v3799
      %v3884 = vmul.f32 %v3564, %v3801
      %v3885 = vmul.f32 %v3565, %v3803
      %v3886 = vmul.f32 %v3566, %v3805
      %v3887 = vmul.f32 %v3567, %v3807
      %v3888 = vmul.f32 %v3568, %v3809
      %v3889 = vmul.f32 %v3569, %v3811
      %v3890 = vmul.f32 %v3570, %v3813
      %v3891 = vmul.f32 %v3571, %v3815
      %v3892 = vmul.f32 %v3572, %v3817
      %v3893 = vmul.f32 %v3573, %v3819
      %v3894 = vmul.f32 %v3574, %v3821
      %v3895 = vmul.f32 %v3575, %v3823
      %v3896 = vmul.f32 %v3576, %v3825
      %v3897 = vmul.f32 %v3577, %v3827
      %v3898 = vmul.f32 %v3578, %v3829
      %v3899 = vmul.f32 %v3579, %v3831
      %v3900 = vmul.f32 %v3580, %v3833
      %v3901 = vmul.f32 %v3581, %v3835
      %v3902 = vmul.f32 %v3582, %v3837
      %v3903 = vmul.f32 %v3583, %v3839
      %v3904 = vsub.f32 1.0, %v3840
      %v3905 = vsub.f32 1.0, %v3841
      %v3906 = vsub.f32 1.0, %v3842
      %v3907 = vsub.f32 1.0, %v3843
      %v3908 = vsub.f32 1.0, %v3844
      %v3909 = vsub.f32 1.0, %v3845
      %v3910 = vsub.f32 1.0, %v3846
      %v3911 = vsub.f32 1.0, %v3847
      %v3912 = vsub.f32 1.0, %v3848
      %v3913 = vsub.f32 1.0, %v3849
      %v3914 = vsub.f32 1.0, %v3850
      %v3915 = vsub.f32 1.0, %v3851
      %v3916 = vsub.f32 1.0, %v3852
      %v3917 = vsub.f32 1.0, %v3853
      %v3918 = vsub.f32 1.0, %v3854
      %v3919 = vsub.f32 1.0, %v3855
      %v3920 = vsub.f32 1.0, %v3856
      %v3921 = vsub.f32 1.0, %v3857
      %v3922 = vsub.f32 1.0, %v3858
      %v3923 = vsub.f32 1.0, %v3859
      %v3924 = vsub.f32 1.0, %v3860
      %v3925 = vsub.f32 1.0, %v3861
      %v3926 = vsub.f32 1.0, %v3862
      %v3927 = vsub.f32 1.0, %v3863
      %v3928 = vsub.f32 1.0, %v3864
      %v3929 = vsub.f32 1.0, %v3865
      %v3930 = vsub.f32 1.0, %v3866
      %v3931 = vsub.f32 1.0, %v3867
      %v3932 = vsub.f32 1.0, %v3868
      %v3933 = vsub.f32 1.0, %v3869
      %v3934 = vsub.f32 1.0, %v3870
      %v3935 = vsub.f32 1.0, %v3871
      %v3936 = vsub.f32 1.0, %v3872
      %v3937 = vsub.f32 1.0, %v3873
      %v3938 = vsub.f32 1.0, %v3874
      %v3939 = vsub.f32 1.0, %v3875
      %v3940 = vsub.f32 1.0, %v3876
      %v3941 = vsub.f32 1.0, %v3877
      %v3942 = vsub.f32 1.0, %v3878
      %v3943 = vsub.f32 1.0, %v3879
      %v3944 = vsub.f32 1.0, %v3880
      %v3945 = vsub.f32 1.0, %v3881
      %v3946 = vsub.f32 1.0, %v3882
      %v3947 = vsub.f32 1.0, %v3883
      %v3948 = vsub.f32 1.0, %v3884
      %v3949 = vsub.f32 1.0, %v3885
      %v3950 = vsub.f32 1.0, %v3886
      %v3951 = vsub.f32 1.0, %v3887
      %v3952 = vsub.f32 1.0, %v3888
      %v3953 = vsub.f32 1.0, %v3889
      %v3954 = vsub.f32 1.0, %v3890
      %v3955 = vsub.f32 1.0, %v3891
      %v3956 = vsub.f32 1.0, %v3892
      %v3957 = vsub.f32 1.0, %v3893
      %v3958 = vsub.f32 1.0, %v3894
      %v3959 = vsub.f32 1.0, %v3895
      %v3960 = vsub.f32 1.0, %v3896
      %v3961 = vsub.f32 1.0, %v3897
      %v3962 = vsub.f32 1.0, %v3898
      %v3963 = vsub.f32 1.0, %v3899
      %v3964 = vsub.f32 1.0, %v3900
      %v3965 = vsub.f32 1.0, %v3901
      %v3966 = vsub.f32 1.0, %v3902
      %v3967 = vsub.f32 1.0, %v3903
      %v3968 = vmul.f32 %v1792, %v3904
      %v3969 = vmul.f32 %v1793, %v3905
      %v3970 = vmul.f32 %v1794, %v3906
      %v3971 = vmul.f32 %v1795, %v3907
      %v3972 = vmul.f32 %v1796, %v3908
      %v3973 = vmul.f32 %v1797, %v3909
      %v3974 = vmul.f32 %v1798, %v3910
      %v3975 = vmul.f32 %v1799, %v3911
      %v3976 = vmul.f32 %v1800, %v3912
      %v3977 = vmul.f32 %v1801, %v3913
      %v3978 = vmul.f32 %v1802, %v3914
      %v3979 = vmul.f32 %v1803, %v3915
      %v3980 = vmul.f32 %v1804, %v3916
      %v3981 = vmul.f32 %v1805, %v3917
      %v3982 = vmul.f32 %v1806, %v3918
      %v3983 = vmul.f32 %v1807, %v3919
      %v3984 = vmul.f32 %v1808, %v3920
      %v3985 = vmul.f32 %v1809, %v3921
      %v3986 = vmul.f32 %v1810, %v3922
      %v3987 = vmul.f32 %v1811, %v3923
      %v3988 = vmul.f32 %v1812, %v3924
      %v3989 = vmul.f32 %v1813, %v3925
      %v3990 = vmul.f32 %v1814, %v3926
      %v3991 = vmul.f32 %v1815, %v3927
      %v3992 = vmul.f32 %v1816, %v3928
      %v3993 = vmul.f32 %v1817, %v3929
      %v3994 = vmul.f32 %v1818, %v3930
      %v3995 = vmul.f32 %v1819, %v3931
      %v3996 = vmul.f32 %v1820, %v3932
      %v3997 = vmul.f32 %v1821, %v3933
      %v3998 = vmul.f32 %v1822, %v3934
      %v3999 = vmul.f32 %v1823, %v3935
      %v4000 = vmul.f32 %v1824, %v3936
      %v4001 = vmul.f32 %v1825, %v3937
      %v4002 = vmul.f32 %v1826, %v3938
      %v4003 = vmul.f32 %v1827, %v3939
      %v4004 = vmul.f32 %v1828, %v3940
      %v4005 = vmul.f32 %v1829, %v3941
      %v4006 = vmul.f32 %v1830, %v3942
      %v4007 = vmul.f32 %v1831, %v3943
      %v4008 = vmul.f32 %v1832, %v3944
      %v4009 = vmul.f32 %v1833, %v3945
      %v4010 = vmul.f32 %v1834, %v3946
      %v4011 = vmul.f32 %v1835, %v3947
      %v4012 = vmul.f32 %v1836, %v3948
      %v4013 = vmul.f32 %v1837, %v3949
      %v4014 = vmul.f32 %v1838, %v3950
      %v4015 = vmul.f32 %v1839, %v3951
      %v4016 = vmul.f32 %v1840, %v3952
      %v4017 = vmul.f32 %v1841, %v3953
      %v4018 = vmul.f32 %v1842, %v3954
      %v4019 = vmul.f32 %v1843, %v3955
      %v4020 = vmul.f32 %v1844, %v3956
      %v4021 = vmul.f32 %v1845, %v3957
      %v4022 = vmul.f32 %v1846, %v3958
      %v4023 = vmul.f32 %v1847, %v3959
      %v4024 = vmul.f32 %v1848, %v3960
      %v4025 = vmul.f32 %v1849, %v3961
      %v4026 = vmul.f32 %v1850, %v3962
      %v4027 = vmul.f32 %v1851, %v3963
      %v4028 = vmul.f32 %v1852, %v3964
      %v4029 = vmul.f32 %v1853, %v3965
      %v4030 = vmul.f32 %v1854, %v3966
      %v4031 = vmul.f32 %v1855, %v3967
      %4032 = vmatpush.msra.mxu0 %v3983
      %4033 = vmatpush.msra.mxu0 %v3982
      %4034 = vmatpush.msra.mxu0 %v3981
      %4035 = vmatpush.msra.mxu0 %v3980
      %4036 = vmatpush.msra.mxu0 %v3979
      %4037 = vmatpush.msra.mxu0 %v3978
      %4038 = vmatpush.msra.mxu0 %v3977
      %4039 = vmatpush.msra.mxu0 %v3976
      %4040 = vmatpush.msra.mxu0 %v3975
      %4041 = vmatpush.msra.mxu0 %v3974
      %4042 = vmatpush.msra.mxu0 %v3973
      %4043 = vmatpush.msra.mxu0 %v3972
      %4044 = vmatpush.msra.mxu0 %v3971
      %4045 = vmatpush.msra.mxu0 %v3970
      %4046 = vmatpush.msra.mxu0 %v3969
      %4047 = vmatpush.msra.mxu0 %v3968
      %4048 = vmatmul.f32.gmra.mxu0 %v572
      %v4049 = vpop.f32.mrf.mxu0
      %v4050 = vadd.f32 0.0, %v4049
      %4051 = vdwg.mxu0
      %4052 = vmatpush.msra.mxu0 %v3999
      %4053 = vmatpush.msra.mxu0 %v3998
      %4054 = vmatpush.msra.mxu0 %v3997
      %4055 = vmatpush.msra.mxu0 %v3996
      %4056 = vmatpush.msra.mxu0 %v3995
      %4057 = vmatpush.msra.mxu0 %v3994
      %4058 = vmatpush.msra.mxu0 %v3993
      %4059 = vmatpush.msra.mxu0 %v3992
      %4060 = vmatpush.msra.mxu0 %v3991
      %4061 = vmatpush.msra.mxu0 %v3990
      %4062 = vmatpush.msra.mxu0 %v3989
      %4063 = vmatpush.msra.mxu0 %v3988
      %4064 = vmatpush.msra.mxu0 %v3987
      %4065 = vmatpush.msra.mxu0 %v3986
      %4066 = vmatpush.msra.mxu0 %v3985
      %4067 = vmatpush.msra.mxu0 %v3984
      %4068 = vmatmul.f32.gmra.mxu0 %v573
      %v4069 = vpop.f32.mrf.mxu0
      %v4070 = vadd.f32 %v4050, %v4069
      %4071 = vdwg.mxu0
      %4072 = vmatpush.msra.mxu0 %v4015
      %4073 = vmatpush.msra.mxu0 %v4014
      %4074 = vmatpush.msra.mxu0 %v4013
      %4075 = vmatpush.msra.mxu0 %v4012
      %4076 = vmatpush.msra.mxu0 %v4011
      %4077 = vmatpush.msra.mxu0 %v4010
      %4078 = vmatpush.msra.mxu0 %v4009
      %4079 = vmatpush.msra.mxu0 %v4008
      %4080 = vmatpush.msra.mxu0 %v4007
      %4081 = vmatpush.msra.mxu0 %v4006
      %4082 = vmatpush.msra.mxu0 %v4005
      %4083 = vmatpush.msra.mxu0 %v4004
      %4084 = vmatpush.msra.mxu0 %v4003
      %4085 = vmatpush.msra.mxu0 %v4002
      %4086 = vmatpush.msra.mxu0 %v4001
      %4087 = vmatpush.msra.mxu0 %v4000
      %4088 = vmatmul.f32.gmra.mxu0 %v574
      %v4089 = vpop.f32.mrf.mxu0
      %v4090 = vadd.f32 %v4070, %v4089
      %4091 = vdwg.mxu0
      %4092 = vmatpush.msra.mxu0 %v4031
      %4093 = vmatpush.msra.mxu0 %v4030
      %4094 = vmatpush.msra.mxu0 %v4029
      %4095 = vmatpush.msra.mxu0 %v4028
      %4096 = vmatpush.msra.mxu0 %v4027
      %4097 = vmatpush.msra.mxu0 %v4026
      %4098 = vmatpush.msra.mxu0 %v4025
      %4099 = vmatpush.msra.mxu0 %v4024
      %4100 = vmatpush.msra.mxu0 %v4023
      %4101 = vmatpush.msra.mxu0 %v4022
      %4102 = vmatpush.msra.mxu0 %v4021
      %4103 = vmatpush.msra.mxu0 %v4020
      %4104 = vmatpush.msra.mxu0 %v4019
      %4105 = vmatpush.msra.mxu0 %v4018
      %4106 = vmatpush.msra.mxu0 %v4017
      %4107 = vmatpush.msra.mxu0 %v4016
      %4108 = vmatmul.f32.gmra.mxu0 %v575
      %v4109 = vpop.f32.mrf.mxu0
      %v4110 = vadd.f32 %v4090, %v4109
      %4111 = vdwg.mxu0
      %v4112 = vld [vmem:[%s489] sm:$0xff]
      %v4113 = vld [vmem:[%s489 + $0x8] sm:$0xff]
      %v4114 = vld [vmem:[%s489 + $0x10] sm:$0xff]
      %v4115 = vld [vmem:[%s489 + $0x18] sm:$0xff]
      %v4116 = vld [vmem:[%s492] sm:$0x1]
      %v4117 = vld [vmem:[%s502] sm:$0xff]
      %v4118 = vld [vmem:[%s502 + $0x8] sm:$0xff]
      %v4119 = vld [vmem:[%s502 + $0x10] sm:$0xff]
      %v4120 = vld [vmem:[%s502 + $0x18] sm:$0xff]
      %v4121 = vld [vmem:[%s502 + $0x20] sm:$0xff]
      %v4122 = vld [vmem:[%s502 + $0x28] sm:$0xff]
      %v4123 = vld [vmem:[%s502 + $0x30] sm:$0xff]
      %v4124 = vld [vmem:[%s502 + $0x38] sm:$0xff]
      %v4125 = vld [vmem:[%s502 + $0x40] sm:$0xff]
      %v4126 = vld [vmem:[%s502 + $0x48] sm:$0xff]
      %v4127 = vld [vmem:[%s502 + $0x50] sm:$0xff]
      %v4128 = vld [vmem:[%s502 + $0x58] sm:$0xff]
      %v4129 = vld [vmem:[%s502 + $0x60] sm:$0xff]
      %v4130 = vld [vmem:[%s502 + $0x68] sm:$0xff]
      %v4131 = vld [vmem:[%s502 + $0x70] sm:$0xff]
      %v4132 = vld [vmem:[%s502 + $0x78] sm:$0xff]
      %v4133 = vld [vmem:[%s502 + $0x80] sm:$0xff]
      %v4134 = vld [vmem:[%s502 + $0x88] sm:$0xff]
      %v4135 = vld [vmem:[%s502 + $0x90] sm:$0xff]
      %v4136 = vld [vmem:[%s502 + $0x98] sm:$0xff]
      %v4137 = vld [vmem:[%s502 + $0xa0] sm:$0xff]
      %v4138 = vld [vmem:[%s502 + $0xa8] sm:$0xff]
      %v4139 = vld [vmem:[%s502 + $0xb0] sm:$0xff]
      %v4140 = vld [vmem:[%s502 + $0xb8] sm:$0xff]
      %v4141 = vld [vmem:[%s502 + $0xc0] sm:$0xff]
      %v4142 = vld [vmem:[%s502 + $0xc8] sm:$0xff]
      %v4143 = vld [vmem:[%s502 + $0xd0] sm:$0xff]
      %v4144 = vld [vmem:[%s502 + $0xd8] sm:$0xff]
      %v4145 = vld [vmem:[%s502 + $0xe0] sm:$0xff]
      %v4146 = vld [vmem:[%s502 + $0xe8] sm:$0xff]
      %v4147 = vld [vmem:[%s502 + $0xf0] sm:$0xff]
      %v4148 = vld [vmem:[%s502 + $0xf8] sm:$0xff]
      %v4149 = vld [vmem:[%s502 + $0x100] sm:$0xff]
      %v4150 = vld [vmem:[%s502 + $0x108] sm:$0xff]
      %v4151 = vld [vmem:[%s502 + $0x110] sm:$0xff]
      %v4152 = vld [vmem:[%s502 + $0x118] sm:$0xff]
      %v4153 = vld [vmem:[%s502 + $0x120] sm:$0xff]
      %v4154 = vld [vmem:[%s502 + $0x128] sm:$0xff]
      %v4155 = vld [vmem:[%s502 + $0x130] sm:$0xff]
      %v4156 = vld [vmem:[%s502 + $0x138] sm:$0xff]
      %v4157 = vld [vmem:[%s502 + $0x140] sm:$0xff]
      %v4158 = vld [vmem:[%s502 + $0x148] sm:$0xff]
      %v4159 = vld [vmem:[%s502 + $0x150] sm:$0xff]
      %v4160 = vld [vmem:[%s502 + $0x158] sm:$0xff]
      %v4161 = vld [vmem:[%s502 + $0x160] sm:$0xff]
      %v4162 = vld [vmem:[%s502 + $0x168] sm:$0xff]
      %v4163 = vld [vmem:[%s502 + $0x170] sm:$0xff]
      %v4164 = vld [vmem:[%s502 + $0x178] sm:$0xff]
      %v4165 = vld [vmem:[%s502 + $0x180] sm:$0xff]
      %v4166 = vld [vmem:[%s502 + $0x188] sm:$0xff]
      %v4167 = vld [vmem:[%s502 + $0x190] sm:$0xff]
      %v4168 = vld [vmem:[%s502 + $0x198] sm:$0xff]
      %v4169 = vld [vmem:[%s502 + $0x1a0] sm:$0xff]
      %v4170 = vld [vmem:[%s502 + $0x1a8] sm:$0xff]
      %v4171 = vld [vmem:[%s502 + $0x1b0] sm:$0xff]
      %v4172 = vld [vmem:[%s502 + $0x1b8] sm:$0xff]
      %v4173 = vld [vmem:[%s502 + $0x1c0] sm:$0xff]
      %v4174 = vld [vmem:[%s502 + $0x1c8] sm:$0xff]
      %v4175 = vld [vmem:[%s502 + $0x1d0] sm:$0xff]
      %v4176 = vld [vmem:[%s502 + $0x1d8] sm:$0xff]
      %v4177 = vld [vmem:[%s502 + $0x1e0] sm:$0xff]
      %v4178 = vld [vmem:[%s502 + $0x1e8] sm:$0xff]
      %v4179 = vld [vmem:[%s502 + $0x1f0] sm:$0xff]
      %v4180 = vld [vmem:[%s502 + $0x1f8] sm:$0xff]
      %v4181 = vmul.f32 %v4110, 0.5
      %v4182 = vadd.f32 %v4181, 0.5
      %4183 = vmatpush.msra.mxu0 0.0
      %4184 = vmatpush.msra.mxu0 0.0
      %4185 = vmatpush.msra.mxu0 0.0
      %4186 = vmatpush.msra.mxu0 0.0
      %4187 = vmatpush.msra.mxu0 0.0
      %4188 = vmatpush.msra.mxu0 0.0
      %4189 = vmatpush.msra.mxu0 0.0
      %4190 = vmatpush.msra.mxu0 0.0
      %4191 = vmatpush.msra.mxu0 0.0
      %4192 = vmatpush.msra.mxu0 0.0
      %4193 = vmatpush.msra.mxu0 0.0
      %4194 = vmatpush.msra.mxu0 0.0
      %4195 = vmatpush.msra.mxu0 0.0
      %4196 = vmatpush.msra.mxu0 0.0
      %4197 = vmatpush.msra.mxu0 0.0
      %4198 = vmatpush.msra.mxu0 %v4182
      %4199 = vmatmul.f32.gmra.mxu0 %v731
      %v4200 = vpop.f32.mrf.mxu0
      %v4201 = vadd.f32 0.0, %v4200
      %4202 = vmatmul.f32.gmra.mxu0 %v734
      %v4203 = vpop.f32.mrf.mxu0
      %v4204 = vadd.f32 0.0, %v4203
      %4205 = vmatmul.f32.gmra.mxu0 %v737
      %v4206 = vpop.f32.mrf.mxu0
      %v4207 = vadd.f32 0.0, %v4206
      %4208 = vmatmul.f32.gmra.mxu0 %v740
      %v4209 = vpop.f32.mrf.mxu0
      %v4210 = vadd.f32 0.0, %v4209
      %4211 = vmatmul.f32.gmra.mxu0 %v743
      %v4212 = vpop.f32.mrf.mxu0
      %v4213 = vadd.f32 0.0, %v4212
      %4214 = vmatmul.f32.gmra.mxu0 %v746
      %v4215 = vpop.f32.mrf.mxu0
      %v4216 = vadd.f32 0.0, %v4215
      %4217 = vmatmul.f32.gmra.mxu0 %v749
      %v4218 = vpop.f32.mrf.mxu0
      %v4219 = vadd.f32 0.0, %v4218
      %4220 = vmatmul.f32.gmra.mxu0 %v752
      %v4221 = vpop.f32.mrf.mxu0
      %v4222 = vadd.f32 0.0, %v4221
      %4223 = vmatmul.f32.gmra.mxu0 %v755
      %v4224 = vpop.f32.mrf.mxu0
      %v4225 = vadd.f32 0.0, %v4224
      %4226 = vmatmul.f32.gmra.mxu0 %v758
      %v4227 = vpop.f32.mrf.mxu0
      %v4228 = vadd.f32 0.0, %v4227
      %4229 = vmatmul.f32.gmra.mxu0 %v761
      %v4230 = vpop.f32.mrf.mxu0
      %v4231 = vadd.f32 0.0, %v4230
      %4232 = vmatmul.f32.gmra.mxu0 %v764
      %v4233 = vpop.f32.mrf.mxu0
      %v4234 = vadd.f32 0.0, %v4233
      %4235 = vmatmul.f32.gmra.mxu0 %v767
      %v4236 = vpop.f32.mrf.mxu0
      %v4237 = vadd.f32 0.0, %v4236
      %4238 = vmatmul.f32.gmra.mxu0 %v770
      %v4239 = vpop.f32.mrf.mxu0
      %v4240 = vadd.f32 0.0, %v4239
      %4241 = vmatmul.f32.gmra.mxu0 %v773
      %v4242 = vpop.f32.mrf.mxu0
      %v4243 = vadd.f32 0.0, %v4242
      %4244 = vmatmul.f32.gmra.mxu0 %v776
      %v4245 = vpop.f32.mrf.mxu0
      %v4246 = vadd.f32 0.0, %v4245
      %4247 = vmatmul.f32.gmra.mxu0 %v779
      %v4248 = vpop.f32.mrf.mxu0
      %v4249 = vadd.f32 0.0, %v4248
      %4250 = vmatmul.f32.gmra.mxu0 %v782
      %v4251 = vpop.f32.mrf.mxu0
      %v4252 = vadd.f32 0.0, %v4251
      %4253 = vmatmul.f32.gmra.mxu0 %v785
      %v4254 = vpop.f32.mrf.mxu0
      %v4255 = vadd.f32 0.0, %v4254
      %4256 = vmatmul.f32.gmra.mxu0 %v788
      %v4257 = vpop.f32.mrf.mxu0
      %v4258 = vadd.f32 0.0, %v4257
      %4259 = vmatmul.f32.gmra.mxu0 %v791
      %v4260 = vpop.f32.mrf.mxu0
      %v4261 = vadd.f32 0.0, %v4260
      %4262 = vmatmul.f32.gmra.mxu0 %v794
      %v4263 = vpop.f32.mrf.mxu0
      %v4264 = vadd.f32 0.0, %v4263
      %4265 = vmatmul.f32.gmra.mxu0 %v797
      %v4266 = vpop.f32.mrf.mxu0
      %v4267 = vadd.f32 0.0, %v4266
      %4268 = vmatmul.f32.gmra.mxu0 %v800
      %v4269 = vpop.f32.mrf.mxu0
      %v4270 = vadd.f32 0.0, %v4269
      %4271 = vmatmul.f32.gmra.mxu0 %v803
      %v4272 = vpop.f32.mrf.mxu0
      %v4273 = vadd.f32 0.0, %v4272
      %4274 = vmatmul.f32.gmra.mxu0 %v806
      %v4275 = vpop.f32.mrf.mxu0
      %v4276 = vadd.f32 0.0, %v4275
      %4277 = vmatmul.f32.gmra.mxu0 %v809
      %v4278 = vpop.f32.mrf.mxu0
      %v4279 = vadd.f32 0.0, %v4278
      %4280 = vmatmul.f32.gmra.mxu0 %v812
      %v4281 = vpop.f32.mrf.mxu0
      %v4282 = vadd.f32 0.0, %v4281
      %4283 = vmatmul.f32.gmra.mxu0 %v815
      %v4284 = vpop.f32.mrf.mxu0
      %v4285 = vadd.f32 0.0, %v4284
      %4286 = vmatmul.f32.gmra.mxu0 %v818
      %v4287 = vpop.f32.mrf.mxu0
      %v4288 = vadd.f32 0.0, %v4287
      %4289 = vmatmul.f32.gmra.mxu0 %v821
      %v4290 = vpop.f32.mrf.mxu0
      %v4291 = vadd.f32 0.0, %v4290
      %4292 = vmatmul.f32.gmra.mxu0 %v824
      %v4293 = vpop.f32.mrf.mxu0
      %v4294 = vadd.f32 0.0, %v4293
      %4295 = vmatmul.f32.gmra.mxu0 %v827
      %v4296 = vpop.f32.mrf.mxu0
      %v4297 = vadd.f32 0.0, %v4296
      %4298 = vmatmul.f32.gmra.mxu0 %v830
      %v4299 = vpop.f32.mrf.mxu0
      %v4300 = vadd.f32 0.0, %v4299
      %4301 = vmatmul.f32.gmra.mxu0 %v833
      %v4302 = vpop.f32.mrf.mxu0
      %v4303 = vadd.f32 0.0, %v4302
      %4304 = vmatmul.f32.gmra.mxu0 %v836
      %v4305 = vpop.f32.mrf.mxu0
      %v4306 = vadd.f32 0.0, %v4305
      %4307 = vmatmul.f32.gmra.mxu0 %v839
      %v4308 = vpop.f32.mrf.mxu0
      %v4309 = vadd.f32 0.0, %v4308
      %4310 = vmatmul.f32.gmra.mxu0 %v842
      %v4311 = vpop.f32.mrf.mxu0
      %v4312 = vadd.f32 0.0, %v4311
      %4313 = vmatmul.f32.gmra.mxu0 %v845
      %v4314 = vpop.f32.mrf.mxu0
      %v4315 = vadd.f32 0.0, %v4314
      %4316 = vmatmul.f32.gmra.mxu0 %v848
      %v4317 = vpop.f32.mrf.mxu0
      %v4318 = vadd.f32 0.0, %v4317
      %4319 = vmatmul.f32.gmra.mxu0 %v851
      %v4320 = vpop.f32.mrf.mxu0
      %v4321 = vadd.f32 0.0, %v4320
      %4322 = vmatmul.f32.gmra.mxu0 %v854
      %v4323 = vpop.f32.mrf.mxu0
      %v4324 = vadd.f32 0.0, %v4323
      %4325 = vmatmul.f32.gmra.mxu0 %v857
      %v4326 = vpop.f32.mrf.mxu0
      %v4327 = vadd.f32 0.0, %v4326
      %4328 = vmatmul.f32.gmra.mxu0 %v860
      %v4329 = vpop.f32.mrf.mxu0
      %v4330 = vadd.f32 0.0, %v4329
      %4331 = vmatmul.f32.gmra.mxu0 %v863
      %v4332 = vpop.f32.mrf.mxu0
      %v4333 = vadd.f32 0.0, %v4332
      %4334 = vmatmul.f32.gmra.mxu0 %v866
      %v4335 = vpop.f32.mrf.mxu0
      %v4336 = vadd.f32 0.0, %v4335
      %4337 = vmatmul.f32.gmra.mxu0 %v869
      %v4338 = vpop.f32.mrf.mxu0
      %v4339 = vadd.f32 0.0, %v4338
      %4340 = vmatmul.f32.gmra.mxu0 %v872
      %v4341 = vpop.f32.mrf.mxu0
      %v4342 = vadd.f32 0.0, %v4341
      %4343 = vmatmul.f32.gmra.mxu0 %v875
      %v4344 = vpop.f32.mrf.mxu0
      %v4345 = vadd.f32 0.0, %v4344
      %4346 = vmatmul.f32.gmra.mxu0 %v878
      %v4347 = vpop.f32.mrf.mxu0
      %v4348 = vadd.f32 0.0, %v4347
      %4349 = vmatmul.f32.gmra.mxu0 %v881
      %v4350 = vpop.f32.mrf.mxu0
      %v4351 = vadd.f32 0.0, %v4350
      %4352 = vmatmul.f32.gmra.mxu0 %v884
      %v4353 = vpop.f32.mrf.mxu0
      %v4354 = vadd.f32 0.0, %v4353
      %4355 = vmatmul.f32.gmra.mxu0 %v887
      %v4356 = vpop.f32.mrf.mxu0
      %v4357 = vadd.f32 0.0, %v4356
      %4358 = vmatmul.f32.gmra.mxu0 %v890
      %v4359 = vpop.f32.mrf.mxu0
      %v4360 = vadd.f32 0.0, %v4359
      %4361 = vmatmul.f32.gmra.mxu0 %v893
      %v4362 = vpop.f32.mrf.mxu0
      %v4363 = vadd.f32 0.0, %v4362
      %4364 = vmatmul.f32.gmra.mxu0 %v896
      %v4365 = vpop.f32.mrf.mxu0
      %v4366 = vadd.f32 0.0, %v4365
      %4367 = vmatmul.f32.gmra.mxu0 %v899
      %v4368 = vpop.f32.mrf.mxu0
      %v4369 = vadd.f32 0.0, %v4368
      %4370 = vmatmul.f32.gmra.mxu0 %v902
      %v4371 = vpop.f32.mrf.mxu0
      %v4372 = vadd.f32 0.0, %v4371
      %4373 = vmatmul.f32.gmra.mxu0 %v905
      %v4374 = vpop.f32.mrf.mxu0
      %v4375 = vadd.f32 0.0, %v4374
      %4376 = vmatmul.f32.gmra.mxu0 %v908
      %v4377 = vpop.f32.mrf.mxu0
      %v4378 = vadd.f32 0.0, %v4377
      %4379 = vmatmul.f32.gmra.mxu0 %v911
      %v4380 = vpop.f32.mrf.mxu0
      %v4381 = vadd.f32 0.0, %v4380
      %4382 = vmatmul.f32.gmra.mxu0 %v914
      %v4383 = vpop.f32.mrf.mxu0
      %v4384 = vadd.f32 0.0, %v4383
      %4385 = vmatmul.f32.gmra.mxu0 %v917
      %v4386 = vpop.f32.mrf.mxu0
      %v4387 = vadd.f32 0.0, %v4386
      %4388 = vmatmul.f32.gmra.mxu0 %v920
      %v4389 = vpop.f32.mrf.mxu0
      %v4390 = vadd.f32 0.0, %v4389
      %4391 = vdwg.mxu0
      %vm4392 = vcmp.lt.f32.partialorder %v4117, %v4201
      %vm4393 = vcmp.lt.f32.partialorder %v4118, %v4204
      %vm4394 = vcmp.lt.f32.partialorder %v4119, %v4207
      %vm4395 = vcmp.lt.f32.partialorder %v4120, %v4210
      %vm4396 = vcmp.lt.f32.partialorder %v4121, %v4213
      %vm4397 = vcmp.lt.f32.partialorder %v4122, %v4216
      %vm4398 = vcmp.lt.f32.partialorder %v4123, %v4219
      %vm4399 = vcmp.lt.f32.partialorder %v4124, %v4222
      %vm4400 = vcmp.lt.f32.partialorder %v4125, %v4225
      %vm4401 = vcmp.lt.f32.partialorder %v4126, %v4228
      %vm4402 = vcmp.lt.f32.partialorder %v4127, %v4231
      %vm4403 = vcmp.lt.f32.partialorder %v4128, %v4234
      %vm4404 = vcmp.lt.f32.partialorder %v4129, %v4237
      %vm4405 = vcmp.lt.f32.partialorder %v4130, %v4240
      %vm4406 = vcmp.lt.f32.partialorder %v4131, %v4243
      %vm4407 = vcmp.lt.f32.partialorder %v4132, %v4246
      %vm4408 = vcmp.lt.f32.partialorder %v4133, %v4249
      %vm4409 = vcmp.lt.f32.partialorder %v4134, %v4252
      %vm4410 = vcmp.lt.f32.partialorder %v4135, %v4255
      %vm4411 = vcmp.lt.f32.partialorder %v4136, %v4258
      %vm4412 = vcmp.lt.f32.partialorder %v4137, %v4261
      %vm4413 = vcmp.lt.f32.partialorder %v4138, %v4264
      %vm4414 = vcmp.lt.f32.partialorder %v4139, %v4267
      %vm4415 = vcmp.lt.f32.partialorder %v4140, %v4270
      %vm4416 = vcmp.lt.f32.partialorder %v4141, %v4273
      %vm4417 = vcmp.lt.f32.partialorder %v4142, %v4276
      %vm4418 = vcmp.lt.f32.partialorder %v4143, %v4279
      %vm4419 = vcmp.lt.f32.partialorder %v4144, %v4282
      %vm4420 = vcmp.lt.f32.partialorder %v4145, %v4285
      %vm4421 = vcmp.lt.f32.partialorder %v4146, %v4288
      %vm4422 = vcmp.lt.f32.partialorder %v4147, %v4291
      %vm4423 = vcmp.lt.f32.partialorder %v4148, %v4294
      %vm4424 = vcmp.lt.f32.partialorder %v4149, %v4297
      %vm4425 = vcmp.lt.f32.partialorder %v4150, %v4300
      %vm4426 = vcmp.lt.f32.partialorder %v4151, %v4303
      %vm4427 = vcmp.lt.f32.partialorder %v4152, %v4306
      %vm4428 = vcmp.lt.f32.partialorder %v4153, %v4309
      %vm4429 = vcmp.lt.f32.partialorder %v4154, %v4312
      %vm4430 = vcmp.lt.f32.partialorder %v4155, %v4315
      %vm4431 = vcmp.lt.f32.partialorder %v4156, %v4318
      %vm4432 = vcmp.lt.f32.partialorder %v4157, %v4321
      %vm4433 = vcmp.lt.f32.partialorder %v4158, %v4324
      %vm4434 = vcmp.lt.f32.partialorder %v4159, %v4327
      %vm4435 = vcmp.lt.f32.partialorder %v4160, %v4330
      %vm4436 = vcmp.lt.f32.partialorder %v4161, %v4333
      %vm4437 = vcmp.lt.f32.partialorder %v4162, %v4336
      %vm4438 = vcmp.lt.f32.partialorder %v4163, %v4339
      %vm4439 = vcmp.lt.f32.partialorder %v4164, %v4342
      %vm4440 = vcmp.lt.f32.partialorder %v4165, %v4345
      %vm4441 = vcmp.lt.f32.partialorder %v4166, %v4348
      %vm4442 = vcmp.lt.f32.partialorder %v4167, %v4351
      %vm4443 = vcmp.lt.f32.partialorder %v4168, %v4354
      %vm4444 = vcmp.lt.f32.partialorder %v4169, %v4357
      %vm4445 = vcmp.lt.f32.partialorder %v4170, %v4360
      %vm4446 = vcmp.lt.f32.partialorder %v4171, %v4363
      %vm4447 = vcmp.lt.f32.partialorder %v4172, %v4366
      %vm4448 = vcmp.lt.f32.partialorder %v4173, %v4369
      %vm4449 = vcmp.lt.f32.partialorder %v4174, %v4372
      %vm4450 = vcmp.lt.f32.partialorder %v4175, %v4375
      %vm4451 = vcmp.lt.f32.partialorder %v4176, %v4378
      %vm4452 = vcmp.lt.f32.partialorder %v4177, %v4381
      %vm4453 = vcmp.lt.f32.partialorder %v4178, %v4384
      %vm4454 = vcmp.lt.f32.partialorder %v4179, %v4387
      %vm4455 = vcmp.lt.f32.partialorder %v4180, %v4390
      %v4456 = vsel %vm4392, 1.0, -1.0
      %v4457 = vsel %vm4393, 1.0, -1.0
      %v4458 = vsel %vm4394, 1.0, -1.0
      %v4459 = vsel %vm4395, 1.0, -1.0
      %v4460 = vsel %vm4396, 1.0, -1.0
      %v4461 = vsel %vm4397, 1.0, -1.0
      %v4462 = vsel %vm4398, 1.0, -1.0
      %v4463 = vsel %vm4399, 1.0, -1.0
      %v4464 = vsel %vm4400, 1.0, -1.0
      %v4465 = vsel %vm4401, 1.0, -1.0
      %v4466 = vsel %vm4402, 1.0, -1.0
      %v4467 = vsel %vm4403, 1.0, -1.0
      %v4468 = vsel %vm4404, 1.0, -1.0
      %v4469 = vsel %vm4405, 1.0, -1.0
      %v4470 = vsel %vm4406, 1.0, -1.0
      %v4471 = vsel %vm4407, 1.0, -1.0
      %v4472 = vsel %vm4408, 1.0, -1.0
      %v4473 = vsel %vm4409, 1.0, -1.0
      %v4474 = vsel %vm4410, 1.0, -1.0
      %v4475 = vsel %vm4411, 1.0, -1.0
      %v4476 = vsel %vm4412, 1.0, -1.0
      %v4477 = vsel %vm4413, 1.0, -1.0
      %v4478 = vsel %vm4414, 1.0, -1.0
      %v4479 = vsel %vm4415, 1.0, -1.0
      %v4480 = vsel %vm4416, 1.0, -1.0
      %v4481 = vsel %vm4417, 1.0, -1.0
      %v4482 = vsel %vm4418, 1.0, -1.0
      %v4483 = vsel %vm4419, 1.0, -1.0
      %v4484 = vsel %vm4420, 1.0, -1.0
      %v4485 = vsel %vm4421, 1.0, -1.0
      %v4486 = vsel %vm4422, 1.0, -1.0
      %v4487 = vsel %vm4423, 1.0, -1.0
      %v4488 = vsel %vm4424, 1.0, -1.0
      %v4489 = vsel %vm4425, 1.0, -1.0
      %v4490 = vsel %vm4426, 1.0, -1.0
      %v4491 = vsel %vm4427, 1.0, -1.0
      %v4492 = vsel %vm4428, 1.0, -1.0
      %v4493 = vsel %vm4429, 1.0, -1.0
      %v4494 = vsel %vm4430, 1.0, -1.0
      %v4495 = vsel %vm4431, 1.0, -1.0
      %v4496 = vsel %vm4432, 1.0, -1.0
      %v4497 = vsel %vm4433, 1.0, -1.0
      %v4498 = vsel %vm4434, 1.0, -1.0
      %v4499 = vsel %vm4435, 1.0, -1.0
      %v4500 = vsel %vm4436, 1.0, -1.0
      %v4501 = vsel %vm4437, 1.0, -1.0
      %v4502 = vsel %vm4438, 1.0, -1.0
      %v4503 = vsel %vm4439, 1.0, -1.0
      %v4504 = vsel %vm4440, 1.0, -1.0
      %v4505 = vsel %vm4441, 1.0, -1.0
      %v4506 = vsel %vm4442, 1.0, -1.0
      %v4507 = vsel %vm4443, 1.0, -1.0
      %v4508 = vsel %vm4444, 1.0, -1.0
      %v4509 = vsel %vm4445, 1.0, -1.0
      %v4510 = vsel %vm4446, 1.0, -1.0
      %v4511 = vsel %vm4447, 1.0, -1.0
      %v4512 = vsel %vm4448, 1.0, -1.0
      %v4513 = vsel %vm4449, 1.0, -1.0
      %v4514 = vsel %vm4450, 1.0, -1.0
      %v4515 = vsel %vm4451, 1.0, -1.0
      %v4516 = vsel %vm4452, 1.0, -1.0
      %v4517 = vsel %vm4453, 1.0, -1.0
      %v4518 = vsel %vm4454, 1.0, -1.0
      %v4519 = vsel %vm4455, 1.0, -1.0
      %v4521 = vperm.slane %v4116, 0
      %v4524 = vsel %vm1262, %v4456, 0
      %v4527 = vsel %vm1262, %v4457, 0
      %v4530 = vsel %vm1262, %v4458, 0
      %v4533 = vsel %vm1262, %v4459, 0
      %v4536 = vsel %vm1262, %v4460, 0
      %v4539 = vsel %vm1262, %v4461, 0
      %v4542 = vsel %vm1262, %v4462, 0
      %v4545 = vsel %vm1262, %v4463, 0
      %v4548 = vsel %vm1262, %v4464, 0
      %v4551 = vsel %vm1262, %v4465, 0
      %v4554 = vsel %vm1262, %v4466, 0
      %v4557 = vsel %vm1262, %v4467, 0
      %v4560 = vsel %vm1262, %v4468, 0
      %v4563 = vsel %vm1262, %v4469, 0
      %v4566 = vsel %vm1262, %v4470, 0
      %v4569 = vsel %vm1262, %v4471, 0
      %v4572 = vsel %vm1262, %v4472, 0
      %v4575 = vsel %vm1262, %v4473, 0
      %v4578 = vsel %vm1262, %v4474, 0
      %v4581 = vsel %vm1262, %v4475, 0
      %v4584 = vsel %vm1262, %v4476, 0
      %v4587 = vsel %vm1262, %v4477, 0
      %v4590 = vsel %vm1262, %v4478, 0
      %v4593 = vsel %vm1262, %v4479, 0
      %v4596 = vsel %vm1262, %v4480, 0
      %v4599 = vsel %vm1262, %v4481, 0
      %v4602 = vsel %vm1262, %v4482, 0
      %v4605 = vsel %vm1262, %v4483, 0
      %v4608 = vsel %vm1262, %v4484, 0
      %v4611 = vsel %vm1262, %v4485, 0
      %v4614 = vsel %vm1262, %v4486, 0
      %v4617 = vsel %vm1262, %v4487, 0
      %v4620 = vsel %vm1262, %v4488, 0
      %v4623 = vsel %vm1262, %v4489, 0
      %v4626 = vsel %vm1262, %v4490, 0
      %v4629 = vsel %vm1262, %v4491, 0
      %v4632 = vsel %vm1262, %v4492, 0
      %v4635 = vsel %vm1262, %v4493, 0
      %v4638 = vsel %vm1262, %v4494, 0
      %v4641 = vsel %vm1262, %v4495, 0
      %v4644 = vsel %vm1262, %v4496, 0
      %v4647 = vsel %vm1262, %v4497, 0
      %v4650 = vsel %vm1262, %v4498, 0
      %v4653 = vsel %vm1262, %v4499, 0
      %v4656 = vsel %vm1262, %v4500, 0
      %v4659 = vsel %vm1262, %v4501, 0
      %v4662 = vsel %vm1262, %v4502, 0
      %v4665 = vsel %vm1262, %v4503, 0
      %v4668 = vsel %vm1262, %v4504, 0
      %v4671 = vsel %vm1262, %v4505, 0
      %v4674 = vsel %vm1262, %v4506, 0
      %v4677 = vsel %vm1262, %v4507, 0
      %v4680 = vsel %vm1262, %v4508, 0
      %v4683 = vsel %vm1262, %v4509, 0
      %v4686 = vsel %vm1262, %v4510, 0
      %v4689 = vsel %vm1262, %v4511, 0
      %v4692 = vsel %vm1262, %v4512, 0
      %v4695 = vsel %vm1262, %v4513, 0
      %v4698 = vsel %vm1262, %v4514, 0
      %v4701 = vsel %vm1262, %v4515, 0
      %v4704 = vsel %vm1262, %v4516, 0
      %v4707 = vsel %vm1262, %v4517, 0
      %v4710 = vsel %vm1262, %v4518, 0
      %v4713 = vsel %vm1262, %v4519, 0
      %4715 = vmatpush.msra.mxu0 0.0
      %4716 = vmatpush.msra.mxu0 0.0
      %4717 = vmatpush.msra.mxu0 0.0
      %4718 = vmatpush.msra.mxu0 0.0
      %4719 = vmatpush.msra.mxu0 0.0
      %4720 = vmatpush.msra.mxu0 0.0
      %4721 = vmatpush.msra.mxu0 0.0
      %4722 = vmatpush.msra.mxu0 0.0
      %4723 = vmatpush.msra.mxu0 0.0
      %4724 = vmatpush.msra.mxu0 0.0
      %4725 = vmatpush.msra.mxu0 0.0
      %4726 = vmatpush.msra.mxu0 0.0
      %4727 = vmatpush.msra.mxu0 %v4115
      %4728 = vmatpush.msra.mxu0 %v4114
      %4729 = vmatpush.msra.mxu0 %v4113
      %4730 = vmatpush.msra.mxu0 %v4112
      %4731 = vmatmul.f32.gmra.mxu0 %v4524
      %v4732 = vpop.f32.mrf.mxu0
      %v4733 = vadd.f32 %v4521, %v4732
      %4734 = vmatmul.f32.gmra.mxu0 %v4527
      %v4735 = vpop.f32.mrf.mxu0
      %v4736 = vadd.f32 %v4521, %v4735
      %4737 = vmatmul.f32.gmra.mxu0 %v4530
      %v4738 = vpop.f32.mrf.mxu0
      %v4739 = vadd.f32 %v4521, %v4738
      %4740 = vmatmul.f32.gmra.mxu0 %v4533
      %v4741 = vpop.f32.mrf.mxu0
      %v4742 = vadd.f32 %v4521, %v4741
      %4743 = vmatmul.f32.gmra.mxu0 %v4536
      %v4744 = vpop.f32.mrf.mxu0
      %v4745 = vadd.f32 %v4521, %v4744
      %4746 = vmatmul.f32.gmra.mxu0 %v4539
      %v4747 = vpop.f32.mrf.mxu0
      %v4748 = vadd.f32 %v4521, %v4747
      %4749 = vmatmul.f32.gmra.mxu0 %v4542
      %v4750 = vpop.f32.mrf.mxu0
      %v4751 = vadd.f32 %v4521, %v4750
      %4752 = vmatmul.f32.gmra.mxu0 %v4545
      %v4753 = vpop.f32.mrf.mxu0
      %v4754 = vadd.f32 %v4521, %v4753
      %4755 = vmatmul.f32.gmra.mxu0 %v4548
      %v4756 = vpop.f32.mrf.mxu0
      %v4757 = vadd.f32 %v4521, %v4756
      %4758 = vmatmul.f32.gmra.mxu0 %v4551
      %v4759 = vpop.f32.mrf.mxu0
      %v4760 = vadd.f32 %v4521, %v4759
      %4761 = vmatmul.f32.gmra.mxu0 %v4554
      %v4762 = vpop.f32.mrf.mxu0
      %v4763 = vadd.f32 %v4521, %v4762
      %4764 = vmatmul.f32.gmra.mxu0 %v4557
      %v4765 = vpop.f32.mrf.mxu0
      %v4766 = vadd.f32 %v4521, %v4765
      %4767 = vmatmul.f32.gmra.mxu0 %v4560
      %v4768 = vpop.f32.mrf.mxu0
      %v4769 = vadd.f32 %v4521, %v4768
      %4770 = vmatmul.f32.gmra.mxu0 %v4563
      %v4771 = vpop.f32.mrf.mxu0
      %v4772 = vadd.f32 %v4521, %v4771
      %4773 = vmatmul.f32.gmra.mxu0 %v4566
      %v4774 = vpop.f32.mrf.mxu0
      %v4775 = vadd.f32 %v4521, %v4774
      %4776 = vmatmul.f32.gmra.mxu0 %v4569
      %v4777 = vpop.f32.mrf.mxu0
      %v4778 = vadd.f32 %v4521, %v4777
      %4779 = vmatmul.f32.gmra.mxu0 %v4572
      %v4780 = vpop.f32.mrf.mxu0
      %v4781 = vadd.f32 %v4521, %v4780
      %4782 = vmatmul.f32.gmra.mxu0 %v4575
      %v4783 = vpop.f32.mrf.mxu0
      %v4784 = vadd.f32 %v4521, %v4783
      %4785 = vmatmul.f32.gmra.mxu0 %v4578
      %v4786 = vpop.f32.mrf.mxu0
      %v4787 = vadd.f32 %v4521, %v4786
      %4788 = vmatmul.f32.gmra.mxu0 %v4581
      %v4789 = vpop.f32.mrf.mxu0
      %v4790 = vadd.f32 %v4521, %v4789
      %4791 = vmatmul.f32.gmra.mxu0 %v4584
      %v4792 = vpop.f32.mrf.mxu0
      %v4793 = vadd.f32 %v4521, %v4792
      %4794 = vmatmul.f32.gmra.mxu0 %v4587
      %v4795 = vpop.f32.mrf.mxu0
      %v4796 = vadd.f32 %v4521, %v4795
      %4797 = vmatmul.f32.gmra.mxu0 %v4590
      %v4798 = vpop.f32.mrf.mxu0
      %v4799 = vadd.f32 %v4521, %v4798
      %4800 = vmatmul.f32.gmra.mxu0 %v4593
      %v4801 = vpop.f32.mrf.mxu0
      %v4802 = vadd.f32 %v4521, %v4801
      %4803 = vmatmul.f32.gmra.mxu0 %v4596
      %v4804 = vpop.f32.mrf.mxu0
      %v4805 = vadd.f32 %v4521, %v4804
      %4806 = vmatmul.f32.gmra.mxu0 %v4599
      %v4807 = vpop.f32.mrf.mxu0
      %v4808 = vadd.f32 %v4521, %v4807
      %4809 = vmatmul.f32.gmra.mxu0 %v4602
      %v4810 = vpop.f32.mrf.mxu0
      %v4811 = vadd.f32 %v4521, %v4810
      %4812 = vmatmul.f32.gmra.mxu0 %v4605
      %v4813 = vpop.f32.mrf.mxu0
      %v4814 = vadd.f32 %v4521, %v4813
      %4815 = vmatmul.f32.gmra.mxu0 %v4608
      %v4816 = vpop.f32.mrf.mxu0
      %v4817 = vadd.f32 %v4521, %v4816
      %4818 = vmatmul.f32.gmra.mxu0 %v4611
      %v4819 = vpop.f32.mrf.mxu0
      %v4820 = vadd.f32 %v4521, %v4819
      %4821 = vmatmul.f32.gmra.mxu0 %v4614
      %v4822 = vpop.f32.mrf.mxu0
      %v4823 = vadd.f32 %v4521, %v4822
      %4824 = vmatmul.f32.gmra.mxu0 %v4617
      %v4825 = vpop.f32.mrf.mxu0
      %v4826 = vadd.f32 %v4521, %v4825
      %4827 = vmatmul.f32.gmra.mxu0 %v4620
      %v4828 = vpop.f32.mrf.mxu0
      %v4829 = vadd.f32 %v4521, %v4828
      %4830 = vmatmul.f32.gmra.mxu0 %v4623
      %v4831 = vpop.f32.mrf.mxu0
      %v4832 = vadd.f32 %v4521, %v4831
      %4833 = vmatmul.f32.gmra.mxu0 %v4626
      %v4834 = vpop.f32.mrf.mxu0
      %v4835 = vadd.f32 %v4521, %v4834
      %4836 = vmatmul.f32.gmra.mxu0 %v4629
      %v4837 = vpop.f32.mrf.mxu0
      %v4838 = vadd.f32 %v4521, %v4837
      %4839 = vmatmul.f32.gmra.mxu0 %v4632
      %v4840 = vpop.f32.mrf.mxu0
      %v4841 = vadd.f32 %v4521, %v4840
      %4842 = vmatmul.f32.gmra.mxu0 %v4635
      %v4843 = vpop.f32.mrf.mxu0
      %v4844 = vadd.f32 %v4521, %v4843
      %4845 = vmatmul.f32.gmra.mxu0 %v4638
      %v4846 = vpop.f32.mrf.mxu0
      %v4847 = vadd.f32 %v4521, %v4846
      %4848 = vmatmul.f32.gmra.mxu0 %v4641
      %v4849 = vpop.f32.mrf.mxu0
      %v4850 = vadd.f32 %v4521, %v4849
      %4851 = vmatmul.f32.gmra.mxu0 %v4644
      %v4852 = vpop.f32.mrf.mxu0
      %v4853 = vadd.f32 %v4521, %v4852
      %4854 = vmatmul.f32.gmra.mxu0 %v4647
      %v4855 = vpop.f32.mrf.mxu0
      %v4856 = vadd.f32 %v4521, %v4855
      %4857 = vmatmul.f32.gmra.mxu0 %v4650
      %v4858 = vpop.f32.mrf.mxu0
      %v4859 = vadd.f32 %v4521, %v4858
      %4860 = vmatmul.f32.gmra.mxu0 %v4653
      %v4861 = vpop.f32.mrf.mxu0
      %v4862 = vadd.f32 %v4521, %v4861
      %4863 = vmatmul.f32.gmra.mxu0 %v4656
      %v4864 = vpop.f32.mrf.mxu0
      %v4865 = vadd.f32 %v4521, %v4864
      %4866 = vmatmul.f32.gmra.mxu0 %v4659
      %v4867 = vpop.f32.mrf.mxu0
      %v4868 = vadd.f32 %v4521, %v4867
      %4869 = vmatmul.f32.gmra.mxu0 %v4662
      %v4870 = vpop.f32.mrf.mxu0
      %v4871 = vadd.f32 %v4521, %v4870
      %4872 = vmatmul.f32.gmra.mxu0 %v4665
      %v4873 = vpop.f32.mrf.mxu0
      %v4874 = vadd.f32 %v4521, %v4873
      %4875 = vmatmul.f32.gmra.mxu0 %v4668
      %v4876 = vpop.f32.mrf.mxu0
      %v4877 = vadd.f32 %v4521, %v4876
      %4878 = vmatmul.f32.gmra.mxu0 %v4671
      %v4879 = vpop.f32.mrf.mxu0
      %v4880 = vadd.f32 %v4521, %v4879
      %4881 = vmatmul.f32.gmra.mxu0 %v4674
      %v4882 = vpop.f32.mrf.mxu0
      %v4883 = vadd.f32 %v4521, %v4882
      %4884 = vmatmul.f32.gmra.mxu0 %v4677
      %v4885 = vpop.f32.mrf.mxu0
      %v4886 = vadd.f32 %v4521, %v4885
      %4887 = vmatmul.f32.gmra.mxu0 %v4680
      %v4888 = vpop.f32.mrf.mxu0
      %v4889 = vadd.f32 %v4521, %v4888
      %4890 = vmatmul.f32.gmra.mxu0 %v4683
      %v4891 = vpop.f32.mrf.mxu0
      %v4892 = vadd.f32 %v4521, %v4891
      %4893 = vmatmul.f32.gmra.mxu0 %v4686
      %v4894 = vpop.f32.mrf.mxu0
      %v4895 = vadd.f32 %v4521, %v4894
      %4896 = vmatmul.f32.gmra.mxu0 %v4689
      %v4897 = vpop.f32.mrf.mxu0
      %v4898 = vadd.f32 %v4521, %v4897
      %4899 = vmatmul.f32.gmra.mxu0 %v4692
      %v4900 = vpop.f32.mrf.mxu0
      %v4901 = vadd.f32 %v4521, %v4900
      %4902 = vmatmul.f32.gmra.mxu0 %v4695
      %v4903 = vpop.f32.mrf.mxu0
      %v4904 = vadd.f32 %v4521, %v4903
      %4905 = vmatmul.f32.gmra.mxu0 %v4698
      %v4906 = vpop.f32.mrf.mxu0
      %v4907 = vadd.f32 %v4521, %v4906
      %4908 = vmatmul.f32.gmra.mxu0 %v4701
      %v4909 = vpop.f32.mrf.mxu0
      %v4910 = vadd.f32 %v4521, %v4909
      %4911 = vmatmul.f32.gmra.mxu0 %v4704
      %v4912 = vpop.f32.mrf.mxu0
      %v4913 = vadd.f32 %v4521, %v4912
      %4914 = vmatmul.f32.gmra.mxu0 %v4707
      %v4915 = vpop.f32.mrf.mxu0
      %v4916 = vadd.f32 %v4521, %v4915
      %4917 = vmatmul.f32.gmra.mxu0 %v4710
      %v4918 = vpop.f32.mrf.mxu0
      %v4919 = vadd.f32 %v4521, %v4918
      %4920 = vmatmul.f32.gmra.mxu0 %v4713
      %v4921 = vpop.f32.mrf.mxu0
      %v4922 = vadd.f32 %v4521, %v4921
      %4923 = vdwg.mxu0
      %v4924 = vmul.f32 %v4733, 0.125
      %v4925 = vmul.f32 %v4736, 0.125
      %v4926 = vmul.f32 %v4739, 0.125
      %v4927 = vmul.f32 %v4742, 0.125
      %v4928 = vmul.f32 %v4745, 0.125
      %v4929 = vmul.f32 %v4748, 0.125
      %v4930 = vmul.f32 %v4751, 0.125
      %v4931 = vmul.f32 %v4754, 0.125
      %v4932 = vmul.f32 %v4757, 0.125
      %v4933 = vmul.f32 %v4760, 0.125
      %v4934 = vmul.f32 %v4763, 0.125
      %v4935 = vmul.f32 %v4766, 0.125
      %v4936 = vmul.f32 %v4769, 0.125
      %v4937 = vmul.f32 %v4772, 0.125
      %v4938 = vmul.f32 %v4775, 0.125
      %v4939 = vmul.f32 %v4778, 0.125
      %v4940 = vmul.f32 %v4781, 0.125
      %v4941 = vmul.f32 %v4784, 0.125
      %v4942 = vmul.f32 %v4787, 0.125
      %v4943 = vmul.f32 %v4790, 0.125
      %v4944 = vmul.f32 %v4793, 0.125
      %v4945 = vmul.f32 %v4796, 0.125
      %v4946 = vmul.f32 %v4799, 0.125
      %v4947 = vmul.f32 %v4802, 0.125
      %v4948 = vmul.f32 %v4805, 0.125
      %v4949 = vmul.f32 %v4808, 0.125
      %v4950 = vmul.f32 %v4811, 0.125
      %v4951 = vmul.f32 %v4814, 0.125
      %v4952 = vmul.f32 %v4817, 0.125
      %v4953 = vmul.f32 %v4820, 0.125
      %v4954 = vmul.f32 %v4823, 0.125
      %v4955 = vmul.f32 %v4826, 0.125
      %v4956 = vmul.f32 %v4829, 0.125
      %v4957 = vmul.f32 %v4832, 0.125
      %v4958 = vmul.f32 %v4835, 0.125
      %v4959 = vmul.f32 %v4838, 0.125
      %v4960 = vmul.f32 %v4841, 0.125
      %v4961 = vmul.f32 %v4844, 0.125
      %v4962 = vmul.f32 %v4847, 0.125
      %v4963 = vmul.f32 %v4850, 0.125
      %v4964 = vmul.f32 %v4853, 0.125
      %v4965 = vmul.f32 %v4856, 0.125
      %v4966 = vmul.f32 %v4859, 0.125
      %v4967 = vmul.f32 %v4862, 0.125
      %v4968 = vmul.f32 %v4865, 0.125
      %v4969 = vmul.f32 %v4868, 0.125
      %v4970 = vmul.f32 %v4871, 0.125
      %v4971 = vmul.f32 %v4874, 0.125
      %v4972 = vmul.f32 %v4877, 0.125
      %v4973 = vmul.f32 %v4880, 0.125
      %v4974 = vmul.f32 %v4883, 0.125
      %v4975 = vmul.f32 %v4886, 0.125
      %v4976 = vmul.f32 %v4889, 0.125
      %v4977 = vmul.f32 %v4892, 0.125
      %v4978 = vmul.f32 %v4895, 0.125
      %v4979 = vmul.f32 %v4898, 0.125
      %v4980 = vmul.f32 %v4901, 0.125
      %v4981 = vmul.f32 %v4904, 0.125
      %v4982 = vmul.f32 %v4907, 0.125
      %v4983 = vmul.f32 %v4910, 0.125
      %v4984 = vmul.f32 %v4913, 0.125
      %v4985 = vmul.f32 %v4916, 0.125
      %v4986 = vmul.f32 %v4919, 0.125
      %v4987 = vmul.f32 %v4922, 0.125
      %vm4988 = vcmp.lt.f32.partialorder %v4924, 0.0
      %vm4989 = vcmp.lt.f32.partialorder %v4925, 0.0
      %vm4990 = vcmp.lt.f32.partialorder %v4926, 0.0
      %vm4991 = vcmp.lt.f32.partialorder %v4927, 0.0
      %vm4992 = vcmp.lt.f32.partialorder %v4928, 0.0
      %vm4993 = vcmp.lt.f32.partialorder %v4929, 0.0
      %vm4994 = vcmp.lt.f32.partialorder %v4930, 0.0
      %vm4995 = vcmp.lt.f32.partialorder %v4931, 0.0
      %vm4996 = vcmp.lt.f32.partialorder %v4932, 0.0
      %vm4997 = vcmp.lt.f32.partialorder %v4933, 0.0
      %vm4998 = vcmp.lt.f32.partialorder %v4934, 0.0
      %vm4999 = vcmp.lt.f32.partialorder %v4935, 0.0
      %vm5000 = vcmp.lt.f32.partialorder %v4936, 0.0
      %vm5001 = vcmp.lt.f32.partialorder %v4937, 0.0
      %vm5002 = vcmp.lt.f32.partialorder %v4938, 0.0
      %vm5003 = vcmp.lt.f32.partialorder %v4939, 0.0
      %vm5004 = vcmp.lt.f32.partialorder %v4940, 0.0
      %vm5005 = vcmp.lt.f32.partialorder %v4941, 0.0
      %vm5006 = vcmp.lt.f32.partialorder %v4942, 0.0
      %vm5007 = vcmp.lt.f32.partialorder %v4943, 0.0
      %vm5008 = vcmp.lt.f32.partialorder %v4944, 0.0
      %vm5009 = vcmp.lt.f32.partialorder %v4945, 0.0
      %vm5010 = vcmp.lt.f32.partialorder %v4946, 0.0
      %vm5011 = vcmp.lt.f32.partialorder %v4947, 0.0
      %vm5012 = vcmp.lt.f32.partialorder %v4948, 0.0
      %vm5013 = vcmp.lt.f32.partialorder %v4949, 0.0
      %vm5014 = vcmp.lt.f32.partialorder %v4950, 0.0
      %vm5015 = vcmp.lt.f32.partialorder %v4951, 0.0
      %vm5016 = vcmp.lt.f32.partialorder %v4952, 0.0
      %vm5017 = vcmp.lt.f32.partialorder %v4953, 0.0
      %vm5018 = vcmp.lt.f32.partialorder %v4954, 0.0
      %vm5019 = vcmp.lt.f32.partialorder %v4955, 0.0
      %vm5020 = vcmp.lt.f32.partialorder %v4956, 0.0
      %vm5021 = vcmp.lt.f32.partialorder %v4957, 0.0
      %vm5022 = vcmp.lt.f32.partialorder %v4958, 0.0
      %vm5023 = vcmp.lt.f32.partialorder %v4959, 0.0
      %vm5024 = vcmp.lt.f32.partialorder %v4960, 0.0
      %vm5025 = vcmp.lt.f32.partialorder %v4961, 0.0
      %vm5026 = vcmp.lt.f32.partialorder %v4962, 0.0
      %vm5027 = vcmp.lt.f32.partialorder %v4963, 0.0
      %vm5028 = vcmp.lt.f32.partialorder %v4964, 0.0
      %vm5029 = vcmp.lt.f32.partialorder %v4965, 0.0
      %vm5030 = vcmp.lt.f32.partialorder %v4966, 0.0
      %vm5031 = vcmp.lt.f32.partialorder %v4967, 0.0
      %vm5032 = vcmp.lt.f32.partialorder %v4968, 0.0
      %vm5033 = vcmp.lt.f32.partialorder %v4969, 0.0
      %vm5034 = vcmp.lt.f32.partialorder %v4970, 0.0
      %vm5035 = vcmp.lt.f32.partialorder %v4971, 0.0
      %vm5036 = vcmp.lt.f32.partialorder %v4972, 0.0
      %vm5037 = vcmp.lt.f32.partialorder %v4973, 0.0
      %vm5038 = vcmp.lt.f32.partialorder %v4974, 0.0
      %vm5039 = vcmp.lt.f32.partialorder %v4975, 0.0
      %vm5040 = vcmp.lt.f32.partialorder %v4976, 0.0
      %vm5041 = vcmp.lt.f32.partialorder %v4977, 0.0
      %vm5042 = vcmp.lt.f32.partialorder %v4978, 0.0
      %vm5043 = vcmp.lt.f32.partialorder %v4979, 0.0
      %vm5044 = vcmp.lt.f32.partialorder %v4980, 0.0
      %vm5045 = vcmp.lt.f32.partialorder %v4981, 0.0
      %vm5046 = vcmp.lt.f32.partialorder %v4982, 0.0
      %vm5047 = vcmp.lt.f32.partialorder %v4983, 0.0
      %vm5048 = vcmp.lt.f32.partialorder %v4984, 0.0
      %vm5049 = vcmp.lt.f32.partialorder %v4985, 0.0
      %vm5050 = vcmp.lt.f32.partialorder %v4986, 0.0
      %vm5051 = vcmp.lt.f32.partialorder %v4987, 0.0
      %v5052 = vsel %vm4988, -1.0, 1.0
      %v5053 = vsel %vm4989, -1.0, 1.0
      %v5054 = vsel %vm4990, -1.0, 1.0
      %v5055 = vsel %vm4991, -1.0, 1.0
      %v5056 = vsel %vm4992, -1.0, 1.0
      %v5057 = vsel %vm4993, -1.0, 1.0
      %v5058 = vsel %vm4994, -1.0, 1.0
      %v5059 = vsel %vm4995, -1.0, 1.0
      %v5060 = vsel %vm4996, -1.0, 1.0
      %v5061 = vsel %vm4997, -1.0, 1.0
      %v5062 = vsel %vm4998, -1.0, 1.0
      %v5063 = vsel %vm4999, -1.0, 1.0
      %v5064 = vsel %vm5000, -1.0, 1.0
      %v5065 = vsel %vm5001, -1.0, 1.0
      %v5066 = vsel %vm5002, -1.0, 1.0
      %v5067 = vsel %vm5003, -1.0, 1.0
      %v5068 = vsel %vm5004, -1.0, 1.0
      %v5069 = vsel %vm5005, -1.0, 1.0
      %v5070 = vsel %vm5006, -1.0, 1.0
      %v5071 = vsel %vm5007, -1.0, 1.0
      %v5072 = vsel %vm5008, -1.0, 1.0
      %v5073 = vsel %vm5009, -1.0, 1.0
      %v5074 = vsel %vm5010, -1.0, 1.0
      %v5075 = vsel %vm5011, -1.0, 1.0
      %v5076 = vsel %vm5012, -1.0, 1.0
      %v5077 = vsel %vm5013, -1.0, 1.0
      %v5078 = vsel %vm5014, -1.0, 1.0
      %v5079 = vsel %vm5015, -1.0, 1.0
      %v5080 = vsel %vm5016, -1.0, 1.0
      %v5081 = vsel %vm5017, -1.0, 1.0
      %v5082 = vsel %vm5018, -1.0, 1.0
      %v5083 = vsel %vm5019, -1.0, 1.0
      %v5084 = vsel %vm5020, -1.0, 1.0
      %v5085 = vsel %vm5021, -1.0, 1.0
      %v5086 = vsel %vm5022, -1.0, 1.0
      %v5087 = vsel %vm5023, -1.0, 1.0
      %v5088 = vsel %vm5024, -1.0, 1.0
      %v5089 = vsel %vm5025, -1.0, 1.0
      %v5090 = vsel %vm5026, -1.0, 1.0
      %v5091 = vsel %vm5027, -1.0, 1.0
      %v5092 = vsel %vm5028, -1.0, 1.0
      %v5093 = vsel %vm5029, -1.0, 1.0
      %v5094 = vsel %vm5030, -1.0, 1.0
      %v5095 = vsel %vm5031, -1.0, 1.0
      %v5096 = vsel %vm5032, -1.0, 1.0
      %v5097 = vsel %vm5033, -1.0, 1.0
      %v5098 = vsel %vm5034, -1.0, 1.0
      %v5099 = vsel %vm5035, -1.0, 1.0
      %v5100 = vsel %vm5036, -1.0, 1.0
      %v5101 = vsel %vm5037, -1.0, 1.0
      %v5102 = vsel %vm5038, -1.0, 1.0
      %v5103 = vsel %vm5039, -1.0, 1.0
      %v5104 = vsel %vm5040, -1.0, 1.0
      %v5105 = vsel %vm5041, -1.0, 1.0
      %v5106 = vsel %vm5042, -1.0, 1.0
      %v5107 = vsel %vm5043, -1.0, 1.0
      %v5108 = vsel %vm5044, -1.0, 1.0
      %v5109 = vsel %vm5045, -1.0, 1.0
      %v5110 = vsel %vm5046, -1.0, 1.0
      %v5111 = vsel %vm5047, -1.0, 1.0
      %v5112 = vsel %vm5048, -1.0, 1.0
      %v5113 = vsel %vm5049, -1.0, 1.0
      %v5114 = vsel %vm5050, -1.0, 1.0
      %v5115 = vsel %vm5051, -1.0, 1.0
      %v5116 = vand.u32 2147483647, %v4924
      %v5117 = vand.u32 2147483647, %v4925
      %v5118 = vand.u32 2147483647, %v4926
      %v5119 = vand.u32 2147483647, %v4927
      %v5120 = vand.u32 2147483647, %v4928
      %v5121 = vand.u32 2147483647, %v4929
      %v5122 = vand.u32 2147483647, %v4930
      %v5123 = vand.u32 2147483647, %v4931
      %v5124 = vand.u32 2147483647, %v4932
      %v5125 = vand.u32 2147483647, %v4933
      %v5126 = vand.u32 2147483647, %v4934
      %v5127 = vand.u32 2147483647, %v4935
      %v5128 = vand.u32 2147483647, %v4936
      %v5129 = vand.u32 2147483647, %v4937
      %v5130 = vand.u32 2147483647, %v4938
      %v5131 = vand.u32 2147483647, %v4939
      %v5132 = vand.u32 2147483647, %v4940
      %v5133 = vand.u32 2147483647, %v4941
      %v5134 = vand.u32 2147483647, %v4942
      %v5135 = vand.u32 2147483647, %v4943
      %v5136 = vand.u32 2147483647, %v4944
      %v5137 = vand.u32 2147483647, %v4945
      %v5138 = vand.u32 2147483647, %v4946
      %v5139 = vand.u32 2147483647, %v4947
      %v5140 = vand.u32 2147483647, %v4948
      %v5141 = vand.u32 2147483647, %v4949
      %v5142 = vand.u32 2147483647, %v4950
      %v5143 = vand.u32 2147483647, %v4951
      %v5144 = vand.u32 2147483647, %v4952
      %v5145 = vand.u32 2147483647, %v4953
      %v5146 = vand.u32 2147483647, %v4954
      %v5147 = vand.u32 2147483647, %v4955
      %v5148 = vand.u32 2147483647, %v4956
      %v5149 = vand.u32 2147483647, %v4957
      %v5150 = vand.u32 2147483647, %v4958
      %v5151 = vand.u32 2147483647, %v4959
      %v5152 = vand.u32 2147483647, %v4960
      %v5153 = vand.u32 2147483647, %v4961
      %v5154 = vand.u32 2147483647, %v4962
      %v5155 = vand.u32 2147483647, %v4963
      %v5156 = vand.u32 2147483647, %v4964
      %v5157 = vand.u32 2147483647, %v4965
      %v5158 = vand.u32 2147483647, %v4966
      %v5159 = vand.u32 2147483647, %v4967
      %v5160 = vand.u32 2147483647, %v4968
      %v5161 = vand.u32 2147483647, %v4969
      %v5162 = vand.u32 2147483647, %v4970
      %v5163 = vand.u32 2147483647, %v4971
      %v5164 = vand.u32 2147483647, %v4972
      %v5165 = vand.u32 2147483647, %v4973
      %v5166 = vand.u32 2147483647, %v4974
      %v5167 = vand.u32 2147483647, %v4975
      %v5168 = vand.u32 2147483647, %v4976
      %v5169 = vand.u32 2147483647, %v4977
      %v5170 = vand.u32 2147483647, %v4978
      %v5171 = vand.u32 2147483647, %v4979
      %v5172 = vand.u32 2147483647, %v4980
      %v5173 = vand.u32 2147483647, %v4981
      %v5174 = vand.u32 2147483647, %v4982
      %v5175 = vand.u32 2147483647, %v4983
      %v5176 = vand.u32 2147483647, %v4984
      %v5177 = vand.u32 2147483647, %v4985
      %v5178 = vand.u32 2147483647, %v4986
      %v5179 = vand.u32 2147483647, %v4987
      %v5180 = vmul.f32 %v5116, 0.3275911
      %v5181 = vmul.f32 %v5117, 0.3275911
      %v5182 = vmul.f32 %v5118, 0.3275911
      %v5183 = vmul.f32 %v5119, 0.3275911
      %v5184 = vmul.f32 %v5120, 0.3275911
      %v5185 = vmul.f32 %v5121, 0.3275911
      %v5186 = vmul.f32 %v5122, 0.3275911
      %v5187 = vmul.f32 %v5123, 0.3275911
      %v5188 = vmul.f32 %v5124, 0.3275911
      %v5189 = vmul.f32 %v5125, 0.3275911
      %v5190 = vmul.f32 %v5126, 0.3275911
      %v5191 = vmul.f32 %v5127, 0.3275911
      %v5192 = vmul.f32 %v5128, 0.3275911
      %v5193 = vmul.f32 %v5129, 0.3275911
      %v5194 = vmul.f32 %v5130, 0.3275911
      %v5195 = vmul.f32 %v5131, 0.3275911
      %v5196 = vmul.f32 %v5132, 0.3275911
      %v5197 = vmul.f32 %v5133, 0.3275911
      %v5198 = vmul.f32 %v5134, 0.3275911
      %v5199 = vmul.f32 %v5135, 0.3275911
      %v5200 = vmul.f32 %v5136, 0.3275911
      %v5201 = vmul.f32 %v5137, 0.3275911
      %v5202 = vmul.f32 %v5138, 0.3275911
      %v5203 = vmul.f32 %v5139, 0.3275911
      %v5204 = vmul.f32 %v5140, 0.3275911
      %v5205 = vmul.f32 %v5141, 0.3275911
      %v5206 = vmul.f32 %v5142, 0.3275911
      %v5207 = vmul.f32 %v5143, 0.3275911
      %v5208 = vmul.f32 %v5144, 0.3275911
      %v5209 = vmul.f32 %v5145, 0.3275911
      %v5210 = vmul.f32 %v5146, 0.3275911
      %v5211 = vmul.f32 %v5147, 0.3275911
      %v5212 = vmul.f32 %v5148, 0.3275911
      %v5213 = vmul.f32 %v5149, 0.3275911
      %v5214 = vmul.f32 %v5150, 0.3275911
      %v5215 = vmul.f32 %v5151, 0.3275911
      %v5216 = vmul.f32 %v5152, 0.3275911
      %v5217 = vmul.f32 %v5153, 0.3275911
      %v5218 = vmul.f32 %v5154, 0.3275911
      %v5219 = vmul.f32 %v5155, 0.3275911
      %v5220 = vmul.f32 %v5156, 0.3275911
      %v5221 = vmul.f32 %v5157, 0.3275911
      %v5222 = vmul.f32 %v5158, 0.3275911
      %v5223 = vmul.f32 %v5159, 0.3275911
      %v5224 = vmul.f32 %v5160, 0.3275911
      %v5225 = vmul.f32 %v5161, 0.3275911
      %v5226 = vmul.f32 %v5162, 0.3275911
      %v5227 = vmul.f32 %v5163, 0.3275911
      %v5228 = vmul.f32 %v5164, 0.3275911
      %v5229 = vmul.f32 %v5165, 0.3275911
      %v5230 = vmul.f32 %v5166, 0.3275911
      %v5231 = vmul.f32 %v5167, 0.3275911
      %v5232 = vmul.f32 %v5168, 0.3275911
      %v5233 = vmul.f32 %v5169, 0.3275911
      %v5234 = vmul.f32 %v5170, 0.3275911
      %v5235 = vmul.f32 %v5171, 0.3275911
      %v5236 = vmul.f32 %v5172, 0.3275911
      %v5237 = vmul.f32 %v5173, 0.3275911
      %v5238 = vmul.f32 %v5174, 0.3275911
      %v5239 = vmul.f32 %v5175, 0.3275911
      %v5240 = vmul.f32 %v5176, 0.3275911
      %v5241 = vmul.f32 %v5177, 0.3275911
      %v5242 = vmul.f32 %v5178, 0.3275911
      %v5243 = vmul.f32 %v5179, 0.3275911
      %v5244 = vadd.f32 %v5180, 1.0
      %v5245 = vadd.f32 %v5181, 1.0
      %v5246 = vadd.f32 %v5182, 1.0
      %v5247 = vadd.f32 %v5183, 1.0
      %v5248 = vadd.f32 %v5184, 1.0
      %v5249 = vadd.f32 %v5185, 1.0
      %v5250 = vadd.f32 %v5186, 1.0
      %v5251 = vadd.f32 %v5187, 1.0
      %v5252 = vadd.f32 %v5188, 1.0
      %v5253 = vadd.f32 %v5189, 1.0
      %v5254 = vadd.f32 %v5190, 1.0
      %v5255 = vadd.f32 %v5191, 1.0
      %v5256 = vadd.f32 %v5192, 1.0
      %v5257 = vadd.f32 %v5193, 1.0
      %v5258 = vadd.f32 %v5194, 1.0
      %v5259 = vadd.f32 %v5195, 1.0
      %v5260 = vadd.f32 %v5196, 1.0
      %v5261 = vadd.f32 %v5197, 1.0
      %v5262 = vadd.f32 %v5198, 1.0
      %v5263 = vadd.f32 %v5199, 1.0
      %v5264 = vadd.f32 %v5200, 1.0
      %v5265 = vadd.f32 %v5201, 1.0
      %v5266 = vadd.f32 %v5202, 1.0
      %v5267 = vadd.f32 %v5203, 1.0
      %v5268 = vadd.f32 %v5204, 1.0
      %v5269 = vadd.f32 %v5205, 1.0
      %v5270 = vadd.f32 %v5206, 1.0
      %v5271 = vadd.f32 %v5207, 1.0
      %v5272 = vadd.f32 %v5208, 1.0
      %v5273 = vadd.f32 %v5209, 1.0
      %v5274 = vadd.f32 %v5210, 1.0
      %v5275 = vadd.f32 %v5211, 1.0
      %v5276 = vadd.f32 %v5212, 1.0
      %v5277 = vadd.f32 %v5213, 1.0
      %v5278 = vadd.f32 %v5214, 1.0
      %v5279 = vadd.f32 %v5215, 1.0
      %v5280 = vadd.f32 %v5216, 1.0
      %v5281 = vadd.f32 %v5217, 1.0
      %v5282 = vadd.f32 %v5218, 1.0
      %v5283 = vadd.f32 %v5219, 1.0
      %v5284 = vadd.f32 %v5220, 1.0
      %v5285 = vadd.f32 %v5221, 1.0
      %v5286 = vadd.f32 %v5222, 1.0
      %v5287 = vadd.f32 %v5223, 1.0
      %v5288 = vadd.f32 %v5224, 1.0
      %v5289 = vadd.f32 %v5225, 1.0
      %v5290 = vadd.f32 %v5226, 1.0
      %v5291 = vadd.f32 %v5227, 1.0
      %v5292 = vadd.f32 %v5228, 1.0
      %v5293 = vadd.f32 %v5229, 1.0
      %v5294 = vadd.f32 %v5230, 1.0
      %v5295 = vadd.f32 %v5231, 1.0
      %v5296 = vadd.f32 %v5232, 1.0
      %v5297 = vadd.f32 %v5233, 1.0
      %v5298 = vadd.f32 %v5234, 1.0
      %v5299 = vadd.f32 %v5235, 1.0
      %v5300 = vadd.f32 %v5236, 1.0
      %v5301 = vadd.f32 %v5237, 1.0
      %v5302 = vadd.f32 %v5238, 1.0
      %v5303 = vadd.f32 %v5239, 1.0
      %v5304 = vadd.f32 %v5240, 1.0
      %v5305 = vadd.f32 %v5241, 1.0
      %v5306 = vadd.f32 %v5242, 1.0
      %v5307 = vadd.f32 %v5243, 1.0
      %v5308 = vrcp.pop %v5244
      %v5309 = vmul.f32 %v5244, %v5308
      %v5310 = vsub.f32 1.0, %v5309
      %v5311 = vmul.f32 %v5308, %v5310
      %v5312 = vadd.f32 %v5308, %v5311
      %vm5313 = vweird.f32 %v5244
      %vm5314 = vweird.f32 %v5308
      %vm5315 = vmor %vm5313, %vm5314
      %v5316 = vsel %vm5315, %v5308, %v5312
      %v5317 = vand.u32 2147483647, %v5244
      %vm5318 = vcmp.eq.f32.partialorder %v5317, 8.507059e+37
      %v5319 = vand.u32 %v5244, 2147483648
      %v5320 = vor.u32 1.1754944e-38, %v5319
      %v5321 = vsel %vm5318, %v5320, %v5316
      %v5322 = vmul.f32 1.0, %v5321
      %v5323 = vrcp.pop %v5245
      %v5324 = vmul.f32 %v5245, %v5323
      %v5325 = vsub.f32 1.0, %v5324
      %v5326 = vmul.f32 %v5323, %v5325
      %v5327 = vadd.f32 %v5323, %v5326
      %vm5328 = vweird.f32 %v5245
      %vm5329 = vweird.f32 %v5323
      %vm5330 = vmor %vm5328, %vm5329
      %v5331 = vsel %vm5330, %v5323, %v5327
      %v5332 = vand.u32 2147483647, %v5245
      %vm5333 = vcmp.eq.f32.partialorder %v5332, 8.507059e+37
      %v5334 = vand.u32 %v5245, 2147483648
      %v5335 = vor.u32 1.1754944e-38, %v5334
      %v5336 = vsel %vm5333, %v5335, %v5331
      %v5337 = vmul.f32 1.0, %v5336
      %v5338 = vrcp.pop %v5246
      %v5339 = vmul.f32 %v5246, %v5338
      %v5340 = vsub.f32 1.0, %v5339
      %v5341 = vmul.f32 %v5338, %v5340
      %v5342 = vadd.f32 %v5338, %v5341
      %vm5343 = vweird.f32 %v5246
      %vm5344 = vweird.f32 %v5338
      %vm5345 = vmor %vm5343, %vm5344
      %v5346 = vsel %vm5345, %v5338, %v5342
      %v5347 = vand.u32 2147483647, %v5246
      %vm5348 = vcmp.eq.f32.partialorder %v5347, 8.507059e+37
      %v5349 = vand.u32 %v5246, 2147483648
      %v5350 = vor.u32 1.1754944e-38, %v5349
      %v5351 = vsel %vm5348, %v5350, %v5346
      %v5352 = vmul.f32 1.0, %v5351
      %v5353 = vrcp.pop %v5247
      %v5354 = vmul.f32 %v5247, %v5353
      %v5355 = vsub.f32 1.0, %v5354
      %v5356 = vmul.f32 %v5353, %v5355
      %v5357 = vadd.f32 %v5353, %v5356
      %vm5358 = vweird.f32 %v5247
      %vm5359 = vweird.f32 %v5353
      %vm5360 = vmor %vm5358, %vm5359
      %v5361 = vsel %vm5360, %v5353, %v5357
      %v5362 = vand.u32 2147483647, %v5247
      %vm5363 = vcmp.eq.f32.partialorder %v5362, 8.507059e+37
      %v5364 = vand.u32 %v5247, 2147483648
      %v5365 = vor.u32 1.1754944e-38, %v5364
      %v5366 = vsel %vm5363, %v5365, %v5361
      %v5367 = vmul.f32 1.0, %v5366
      %v5368 = vrcp.pop %v5248
      %v5369 = vmul.f32 %v5248, %v5368
      %v5370 = vsub.f32 1.0, %v5369
      %v5371 = vmul.f32 %v5368, %v5370
      %v5372 = vadd.f32 %v5368, %v5371
      %vm5373 = vweird.f32 %v5248
      %vm5374 = vweird.f32 %v5368
      %vm5375 = vmor %vm5373, %vm5374
      %v5376 = vsel %vm5375, %v5368, %v5372
      %v5377 = vand.u32 2147483647, %v5248
      %vm5378 = vcmp.eq.f32.partialorder %v5377, 8.507059e+37
      %v5379 = vand.u32 %v5248, 2147483648
      %v5380 = vor.u32 1.1754944e-38, %v5379
      %v5381 = vsel %vm5378, %v5380, %v5376
      %v5382 = vmul.f32 1.0, %v5381
      %v5383 = vrcp.pop %v5249
      %v5384 = vmul.f32 %v5249, %v5383
      %v5385 = vsub.f32 1.0, %v5384
      %v5386 = vmul.f32 %v5383, %v5385
      %v5387 = vadd.f32 %v5383, %v5386
      %vm5388 = vweird.f32 %v5249
      %vm5389 = vweird.f32 %v5383
      %vm5390 = vmor %vm5388, %vm5389
      %v5391 = vsel %vm5390, %v5383, %v5387
      %v5392 = vand.u32 2147483647, %v5249
      %vm5393 = vcmp.eq.f32.partialorder %v5392, 8.507059e+37
      %v5394 = vand.u32 %v5249, 2147483648
      %v5395 = vor.u32 1.1754944e-38, %v5394
      %v5396 = vsel %vm5393, %v5395, %v5391
      %v5397 = vmul.f32 1.0, %v5396
      %v5398 = vrcp.pop %v5250
      %v5399 = vmul.f32 %v5250, %v5398
      %v5400 = vsub.f32 1.0, %v5399
      %v5401 = vmul.f32 %v5398, %v5400
      %v5402 = vadd.f32 %v5398, %v5401
      %vm5403 = vweird.f32 %v5250
      %vm5404 = vweird.f32 %v5398
      %vm5405 = vmor %vm5403, %vm5404
      %v5406 = vsel %vm5405, %v5398, %v5402
      %v5407 = vand.u32 2147483647, %v5250
      %vm5408 = vcmp.eq.f32.partialorder %v5407, 8.507059e+37
      %v5409 = vand.u32 %v5250, 2147483648
      %v5410 = vor.u32 1.1754944e-38, %v5409
      %v5411 = vsel %vm5408, %v5410, %v5406
      %v5412 = vmul.f32 1.0, %v5411
      %v5413 = vrcp.pop %v5251
      %v5414 = vmul.f32 %v5251, %v5413
      %v5415 = vsub.f32 1.0, %v5414
      %v5416 = vmul.f32 %v5413, %v5415
      %v5417 = vadd.f32 %v5413, %v5416
      %vm5418 = vweird.f32 %v5251
      %vm5419 = vweird.f32 %v5413
      %vm5420 = vmor %vm5418, %vm5419
      %v5421 = vsel %vm5420, %v5413, %v5417
      %v5422 = vand.u32 2147483647, %v5251
      %vm5423 = vcmp.eq.f32.partialorder %v5422, 8.507059e+37
      %v5424 = vand.u32 %v5251, 2147483648
      %v5425 = vor.u32 1.1754944e-38, %v5424
      %v5426 = vsel %vm5423, %v5425, %v5421
      %v5427 = vmul.f32 1.0, %v5426
      %v5428 = vrcp.pop %v5252
      %v5429 = vmul.f32 %v5252, %v5428
      %v5430 = vsub.f32 1.0, %v5429
      %v5431 = vmul.f32 %v5428, %v5430
      %v5432 = vadd.f32 %v5428, %v5431
      %vm5433 = vweird.f32 %v5252
      %vm5434 = vweird.f32 %v5428
      %vm5435 = vmor %vm5433, %vm5434
      %v5436 = vsel %vm5435, %v5428, %v5432
      %v5437 = vand.u32 2147483647, %v5252
      %vm5438 = vcmp.eq.f32.partialorder %v5437, 8.507059e+37
      %v5439 = vand.u32 %v5252, 2147483648
      %v5440 = vor.u32 1.1754944e-38, %v5439
      %v5441 = vsel %vm5438, %v5440, %v5436
      %v5442 = vmul.f32 1.0, %v5441
      %v5443 = vrcp.pop %v5253
      %v5444 = vmul.f32 %v5253, %v5443
      %v5445 = vsub.f32 1.0, %v5444
      %v5446 = vmul.f32 %v5443, %v5445
      %v5447 = vadd.f32 %v5443, %v5446
      %vm5448 = vweird.f32 %v5253
      %vm5449 = vweird.f32 %v5443
      %vm5450 = vmor %vm5448, %vm5449
      %v5451 = vsel %vm5450, %v5443, %v5447
      %v5452 = vand.u32 2147483647, %v5253
      %vm5453 = vcmp.eq.f32.partialorder %v5452, 8.507059e+37
      %v5454 = vand.u32 %v5253, 2147483648
      %v5455 = vor.u32 1.1754944e-38, %v5454
      %v5456 = vsel %vm5453, %v5455, %v5451
      %v5457 = vmul.f32 1.0, %v5456
      %v5458 = vrcp.pop %v5254
      %v5459 = vmul.f32 %v5254, %v5458
      %v5460 = vsub.f32 1.0, %v5459
      %v5461 = vmul.f32 %v5458, %v5460
      %v5462 = vadd.f32 %v5458, %v5461
      %vm5463 = vweird.f32 %v5254
      %vm5464 = vweird.f32 %v5458
      %vm5465 = vmor %vm5463, %vm5464
      %v5466 = vsel %vm5465, %v5458, %v5462
      %v5467 = vand.u32 2147483647, %v5254
      %vm5468 = vcmp.eq.f32.partialorder %v5467, 8.507059e+37
      %v5469 = vand.u32 %v5254, 2147483648
      %v5470 = vor.u32 1.1754944e-38, %v5469
      %v5471 = vsel %vm5468, %v5470, %v5466
      %v5472 = vmul.f32 1.0, %v5471
      %v5473 = vrcp.pop %v5255
      %v5474 = vmul.f32 %v5255, %v5473
      %v5475 = vsub.f32 1.0, %v5474
      %v5476 = vmul.f32 %v5473, %v5475
      %v5477 = vadd.f32 %v5473, %v5476
      %vm5478 = vweird.f32 %v5255
      %vm5479 = vweird.f32 %v5473
      %vm5480 = vmor %vm5478, %vm5479
      %v5481 = vsel %vm5480, %v5473, %v5477
      %v5482 = vand.u32 2147483647, %v5255
      %vm5483 = vcmp.eq.f32.partialorder %v5482, 8.507059e+37
      %v5484 = vand.u32 %v5255, 2147483648
      %v5485 = vor.u32 1.1754944e-38, %v5484
      %v5486 = vsel %vm5483, %v5485, %v5481
      %v5487 = vmul.f32 1.0, %v5486
      %v5488 = vrcp.pop %v5256
      %v5489 = vmul.f32 %v5256, %v5488
      %v5490 = vsub.f32 1.0, %v5489
      %v5491 = vmul.f32 %v5488, %v5490
      %v5492 = vadd.f32 %v5488, %v5491
      %vm5493 = vweird.f32 %v5256
      %vm5494 = vweird.f32 %v5488
      %vm5495 = vmor %vm5493, %vm5494
      %v5496 = vsel %vm5495, %v5488, %v5492
      %v5497 = vand.u32 2147483647, %v5256
      %vm5498 = vcmp.eq.f32.partialorder %v5497, 8.507059e+37
      %v5499 = vand.u32 %v5256, 2147483648
      %v5500 = vor.u32 1.1754944e-38, %v5499
      %v5501 = vsel %vm5498, %v5500, %v5496
      %v5502 = vmul.f32 1.0, %v5501
      %v5503 = vrcp.pop %v5257
      %v5504 = vmul.f32 %v5257, %v5503
      %v5505 = vsub.f32 1.0, %v5504
      %v5506 = vmul.f32 %v5503, %v5505
      %v5507 = vadd.f32 %v5503, %v5506
      %vm5508 = vweird.f32 %v5257
      %vm5509 = vweird.f32 %v5503
      %vm5510 = vmor %vm5508, %vm5509
      %v5511 = vsel %vm5510, %v5503, %v5507
      %v5512 = vand.u32 2147483647, %v5257
      %vm5513 = vcmp.eq.f32.partialorder %v5512, 8.507059e+37
      %v5514 = vand.u32 %v5257, 2147483648
      %v5515 = vor.u32 1.1754944e-38, %v5514
      %v5516 = vsel %vm5513, %v5515, %v5511
      %v5517 = vmul.f32 1.0, %v5516
      %v5518 = vrcp.pop %v5258
      %v5519 = vmul.f32 %v5258, %v5518
      %v5520 = vsub.f32 1.0, %v5519
      %v5521 = vmul.f32 %v5518, %v5520
      %v5522 = vadd.f32 %v5518, %v5521
      %vm5523 = vweird.f32 %v5258
      %vm5524 = vweird.f32 %v5518
      %vm5525 = vmor %vm5523, %vm5524
      %v5526 = vsel %vm5525, %v5518, %v5522
      %v5527 = vand.u32 2147483647, %v5258
      %vm5528 = vcmp.eq.f32.partialorder %v5527, 8.507059e+37
      %v5529 = vand.u32 %v5258, 2147483648
      %v5530 = vor.u32 1.1754944e-38, %v5529
      %v5531 = vsel %vm5528, %v5530, %v5526
      %v5532 = vmul.f32 1.0, %v5531
      %v5533 = vrcp.pop %v5259
      %v5534 = vmul.f32 %v5259, %v5533
      %v5535 = vsub.f32 1.0, %v5534
      %v5536 = vmul.f32 %v5533, %v5535
      %v5537 = vadd.f32 %v5533, %v5536
      %vm5538 = vweird.f32 %v5259
      %vm5539 = vweird.f32 %v5533
      %vm5540 = vmor %vm5538, %vm5539
      %v5541 = vsel %vm5540, %v5533, %v5537
      %v5542 = vand.u32 2147483647, %v5259
      %vm5543 = vcmp.eq.f32.partialorder %v5542, 8.507059e+37
      %v5544 = vand.u32 %v5259, 2147483648
      %v5545 = vor.u32 1.1754944e-38, %v5544
      %v5546 = vsel %vm5543, %v5545, %v5541
      %v5547 = vmul.f32 1.0, %v5546
      %v5548 = vrcp.pop %v5260
      %v5549 = vmul.f32 %v5260, %v5548
      %v5550 = vsub.f32 1.0, %v5549
      %v5551 = vmul.f32 %v5548, %v5550
      %v5552 = vadd.f32 %v5548, %v5551
      %vm5553 = vweird.f32 %v5260
      %vm5554 = vweird.f32 %v5548
      %vm5555 = vmor %vm5553, %vm5554
      %v5556 = vsel %vm5555, %v5548, %v5552
      %v5557 = vand.u32 2147483647, %v5260
      %vm5558 = vcmp.eq.f32.partialorder %v5557, 8.507059e+37
      %v5559 = vand.u32 %v5260, 2147483648
      %v5560 = vor.u32 1.1754944e-38, %v5559
      %v5561 = vsel %vm5558, %v5560, %v5556
      %v5562 = vmul.f32 1.0, %v5561
      %v5563 = vrcp.pop %v5261
      %v5564 = vmul.f32 %v5261, %v5563
      %v5565 = vsub.f32 1.0, %v5564
      %v5566 = vmul.f32 %v5563, %v5565
      %v5567 = vadd.f32 %v5563, %v5566
      %vm5568 = vweird.f32 %v5261
      %vm5569 = vweird.f32 %v5563
      %vm5570 = vmor %vm5568, %vm5569
      %v5571 = vsel %vm5570, %v5563, %v5567
      %v5572 = vand.u32 2147483647, %v5261
      %vm5573 = vcmp.eq.f32.partialorder %v5572, 8.507059e+37
      %v5574 = vand.u32 %v5261, 2147483648
      %v5575 = vor.u32 1.1754944e-38, %v5574
      %v5576 = vsel %vm5573, %v5575, %v5571
      %v5577 = vmul.f32 1.0, %v5576
      %v5578 = vrcp.pop %v5262
      %v5579 = vmul.f32 %v5262, %v5578
      %v5580 = vsub.f32 1.0, %v5579
      %v5581 = vmul.f32 %v5578, %v5580
      %v5582 = vadd.f32 %v5578, %v5581
      %vm5583 = vweird.f32 %v5262
      %vm5584 = vweird.f32 %v5578
      %vm5585 = vmor %vm5583, %vm5584
      %v5586 = vsel %vm5585, %v5578, %v5582
      %v5587 = vand.u32 2147483647, %v5262
      %vm5588 = vcmp.eq.f32.partialorder %v5587, 8.507059e+37
      %v5589 = vand.u32 %v5262, 2147483648
      %v5590 = vor.u32 1.1754944e-38, %v5589
      %v5591 = vsel %vm5588, %v5590, %v5586
      %v5592 = vmul.f32 1.0, %v5591
      %v5593 = vrcp.pop %v5263
      %v5594 = vmul.f32 %v5263, %v5593
      %v5595 = vsub.f32 1.0, %v5594
      %v5596 = vmul.f32 %v5593, %v5595
      %v5597 = vadd.f32 %v5593, %v5596
      %vm5598 = vweird.f32 %v5263
      %vm5599 = vweird.f32 %v5593
      %vm5600 = vmor %vm5598, %vm5599
      %v5601 = vsel %vm5600, %v5593, %v5597
      %v5602 = vand.u32 2147483647, %v5263
      %vm5603 = vcmp.eq.f32.partialorder %v5602, 8.507059e+37
      %v5604 = vand.u32 %v5263, 2147483648
      %v5605 = vor.u32 1.1754944e-38, %v5604
      %v5606 = vsel %vm5603, %v5605, %v5601
      %v5607 = vmul.f32 1.0, %v5606
      %v5608 = vrcp.pop %v5264
      %v5609 = vmul.f32 %v5264, %v5608
      %v5610 = vsub.f32 1.0, %v5609
      %v5611 = vmul.f32 %v5608, %v5610
      %v5612 = vadd.f32 %v5608, %v5611
      %vm5613 = vweird.f32 %v5264
      %vm5614 = vweird.f32 %v5608
      %vm5615 = vmor %vm5613, %vm5614
      %v5616 = vsel %vm5615, %v5608, %v5612
      %v5617 = vand.u32 2147483647, %v5264
      %vm5618 = vcmp.eq.f32.partialorder %v5617, 8.507059e+37
      %v5619 = vand.u32 %v5264, 2147483648
      %v5620 = vor.u32 1.1754944e-38, %v5619
      %v5621 = vsel %vm5618, %v5620, %v5616
      %v5622 = vmul.f32 1.0, %v5621
      %v5623 = vrcp.pop %v5265
      %v5624 = vmul.f32 %v5265, %v5623
      %v5625 = vsub.f32 1.0, %v5624
      %v5626 = vmul.f32 %v5623, %v5625
      %v5627 = vadd.f32 %v5623, %v5626
      %vm5628 = vweird.f32 %v5265
      %vm5629 = vweird.f32 %v5623
      %vm5630 = vmor %vm5628, %vm5629
      %v5631 = vsel %vm5630, %v5623, %v5627
      %v5632 = vand.u32 2147483647, %v5265
      %vm5633 = vcmp.eq.f32.partialorder %v5632, 8.507059e+37
      %v5634 = vand.u32 %v5265, 2147483648
      %v5635 = vor.u32 1.1754944e-38, %v5634
      %v5636 = vsel %vm5633, %v5635, %v5631
      %v5637 = vmul.f32 1.0, %v5636
      %v5638 = vrcp.pop %v5266
      %v5639 = vmul.f32 %v5266, %v5638
      %v5640 = vsub.f32 1.0, %v5639
      %v5641 = vmul.f32 %v5638, %v5640
      %v5642 = vadd.f32 %v5638, %v5641
      %vm5643 = vweird.f32 %v5266
      %vm5644 = vweird.f32 %v5638
      %vm5645 = vmor %vm5643, %vm5644
      %v5646 = vsel %vm5645, %v5638, %v5642
      %v5647 = vand.u32 2147483647, %v5266
      %vm5648 = vcmp.eq.f32.partialorder %v5647, 8.507059e+37
      %v5649 = vand.u32 %v5266, 2147483648
      %v5650 = vor.u32 1.1754944e-38, %v5649
      %v5651 = vsel %vm5648, %v5650, %v5646
      %v5652 = vmul.f32 1.0, %v5651
      %v5653 = vrcp.pop %v5267
      %v5654 = vmul.f32 %v5267, %v5653
      %v5655 = vsub.f32 1.0, %v5654
      %v5656 = vmul.f32 %v5653, %v5655
      %v5657 = vadd.f32 %v5653, %v5656
      %vm5658 = vweird.f32 %v5267
      %vm5659 = vweird.f32 %v5653
      %vm5660 = vmor %vm5658, %vm5659
      %v5661 = vsel %vm5660, %v5653, %v5657
      %v5662 = vand.u32 2147483647, %v5267
      %vm5663 = vcmp.eq.f32.partialorder %v5662, 8.507059e+37
      %v5664 = vand.u32 %v5267, 2147483648
      %v5665 = vor.u32 1.1754944e-38, %v5664
      %v5666 = vsel %vm5663, %v5665, %v5661
      %v5667 = vmul.f32 1.0, %v5666
      %v5668 = vrcp.pop %v5268
      %v5669 = vmul.f32 %v5268, %v5668
      %v5670 = vsub.f32 1.0, %v5669
      %v5671 = vmul.f32 %v5668, %v5670
      %v5672 = vadd.f32 %v5668, %v5671
      %vm5673 = vweird.f32 %v5268
      %vm5674 = vweird.f32 %v5668
      %vm5675 = vmor %vm5673, %vm5674
      %v5676 = vsel %vm5675, %v5668, %v5672
      %v5677 = vand.u32 2147483647, %v5268
      %vm5678 = vcmp.eq.f32.partialorder %v5677, 8.507059e+37
      %v5679 = vand.u32 %v5268, 2147483648
      %v5680 = vor.u32 1.1754944e-38, %v5679
      %v5681 = vsel %vm5678, %v5680, %v5676
      %v5682 = vmul.f32 1.0, %v5681
      %v5683 = vrcp.pop %v5269
      %v5684 = vmul.f32 %v5269, %v5683
      %v5685 = vsub.f32 1.0, %v5684
      %v5686 = vmul.f32 %v5683, %v5685
      %v5687 = vadd.f32 %v5683, %v5686
      %vm5688 = vweird.f32 %v5269
      %vm5689 = vweird.f32 %v5683
      %vm5690 = vmor %vm5688, %vm5689
      %v5691 = vsel %vm5690, %v5683, %v5687
      %v5692 = vand.u32 2147483647, %v5269
      %vm5693 = vcmp.eq.f32.partialorder %v5692, 8.507059e+37
      %v5694 = vand.u32 %v5269, 2147483648
      %v5695 = vor.u32 1.1754944e-38, %v5694
      %v5696 = vsel %vm5693, %v5695, %v5691
      %v5697 = vmul.f32 1.0, %v5696
      %v5698 = vrcp.pop %v5270
      %v5699 = vmul.f32 %v5270, %v5698
      %v5700 = vsub.f32 1.0, %v5699
      %v5701 = vmul.f32 %v5698, %v5700
      %v5702 = vadd.f32 %v5698, %v5701
      %vm5703 = vweird.f32 %v5270
      %vm5704 = vweird.f32 %v5698
      %vm5705 = vmor %vm5703, %vm5704
      %v5706 = vsel %vm5705, %v5698, %v5702
      %v5707 = vand.u32 2147483647, %v5270
      %vm5708 = vcmp.eq.f32.partialorder %v5707, 8.507059e+37
      %v5709 = vand.u32 %v5270, 2147483648
      %v5710 = vor.u32 1.1754944e-38, %v5709
      %v5711 = vsel %vm5708, %v5710, %v5706
      %v5712 = vmul.f32 1.0, %v5711
      %v5713 = vrcp.pop %v5271
      %v5714 = vmul.f32 %v5271, %v5713
      %v5715 = vsub.f32 1.0, %v5714
      %v5716 = vmul.f32 %v5713, %v5715
      %v5717 = vadd.f32 %v5713, %v5716
      %vm5718 = vweird.f32 %v5271
      %vm5719 = vweird.f32 %v5713
      %vm5720 = vmor %vm5718, %vm5719
      %v5721 = vsel %vm5720, %v5713, %v5717
      %v5722 = vand.u32 2147483647, %v5271
      %vm5723 = vcmp.eq.f32.partialorder %v5722, 8.507059e+37
      %v5724 = vand.u32 %v5271, 2147483648
      %v5725 = vor.u32 1.1754944e-38, %v5724
      %v5726 = vsel %vm5723, %v5725, %v5721
      %v5727 = vmul.f32 1.0, %v5726
      %v5728 = vrcp.pop %v5272
      %v5729 = vmul.f32 %v5272, %v5728
      %v5730 = vsub.f32 1.0, %v5729
      %v5731 = vmul.f32 %v5728, %v5730
      %v5732 = vadd.f32 %v5728, %v5731
      %vm5733 = vweird.f32 %v5272
      %vm5734 = vweird.f32 %v5728
      %vm5735 = vmor %vm5733, %vm5734
      %v5736 = vsel %vm5735, %v5728, %v5732
      %v5737 = vand.u32 2147483647, %v5272
      %vm5738 = vcmp.eq.f32.partialorder %v5737, 8.507059e+37
      %v5739 = vand.u32 %v5272, 2147483648
      %v5740 = vor.u32 1.1754944e-38, %v5739
      %v5741 = vsel %vm5738, %v5740, %v5736
      %v5742 = vmul.f32 1.0, %v5741
      %v5743 = vrcp.pop %v5273
      %v5744 = vmul.f32 %v5273, %v5743
      %v5745 = vsub.f32 1.0, %v5744
      %v5746 = vmul.f32 %v5743, %v5745
      %v5747 = vadd.f32 %v5743, %v5746
      %vm5748 = vweird.f32 %v5273
      %vm5749 = vweird.f32 %v5743
      %vm5750 = vmor %vm5748, %vm5749
      %v5751 = vsel %vm5750, %v5743, %v5747
      %v5752 = vand.u32 2147483647, %v5273
      %vm5753 = vcmp.eq.f32.partialorder %v5752, 8.507059e+37
      %v5754 = vand.u32 %v5273, 2147483648
      %v5755 = vor.u32 1.1754944e-38, %v5754
      %v5756 = vsel %vm5753, %v5755, %v5751
      %v5757 = vmul.f32 1.0, %v5756
      %v5758 = vrcp.pop %v5274
      %v5759 = vmul.f32 %v5274, %v5758
      %v5760 = vsub.f32 1.0, %v5759
      %v5761 = vmul.f32 %v5758, %v5760
      %v5762 = vadd.f32 %v5758, %v5761
      %vm5763 = vweird.f32 %v5274
      %vm5764 = vweird.f32 %v5758
      %vm5765 = vmor %vm5763, %vm5764
      %v5766 = vsel %vm5765, %v5758, %v5762
      %v5767 = vand.u32 2147483647, %v5274
      %vm5768 = vcmp.eq.f32.partialorder %v5767, 8.507059e+37
      %v5769 = vand.u32 %v5274, 2147483648
      %v5770 = vor.u32 1.1754944e-38, %v5769
      %v5771 = vsel %vm5768, %v5770, %v5766
      %v5772 = vmul.f32 1.0, %v5771
      %v5773 = vrcp.pop %v5275
      %v5774 = vmul.f32 %v5275, %v5773
      %v5775 = vsub.f32 1.0, %v5774
      %v5776 = vmul.f32 %v5773, %v5775
      %v5777 = vadd.f32 %v5773, %v5776
      %vm5778 = vweird.f32 %v5275
      %vm5779 = vweird.f32 %v5773
      %vm5780 = vmor %vm5778, %vm5779
      %v5781 = vsel %vm5780, %v5773, %v5777
      %v5782 = vand.u32 2147483647, %v5275
      %vm5783 = vcmp.eq.f32.partialorder %v5782, 8.507059e+37
      %v5784 = vand.u32 %v5275, 2147483648
      %v5785 = vor.u32 1.1754944e-38, %v5784
      %v5786 = vsel %vm5783, %v5785, %v5781
      %v5787 = vmul.f32 1.0, %v5786
      %v5788 = vrcp.pop %v5276
      %v5789 = vmul.f32 %v5276, %v5788
      %v5790 = vsub.f32 1.0, %v5789
      %v5791 = vmul.f32 %v5788, %v5790
      %v5792 = vadd.f32 %v5788, %v5791
      %vm5793 = vweird.f32 %v5276
      %vm5794 = vweird.f32 %v5788
      %vm5795 = vmor %vm5793, %vm5794
      %v5796 = vsel %vm5795, %v5788, %v5792
      %v5797 = vand.u32 2147483647, %v5276
      %vm5798 = vcmp.eq.f32.partialorder %v5797, 8.507059e+37
      %v5799 = vand.u32 %v5276, 2147483648
      %v5800 = vor.u32 1.1754944e-38, %v5799
      %v5801 = vsel %vm5798, %v5800, %v5796
      %v5802 = vmul.f32 1.0, %v5801
      %v5803 = vrcp.pop %v5277
      %v5804 = vmul.f32 %v5277, %v5803
      %v5805 = vsub.f32 1.0, %v5804
      %v5806 = vmul.f32 %v5803, %v5805
      %v5807 = vadd.f32 %v5803, %v5806
      %vm5808 = vweird.f32 %v5277
      %vm5809 = vweird.f32 %v5803
      %vm5810 = vmor %vm5808, %vm5809
      %v5811 = vsel %vm5810, %v5803, %v5807
      %v5812 = vand.u32 2147483647, %v5277
      %vm5813 = vcmp.eq.f32.partialorder %v5812, 8.507059e+37
      %v5814 = vand.u32 %v5277, 2147483648
      %v5815 = vor.u32 1.1754944e-38, %v5814
      %v5816 = vsel %vm5813, %v5815, %v5811
      %v5817 = vmul.f32 1.0, %v5816
      %v5818 = vrcp.pop %v5278
      %v5819 = vmul.f32 %v5278, %v5818
      %v5820 = vsub.f32 1.0, %v5819
      %v5821 = vmul.f32 %v5818, %v5820
      %v5822 = vadd.f32 %v5818, %v5821
      %vm5823 = vweird.f32 %v5278
      %vm5824 = vweird.f32 %v5818
      %vm5825 = vmor %vm5823, %vm5824
      %v5826 = vsel %vm5825, %v5818, %v5822
      %v5827 = vand.u32 2147483647, %v5278
      %vm5828 = vcmp.eq.f32.partialorder %v5827, 8.507059e+37
      %v5829 = vand.u32 %v5278, 2147483648
      %v5830 = vor.u32 1.1754944e-38, %v5829
      %v5831 = vsel %vm5828, %v5830, %v5826
      %v5832 = vmul.f32 1.0, %v5831
      %v5833 = vrcp.pop %v5279
      %v5834 = vmul.f32 %v5279, %v5833
      %v5835 = vsub.f32 1.0, %v5834
      %v5836 = vmul.f32 %v5833, %v5835
      %v5837 = vadd.f32 %v5833, %v5836
      %vm5838 = vweird.f32 %v5279
      %vm5839 = vweird.f32 %v5833
      %vm5840 = vmor %vm5838, %vm5839
      %v5841 = vsel %vm5840, %v5833, %v5837
      %v5842 = vand.u32 2147483647, %v5279
      %vm5843 = vcmp.eq.f32.partialorder %v5842, 8.507059e+37
      %v5844 = vand.u32 %v5279, 2147483648
      %v5845 = vor.u32 1.1754944e-38, %v5844
      %v5846 = vsel %vm5843, %v5845, %v5841
      %v5847 = vmul.f32 1.0, %v5846
      %v5848 = vrcp.pop %v5280
      %v5849 = vmul.f32 %v5280, %v5848
      %v5850 = vsub.f32 1.0, %v5849
      %v5851 = vmul.f32 %v5848, %v5850
      %v5852 = vadd.f32 %v5848, %v5851
      %vm5853 = vweird.f32 %v5280
      %vm5854 = vweird.f32 %v5848
      %vm5855 = vmor %vm5853, %vm5854
      %v5856 = vsel %vm5855, %v5848, %v5852
      %v5857 = vand.u32 2147483647, %v5280
      %vm5858 = vcmp.eq.f32.partialorder %v5857, 8.507059e+37
      %v5859 = vand.u32 %v5280, 2147483648
      %v5860 = vor.u32 1.1754944e-38, %v5859
      %v5861 = vsel %vm5858, %v5860, %v5856
      %v5862 = vmul.f32 1.0, %v5861
      %v5863 = vrcp.pop %v5281
      %v5864 = vmul.f32 %v5281, %v5863
      %v5865 = vsub.f32 1.0, %v5864
      %v5866 = vmul.f32 %v5863, %v5865
      %v5867 = vadd.f32 %v5863, %v5866
      %vm5868 = vweird.f32 %v5281
      %vm5869 = vweird.f32 %v5863
      %vm5870 = vmor %vm5868, %vm5869
      %v5871 = vsel %vm5870, %v5863, %v5867
      %v5872 = vand.u32 2147483647, %v5281
      %vm5873 = vcmp.eq.f32.partialorder %v5872, 8.507059e+37
      %v5874 = vand.u32 %v5281, 2147483648
      %v5875 = vor.u32 1.1754944e-38, %v5874
      %v5876 = vsel %vm5873, %v5875, %v5871
      %v5877 = vmul.f32 1.0, %v5876
      %v5878 = vrcp.pop %v5282
      %v5879 = vmul.f32 %v5282, %v5878
      %v5880 = vsub.f32 1.0, %v5879
      %v5881 = vmul.f32 %v5878, %v5880
      %v5882 = vadd.f32 %v5878, %v5881
      %vm5883 = vweird.f32 %v5282
      %vm5884 = vweird.f32 %v5878
      %vm5885 = vmor %vm5883, %vm5884
      %v5886 = vsel %vm5885, %v5878, %v5882
      %v5887 = vand.u32 2147483647, %v5282
      %vm5888 = vcmp.eq.f32.partialorder %v5887, 8.507059e+37
      %v5889 = vand.u32 %v5282, 2147483648
      %v5890 = vor.u32 1.1754944e-38, %v5889
      %v5891 = vsel %vm5888, %v5890, %v5886
      %v5892 = vmul.f32 1.0, %v5891
      %v5893 = vrcp.pop %v5283
      %v5894 = vmul.f32 %v5283, %v5893
      %v5895 = vsub.f32 1.0, %v5894
      %v5896 = vmul.f32 %v5893, %v5895
      %v5897 = vadd.f32 %v5893, %v5896
      %vm5898 = vweird.f32 %v5283
      %vm5899 = vweird.f32 %v5893
      %vm5900 = vmor %vm5898, %vm5899
      %v5901 = vsel %vm5900, %v5893, %v5897
      %v5902 = vand.u32 2147483647, %v5283
      %vm5903 = vcmp.eq.f32.partialorder %v5902, 8.507059e+37
      %v5904 = vand.u32 %v5283, 2147483648
      %v5905 = vor.u32 1.1754944e-38, %v5904
      %v5906 = vsel %vm5903, %v5905, %v5901
      %v5907 = vmul.f32 1.0, %v5906
      %v5908 = vrcp.pop %v5284
      %v5909 = vmul.f32 %v5284, %v5908
      %v5910 = vsub.f32 1.0, %v5909
      %v5911 = vmul.f32 %v5908, %v5910
      %v5912 = vadd.f32 %v5908, %v5911
      %vm5913 = vweird.f32 %v5284
      %vm5914 = vweird.f32 %v5908
      %vm5915 = vmor %vm5913, %vm5914
      %v5916 = vsel %vm5915, %v5908, %v5912
      %v5917 = vand.u32 2147483647, %v5284
      %vm5918 = vcmp.eq.f32.partialorder %v5917, 8.507059e+37
      %v5919 = vand.u32 %v5284, 2147483648
      %v5920 = vor.u32 1.1754944e-38, %v5919
      %v5921 = vsel %vm5918, %v5920, %v5916
      %v5922 = vmul.f32 1.0, %v5921
      %v5923 = vrcp.pop %v5285
      %v5924 = vmul.f32 %v5285, %v5923
      %v5925 = vsub.f32 1.0, %v5924
      %v5926 = vmul.f32 %v5923, %v5925
      %v5927 = vadd.f32 %v5923, %v5926
      %vm5928 = vweird.f32 %v5285
      %vm5929 = vweird.f32 %v5923
      %vm5930 = vmor %vm5928, %vm5929
      %v5931 = vsel %vm5930, %v5923, %v5927
      %v5932 = vand.u32 2147483647, %v5285
      %vm5933 = vcmp.eq.f32.partialorder %v5932, 8.507059e+37
      %v5934 = vand.u32 %v5285, 2147483648
      %v5935 = vor.u32 1.1754944e-38, %v5934
      %v5936 = vsel %vm5933, %v5935, %v5931
      %v5937 = vmul.f32 1.0, %v5936
      %v5938 = vrcp.pop %v5286
      %v5939 = vmul.f32 %v5286, %v5938
      %v5940 = vsub.f32 1.0, %v5939
      %v5941 = vmul.f32 %v5938, %v5940
      %v5942 = vadd.f32 %v5938, %v5941
      %vm5943 = vweird.f32 %v5286
      %vm5944 = vweird.f32 %v5938
      %vm5945 = vmor %vm5943, %vm5944
      %v5946 = vsel %vm5945, %v5938, %v5942
      %v5947 = vand.u32 2147483647, %v5286
      %vm5948 = vcmp.eq.f32.partialorder %v5947, 8.507059e+37
      %v5949 = vand.u32 %v5286, 2147483648
      %v5950 = vor.u32 1.1754944e-38, %v5949
      %v5951 = vsel %vm5948, %v5950, %v5946
      %v5952 = vmul.f32 1.0, %v5951
      %v5953 = vrcp.pop %v5287
      %v5954 = vmul.f32 %v5287, %v5953
      %v5955 = vsub.f32 1.0, %v5954
      %v5956 = vmul.f32 %v5953, %v5955
      %v5957 = vadd.f32 %v5953, %v5956
      %vm5958 = vweird.f32 %v5287
      %vm5959 = vweird.f32 %v5953
      %vm5960 = vmor %vm5958, %vm5959
      %v5961 = vsel %vm5960, %v5953, %v5957
      %v5962 = vand.u32 2147483647, %v5287
      %vm5963 = vcmp.eq.f32.partialorder %v5962, 8.507059e+37
      %v5964 = vand.u32 %v5287, 2147483648
      %v5965 = vor.u32 1.1754944e-38, %v5964
      %v5966 = vsel %vm5963, %v5965, %v5961
      %v5967 = vmul.f32 1.0, %v5966
      %v5968 = vrcp.pop %v5288
      %v5969 = vmul.f32 %v5288, %v5968
      %v5970 = vsub.f32 1.0, %v5969
      %v5971 = vmul.f32 %v5968, %v5970
      %v5972 = vadd.f32 %v5968, %v5971
      %vm5973 = vweird.f32 %v5288
      %vm5974 = vweird.f32 %v5968
      %vm5975 = vmor %vm5973, %vm5974
      %v5976 = vsel %vm5975, %v5968, %v5972
      %v5977 = vand.u32 2147483647, %v5288
      %vm5978 = vcmp.eq.f32.partialorder %v5977, 8.507059e+37
      %v5979 = vand.u32 %v5288, 2147483648
      %v5980 = vor.u32 1.1754944e-38, %v5979
      %v5981 = vsel %vm5978, %v5980, %v5976
      %v5982 = vmul.f32 1.0, %v5981
      %v5983 = vrcp.pop %v5289
      %v5984 = vmul.f32 %v5289, %v5983
      %v5985 = vsub.f32 1.0, %v5984
      %v5986 = vmul.f32 %v5983, %v5985
      %v5987 = vadd.f32 %v5983, %v5986
      %vm5988 = vweird.f32 %v5289
      %vm5989 = vweird.f32 %v5983
      %vm5990 = vmor %vm5988, %vm5989
      %v5991 = vsel %vm5990, %v5983, %v5987
      %v5992 = vand.u32 2147483647, %v5289
      %vm5993 = vcmp.eq.f32.partialorder %v5992, 8.507059e+37
      %v5994 = vand.u32 %v5289, 2147483648
      %v5995 = vor.u32 1.1754944e-38, %v5994
      %v5996 = vsel %vm5993, %v5995, %v5991
      %v5997 = vmul.f32 1.0, %v5996
      %v5998 = vrcp.pop %v5290
      %v5999 = vmul.f32 %v5290, %v5998
      %v6000 = vsub.f32 1.0, %v5999
      %v6001 = vmul.f32 %v5998, %v6000
      %v6002 = vadd.f32 %v5998, %v6001
      %vm6003 = vweird.f32 %v5290
      %vm6004 = vweird.f32 %v5998
      %vm6005 = vmor %vm6003, %vm6004
      %v6006 = vsel %vm6005, %v5998, %v6002
      %v6007 = vand.u32 2147483647, %v5290
      %vm6008 = vcmp.eq.f32.partialorder %v6007, 8.507059e+37
      %v6009 = vand.u32 %v5290, 2147483648
      %v6010 = vor.u32 1.1754944e-38, %v6009
      %v6011 = vsel %vm6008, %v6010, %v6006
      %v6012 = vmul.f32 1.0, %v6011
      %v6013 = vrcp.pop %v5291
      %v6014 = vmul.f32 %v5291, %v6013
      %v6015 = vsub.f32 1.0, %v6014
      %v6016 = vmul.f32 %v6013, %v6015
      %v6017 = vadd.f32 %v6013, %v6016
      %vm6018 = vweird.f32 %v5291
      %vm6019 = vweird.f32 %v6013
      %vm6020 = vmor %vm6018, %vm6019
      %v6021 = vsel %vm6020, %v6013, %v6017
      %v6022 = vand.u32 2147483647, %v5291
      %vm6023 = vcmp.eq.f32.partialorder %v6022, 8.507059e+37
      %v6024 = vand.u32 %v5291, 2147483648
      %v6025 = vor.u32 1.1754944e-38, %v6024
      %v6026 = vsel %vm6023, %v6025, %v6021
      %v6027 = vmul.f32 1.0, %v6026
      %v6028 = vrcp.pop %v5292
      %v6029 = vmul.f32 %v5292, %v6028
      %v6030 = vsub.f32 1.0, %v6029
      %v6031 = vmul.f32 %v6028, %v6030
      %v6032 = vadd.f32 %v6028, %v6031
      %vm6033 = vweird.f32 %v5292
      %vm6034 = vweird.f32 %v6028
      %vm6035 = vmor %vm6033, %vm6034
      %v6036 = vsel %vm6035, %v6028, %v6032
      %v6037 = vand.u32 2147483647, %v5292
      %vm6038 = vcmp.eq.f32.partialorder %v6037, 8.507059e+37
      %v6039 = vand.u32 %v5292, 2147483648
      %v6040 = vor.u32 1.1754944e-38, %v6039
      %v6041 = vsel %vm6038, %v6040, %v6036
      %v6042 = vmul.f32 1.0, %v6041
      %v6043 = vrcp.pop %v5293
      %v6044 = vmul.f32 %v5293, %v6043
      %v6045 = vsub.f32 1.0, %v6044
      %v6046 = vmul.f32 %v6043, %v6045
      %v6047 = vadd.f32 %v6043, %v6046
      %vm6048 = vweird.f32 %v5293
      %vm6049 = vweird.f32 %v6043
      %vm6050 = vmor %vm6048, %vm6049
      %v6051 = vsel %vm6050, %v6043, %v6047
      %v6052 = vand.u32 2147483647, %v5293
      %vm6053 = vcmp.eq.f32.partialorder %v6052, 8.507059e+37
      %v6054 = vand.u32 %v5293, 2147483648
      %v6055 = vor.u32 1.1754944e-38, %v6054
      %v6056 = vsel %vm6053, %v6055, %v6051
      %v6057 = vmul.f32 1.0, %v6056
      %v6058 = vrcp.pop %v5294
      %v6059 = vmul.f32 %v5294, %v6058
      %v6060 = vsub.f32 1.0, %v6059
      %v6061 = vmul.f32 %v6058, %v6060
      %v6062 = vadd.f32 %v6058, %v6061
      %vm6063 = vweird.f32 %v5294
      %vm6064 = vweird.f32 %v6058
      %vm6065 = vmor %vm6063, %vm6064
      %v6066 = vsel %vm6065, %v6058, %v6062
      %v6067 = vand.u32 2147483647, %v5294
      %vm6068 = vcmp.eq.f32.partialorder %v6067, 8.507059e+37
      %v6069 = vand.u32 %v5294, 2147483648
      %v6070 = vor.u32 1.1754944e-38, %v6069
      %v6071 = vsel %vm6068, %v6070, %v6066
      %v6072 = vmul.f32 1.0, %v6071
      %v6073 = vrcp.pop %v5295
      %v6074 = vmul.f32 %v5295, %v6073
      %v6075 = vsub.f32 1.0, %v6074
      %v6076 = vmul.f32 %v6073, %v6075
      %v6077 = vadd.f32 %v6073, %v6076
      %vm6078 = vweird.f32 %v5295
      %vm6079 = vweird.f32 %v6073
      %vm6080 = vmor %vm6078, %vm6079
      %v6081 = vsel %vm6080, %v6073, %v6077
      %v6082 = vand.u32 2147483647, %v5295
      %vm6083 = vcmp.eq.f32.partialorder %v6082, 8.507059e+37
      %v6084 = vand.u32 %v5295, 2147483648
      %v6085 = vor.u32 1.1754944e-38, %v6084
      %v6086 = vsel %vm6083, %v6085, %v6081
      %v6087 = vmul.f32 1.0, %v6086
      %v6088 = vrcp.pop %v5296
      %v6089 = vmul.f32 %v5296, %v6088
      %v6090 = vsub.f32 1.0, %v6089
      %v6091 = vmul.f32 %v6088, %v6090
      %v6092 = vadd.f32 %v6088, %v6091
      %vm6093 = vweird.f32 %v5296
      %vm6094 = vweird.f32 %v6088
      %vm6095 = vmor %vm6093, %vm6094
      %v6096 = vsel %vm6095, %v6088, %v6092
      %v6097 = vand.u32 2147483647, %v5296
      %vm6098 = vcmp.eq.f32.partialorder %v6097, 8.507059e+37
      %v6099 = vand.u32 %v5296, 2147483648
      %v6100 = vor.u32 1.1754944e-38, %v6099
      %v6101 = vsel %vm6098, %v6100, %v6096
      %v6102 = vmul.f32 1.0, %v6101
      %v6103 = vrcp.pop %v5297
      %v6104 = vmul.f32 %v5297, %v6103
      %v6105 = vsub.f32 1.0, %v6104
      %v6106 = vmul.f32 %v6103, %v6105
      %v6107 = vadd.f32 %v6103, %v6106
      %vm6108 = vweird.f32 %v5297
      %vm6109 = vweird.f32 %v6103
      %vm6110 = vmor %vm6108, %vm6109
      %v6111 = vsel %vm6110, %v6103, %v6107
      %v6112 = vand.u32 2147483647, %v5297
      %vm6113 = vcmp.eq.f32.partialorder %v6112, 8.507059e+37
      %v6114 = vand.u32 %v5297, 2147483648
      %v6115 = vor.u32 1.1754944e-38, %v6114
      %v6116 = vsel %vm6113, %v6115, %v6111
      %v6117 = vmul.f32 1.0, %v6116
      %v6118 = vrcp.pop %v5298
      %v6119 = vmul.f32 %v5298, %v6118
      %v6120 = vsub.f32 1.0, %v6119
      %v6121 = vmul.f32 %v6118, %v6120
      %v6122 = vadd.f32 %v6118, %v6121
      %vm6123 = vweird.f32 %v5298
      %vm6124 = vweird.f32 %v6118
      %vm6125 = vmor %vm6123, %vm6124
      %v6126 = vsel %vm6125, %v6118, %v6122
      %v6127 = vand.u32 2147483647, %v5298
      %vm6128 = vcmp.eq.f32.partialorder %v6127, 8.507059e+37
      %v6129 = vand.u32 %v5298, 2147483648
      %v6130 = vor.u32 1.1754944e-38, %v6129
      %v6131 = vsel %vm6128, %v6130, %v6126
      %v6132 = vmul.f32 1.0, %v6131
      %v6133 = vrcp.pop %v5299
      %v6134 = vmul.f32 %v5299, %v6133
      %v6135 = vsub.f32 1.0, %v6134
      %v6136 = vmul.f32 %v6133, %v6135
      %v6137 = vadd.f32 %v6133, %v6136
      %vm6138 = vweird.f32 %v5299
      %vm6139 = vweird.f32 %v6133
      %vm6140 = vmor %vm6138, %vm6139
      %v6141 = vsel %vm6140, %v6133, %v6137
      %v6142 = vand.u32 2147483647, %v5299
      %vm6143 = vcmp.eq.f32.partialorder %v6142, 8.507059e+37
      %v6144 = vand.u32 %v5299, 2147483648
      %v6145 = vor.u32 1.1754944e-38, %v6144
      %v6146 = vsel %vm6143, %v6145, %v6141
      %v6147 = vmul.f32 1.0, %v6146
      %v6148 = vrcp.pop %v5300
      %v6149 = vmul.f32 %v5300, %v6148
      %v6150 = vsub.f32 1.0, %v6149
      %v6151 = vmul.f32 %v6148, %v6150
      %v6152 = vadd.f32 %v6148, %v6151
      %vm6153 = vweird.f32 %v5300
      %vm6154 = vweird.f32 %v6148
      %vm6155 = vmor %vm6153, %vm6154
      %v6156 = vsel %vm6155, %v6148, %v6152
      %v6157 = vand.u32 2147483647, %v5300
      %vm6158 = vcmp.eq.f32.partialorder %v6157, 8.507059e+37
      %v6159 = vand.u32 %v5300, 2147483648
      %v6160 = vor.u32 1.1754944e-38, %v6159
      %v6161 = vsel %vm6158, %v6160, %v6156
      %v6162 = vmul.f32 1.0, %v6161
      %v6163 = vrcp.pop %v5301
      %v6164 = vmul.f32 %v5301, %v6163
      %v6165 = vsub.f32 1.0, %v6164
      %v6166 = vmul.f32 %v6163, %v6165
      %v6167 = vadd.f32 %v6163, %v6166
      %vm6168 = vweird.f32 %v5301
      %vm6169 = vweird.f32 %v6163
      %vm6170 = vmor %vm6168, %vm6169
      %v6171 = vsel %vm6170, %v6163, %v6167
      %v6172 = vand.u32 2147483647, %v5301
      %vm6173 = vcmp.eq.f32.partialorder %v6172, 8.507059e+37
      %v6174 = vand.u32 %v5301, 2147483648
      %v6175 = vor.u32 1.1754944e-38, %v6174
      %v6176 = vsel %vm6173, %v6175, %v6171
      %v6177 = vmul.f32 1.0, %v6176
      %v6178 = vrcp.pop %v5302
      %v6179 = vmul.f32 %v5302, %v6178
      %v6180 = vsub.f32 1.0, %v6179
      %v6181 = vmul.f32 %v6178, %v6180
      %v6182 = vadd.f32 %v6178, %v6181
      %vm6183 = vweird.f32 %v5302
      %vm6184 = vweird.f32 %v6178
      %vm6185 = vmor %vm6183, %vm6184
      %v6186 = vsel %vm6185, %v6178, %v6182
      %v6187 = vand.u32 2147483647, %v5302
      %vm6188 = vcmp.eq.f32.partialorder %v6187, 8.507059e+37
      %v6189 = vand.u32 %v5302, 2147483648
      %v6190 = vor.u32 1.1754944e-38, %v6189
      %v6191 = vsel %vm6188, %v6190, %v6186
      %v6192 = vmul.f32 1.0, %v6191
      %v6193 = vrcp.pop %v5303
      %v6194 = vmul.f32 %v5303, %v6193
      %v6195 = vsub.f32 1.0, %v6194
      %v6196 = vmul.f32 %v6193, %v6195
      %v6197 = vadd.f32 %v6193, %v6196
      %vm6198 = vweird.f32 %v5303
      %vm6199 = vweird.f32 %v6193
      %vm6200 = vmor %vm6198, %vm6199
      %v6201 = vsel %vm6200, %v6193, %v6197
      %v6202 = vand.u32 2147483647, %v5303
      %vm6203 = vcmp.eq.f32.partialorder %v6202, 8.507059e+37
      %v6204 = vand.u32 %v5303, 2147483648
      %v6205 = vor.u32 1.1754944e-38, %v6204
      %v6206 = vsel %vm6203, %v6205, %v6201
      %v6207 = vmul.f32 1.0, %v6206
      %v6208 = vrcp.pop %v5304
      %v6209 = vmul.f32 %v5304, %v6208
      %v6210 = vsub.f32 1.0, %v6209
      %v6211 = vmul.f32 %v6208, %v6210
      %v6212 = vadd.f32 %v6208, %v6211
      %vm6213 = vweird.f32 %v5304
      %vm6214 = vweird.f32 %v6208
      %vm6215 = vmor %vm6213, %vm6214
      %v6216 = vsel %vm6215, %v6208, %v6212
      %v6217 = vand.u32 2147483647, %v5304
      %vm6218 = vcmp.eq.f32.partialorder %v6217, 8.507059e+37
      %v6219 = vand.u32 %v5304, 2147483648
      %v6220 = vor.u32 1.1754944e-38, %v6219
      %v6221 = vsel %vm6218, %v6220, %v6216
      %v6222 = vmul.f32 1.0, %v6221
      %v6223 = vrcp.pop %v5305
      %v6224 = vmul.f32 %v5305, %v6223
      %v6225 = vsub.f32 1.0, %v6224
      %v6226 = vmul.f32 %v6223, %v6225
      %v6227 = vadd.f32 %v6223, %v6226
      %vm6228 = vweird.f32 %v5305
      %vm6229 = vweird.f32 %v6223
      %vm6230 = vmor %vm6228, %vm6229
      %v6231 = vsel %vm6230, %v6223, %v6227
      %v6232 = vand.u32 2147483647, %v5305
      %vm6233 = vcmp.eq.f32.partialorder %v6232, 8.507059e+37
      %v6234 = vand.u32 %v5305, 2147483648
      %v6235 = vor.u32 1.1754944e-38, %v6234
      %v6236 = vsel %vm6233, %v6235, %v6231
      %v6237 = vmul.f32 1.0, %v6236
      %v6238 = vrcp.pop %v5306
      %v6239 = vmul.f32 %v5306, %v6238
      %v6240 = vsub.f32 1.0, %v6239
      %v6241 = vmul.f32 %v6238, %v6240
      %v6242 = vadd.f32 %v6238, %v6241
      %vm6243 = vweird.f32 %v5306
      %vm6244 = vweird.f32 %v6238
      %vm6245 = vmor %vm6243, %vm6244
      %v6246 = vsel %vm6245, %v6238, %v6242
      %v6247 = vand.u32 2147483647, %v5306
      %vm6248 = vcmp.eq.f32.partialorder %v6247, 8.507059e+37
      %v6249 = vand.u32 %v5306, 2147483648
      %v6250 = vor.u32 1.1754944e-38, %v6249
      %v6251 = vsel %vm6248, %v6250, %v6246
      %v6252 = vmul.f32 1.0, %v6251
      %v6253 = vrcp.pop %v5307
      %v6254 = vmul.f32 %v5307, %v6253
      %v6255 = vsub.f32 1.0, %v6254
      %v6256 = vmul.f32 %v6253, %v6255
      %v6257 = vadd.f32 %v6253, %v6256
      %vm6258 = vweird.f32 %v5307
      %vm6259 = vweird.f32 %v6253
      %vm6260 = vmor %vm6258, %vm6259
      %v6261 = vsel %vm6260, %v6253, %v6257
      %v6262 = vand.u32 2147483647, %v5307
      %vm6263 = vcmp.eq.f32.partialorder %v6262, 8.507059e+37
      %v6264 = vand.u32 %v5307, 2147483648
      %v6265 = vor.u32 1.1754944e-38, %v6264
      %v6266 = vsel %vm6263, %v6265, %v6261
      %v6267 = vmul.f32 1.0, %v6266
      %v6268 = vmul.f32 %v5322, 1.0614054
      %v6269 = vmul.f32 %v5337, 1.0614054
      %v6270 = vmul.f32 %v5352, 1.0614054
      %v6271 = vmul.f32 %v5367, 1.0614054
      %v6272 = vmul.f32 %v5382, 1.0614054
      %v6273 = vmul.f32 %v5397, 1.0614054
      %v6274 = vmul.f32 %v5412, 1.0614054
      %v6275 = vmul.f32 %v5427, 1.0614054
      %v6276 = vmul.f32 %v5442, 1.0614054
      %v6277 = vmul.f32 %v5457, 1.0614054
      %v6278 = vmul.f32 %v5472, 1.0614054
      %v6279 = vmul.f32 %v5487, 1.0614054
      %v6280 = vmul.f32 %v5502, 1.0614054
      %v6281 = vmul.f32 %v5517, 1.0614054
      %v6282 = vmul.f32 %v5532, 1.0614054
      %v6283 = vmul.f32 %v5547, 1.0614054
      %v6284 = vmul.f32 %v5562, 1.0614054
      %v6285 = vmul.f32 %v5577, 1.0614054
      %v6286 = vmul.f32 %v5592, 1.0614054
      %v6287 = vmul.f32 %v5607, 1.0614054
      %v6288 = vmul.f32 %v5622, 1.0614054
      %v6289 = vmul.f32 %v5637, 1.0614054
      %v6290 = vmul.f32 %v5652, 1.0614054
      %v6291 = vmul.f32 %v5667, 1.0614054
      %v6292 = vmul.f32 %v5682, 1.0614054
      %v6293 = vmul.f32 %v5697, 1.0614054
      %v6294 = vmul.f32 %v5712, 1.0614054
      %v6295 = vmul.f32 %v5727, 1.0614054
      %v6296 = vmul.f32 %v5742, 1.0614054
      %v6297 = vmul.f32 %v5757, 1.0614054
      %v6298 = vmul.f32 %v5772, 1.0614054
      %v6299 = vmul.f32 %v5787, 1.0614054
      %v6300 = vmul.f32 %v5802, 1.0614054
      %v6301 = vmul.f32 %v5817, 1.0614054
      %v6302 = vmul.f32 %v5832, 1.0614054
      %v6303 = vmul.f32 %v5847, 1.0614054
      %v6304 = vmul.f32 %v5862, 1.0614054
      %v6305 = vmul.f32 %v5877, 1.0614054
      %v6306 = vmul.f32 %v5892, 1.0614054
      %v6307 = vmul.f32 %v5907, 1.0614054
      %v6308 = vmul.f32 %v5922, 1.0614054
      %v6309 = vmul.f32 %v5937, 1.0614054
      %v6310 = vmul.f32 %v5952, 1.0614054
      %v6311 = vmul.f32 %v5967, 1.0614054
      %v6312 = vmul.f32 %v5982, 1.0614054
      %v6313 = vmul.f32 %v5997, 1.0614054
      %v6314 = vmul.f32 %v6012, 1.0614054
      %v6315 = vmul.f32 %v6027, 1.0614054
      %v6316 = vmul.f32 %v6042, 1.0614054
      %v6317 = vmul.f32 %v6057, 1.0614054
      %v6318 = vmul.f32 %v6072, 1.0614054
      %v6319 = vmul.f32 %v6087, 1.0614054
      %v6320 = vmul.f32 %v6102, 1.0614054
      %v6321 = vmul.f32 %v6117, 1.0614054
      %v6322 = vmul.f32 %v6132, 1.0614054
      %v6323 = vmul.f32 %v6147, 1.0614054
      %v6324 = vmul.f32 %v6162, 1.0614054
      %v6325 = vmul.f32 %v6177, 1.0614054
      %v6326 = vmul.f32 %v6192, 1.0614054
      %v6327 = vmul.f32 %v6207, 1.0614054
      %v6328 = vmul.f32 %v6222, 1.0614054
      %v6329 = vmul.f32 %v6237, 1.0614054
      %v6330 = vmul.f32 %v6252, 1.0614054
      %v6331 = vmul.f32 %v6267, 1.0614054
      %v6332 = vadd.f32 %v6268, -1.4531521
      %v6333 = vadd.f32 %v6269, -1.4531521
      %v6334 = vadd.f32 %v6270, -1.4531521
      %v6335 = vadd.f32 %v6271, -1.4531521
      %v6336 = vadd.f32 %v6272, -1.4531521
      %v6337 = vadd.f32 %v6273, -1.4531521
      %v6338 = vadd.f32 %v6274, -1.4531521
      %v6339 = vadd.f32 %v6275, -1.4531521
      %v6340 = vadd.f32 %v6276, -1.4531521
      %v6341 = vadd.f32 %v6277, -1.4531521
      %v6342 = vadd.f32 %v6278, -1.4531521
      %v6343 = vadd.f32 %v6279, -1.4531521
      %v6344 = vadd.f32 %v6280, -1.4531521
      %v6345 = vadd.f32 %v6281, -1.4531521
      %v6346 = vadd.f32 %v6282, -1.4531521
      %v6347 = vadd.f32 %v6283, -1.4531521
      %v6348 = vadd.f32 %v6284, -1.4531521
      %v6349 = vadd.f32 %v6285, -1.4531521
      %v6350 = vadd.f32 %v6286, -1.4531521
      %v6351 = vadd.f32 %v6287, -1.4531521
      %v6352 = vadd.f32 %v6288, -1.4531521
      %v6353 = vadd.f32 %v6289, -1.4531521
      %v6354 = vadd.f32 %v6290, -1.4531521
      %v6355 = vadd.f32 %v6291, -1.4531521
      %v6356 = vadd.f32 %v6292, -1.4531521
      %v6357 = vadd.f32 %v6293, -1.4531521
      %v6358 = vadd.f32 %v6294, -1.4531521
      %v6359 = vadd.f32 %v6295, -1.4531521
      %v6360 = vadd.f32 %v6296, -1.4531521
      %v6361 = vadd.f32 %v6297, -1.4531521
      %v6362 = vadd.f32 %v6298, -1.4531521
      %v6363 = vadd.f32 %v6299, -1.4531521
      %v6364 = vadd.f32 %v6300, -1.4531521
      %v6365 = vadd.f32 %v6301, -1.4531521
      %v6366 = vadd.f32 %v6302, -1.4531521
      %v6367 = vadd.f32 %v6303, -1.4531521
      %v6368 = vadd.f32 %v6304, -1.4531521
      %v6369 = vadd.f32 %v6305, -1.4531521
      %v6370 = vadd.f32 %v6306, -1.4531521
      %v6371 = vadd.f32 %v6307, -1.4531521
      %v6372 = vadd.f32 %v6308, -1.4531521
      %v6373 = vadd.f32 %v6309, -1.4531521
      %v6374 = vadd.f32 %v6310, -1.4531521
      %v6375 = vadd.f32 %v6311, -1.4531521
      %v6376 = vadd.f32 %v6312, -1.4531521
      %v6377 = vadd.f32 %v6313, -1.4531521
      %v6378 = vadd.f32 %v6314, -1.4531521
      %v6379 = vadd.f32 %v6315, -1.4531521
      %v6380 = vadd.f32 %v6316, -1.4531521
      %v6381 = vadd.f32 %v6317, -1.4531521
      %v6382 = vadd.f32 %v6318, -1.4531521
      %v6383 = vadd.f32 %v6319, -1.4531521
      %v6384 = vadd.f32 %v6320, -1.4531521
      %v6385 = vadd.f32 %v6321, -1.4531521
      %v6386 = vadd.f32 %v6322, -1.4531521
      %v6387 = vadd.f32 %v6323, -1.4531521
      %v6388 = vadd.f32 %v6324, -1.4531521
      %v6389 = vadd.f32 %v6325, -1.4531521
      %v6390 = vadd.f32 %v6326, -1.4531521
      %v6391 = vadd.f32 %v6327, -1.4531521
      %v6392 = vadd.f32 %v6328, -1.4531521
      %v6393 = vadd.f32 %v6329, -1.4531521
      %v6394 = vadd.f32 %v6330, -1.4531521
      %v6395 = vadd.f32 %v6331, -1.4531521
      %v6396 = vmul.f32 %v6332, %v5322
      %v6397 = vmul.f32 %v6333, %v5337
      %v6398 = vmul.f32 %v6334, %v5352
      %v6399 = vmul.f32 %v6335, %v5367
      %v6400 = vmul.f32 %v6336, %v5382
      %v6401 = vmul.f32 %v6337, %v5397
      %v6402 = vmul.f32 %v6338, %v5412
      %v6403 = vmul.f32 %v6339, %v5427
      %v6404 = vmul.f32 %v6340, %v5442
      %v6405 = vmul.f32 %v6341, %v5457
      %v6406 = vmul.f32 %v6342, %v5472
      %v6407 = vmul.f32 %v6343, %v5487
      %v6408 = vmul.f32 %v6344, %v5502
      %v6409 = vmul.f32 %v6345, %v5517
      %v6410 = vmul.f32 %v6346, %v5532
      %v6411 = vmul.f32 %v6347, %v5547
      %v6412 = vmul.f32 %v6348, %v5562
      %v6413 = vmul.f32 %v6349, %v5577
      %v6414 = vmul.f32 %v6350, %v5592
      %v6415 = vmul.f32 %v6351, %v5607
      %v6416 = vmul.f32 %v6352, %v5622
      %v6417 = vmul.f32 %v6353, %v5637
      %v6418 = vmul.f32 %v6354, %v5652
      %v6419 = vmul.f32 %v6355, %v5667
      %v6420 = vmul.f32 %v6356, %v5682
      %v6421 = vmul.f32 %v6357, %v5697
      %v6422 = vmul.f32 %v6358, %v5712
      %v6423 = vmul.f32 %v6359, %v5727
      %v6424 = vmul.f32 %v6360, %v5742
      %v6425 = vmul.f32 %v6361, %v5757
      %v6426 = vmul.f32 %v6362, %v5772
      %v6427 = vmul.f32 %v6363, %v5787
      %v6428 = vmul.f32 %v6364, %v5802
      %v6429 = vmul.f32 %v6365, %v5817
      %v6430 = vmul.f32 %v6366, %v5832
      %v6431 = vmul.f32 %v6367, %v5847
      %v6432 = vmul.f32 %v6368, %v5862
      %v6433 = vmul.f32 %v6369, %v5877
      %v6434 = vmul.f32 %v6370, %v5892
      %v6435 = vmul.f32 %v6371, %v5907
      %v6436 = vmul.f32 %v6372, %v5922
      %v6437 = vmul.f32 %v6373, %v5937
      %v6438 = vmul.f32 %v6374, %v5952
      %v6439 = vmul.f32 %v6375, %v5967
      %v6440 = vmul.f32 %v6376, %v5982
      %v6441 = vmul.f32 %v6377, %v5997
      %v6442 = vmul.f32 %v6378, %v6012
      %v6443 = vmul.f32 %v6379, %v6027
      %v6444 = vmul.f32 %v6380, %v6042
      %v6445 = vmul.f32 %v6381, %v6057
      %v6446 = vmul.f32 %v6382, %v6072
      %v6447 = vmul.f32 %v6383, %v6087
      %v6448 = vmul.f32 %v6384, %v6102
      %v6449 = vmul.f32 %v6385, %v6117
      %v6450 = vmul.f32 %v6386, %v6132
      %v6451 = vmul.f32 %v6387, %v6147
      %v6452 = vmul.f32 %v6388, %v6162
      %v6453 = vmul.f32 %v6389, %v6177
      %v6454 = vmul.f32 %v6390, %v6192
      %v6455 = vmul.f32 %v6391, %v6207
      %v6456 = vmul.f32 %v6392, %v6222
      %v6457 = vmul.f32 %v6393, %v6237
      %v6458 = vmul.f32 %v6394, %v6252
      %v6459 = vmul.f32 %v6395, %v6267
      %v6460 = vadd.f32 %v6396, 1.4214138
      %v6461 = vadd.f32 %v6397, 1.4214138
      %v6462 = vadd.f32 %v6398, 1.4214138
      %v6463 = vadd.f32 %v6399, 1.4214138
      %v6464 = vadd.f32 %v6400, 1.4214138
      %v6465 = vadd.f32 %v6401, 1.4214138
      %v6466 = vadd.f32 %v6402, 1.4214138
      %v6467 = vadd.f32 %v6403, 1.4214138
      %v6468 = vadd.f32 %v6404, 1.4214138
      %v6469 = vadd.f32 %v6405, 1.4214138
      %v6470 = vadd.f32 %v6406, 1.4214138
      %v6471 = vadd.f32 %v6407, 1.4214138
      %v6472 = vadd.f32 %v6408, 1.4214138
      %v6473 = vadd.f32 %v6409, 1.4214138
      %v6474 = vadd.f32 %v6410, 1.4214138
      %v6475 = vadd.f32 %v6411, 1.4214138
      %v6476 = vadd.f32 %v6412, 1.4214138
      %v6477 = vadd.f32 %v6413, 1.4214138
      %v6478 = vadd.f32 %v6414, 1.4214138
      %v6479 = vadd.f32 %v6415, 1.4214138
      %v6480 = vadd.f32 %v6416, 1.4214138
      %v6481 = vadd.f32 %v6417, 1.4214138
      %v6482 = vadd.f32 %v6418, 1.4214138
      %v6483 = vadd.f32 %v6419, 1.4214138
      %v6484 = vadd.f32 %v6420, 1.4214138
      %v6485 = vadd.f32 %v6421, 1.4214138
      %v6486 = vadd.f32 %v6422, 1.4214138
      %v6487 = vadd.f32 %v6423, 1.4214138
      %v6488 = vadd.f32 %v6424, 1.4214138
      %v6489 = vadd.f32 %v6425, 1.4214138
      %v6490 = vadd.f32 %v6426, 1.4214138
      %v6491 = vadd.f32 %v6427, 1.4214138
      %v6492 = vadd.f32 %v6428, 1.4214138
      %v6493 = vadd.f32 %v6429, 1.4214138
      %v6494 = vadd.f32 %v6430, 1.4214138
      %v6495 = vadd.f32 %v6431, 1.4214138
      %v6496 = vadd.f32 %v6432, 1.4214138
      %v6497 = vadd.f32 %v6433, 1.4214138
      %v6498 = vadd.f32 %v6434, 1.4214138
      %v6499 = vadd.f32 %v6435, 1.4214138
      %v6500 = vadd.f32 %v6436, 1.4214138
      %v6501 = vadd.f32 %v6437, 1.4214138
      %v6502 = vadd.f32 %v6438, 1.4214138
      %v6503 = vadd.f32 %v6439, 1.4214138
      %v6504 = vadd.f32 %v6440, 1.4214138
      %v6505 = vadd.f32 %v6441, 1.4214138
      %v6506 = vadd.f32 %v6442, 1.4214138
      %v6507 = vadd.f32 %v6443, 1.4214138
      %v6508 = vadd.f32 %v6444, 1.4214138
      %v6509 = vadd.f32 %v6445, 1.4214138
      %v6510 = vadd.f32 %v6446, 1.4214138
      %v6511 = vadd.f32 %v6447, 1.4214138
      %v6512 = vadd.f32 %v6448, 1.4214138
      %v6513 = vadd.f32 %v6449, 1.4214138
      %v6514 = vadd.f32 %v6450, 1.4214138
      %v6515 = vadd.f32 %v6451, 1.4214138
      %v6516 = vadd.f32 %v6452, 1.4214138
      %v6517 = vadd.f32 %v6453, 1.4214138
      %v6518 = vadd.f32 %v6454, 1.4214138
      %v6519 = vadd.f32 %v6455, 1.4214138
      %v6520 = vadd.f32 %v6456, 1.4214138
      %v6521 = vadd.f32 %v6457, 1.4214138
      %v6522 = vadd.f32 %v6458, 1.4214138
      %v6523 = vadd.f32 %v6459, 1.4214138
      %v6524 = vmul.f32 %v6460, %v5322
      %v6525 = vmul.f32 %v6461, %v5337
      %v6526 = vmul.f32 %v6462, %v5352
      %v6527 = vmul.f32 %v6463, %v5367
      %v6528 = vmul.f32 %v6464, %v5382
      %v6529 = vmul.f32 %v6465, %v5397
      %v6530 = vmul.f32 %v6466, %v5412
      %v6531 = vmul.f32 %v6467, %v5427
      %v6532 = vmul.f32 %v6468, %v5442
      %v6533 = vmul.f32 %v6469, %v5457
      %v6534 = vmul.f32 %v6470, %v5472
      %v6535 = vmul.f32 %v6471, %v5487
      %v6536 = vmul.f32 %v6472, %v5502
      %v6537 = vmul.f32 %v6473, %v5517
      %v6538 = vmul.f32 %v6474, %v5532
      %v6539 = vmul.f32 %v6475, %v5547
      %v6540 = vmul.f32 %v6476, %v5562
      %v6541 = vmul.f32 %v6477, %v5577
      %v6542 = vmul.f32 %v6478, %v5592
      %v6543 = vmul.f32 %v6479, %v5607
      %v6544 = vmul.f32 %v6480, %v5622
      %v6545 = vmul.f32 %v6481, %v5637
      %v6546 = vmul.f32 %v6482, %v5652
      %v6547 = vmul.f32 %v6483, %v5667
      %v6548 = vmul.f32 %v6484, %v5682
      %v6549 = vmul.f32 %v6485, %v5697
      %v6550 = vmul.f32 %v6486, %v5712
      %v6551 = vmul.f32 %v6487, %v5727
      %v6552 = vmul.f32 %v6488, %v5742
      %v6553 = vmul.f32 %v6489, %v5757
      %v6554 = vmul.f32 %v6490, %v5772
      %v6555 = vmul.f32 %v6491, %v5787
      %v6556 = vmul.f32 %v6492, %v5802
      %v6557 = vmul.f32 %v6493, %v5817
      %v6558 = vmul.f32 %v6494, %v5832
      %v6559 = vmul.f32 %v6495, %v5847
      %v6560 = vmul.f32 %v6496, %v5862
      %v6561 = vmul.f32 %v6497, %v5877
      %v6562 = vmul.f32 %v6498, %v5892
      %v6563 = vmul.f32 %v6499, %v5907
      %v6564 = vmul.f32 %v6500, %v5922
      %v6565 = vmul.f32 %v6501, %v5937
      %v6566 = vmul.f32 %v6502, %v5952
      %v6567 = vmul.f32 %v6503, %v5967
      %v6568 = vmul.f32 %v6504, %v5982
      %v6569 = vmul.f32 %v6505, %v5997
      %v6570 = vmul.f32 %v6506, %v6012
      %v6571 = vmul.f32 %v6507, %v6027
      %v6572 = vmul.f32 %v6508, %v6042
      %v6573 = vmul.f32 %v6509, %v6057
      %v6574 = vmul.f32 %v6510, %v6072
      %v6575 = vmul.f32 %v6511, %v6087
      %v6576 = vmul.f32 %v6512, %v6102
      %v6577 = vmul.f32 %v6513, %v6117
      %v6578 = vmul.f32 %v6514, %v6132
      %v6579 = vmul.f32 %v6515, %v6147
      %v6580 = vmul.f32 %v6516, %v6162
      %v6581 = vmul.f32 %v6517, %v6177
      %v6582 = vmul.f32 %v6518, %v6192
      %v6583 = vmul.f32 %v6519, %v6207
      %v6584 = vmul.f32 %v6520, %v6222
      %v6585 = vmul.f32 %v6521, %v6237
      %v6586 = vmul.f32 %v6522, %v6252
      %v6587 = vmul.f32 %v6523, %v6267
      %v6588 = vadd.f32 %v6524, -0.28449672
      %v6589 = vadd.f32 %v6525, -0.28449672
      %v6590 = vadd.f32 %v6526, -0.28449672
      %v6591 = vadd.f32 %v6527, -0.28449672
      %v6592 = vadd.f32 %v6528, -0.28449672
      %v6593 = vadd.f32 %v6529, -0.28449672
      %v6594 = vadd.f32 %v6530, -0.28449672
      %v6595 = vadd.f32 %v6531, -0.28449672
      %v6596 = vadd.f32 %v6532, -0.28449672
      %v6597 = vadd.f32 %v6533, -0.28449672
      %v6598 = vadd.f32 %v6534, -0.28449672
      %v6599 = vadd.f32 %v6535, -0.28449672
      %v6600 = vadd.f32 %v6536, -0.28449672
      %v6601 = vadd.f32 %v6537, -0.28449672
      %v6602 = vadd.f32 %v6538, -0.28449672
      %v6603 = vadd.f32 %v6539, -0.28449672
      %v6604 = vadd.f32 %v6540, -0.28449672
      %v6605 = vadd.f32 %v6541, -0.28449672
      %v6606 = vadd.f32 %v6542, -0.28449672
      %v6607 = vadd.f32 %v6543, -0.28449672
      %v6608 = vadd.f32 %v6544, -0.28449672
      %v6609 = vadd.f32 %v6545, -0.28449672
      %v6610 = vadd.f32 %v6546, -0.28449672
      %v6611 = vadd.f32 %v6547, -0.28449672
      %v6612 = vadd.f32 %v6548, -0.28449672
      %v6613 = vadd.f32 %v6549, -0.28449672
      %v6614 = vadd.f32 %v6550, -0.28449672
      %v6615 = vadd.f32 %v6551, -0.28449672
      %v6616 = vadd.f32 %v6552, -0.28449672
      %v6617 = vadd.f32 %v6553, -0.28449672
      %v6618 = vadd.f32 %v6554, -0.28449672
      %v6619 = vadd.f32 %v6555, -0.28449672
      %v6620 = vadd.f32 %v6556, -0.28449672
      %v6621 = vadd.f32 %v6557, -0.28449672
      %v6622 = vadd.f32 %v6558, -0.28449672
      %v6623 = vadd.f32 %v6559, -0.28449672
      %v6624 = vadd.f32 %v6560, -0.28449672
      %v6625 = vadd.f32 %v6561, -0.28449672
      %v6626 = vadd.f32 %v6562, -0.28449672
      %v6627 = vadd.f32 %v6563, -0.28449672
      %v6628 = vadd.f32 %v6564, -0.28449672
      %v6629 = vadd.f32 %v6565, -0.28449672
      %v6630 = vadd.f32 %v6566, -0.28449672
      %v6631 = vadd.f32 %v6567, -0.28449672
      %v6632 = vadd.f32 %v6568, -0.28449672
      %v6633 = vadd.f32 %v6569, -0.28449672
      %v6634 = vadd.f32 %v6570, -0.28449672
      %v6635 = vadd.f32 %v6571, -0.28449672
      %v6636 = vadd.f32 %v6572, -0.28449672
      %v6637 = vadd.f32 %v6573, -0.28449672
      %v6638 = vadd.f32 %v6574, -0.28449672
      %v6639 = vadd.f32 %v6575, -0.28449672
      %v6640 = vadd.f32 %v6576, -0.28449672
      %v6641 = vadd.f32 %v6577, -0.28449672
      %v6642 = vadd.f32 %v6578, -0.28449672
      %v6643 = vadd.f32 %v6579, -0.28449672
      %v6644 = vadd.f32 %v6580, -0.28449672
      %v6645 = vadd.f32 %v6581, -0.28449672
      %v6646 = vadd.f32 %v6582, -0.28449672
      %v6647 = vadd.f32 %v6583, -0.28449672
      %v6648 = vadd.f32 %v6584, -0.28449672
      %v6649 = vadd.f32 %v6585, -0.28449672
      %v6650 = vadd.f32 %v6586, -0.28449672
      %v6651 = vadd.f32 %v6587, -0.28449672
      %v6652 = vmul.f32 %v6588, %v5322
      %v6653 = vmul.f32 %v6589, %v5337
      %v6654 = vmul.f32 %v6590, %v5352
      %v6655 = vmul.f32 %v6591, %v5367
      %v6656 = vmul.f32 %v6592, %v5382
      %v6657 = vmul.f32 %v6593, %v5397
      %v6658 = vmul.f32 %v6594, %v5412
      %v6659 = vmul.f32 %v6595, %v5427
      %v6660 = vmul.f32 %v6596, %v5442
      %v6661 = vmul.f32 %v6597, %v5457
      %v6662 = vmul.f32 %v6598, %v5472
      %v6663 = vmul.f32 %v6599, %v5487
      %v6664 = vmul.f32 %v6600, %v5502
      %v6665 = vmul.f32 %v6601, %v5517
      %v6666 = vmul.f32 %v6602, %v5532
      %v6667 = vmul.f32 %v6603, %v5547
      %v6668 = vmul.f32 %v6604, %v5562
      %v6669 = vmul.f32 %v6605, %v5577
      %v6670 = vmul.f32 %v6606, %v5592
      %v6671 = vmul.f32 %v6607, %v5607
      %v6672 = vmul.f32 %v6608, %v5622
      %v6673 = vmul.f32 %v6609, %v5637
      %v6674 = vmul.f32 %v6610, %v5652
      %v6675 = vmul.f32 %v6611, %v5667
      %v6676 = vmul.f32 %v6612, %v5682
      %v6677 = vmul.f32 %v6613, %v5697
      %v6678 = vmul.f32 %v6614, %v5712
      %v6679 = vmul.f32 %v6615, %v5727
      %v6680 = vmul.f32 %v6616, %v5742
      %v6681 = vmul.f32 %v6617, %v5757
      %v6682 = vmul.f32 %v6618, %v5772
      %v6683 = vmul.f32 %v6619, %v5787
      %v6684 = vmul.f32 %v6620, %v5802
      %v6685 = vmul.f32 %v6621, %v5817
      %v6686 = vmul.f32 %v6622, %v5832
      %v6687 = vmul.f32 %v6623, %v5847
      %v6688 = vmul.f32 %v6624, %v5862
      %v6689 = vmul.f32 %v6625, %v5877
      %v6690 = vmul.f32 %v6626, %v5892
      %v6691 = vmul.f32 %v6627, %v5907
      %v6692 = vmul.f32 %v6628, %v5922
      %v6693 = vmul.f32 %v6629, %v5937
      %v6694 = vmul.f32 %v6630, %v5952
      %v6695 = vmul.f32 %v6631, %v5967
      %v6696 = vmul.f32 %v6632, %v5982
      %v6697 = vmul.f32 %v6633, %v5997
      %v6698 = vmul.f32 %v6634, %v6012
      %v6699 = vmul.f32 %v6635, %v6027
      %v6700 = vmul.f32 %v6636, %v6042
      %v6701 = vmul.f32 %v6637, %v6057
      %v6702 = vmul.f32 %v6638, %v6072
      %v6703 = vmul.f32 %v6639, %v6087
      %v6704 = vmul.f32 %v6640, %v6102
      %v6705 = vmul.f32 %v6641, %v6117
      %v6706 = vmul.f32 %v6642, %v6132
      %v6707 = vmul.f32 %v6643, %v6147
      %v6708 = vmul.f32 %v6644, %v6162
      %v6709 = vmul.f32 %v6645, %v6177
      %v6710 = vmul.f32 %v6646, %v6192
      %v6711 = vmul.f32 %v6647, %v6207
      %v6712 = vmul.f32 %v6648, %v6222
      %v6713 = vmul.f32 %v6649, %v6237
      %v6714 = vmul.f32 %v6650, %v6252
      %v6715 = vmul.f32 %v6651, %v6267
      %v6716 = vadd.f32 %v6652, 0.2548296
      %v6717 = vadd.f32 %v6653, 0.2548296
      %v6718 = vadd.f32 %v6654, 0.2548296
      %v6719 = vadd.f32 %v6655, 0.2548296
      %v6720 = vadd.f32 %v6656, 0.2548296
      %v6721 = vadd.f32 %v6657, 0.2548296
      %v6722 = vadd.f32 %v6658, 0.2548296
      %v6723 = vadd.f32 %v6659, 0.2548296
      %v6724 = vadd.f32 %v6660, 0.2548296
      %v6725 = vadd.f32 %v6661, 0.2548296
      %v6726 = vadd.f32 %v6662, 0.2548296
      %v6727 = vadd.f32 %v6663, 0.2548296
      %v6728 = vadd.f32 %v6664, 0.2548296
      %v6729 = vadd.f32 %v6665, 0.2548296
      %v6730 = vadd.f32 %v6666, 0.2548296
      %v6731 = vadd.f32 %v6667, 0.2548296
      %v6732 = vadd.f32 %v6668, 0.2548296
      %v6733 = vadd.f32 %v6669, 0.2548296
      %v6734 = vadd.f32 %v6670, 0.2548296
      %v6735 = vadd.f32 %v6671, 0.2548296
      %v6736 = vadd.f32 %v6672, 0.2548296
      %v6737 = vadd.f32 %v6673, 0.2548296
      %v6738 = vadd.f32 %v6674, 0.2548296
      %v6739 = vadd.f32 %v6675, 0.2548296
      %v6740 = vadd.f32 %v6676, 0.2548296
      %v6741 = vadd.f32 %v6677, 0.2548296
      %v6742 = vadd.f32 %v6678, 0.2548296
      %v6743 = vadd.f32 %v6679, 0.2548296
      %v6744 = vadd.f32 %v6680, 0.2548296
      %v6745 = vadd.f32 %v6681, 0.2548296
      %v6746 = vadd.f32 %v6682, 0.2548296
      %v6747 = vadd.f32 %v6683, 0.2548296
      %v6748 = vadd.f32 %v6684, 0.2548296
      %v6749 = vadd.f32 %v6685, 0.2548296
      %v6750 = vadd.f32 %v6686, 0.2548296
      %v6751 = vadd.f32 %v6687, 0.2548296
      %v6752 = vadd.f32 %v6688, 0.2548296
      %v6753 = vadd.f32 %v6689, 0.2548296
      %v6754 = vadd.f32 %v6690, 0.2548296
      %v6755 = vadd.f32 %v6691, 0.2548296
      %v6756 = vadd.f32 %v6692, 0.2548296
      %v6757 = vadd.f32 %v6693, 0.2548296
      %v6758 = vadd.f32 %v6694, 0.2548296
      %v6759 = vadd.f32 %v6695, 0.2548296
      %v6760 = vadd.f32 %v6696, 0.2548296
      %v6761 = vadd.f32 %v6697, 0.2548296
      %v6762 = vadd.f32 %v6698, 0.2548296
      %v6763 = vadd.f32 %v6699, 0.2548296
      %v6764 = vadd.f32 %v6700, 0.2548296
      %v6765 = vadd.f32 %v6701, 0.2548296
      %v6766 = vadd.f32 %v6702, 0.2548296
      %v6767 = vadd.f32 %v6703, 0.2548296
      %v6768 = vadd.f32 %v6704, 0.2548296
      %v6769 = vadd.f32 %v6705, 0.2548296
      %v6770 = vadd.f32 %v6706, 0.2548296
      %v6771 = vadd.f32 %v6707, 0.2548296
      %v6772 = vadd.f32 %v6708, 0.2548296
      %v6773 = vadd.f32 %v6709, 0.2548296
      %v6774 = vadd.f32 %v6710, 0.2548296
      %v6775 = vadd.f32 %v6711, 0.2548296
      %v6776 = vadd.f32 %v6712, 0.2548296
      %v6777 = vadd.f32 %v6713, 0.2548296
      %v6778 = vadd.f32 %v6714, 0.2548296
      %v6779 = vadd.f32 %v6715, 0.2548296
      %v6780 = vmul.f32 %v6716, %v5322
      %v6781 = vmul.f32 %v6717, %v5337
      %v6782 = vmul.f32 %v6718, %v5352
      %v6783 = vmul.f32 %v6719, %v5367
      %v6784 = vmul.f32 %v6720, %v5382
      %v6785 = vmul.f32 %v6721, %v5397
      %v6786 = vmul.f32 %v6722, %v5412
      %v6787 = vmul.f32 %v6723, %v5427
      %v6788 = vmul.f32 %v6724, %v5442
      %v6789 = vmul.f32 %v6725, %v5457
      %v6790 = vmul.f32 %v6726, %v5472
      %v6791 = vmul.f32 %v6727, %v5487
      %v6792 = vmul.f32 %v6728, %v5502
      %v6793 = vmul.f32 %v6729, %v5517
      %v6794 = vmul.f32 %v6730, %v5532
      %v6795 = vmul.f32 %v6731, %v5547
      %v6796 = vmul.f32 %v6732, %v5562
      %v6797 = vmul.f32 %v6733, %v5577
      %v6798 = vmul.f32 %v6734, %v5592
      %v6799 = vmul.f32 %v6735, %v5607
      %v6800 = vmul.f32 %v6736, %v5622
      %v6801 = vmul.f32 %v6737, %v5637
      %v6802 = vmul.f32 %v6738, %v5652
      %v6803 = vmul.f32 %v6739, %v5667
      %v6804 = vmul.f32 %v6740, %v5682
      %v6805 = vmul.f32 %v6741, %v5697
      %v6806 = vmul.f32 %v6742, %v5712
      %v6807 = vmul.f32 %v6743, %v5727
      %v6808 = vmul.f32 %v6744, %v5742
      %v6809 = vmul.f32 %v6745, %v5757
      %v6810 = vmul.f32 %v6746, %v5772
      %v6811 = vmul.f32 %v6747, %v5787
      %v6812 = vmul.f32 %v6748, %v5802
      %v6813 = vmul.f32 %v6749, %v5817
      %v6814 = vmul.f32 %v6750, %v5832
      %v6815 = vmul.f32 %v6751, %v5847
      %v6816 = vmul.f32 %v6752, %v5862
      %v6817 = vmul.f32 %v6753, %v5877
      %v6818 = vmul.f32 %v6754, %v5892
      %v6819 = vmul.f32 %v6755, %v5907
      %v6820 = vmul.f32 %v6756, %v5922
      %v6821 = vmul.f32 %v6757, %v5937
      %v6822 = vmul.f32 %v6758, %v5952
      %v6823 = vmul.f32 %v6759, %v5967
      %v6824 = vmul.f32 %v6760, %v5982
      %v6825 = vmul.f32 %v6761, %v5997
      %v6826 = vmul.f32 %v6762, %v6012
      %v6827 = vmul.f32 %v6763, %v6027
      %v6828 = vmul.f32 %v6764, %v6042
      %v6829 = vmul.f32 %v6765, %v6057
      %v6830 = vmul.f32 %v6766, %v6072
      %v6831 = vmul.f32 %v6767, %v6087
      %v6832 = vmul.f32 %v6768, %v6102
      %v6833 = vmul.f32 %v6769, %v6117
      %v6834 = vmul.f32 %v6770, %v6132
      %v6835 = vmul.f32 %v6771, %v6147
      %v6836 = vmul.f32 %v6772, %v6162
      %v6837 = vmul.f32 %v6773, %v6177
      %v6838 = vmul.f32 %v6774, %v6192
      %v6839 = vmul.f32 %v6775, %v6207
      %v6840 = vmul.f32 %v6776, %v6222
      %v6841 = vmul.f32 %v6777, %v6237
      %v6842 = vmul.f32 %v6778, %v6252
      %v6843 = vmul.f32 %v6779, %v6267
      %v6844 = vsub.f32 0.0, %v5116
      %v6845 = vsub.f32 0.0, %v5117
      %v6846 = vsub.f32 0.0, %v5118
      %v6847 = vsub.f32 0.0, %v5119
      %v6848 = vsub.f32 0.0, %v5120
      %v6849 = vsub.f32 0.0, %v5121
      %v6850 = vsub.f32 0.0, %v5122
      %v6851 = vsub.f32 0.0, %v5123
      %v6852 = vsub.f32 0.0, %v5124
      %v6853 = vsub.f32 0.0, %v5125
      %v6854 = vsub.f32 0.0, %v5126
      %v6855 = vsub.f32 0.0, %v5127
      %v6856 = vsub.f32 0.0, %v5128
      %v6857 = vsub.f32 0.0, %v5129
      %v6858 = vsub.f32 0.0, %v5130
      %v6859 = vsub.f32 0.0, %v5131
      %v6860 = vsub.f32 0.0, %v5132
      %v6861 = vsub.f32 0.0, %v5133
      %v6862 = vsub.f32 0.0, %v5134
      %v6863 = vsub.f32 0.0, %v5135
      %v6864 = vsub.f32 0.0, %v5136
      %v6865 = vsub.f32 0.0, %v5137
      %v6866 = vsub.f32 0.0, %v5138
      %v6867 = vsub.f32 0.0, %v5139
      %v6868 = vsub.f32 0.0, %v5140
      %v6869 = vsub.f32 0.0, %v5141
      %v6870 = vsub.f32 0.0, %v5142
      %v6871 = vsub.f32 0.0, %v5143
      %v6872 = vsub.f32 0.0, %v5144
      %v6873 = vsub.f32 0.0, %v5145
      %v6874 = vsub.f32 0.0, %v5146
      %v6875 = vsub.f32 0.0, %v5147
      %v6876 = vsub.f32 0.0, %v5148
      %v6877 = vsub.f32 0.0, %v5149
      %v6878 = vsub.f32 0.0, %v5150
      %v6879 = vsub.f32 0.0, %v5151
      %v6880 = vsub.f32 0.0, %v5152
      %v6881 = vsub.f32 0.0, %v5153
      %v6882 = vsub.f32 0.0, %v5154
      %v6883 = vsub.f32 0.0, %v5155
      %v6884 = vsub.f32 0.0, %v5156
      %v6885 = vsub.f32 0.0, %v5157
      %v6886 = vsub.f32 0.0, %v5158
      %v6887 = vsub.f32 0.0, %v5159
      %v6888 = vsub.f32 0.0, %v5160
      %v6889 = vsub.f32 0.0, %v5161
      %v6890 = vsub.f32 0.0, %v5162
      %v6891 = vsub.f32 0.0, %v5163
      %v6892 = vsub.f32 0.0, %v5164
      %v6893 = vsub.f32 0.0, %v5165
      %v6894 = vsub.f32 0.0, %v5166
      %v6895 = vsub.f32 0.0, %v5167
      %v6896 = vsub.f32 0.0, %v5168
      %v6897 = vsub.f32 0.0, %v5169
      %v6898 = vsub.f32 0.0, %v5170
      %v6899 = vsub.f32 0.0, %v5171
      %v6900 = vsub.f32 0.0, %v5172
      %v6901 = vsub.f32 0.0, %v5173
      %v6902 = vsub.f32 0.0, %v5174
      %v6903 = vsub.f32 0.0, %v5175
      %v6904 = vsub.f32 0.0, %v5176
      %v6905 = vsub.f32 0.0, %v5177
      %v6906 = vsub.f32 0.0, %v5178
      %v6907 = vsub.f32 0.0, %v5179
      %v6908 = vmul.f32 %v6844, %v5116
      %v6909 = vmul.f32 %v6845, %v5117
      %v6910 = vmul.f32 %v6846, %v5118
      %v6911 = vmul.f32 %v6847, %v5119
      %v6912 = vmul.f32 %v6848, %v5120
      %v6913 = vmul.f32 %v6849, %v5121
      %v6914 = vmul.f32 %v6850, %v5122
      %v6915 = vmul.f32 %v6851, %v5123
      %v6916 = vmul.f32 %v6852, %v5124
      %v6917 = vmul.f32 %v6853, %v5125
      %v6918 = vmul.f32 %v6854, %v5126
      %v6919 = vmul.f32 %v6855, %v5127
      %v6920 = vmul.f32 %v6856, %v5128
      %v6921 = vmul.f32 %v6857, %v5129
      %v6922 = vmul.f32 %v6858, %v5130
      %v6923 = vmul.f32 %v6859, %v5131
      %v6924 = vmul.f32 %v6860, %v5132
      %v6925 = vmul.f32 %v6861, %v5133
      %v6926 = vmul.f32 %v6862, %v5134
      %v6927 = vmul.f32 %v6863, %v5135
      %v6928 = vmul.f32 %v6864, %v5136
      %v6929 = vmul.f32 %v6865, %v5137
      %v6930 = vmul.f32 %v6866, %v5138
      %v6931 = vmul.f32 %v6867, %v5139
      %v6932 = vmul.f32 %v6868, %v5140
      %v6933 = vmul.f32 %v6869, %v5141
      %v6934 = vmul.f32 %v6870, %v5142
      %v6935 = vmul.f32 %v6871, %v5143
      %v6936 = vmul.f32 %v6872, %v5144
      %v6937 = vmul.f32 %v6873, %v5145
      %v6938 = vmul.f32 %v6874, %v5146
      %v6939 = vmul.f32 %v6875, %v5147
      %v6940 = vmul.f32 %v6876, %v5148
      %v6941 = vmul.f32 %v6877, %v5149
      %v6942 = vmul.f32 %v6878, %v5150
      %v6943 = vmul.f32 %v6879, %v5151
      %v6944 = vmul.f32 %v6880, %v5152
      %v6945 = vmul.f32 %v6881, %v5153
      %v6946 = vmul.f32 %v6882, %v5154
      %v6947 = vmul.f32 %v6883, %v5155
      %v6948 = vmul.f32 %v6884, %v5156
      %v6949 = vmul.f32 %v6885, %v5157
      %v6950 = vmul.f32 %v6886, %v5158
      %v6951 = vmul.f32 %v6887, %v5159
      %v6952 = vmul.f32 %v6888, %v5160
      %v6953 = vmul.f32 %v6889, %v5161
      %v6954 = vmul.f32 %v6890, %v5162
      %v6955 = vmul.f32 %v6891, %v5163
      %v6956 = vmul.f32 %v6892, %v5164
      %v6957 = vmul.f32 %v6893, %v5165
      %v6958 = vmul.f32 %v6894, %v5166
      %v6959 = vmul.f32 %v6895, %v5167
      %v6960 = vmul.f32 %v6896, %v5168
      %v6961 = vmul.f32 %v6897, %v5169
      %v6962 = vmul.f32 %v6898, %v5170
      %v6963 = vmul.f32 %v6899, %v5171
      %v6964 = vmul.f32 %v6900, %v5172
      %v6965 = vmul.f32 %v6901, %v5173
      %v6966 = vmul.f32 %v6902, %v5174
      %v6967 = vmul.f32 %v6903, %v5175
      %v6968 = vmul.f32 %v6904, %v5176
      %v6969 = vmul.f32 %v6905, %v5177
      %v6970 = vmul.f32 %v6906, %v5178
      %v6971 = vmul.f32 %v6907, %v5179
      %v6972 = vmul.f32 %v6908, 1.442695
      %v6973 = vpow.pop %v6972
      %v6974 = vmul.f32 %v6909, 1.442695
      %v6975 = vpow.pop %v6974
      %v6976 = vmul.f32 %v6910, 1.442695
      %v6977 = vpow.pop %v6976
      %v6978 = vmul.f32 %v6911, 1.442695
      %v6979 = vpow.pop %v6978
      %v6980 = vmul.f32 %v6912, 1.442695
      %v6981 = vpow.pop %v6980
      %v6982 = vmul.f32 %v6913, 1.442695
      %v6983 = vpow.pop %v6982
      %v6984 = vmul.f32 %v6914, 1.442695
      %v6985 = vpow.pop %v6984
      %v6986 = vmul.f32 %v6915, 1.442695
      %v6987 = vpow.pop %v6986
      %v6988 = vmul.f32 %v6916, 1.442695
      %v6989 = vpow.pop %v6988
      %v6990 = vmul.f32 %v6917, 1.442695
      %v6991 = vpow.pop %v6990
      %v6992 = vmul.f32 %v6918, 1.442695
      %v6993 = vpow.pop %v6992
      %v6994 = vmul.f32 %v6919, 1.442695
      %v6995 = vpow.pop %v6994
      %v6996 = vmul.f32 %v6920, 1.442695
      %v6997 = vpow.pop %v6996
      %v6998 = vmul.f32 %v6921, 1.442695
      %v6999 = vpow.pop %v6998
      %v7000 = vmul.f32 %v6922, 1.442695
      %v7001 = vpow.pop %v7000
      %v7002 = vmul.f32 %v6923, 1.442695
      %v7003 = vpow.pop %v7002
      %v7004 = vmul.f32 %v6924, 1.442695
      %v7005 = vpow.pop %v7004
      %v7006 = vmul.f32 %v6925, 1.442695
      %v7007 = vpow.pop %v7006
      %v7008 = vmul.f32 %v6926, 1.442695
      %v7009 = vpow.pop %v7008
      %v7010 = vmul.f32 %v6927, 1.442695
      %v7011 = vpow.pop %v7010
      %v7012 = vmul.f32 %v6928, 1.442695
      %v7013 = vpow.pop %v7012
      %v7014 = vmul.f32 %v6929, 1.442695
      %v7015 = vpow.pop %v7014
      %v7016 = vmul.f32 %v6930, 1.442695
      %v7017 = vpow.pop %v7016
      %v7018 = vmul.f32 %v6931, 1.442695
      %v7019 = vpow.pop %v7018
      %v7020 = vmul.f32 %v6932, 1.442695
      %v7021 = vpow.pop %v7020
      %v7022 = vmul.f32 %v6933, 1.442695
      %v7023 = vpow.pop %v7022
      %v7024 = vmul.f32 %v6934, 1.442695
      %v7025 = vpow.pop %v7024
      %v7026 = vmul.f32 %v6935, 1.442695
      %v7027 = vpow.pop %v7026
      %v7028 = vmul.f32 %v6936, 1.442695
      %v7029 = vpow.pop %v7028
      %v7030 = vmul.f32 %v6937, 1.442695
      %v7031 = vpow.pop %v7030
      %v7032 = vmul.f32 %v6938, 1.442695
      %v7033 = vpow.pop %v7032
      %v7034 = vmul.f32 %v6939, 1.442695
      %v7035 = vpow.pop %v7034
      %v7036 = vmul.f32 %v6940, 1.442695
      %v7037 = vpow.pop %v7036
      %v7038 = vmul.f32 %v6941, 1.442695
      %v7039 = vpow.pop %v7038
      %v7040 = vmul.f32 %v6942, 1.442695
      %v7041 = vpow.pop %v7040
      %v7042 = vmul.f32 %v6943, 1.442695
      %v7043 = vpow.pop %v7042
      %v7044 = vmul.f32 %v6944, 1.442695
      %v7045 = vpow.pop %v7044
      %v7046 = vmul.f32 %v6945, 1.442695
      %v7047 = vpow.pop %v7046
      %v7048 = vmul.f32 %v6946, 1.442695
      %v7049 = vpow.pop %v7048
      %v7050 = vmul.f32 %v6947, 1.442695
      %v7051 = vpow.pop %v7050
      %v7052 = vmul.f32 %v6948, 1.442695
      %v7053 = vpow.pop %v7052
      %v7054 = vmul.f32 %v6949, 1.442695
      %v7055 = vpow.pop %v7054
      %v7056 = vmul.f32 %v6950, 1.442695
      %v7057 = vpow.pop %v7056
      %v7058 = vmul.f32 %v6951, 1.442695
      %v7059 = vpow.pop %v7058
      %v7060 = vmul.f32 %v6952, 1.442695
      %v7061 = vpow.pop %v7060
      %v7062 = vmul.f32 %v6953, 1.442695
      %v7063 = vpow.pop %v7062
      %v7064 = vmul.f32 %v6954, 1.442695
      %v7065 = vpow.pop %v7064
      %v7066 = vmul.f32 %v6955, 1.442695
      %v7067 = vpow.pop %v7066
      %v7068 = vmul.f32 %v6956, 1.442695
      %v7069 = vpow.pop %v7068
      %v7070 = vmul.f32 %v6957, 1.442695
      %v7071 = vpow.pop %v7070
      %v7072 = vmul.f32 %v6958, 1.442695
      %v7073 = vpow.pop %v7072
      %v7074 = vmul.f32 %v6959, 1.442695
      %v7075 = vpow.pop %v7074
      %v7076 = vmul.f32 %v6960, 1.442695
      %v7077 = vpow.pop %v7076
      %v7078 = vmul.f32 %v6961, 1.442695
      %v7079 = vpow.pop %v7078
      %v7080 = vmul.f32 %v6962, 1.442695
      %v7081 = vpow.pop %v7080
      %v7082 = vmul.f32 %v6963, 1.442695
      %v7083 = vpow.pop %v7082
      %v7084 = vmul.f32 %v6964, 1.442695
      %v7085 = vpow.pop %v7084
      %v7086 = vmul.f32 %v6965, 1.442695
      %v7087 = vpow.pop %v7086
      %v7088 = vmul.f32 %v6966, 1.442695
      %v7089 = vpow.pop %v7088
      %v7090 = vmul.f32 %v6967, 1.442695
      %v7091 = vpow.pop %v7090
      %v7092 = vmul.f32 %v6968, 1.442695
      %v7093 = vpow.pop %v7092
      %v7094 = vmul.f32 %v6969, 1.442695
      %v7095 = vpow.pop %v7094
      %v7096 = vmul.f32 %v6970, 1.442695
      %v7097 = vpow.pop %v7096
      %v7098 = vmul.f32 %v6971, 1.442695
      %v7099 = vpow.pop %v7098
      %v7100 = vmul.f32 %v6780, %v6973
      %v7101 = vmul.f32 %v6781, %v6975
      %v7102 = vmul.f32 %v6782, %v6977
      %v7103 = vmul.f32 %v6783, %v6979
      %v7104 = vmul.f32 %v6784, %v6981
      %v7105 = vmul.f32 %v6785, %v6983
      %v7106 = vmul.f32 %v6786, %v6985
      %v7107 = vmul.f32 %v6787, %v6987
      %v7108 = vmul.f32 %v6788, %v6989
      %v7109 = vmul.f32 %v6789, %v6991
      %v7110 = vmul.f32 %v6790, %v6993
      %v7111 = vmul.f32 %v6791, %v6995
      %v7112 = vmul.f32 %v6792, %v6997
      %v7113 = vmul.f32 %v6793, %v6999
      %v7114 = vmul.f32 %v6794, %v7001
      %v7115 = vmul.f32 %v6795, %v7003
      %v7116 = vmul.f32 %v6796, %v7005
      %v7117 = vmul.f32 %v6797, %v7007
      %v7118 = vmul.f32 %v6798, %v7009
      %v7119 = vmul.f32 %v6799, %v7011
      %v7120 = vmul.f32 %v6800, %v7013
      %v7121 = vmul.f32 %v6801, %v7015
      %v7122 = vmul.f32 %v6802, %v7017
      %v7123 = vmul.f32 %v6803, %v7019
      %v7124 = vmul.f32 %v6804, %v7021
      %v7125 = vmul.f32 %v6805, %v7023
      %v7126 = vmul.f32 %v6806, %v7025
      %v7127 = vmul.f32 %v6807, %v7027
      %v7128 = vmul.f32 %v6808, %v7029
      %v7129 = vmul.f32 %v6809, %v7031
      %v7130 = vmul.f32 %v6810, %v7033
      %v7131 = vmul.f32 %v6811, %v7035
      %v7132 = vmul.f32 %v6812, %v7037
      %v7133 = vmul.f32 %v6813, %v7039
      %v7134 = vmul.f32 %v6814, %v7041
      %v7135 = vmul.f32 %v6815, %v7043
      %v7136 = vmul.f32 %v6816, %v7045
      %v7137 = vmul.f32 %v6817, %v7047
      %v7138 = vmul.f32 %v6818, %v7049
      %v7139 = vmul.f32 %v6819, %v7051
      %v7140 = vmul.f32 %v6820, %v7053
      %v7141 = vmul.f32 %v6821, %v7055
      %v7142 = vmul.f32 %v6822, %v7057
      %v7143 = vmul.f32 %v6823, %v7059
      %v7144 = vmul.f32 %v6824, %v7061
      %v7145 = vmul.f32 %v6825, %v7063
      %v7146 = vmul.f32 %v6826, %v7065
      %v7147 = vmul.f32 %v6827, %v7067
      %v7148 = vmul.f32 %v6828, %v7069
      %v7149 = vmul.f32 %v6829, %v7071
      %v7150 = vmul.f32 %v6830, %v7073
      %v7151 = vmul.f32 %v6831, %v7075
      %v7152 = vmul.f32 %v6832, %v7077
      %v7153 = vmul.f32 %v6833, %v7079
      %v7154 = vmul.f32 %v6834, %v7081
      %v7155 = vmul.f32 %v6835, %v7083
      %v7156 = vmul.f32 %v6836, %v7085
      %v7157 = vmul.f32 %v6837, %v7087
      %v7158 = vmul.f32 %v6838, %v7089
      %v7159 = vmul.f32 %v6839, %v7091
      %v7160 = vmul.f32 %v6840, %v7093
      %v7161 = vmul.f32 %v6841, %v7095
      %v7162 = vmul.f32 %v6842, %v7097
      %v7163 = vmul.f32 %v6843, %v7099
      %v7164 = vsub.f32 1.0, %v7100
      %v7165 = vsub.f32 1.0, %v7101
      %v7166 = vsub.f32 1.0, %v7102
      %v7167 = vsub.f32 1.0, %v7103
      %v7168 = vsub.f32 1.0, %v7104
      %v7169 = vsub.f32 1.0, %v7105
      %v7170 = vsub.f32 1.0, %v7106
      %v7171 = vsub.f32 1.0, %v7107
      %v7172 = vsub.f32 1.0, %v7108
      %v7173 = vsub.f32 1.0, %v7109
      %v7174 = vsub.f32 1.0, %v7110
      %v7175 = vsub.f32 1.0, %v7111
      %v7176 = vsub.f32 1.0, %v7112
      %v7177 = vsub.f32 1.0, %v7113
      %v7178 = vsub.f32 1.0, %v7114
      %v7179 = vsub.f32 1.0, %v7115
      %v7180 = vsub.f32 1.0, %v7116
      %v7181 = vsub.f32 1.0, %v7117
      %v7182 = vsub.f32 1.0, %v7118
      %v7183 = vsub.f32 1.0, %v7119
      %v7184 = vsub.f32 1.0, %v7120
      %v7185 = vsub.f32 1.0, %v7121
      %v7186 = vsub.f32 1.0, %v7122
      %v7187 = vsub.f32 1.0, %v7123
      %v7188 = vsub.f32 1.0, %v7124
      %v7189 = vsub.f32 1.0, %v7125
      %v7190 = vsub.f32 1.0, %v7126
      %v7191 = vsub.f32 1.0, %v7127
      %v7192 = vsub.f32 1.0, %v7128
      %v7193 = vsub.f32 1.0, %v7129
      %v7194 = vsub.f32 1.0, %v7130
      %v7195 = vsub.f32 1.0, %v7131
      %v7196 = vsub.f32 1.0, %v7132
      %v7197 = vsub.f32 1.0, %v7133
      %v7198 = vsub.f32 1.0, %v7134
      %v7199 = vsub.f32 1.0, %v7135
      %v7200 = vsub.f32 1.0, %v7136
      %v7201 = vsub.f32 1.0, %v7137
      %v7202 = vsub.f32 1.0, %v7138
      %v7203 = vsub.f32 1.0, %v7139
      %v7204 = vsub.f32 1.0, %v7140
      %v7205 = vsub.f32 1.0, %v7141
      %v7206 = vsub.f32 1.0, %v7142
      %v7207 = vsub.f32 1.0, %v7143
      %v7208 = vsub.f32 1.0, %v7144
      %v7209 = vsub.f32 1.0, %v7145
      %v7210 = vsub.f32 1.0, %v7146
      %v7211 = vsub.f32 1.0, %v7147
      %v7212 = vsub.f32 1.0, %v7148
      %v7213 = vsub.f32 1.0, %v7149
      %v7214 = vsub.f32 1.0, %v7150
      %v7215 = vsub.f32 1.0, %v7151
      %v7216 = vsub.f32 1.0, %v7152
      %v7217 = vsub.f32 1.0, %v7153
      %v7218 = vsub.f32 1.0, %v7154
      %v7219 = vsub.f32 1.0, %v7155
      %v7220 = vsub.f32 1.0, %v7156
      %v7221 = vsub.f32 1.0, %v7157
      %v7222 = vsub.f32 1.0, %v7158
      %v7223 = vsub.f32 1.0, %v7159
      %v7224 = vsub.f32 1.0, %v7160
      %v7225 = vsub.f32 1.0, %v7161
      %v7226 = vsub.f32 1.0, %v7162
      %v7227 = vsub.f32 1.0, %v7163
      %v7228 = vmul.f32 %v5052, %v7164
      %v7229 = vmul.f32 %v5053, %v7165
      %v7230 = vmul.f32 %v5054, %v7166
      %v7231 = vmul.f32 %v5055, %v7167
      %v7232 = vmul.f32 %v5056, %v7168
      %v7233 = vmul.f32 %v5057, %v7169
      %v7234 = vmul.f32 %v5058, %v7170
      %v7235 = vmul.f32 %v5059, %v7171
      %v7236 = vmul.f32 %v5060, %v7172
      %v7237 = vmul.f32 %v5061, %v7173
      %v7238 = vmul.f32 %v5062, %v7174
      %v7239 = vmul.f32 %v5063, %v7175
      %v7240 = vmul.f32 %v5064, %v7176
      %v7241 = vmul.f32 %v5065, %v7177
      %v7242 = vmul.f32 %v5066, %v7178
      %v7243 = vmul.f32 %v5067, %v7179
      %v7244 = vmul.f32 %v5068, %v7180
      %v7245 = vmul.f32 %v5069, %v7181
      %v7246 = vmul.f32 %v5070, %v7182
      %v7247 = vmul.f32 %v5071, %v7183
      %v7248 = vmul.f32 %v5072, %v7184
      %v7249 = vmul.f32 %v5073, %v7185
      %v7250 = vmul.f32 %v5074, %v7186
      %v7251 = vmul.f32 %v5075, %v7187
      %v7252 = vmul.f32 %v5076, %v7188
      %v7253 = vmul.f32 %v5077, %v7189
      %v7254 = vmul.f32 %v5078, %v7190
      %v7255 = vmul.f32 %v5079, %v7191
      %v7256 = vmul.f32 %v5080, %v7192
      %v7257 = vmul.f32 %v5081, %v7193
      %v7258 = vmul.f32 %v5082, %v7194
      %v7259 = vmul.f32 %v5083, %v7195
      %v7260 = vmul.f32 %v5084, %v7196
      %v7261 = vmul.f32 %v5085, %v7197
      %v7262 = vmul.f32 %v5086, %v7198
      %v7263 = vmul.f32 %v5087, %v7199
      %v7264 = vmul.f32 %v5088, %v7200
      %v7265 = vmul.f32 %v5089, %v7201
      %v7266 = vmul.f32 %v5090, %v7202
      %v7267 = vmul.f32 %v5091, %v7203
      %v7268 = vmul.f32 %v5092, %v7204
      %v7269 = vmul.f32 %v5093, %v7205
      %v7270 = vmul.f32 %v5094, %v7206
      %v7271 = vmul.f32 %v5095, %v7207
      %v7272 = vmul.f32 %v5096, %v7208
      %v7273 = vmul.f32 %v5097, %v7209
      %v7274 = vmul.f32 %v5098, %v7210
      %v7275 = vmul.f32 %v5099, %v7211
      %v7276 = vmul.f32 %v5100, %v7212
      %v7277 = vmul.f32 %v5101, %v7213
      %v7278 = vmul.f32 %v5102, %v7214
      %v7279 = vmul.f32 %v5103, %v7215
      %v7280 = vmul.f32 %v5104, %v7216
      %v7281 = vmul.f32 %v5105, %v7217
      %v7282 = vmul.f32 %v5106, %v7218
      %v7283 = vmul.f32 %v5107, %v7219
      %v7284 = vmul.f32 %v5108, %v7220
      %v7285 = vmul.f32 %v5109, %v7221
      %v7286 = vmul.f32 %v5110, %v7222
      %v7287 = vmul.f32 %v5111, %v7223
      %v7288 = vmul.f32 %v5112, %v7224
      %v7289 = vmul.f32 %v5113, %v7225
      %v7290 = vmul.f32 %v5114, %v7226
      %v7291 = vmul.f32 %v5115, %v7227
      %7292 = vmatpush.msra.mxu0 %v7243
      %7293 = vmatpush.msra.mxu0 %v7242
      %7294 = vmatpush.msra.mxu0 %v7241
      %7295 = vmatpush.msra.mxu0 %v7240
      %7296 = vmatpush.msra.mxu0 %v7239
      %7297 = vmatpush.msra.mxu0 %v7238
      %7298 = vmatpush.msra.mxu0 %v7237
      %7299 = vmatpush.msra.mxu0 %v7236
      %7300 = vmatpush.msra.mxu0 %v7235
      %7301 = vmatpush.msra.mxu0 %v7234
      %7302 = vmatpush.msra.mxu0 %v7233
      %7303 = vmatpush.msra.mxu0 %v7232
      %7304 = vmatpush.msra.mxu0 %v7231
      %7305 = vmatpush.msra.mxu0 %v7230
      %7306 = vmatpush.msra.mxu0 %v7229
      %7307 = vmatpush.msra.mxu0 %v7228
      %7308 = vmatmul.f32.gmra.mxu0 %v572
      %v7309 = vpop.f32.mrf.mxu0
      %v7310 = vadd.f32 0.0, %v7309
      %7311 = vdwg.mxu0
      %7312 = vmatpush.msra.mxu0 %v7259
      %7313 = vmatpush.msra.mxu0 %v7258
      %7314 = vmatpush.msra.mxu0 %v7257
      %7315 = vmatpush.msra.mxu0 %v7256
      %7316 = vmatpush.msra.mxu0 %v7255
      %7317 = vmatpush.msra.mxu0 %v7254
      %7318 = vmatpush.msra.mxu0 %v7253
      %7319 = vmatpush.msra.mxu0 %v7252
      %7320 = vmatpush.msra.mxu0 %v7251
      %7321 = vmatpush.msra.mxu0 %v7250
      %7322 = vmatpush.msra.mxu0 %v7249
      %7323 = vmatpush.msra.mxu0 %v7248
      %7324 = vmatpush.msra.mxu0 %v7247
      %7325 = vmatpush.msra.mxu0 %v7246
      %7326 = vmatpush.msra.mxu0 %v7245
      %7327 = vmatpush.msra.mxu0 %v7244
      %7328 = vmatmul.f32.gmra.mxu0 %v573
      %v7329 = vpop.f32.mrf.mxu0
      %v7330 = vadd.f32 %v7310, %v7329
      %7331 = vdwg.mxu0
      %7332 = vmatpush.msra.mxu0 %v7275
      %7333 = vmatpush.msra.mxu0 %v7274
      %7334 = vmatpush.msra.mxu0 %v7273
      %7335 = vmatpush.msra.mxu0 %v7272
      %7336 = vmatpush.msra.mxu0 %v7271
      %7337 = vmatpush.msra.mxu0 %v7270
      %7338 = vmatpush.msra.mxu0 %v7269
      %7339 = vmatpush.msra.mxu0 %v7268
      %7340 = vmatpush.msra.mxu0 %v7267
      %7341 = vmatpush.msra.mxu0 %v7266
      %7342 = vmatpush.msra.mxu0 %v7265
      %7343 = vmatpush.msra.mxu0 %v7264
      %7344 = vmatpush.msra.mxu0 %v7263
      %7345 = vmatpush.msra.mxu0 %v7262
      %7346 = vmatpush.msra.mxu0 %v7261
      %7347 = vmatpush.msra.mxu0 %v7260
      %7348 = vmatmul.f32.gmra.mxu0 %v574
      %v7349 = vpop.f32.mrf.mxu0
      %v7350 = vadd.f32 %v7330, %v7349
      %7351 = vdwg.mxu0
      %7352 = vmatpush.msra.mxu0 %v7291
      %7353 = vmatpush.msra.mxu0 %v7290
      %7354 = vmatpush.msra.mxu0 %v7289
      %7355 = vmatpush.msra.mxu0 %v7288
      %7356 = vmatpush.msra.mxu0 %v7287
      %7357 = vmatpush.msra.mxu0 %v7286
      %7358 = vmatpush.msra.mxu0 %v7285
      %7359 = vmatpush.msra.mxu0 %v7284
      %7360 = vmatpush.msra.mxu0 %v7283
      %7361 = vmatpush.msra.mxu0 %v7282
      %7362 = vmatpush.msra.mxu0 %v7281
      %7363 = vmatpush.msra.mxu0 %v7280
      %7364 = vmatpush.msra.mxu0 %v7279
      %7365 = vmatpush.msra.mxu0 %v7278
      %7366 = vmatpush.msra.mxu0 %v7277
      %7367 = vmatpush.msra.mxu0 %v7276
      %7368 = vmatmul.f32.gmra.mxu0 %v575
      %v7369 = vpop.f32.mrf.mxu0
      %v7370 = vadd.f32 %v7350, %v7369
      %7371 = vdwg.mxu0
      %vm7372 = vcmask 7168
      %7373 = vst.msk [vmem:[%s506] sm:$0xff] %vm7372, %v7370
      %p7374 = scmp.lt.s32.totalorder %s22, 2
      %s7375 = scalar_select %p7374, %s22, 2
      %s7376 = smul.addr %s7375, 8
      %s7377 = scalar_lea.vmem %s11, %s7376
      // Predicated region
      $region65: #{tpu_custom_call.1} parent=63 // pred_check
        %p7378 = pneg %p311
      $region66: #{tpu_custom_call.1} parent=63 // pred_check_branch
        %7380 = sbr.rel (%p7378) target = $region68
      $region67: #{tpu_custom_call.1} parent=63 // pred_region
        _
      $region68: #{tpu_custom_call.1} parent=63 // pred_fallthru
        _
    $region64: #{tpu_custom_call.1} parent=5 // pred_fallthru
      _
    %p7381 = scmp.le.s32.totalorder 2, %s17
    // Predicated region
    $region69: #{tpu_custom_call.1} parent=5 // pred_check
      %p7382 = pneg %p7381
    $region70: #{tpu_custom_call.1} parent=5 // pred_check_branch
      %7384 = sbr.rel (%p7382) target = $region72
    $region71: #{tpu_custom_call.1} parent=5 // pred_region
      %s7385 = ssub.s32 %s17, 2
      // Predicated region
      $region73: #{tpu_custom_call.1} parent=71 // pred_check
        %p7386 = pneg %p317
      $region74: #{tpu_custom_call.1} parent=71 // pred_check_branch
        %7388 = sbr.rel (%p7386) target = $region76
      $region75: #{tpu_custom_call.1} parent=71 // pred_region
        %p7389 = scmp.lt.s32.totalorder %s23, 2
        %s7390 = scalar_select %p7389, %s23, 2
        %s7391 = smul.addr %s7390, 8
        %s7392 = scalar_lea.vmem %s11, %s7391
      $region76: #{tpu_custom_call.1} parent=71 // pred_fallthru
        _
    $region72: #{tpu_custom_call.1} parent=5 // pred_fallthru
      _
  $region6: #{tpu_custom_call.1} parent=0 // loop_footer
    %s21 = sadd.s32 1, %s17
  $region7: #{tpu_custom_call.1} parent=0 // loop_footer_branch
    %16 = sbr.rel target = $region3
  $region8: #{tpu_custom_call.1} parent=0 // loop_exit
    _

</llo_original>
